<compile_context>
chip_gen: v7x
topology: tpu7x:2x2x1
jax: 0.10.0
libtpu: 0.0.40
codegen_flags: <defaults>
</compile_context>

<pallas_src>
import functools

import jax
import jax.numpy as jnp
from jax import lax
from jax.experimental import pallas as pl
from jax.experimental.pallas import tpu as pltpu


# ---------------------------------------------------------------------------
# Tile selection (VMEM-budget aware; tiles always divide the dimension).
# ---------------------------------------------------------------------------
_VMEM_BUDGET = 24 * 1024 * 1024   # target double-buffered footprint (all gens)
_VMEM_LIMIT = 40 * 1024 * 1024    # scoped VMEM limit handed to Mosaic


def _divisor_tiles(m):
    """Divisors of m that are multiples of 8 (plus m itself), descending."""
    cands = {m}
    for d in range(8, m + 1, 8):
        if m % d == 0:
            cands.add(d)
    return sorted(cands, reverse=True)


def _pick_matmul_tiles(m, k, n, n_a, has_extra, out_bytes):
    tn = 256 if n % 256 == 0 else n

    def footprint(tm, tn_):
        a = n_a * tm * k * 2                       # bf16 prologue summands
        b = k * tn_ * 2                            # bf16 weights
        e = (tm * tn_ * 2) if has_extra else 0     # bf16 epilogue operand
        o = tm * tn_ * out_bytes
        vec = 4 * (k + tn_) * 4                    # BN scale/shift rows (f32)
        return 2 * (a + b + e + o + vec)           # x2 for double buffering

    tiles = [t for t in _divisor_tiles(m) if footprint(t, tn) <= _VMEM_BUDGET]
    if not tiles:
        tiles = [_divisor_tiles(m)[-1]]
    tm = tiles[0]

    # v7x megacore: expose at least 2 parallel grid blocks when possible.
    if (m // tm) * (n // tn) < 2:
        half = m // 2
        if m % 2 == 0 and half % 8 == 0 and footprint(half, tn) <= _VMEM_BUDGET:
            tm = half
        elif tn % 256 == 0 and tn >= 256:
            tn //= 2
        else:
            proper = [t for t in tiles if t < m]
            if proper:
                tm = proper[0]
    return tm, tn


def _pick_eltwise_tile(m, c, itemsize=2, target_bytes=4 * 1024 * 1024):
    tiles = _divisor_tiles(m)
    ok = [t for t in tiles if t * c * itemsize <= target_bytes]
    if not ok:
        ok = [tiles[-1]]
    tm = ok[0]
    if m // tm < 2:                               # megacore: >= 2 blocks if possible
        half = m // 2
        if m % 2 == 0 and half % 8 == 0:
            tm = half
        else:
            proper = [t for t in ok if t < m]
            if proper:
                tm = proper[0]
    return tm


# ---------------------------------------------------------------------------
# Pallas kernels
# ---------------------------------------------------------------------------
def _fused_matmul_kernel(*refs, n_a, in_bn, out_bn, out_relu, epilogue):
    it = iter(refs)
    a_refs = [next(it) for _ in range(n_a)]
    b_ref = next(it)
    isc_ref = ish_ref = osc_ref = osh_ref = extra_ref = None
    if in_bn:
        isc_ref, ish_ref = next(it), next(it)
    if out_bn:
        osc_ref, osh_ref = next(it), next(it)
    if epilogue is not None:
        extra_ref = next(it)
    o_ref = next(it)

    # Prologue: optional multi-operand sum + BN + ReLU (f32 math, bf16 to MXU).
    if n_a == 1 and not in_bn:
        a = a_refs[0][...]
    else:
        a = a_refs[0][...].astype(jnp.float32)
        for r in a_refs[1:]:
            a = a + r[...].astype(jnp.float32)
        if in_bn:
            a = jnp.maximum(a * isc_ref[...] + ish_ref[...], 0.0)
        a = a.astype(jnp.bfloat16)

    # Single K step: no accumulator scratch needed.
    y = jnp.dot(a, b_ref[...], preferred_element_type=jnp.float32)

    if out_bn:
        y = y * osc_ref[...] + osh_ref[...]
    if out_relu:
        y = jnp.maximum(y, 0.0)
    if epilogue == "add":
        y = y + extra_ref[...].astype(jnp.float32)
    elif epilogue == "mask":
        # sigmoid via EUP exp + approx reciprocal (below bf16 output precision).
        sig = pl.reciprocal(1.0 + jnp.exp(-y), approx=True)
        y = (1.0 + sig) * extra_ref[...].astype(jnp.float32)
    o_ref[...] = y.astype(o_ref.dtype)


def _bn_relu_kernel(x_ref, s_ref, b_ref, o_ref):
    y = x_ref[...].astype(jnp.float32) * s_ref[...] + b_ref[...]
    o_ref[...] = jnp.maximum(y, 0.0).astype(o_ref.dtype)


def _addn_kernel(*refs):
    o_ref = refs[-1]
    y = refs[0][...].astype(jnp.float32)
    for r in refs[1:-1]:
        y = y + r[...].astype(jnp.float32)
    o_ref[...] = y.astype(o_ref.dtype)


# ---------------------------------------------------------------------------
# Pallas launchers
# ---------------------------------------------------------------------------
def _fused_matmul(a, b, *, in_scale=None, in_shift=None,
                  out_scale=None, out_shift=None, out_relu=False,
                  epilogue=None, extra=None, out_dtype=jnp.bfloat16):
    a_list = list(a) if isinstance(a, (list, tuple)) else [a]
    m, k = a_list[0].shape
    k2, n = b.shape
    assert k == k2
    in_bn = in_scale is not None
    out_bn = out_scale is not None
    out_bytes = jnp.dtype(out_dtype).itemsize
    tm, tn = _pick_matmul_tiles(m, k, n, len(a_list), extra is not None, out_bytes)

    operands = [x.astype(jnp.bfloat16) for x in a_list] + [b.astype(jnp.bfloat16)]
    in_specs = [pl.BlockSpec((tm, k), lambda i, j: (i, 0)) for _ in a_list]
    in_specs.append(pl.BlockSpec((k, tn), lambda i, j: (0, j)))
    if in_bn:
        operands += [in_scale.reshape(1, k).astype(jnp.float32),
                     in_shift.reshape(1, k).astype(jnp.float32)]
        in_specs += [pl.BlockSpec((1, k), lambda i, j: (0, 0))] * 2
    if out_bn:
        operands += [out_scale.reshape(1, n).astype(jnp.float32),
                     out_shift.reshape(1, n).astype(jnp.float32)]
        in_specs += [pl.BlockSpec((1, tn), lambda i, j: (0, j))] * 2
    if epilogue is not None:
        operands.append(extra.astype(jnp.bfloat16))
        in_specs.append(pl.BlockSpec((tm, tn), lambda i, j: (i, j)))

    kernel = functools.partial(_fused_matmul_kernel, n_a=len(a_list), in_bn=in_bn,
                               out_bn=out_bn, out_relu=out_relu, epilogue=epilogue)
    return pl.pallas_call(
        kernel,
        out_shape=jax.ShapeDtypeStruct((m, n), out_dtype),
        grid_spec=pltpu.PrefetchScalarGridSpec(
            num_scalar_prefetch=0,
            grid=(m // tm, n // tn),
            in_specs=in_specs,
            out_specs=pl.BlockSpec((tm, tn), lambda i, j: (i, j))),
        compiler_params=pltpu.CompilerParams(
            dimension_semantics=("parallel", "parallel"),
            vmem_limit_bytes=_VMEM_LIMIT),
    )(*operands)


def _eltwise(kernel, out_dtype, *arrays):
    m, c = arrays[0].shape
    tm = _pick_eltwise_tile(m, c, itemsize=arrays[0].dtype.itemsize)
    in_specs = []
    for arr in arrays:
        if arr.shape[0] == 1:                      # per-channel scale / shift
            in_specs.append(pl.BlockSpec((1, c), lambda i: (0, 0)))
        else:
            in_specs.append(pl.BlockSpec((tm, c), lambda i: (i, 0)))
    return pl.pallas_call(
        kernel,
        out_shape=jax.ShapeDtypeStruct((m, c), out_dtype),
        grid_spec=pltpu.PrefetchScalarGridSpec(
            num_scalar_prefetch=0, grid=(m // tm,),
            in_specs=in_specs,
            out_specs=pl.BlockSpec((tm, c), lambda i: (i, 0))),
        compiler_params=pltpu.CompilerParams(
            dimension_semantics=("parallel",),
            vmem_limit_bytes=_VMEM_LIMIT),
    )(*arrays)


# ---------------------------------------------------------------------------
# Non-Pallas glue (data movement / small XLA ops)
# ---------------------------------------------------------------------------
def _conv_spatial(x, w, *, stride, padding):
    # 3x3 / 7x7 conv via XLA (bf16 operands, f32 accumulate) -- see TODO above.
    out = lax.conv_general_dilated(
        x, w, window_strides=(stride, stride),
        padding=((padding, padding), (padding, padding)),
        dimension_numbers=("NHWC", "HWIO", "NHWC"),
        preferred_element_type=jnp.float32)
    return out.astype(jnp.bfloat16)


def _maxpool_impl(x):
    # nn.MaxPool2d(kernel_size=3, stride=2, padding=1)
    return lax.reduce_window(x, jnp.array(-jnp.inf, x.dtype), lax.max,
                             (1, 3, 3, 1), (1, 2, 2, 1),
                             ((0, 0), (1, 1), (1, 1), (0, 0)))


_maxpool = jax.jit(_maxpool_impl)


def _interp_matrix(n_in, n_out):
    # align_corners=True bilinear (UpsamplingBilinear2d) as (n_out, n_in) tent.
    if n_out == 1 or n_in == 1:
        return jnp.ones((n_out, n_in), jnp.float32) / n_in
    src = jnp.arange(n_out, dtype=jnp.float32) * ((n_in - 1) / (n_out - 1))
    j = jnp.arange(n_in, dtype=jnp.float32)
    return jnp.maximum(0.0, 1.0 - jnp.abs(src[:, None] - j[None, :]))


@functools.partial(jax.jit, static_argnames=("out_h", "out_w"))
def _upsample(x, *, out_h, out_w):
    # Separable bilinear upsample as two small dense interpolation matmuls.
    n, h, w, c = x.shape
    if h == out_h and w == out_w:
        return x
    rh = _interp_matrix(h, out_h).astype(jnp.bfloat16)
    rw = _interp_matrix(w, out_w).astype(jnp.bfloat16)
    y = jnp.einsum("oh,nhwc->nowc", rh, x,
                   preferred_element_type=jnp.float32).astype(jnp.bfloat16)
    y = jnp.einsum("pw,nowc->nopc", rw, y, preferred_element_type=jnp.float32)
    return y.astype(jnp.bfloat16)


# ---------------------------------------------------------------------------
# Jitted model pieces (cached per shape; each contains a few Pallas calls)
# ---------------------------------------------------------------------------
@functools.partial(jax.jit, static_argnames=("stride",))
def _residual_block(x, p, *, stride):
    n, h, w, cin = x.shape
    mid = p['w1'].shape[1]
    cout = p['w3'].shape[1]
    s1, b1 = p['bn1']
    s2, b2 = p['bn2']
    s3, b3 = p['bn3']
    x2d = x.reshape(n * h * w, cin)

    # 1x1 conv1 with fused BN1+ReLU prologue and BN2+ReLU epilogue.
    y = _fused_matmul(x2d, p['w1'], in_scale=s1, in_shift=b1,
                      out_scale=s2, out_shift=b2, out_relu=True)
    # 3x3 conv2 (stride s) -- XLA spatial conv.
    y = _conv_spatial(y.reshape(n, h, w, mid), p['w2'], stride=stride, padding=1)
    _, ho, wo, _ = y.shape
    m = n * ho * wo

    # Residual branch: 1x1 projection (fused BN1+ReLU prologue) or identity.
    if 'w4' in p:
        xr = x if stride == 1 else x[:, ::stride, ::stride, :]
        res = _fused_matmul(xr.reshape(m, cin), p['w4'], in_scale=s1, in_shift=b1)
    else:
        res = x2d

    # 1x1 conv3 with fused BN3+ReLU prologue and residual-add epilogue.
    out = _fused_matmul(y.reshape(m, mid), p['w3'], in_scale=s3, in_shift=b3,
                        epilogue="add", extra=res)
    return out.reshape(n, ho, wo, cout)


@jax.jit
def _mask_apply(x_parts, p, trunk):
    # BN-ReLU-1x1-BN-ReLU-1x1-sigmoid mask head fused with (1+M)*trunk.
    # x_parts is a list of summands (the up-sampled branch + trunk), summed in
    # the first matmul's prologue so the intermediate sum never hits HBM.
    n, h, w, c = trunk.shape
    m = n * h * w
    parts = [xp.reshape(m, c) for xp in x_parts]
    s1, b1 = p['bn1']
    s2, b2 = p['bn2']
    y = _fused_matmul(parts, p['w1'], in_scale=s1, in_shift=b1,
                      out_scale=s2, out_shift=b2, out_relu=True)
    out = _fused_matmul(y, p['w2'], epilogue="mask", extra=trunk.reshape(m, c))
    return out.reshape(n, h, w, c)


@jax.jit
def _add3(a, b, d):
    c = a.shape[-1]
    y = _eltwise(_addn_kernel, jnp.bfloat16,
                 a.reshape(-1, c), b.reshape(-1, c), d.reshape(-1, c))
    return y.reshape(a.shape)


@jax.jit
def _stem(x_nchw, w7, bn_s, bn_b):
    x = jnp.transpose(x_nchw, (0, 2, 3, 1)).astype(jnp.bfloat16)  # NCHW -> NHWC
    x = _conv_spatial(x, w7, stride=2, padding=3)                 # 224 -> 112
    n, h, w, c = x.shape
    # Lane-dense BN+ReLU: view the C=64 activation as 128-wide rows.
    x2 = x.reshape(n * h * w // 2, 2 * c)
    s2 = jnp.tile(bn_s, (1, 2))
    b2 = jnp.tile(bn_b, (1, 2))
    y = _eltwise(_bn_relu_kernel, jnp.bfloat16, x2, s2, b2)
    y = y.reshape(n, h, w, c)
    return _maxpool_impl(y)                                       # 112 -> 56


@jax.jit
def _head(x, bn_s, bn_b, fc_w, fc_b):
    n, h, w, c = x.shape
    y = _eltwise(_bn_relu_kernel, jnp.float32, x.reshape(n * h * w, c), bn_s, bn_b)
    # AvgPool2d(kernel_size=7, stride=1) over the final 7x7 map == global mean.
    y = y.reshape(n, h * w, c).mean(axis=1)
    ones = jnp.ones((1, fc_w.shape[1]), jnp.float32)
    return _fused_matmul(y, fc_w,
                         out_scale=ones, out_shift=fc_b,   # fc bias via epilogue
                         out_dtype=jnp.float32)


# ---------------------------------------------------------------------------
# Deterministic synthetic parameters
# ---------------------------------------------------------------------------
class _ParamGen:
    def __init__(self, seed):
        self._key = jax.random.PRNGKey(seed)

    def _next(self):
        self._key, k = jax.random.split(self._key)
        return k

    def conv_spatial(self, kh, kw, cin, cout):
        std = (2.0 / (kh * kw * cin)) ** 0.5
        w = std * jax.random.normal(self._next(), (kh, kw, cin, cout), jnp.float32)
        return w.astype(jnp.bfloat16)

    def conv1x1(self, cin, cout):
        std = (2.0 / cin) ** 0.5
        w = std * jax.random.normal(self._next(), (cin, cout), jnp.float32)
        return w.astype(jnp.bfloat16)

    def bn(self, c):
        # Inference-mode BN folded to scale/shift once (f32).
        g = 1.0 + 0.1 * jax.random.normal(self._next(), (1, c), jnp.float32)
        b = 0.1 * jax.random.normal(self._next(), (1, c), jnp.float32)
        m = 0.1 * jax.random.normal(self._next(), (1, c), jnp.float32)
        v = 1.0 + 0.5 * jax.random.uniform(self._next(), (1, c), jnp.float32)
        scale = g * lax.rsqrt(v + 1e-5)
        shift = b - m * scale
        return (scale, shift)

    def linear(self, cin, cout):
        lim = 1.0 / (cin ** 0.5)
        w = jax.random.uniform(self._next(), (cin, cout), jnp.float32, -lim, lim)
        b = jax.random.uniform(self._next(), (cout,), jnp.float32, -lim, lim)
        return w.astype(jnp.bfloat16), b


def make_residual_block(pg, cin, cout, stride=1):
    p = dict(bn1=pg.bn(cin), w1=pg.conv1x1(cin, cout // 4),
             bn2=pg.bn(cout // 4), w2=pg.conv_spatial(3, 3, cout // 4, cout // 4),
             bn3=pg.bn(cout // 4), w3=pg.conv1x1(cout // 4, cout))
    if cin != cout or stride != 1:
        p['w4'] = pg.conv1x1(cin, cout)
    return p


def make_mask_head(pg, c):
    return dict(bn1=pg.bn(c), w1=pg.conv1x1(c, c),
                bn2=pg.bn(c), w2=pg.conv1x1(c, c))


# ------------------------- AttentionModule stage 1 -------------------------
def make_attention_stage1(pg, cin, cout):
    return dict(
        first=make_residual_block(pg, cin, cout),
        trunk=[make_residual_block(pg, cin, cout), make_residual_block(pg, cin, cout)],
        softmax1=make_residual_block(pg, cin, cout),
        skip1=make_residual_block(pg, cin, cout),
        softmax2=make_residual_block(pg, cin, cout),
        skip2=make_residual_block(pg, cin, cout),
        softmax3=[make_residual_block(pg, cin, cout), make_residual_block(pg, cin, cout)],
        softmax4=make_residual_block(pg, cin, cout),
        softmax5=make_residual_block(pg, cin, cout),
        mask=make_mask_head(pg, cout),
        last=make_residual_block(pg, cin, cout),
    )


def attention_stage1(x, p):
    x = _residual_block(x, p['first'], stride=1)
    trunk = _residual_block(_residual_block(x, p['trunk'][0], stride=1),
                            p['trunk'][1], stride=1)
    m1 = _maxpool(x)
    s1 = _residual_block(m1, p['softmax1'], stride=1)
    skip1 = _residual_block(s1, p['skip1'], stride=1)
    m2 = _maxpool(s1)
    s2 = _residual_block(m2, p['softmax2'], stride=1)
    skip2 = _residual_block(s2, p['skip2'], stride=1)
    m3 = _maxpool(s2)
    s3 = _residual_block(_residual_block(m3, p['softmax3'][0], stride=1),
                         p['softmax3'][1], stride=1)
    up3 = _upsample(s3, out_h=s2.shape[1], out_w=s2.shape[2])
    out = _add3(up3, s2, skip2)
    s4 = _residual_block(out, p['softmax4'], stride=1)
    up2 = _upsample(s4, out_h=s1.shape[1], out_w=s1.shape[2])
    out = _add3(up2, s1, skip1)
    s5 = _residual_block(out, p['softmax5'], stride=1)
    up1 = _upsample(s5, out_h=trunk.shape[1], out_w=trunk.shape[2])
    out = _mask_apply([up1, trunk], p['mask'], trunk)   # fused (up1+trunk) sum
    return _residual_block(out, p['last'], stride=1)


# ------------------------- AttentionModule stage 2 -------------------------
def make_attention_stage2(pg, cin, cout):
    return dict(
        first=make_residual_block(pg, cin, cout),
        trunk=[make_residual_block(pg, cin, cout), make_residual_block(pg, cin, cout)],
        softmax1=make_residual_block(pg, cin, cout),
        skip1=make_residual_block(pg, cin, cout),
        softmax2=[make_residual_block(pg, cin, cout), make_residual_block(pg, cin, cout)],
        softmax3=make_residual_block(pg, cin, cout),
        mask=make_mask_head(pg, cout),
        last=make_residual_block(pg, cin, cout),
    )


def attention_stage2(x, p):
    x = _residual_block(x, p['first'], stride=1)
    trunk = _residual_block(_residual_block(x, p['trunk'][0], stride=1),
                            p['trunk'][1], stride=1)
    m1 = _maxpool(x)
    s1 = _residual_block(m1, p['softmax1'], stride=1)
    skip1 = _residual_block(s1, p['skip1'], stride=1)
    m2 = _maxpool(s1)
    s2 = _residual_block(_residual_block(m2, p['softmax2'][0], stride=1),
                         p['softmax2'][1], stride=1)
    up2 = _upsample(s2, out_h=s1.shape[1], out_w=s1.shape[2])
    out = _add3(up2, s1, skip1)
    s3 = _residual_block(out, p['softmax3'], stride=1)
    up1 = _upsample(s3, out_h=trunk.shape[1], out_w=trunk.shape[2])
    out = _mask_apply([up1, trunk], p['mask'], trunk)
    return _residual_block(out, p['last'], stride=1)


# ------------------------- AttentionModule stage 3 -------------------------
def make_attention_stage3(pg, cin, cout):
    return dict(
        first=make_residual_block(pg, cin, cout),
        trunk=[make_residual_block(pg, cin, cout), make_residual_block(pg, cin, cout)],
        softmax1=[make_residual_block(pg, cin, cout), make_residual_block(pg, cin, cout)],
        mask=make_mask_head(pg, cout),
        last=make_residual_block(pg, cin, cout),
    )


def attention_stage3(x, p):
    x = _residual_block(x, p['first'], stride=1)
    trunk = _residual_block(_residual_block(x, p['trunk'][0], stride=1),
                            p['trunk'][1], stride=1)
    m1 = _maxpool(x)
    s1 = _residual_block(_residual_block(m1, p['softmax1'][0], stride=1),
                         p['softmax1'][1], stride=1)
    up1 = _upsample(s1, out_h=trunk.shape[1], out_w=trunk.shape[2])
    out = _mask_apply([up1, trunk], p['mask'], trunk)
    return _residual_block(out, p['last'], stride=1)


# --------------------------- full model ------------------------------------
def make_model_params(seed=0):
    pg = _ParamGen(seed)
    P = dict(
        conv1=pg.conv_spatial(7, 7, 3, 64),
        bn1=pg.bn(64),
        rb1=make_residual_block(pg, 64, 256),
        att1=make_attention_stage1(pg, 256, 256),
        rb2=make_residual_block(pg, 256, 512, stride=2),
        att2=make_attention_stage2(pg, 512, 512),
        rb3=make_residual_block(pg, 512, 1024, stride=2),
        att3=make_attention_stage3(pg, 1024, 1024),
        rb4=make_residual_block(pg, 1024, 2048, stride=2),
        rb5=make_residual_block(pg, 2048, 2048),
        rb6=make_residual_block(pg, 2048, 2048),
        bn_final=pg.bn(2048),
    )
    P['fc_w'], P['fc_b'] = pg.linear(2048, 10)
    return P


def model_forward(x_nchw, P):
    x = _stem(x_nchw, P['conv1'], *P['bn1'])             # 224 -> 56, C=64
    x = _residual_block(x, P['rb1'], stride=1)
    x = attention_stage1(x, P['att1'])
    x = _residual_block(x, P['rb2'], stride=2)            # 56 -> 28
    x = attention_stage2(x, P['att2'])
    x = _residual_block(x, P['rb3'], stride=2)            # 28 -> 14
    x = attention_stage3(x, P['att3'])
    x = _residual_block(x, P['rb4'], stride=2)            # 14 -> 7
    x = _residual_block(x, P['rb5'], stride=1)
    x = _residual_block(x, P['rb6'], stride=1)
    return _head(x, *P['bn_final'], P['fc_w'], P['fc_b'])


if __name__ == "__main__":
    # The architecture (AvgPool2d(7) feeding Linear(2048, 10) after five
    # stride-2 reductions) implies a 224x224 RGB input; batch kept small.
    key = jax.random.PRNGKey(0)
    x = jax.random.normal(key, (2, 3, 224, 224), jnp.float32)
    params = make_model_params(seed=0)
    logits = model_forward(x, params)
    logits = jax.block_until_ready(logits)
    assert logits.shape == (2, 10), logits.shape
    assert bool(jnp.all(jnp.isfinite(logits)))
    print("KERNEL_OK")
</pallas_src>

<mosaic_0001>
module attributes {stable_mosaic.version = 11 : i64} {
  func.func @_bn_relu_kernel(%arg0: i32, %arg1: memref<6272x128xbf16, #tpu.memory_space<vmem>>, %arg2: memref<1x128xf32, #tpu.memory_space<vmem>>, %arg3: memref<1x128xf32, #tpu.memory_space<vmem>>, %arg4: memref<6272x128xbf16, #tpu.memory_space<vmem>>) attributes {dimension_semantics = [#tpu.dimension_semantics<parallel>], iteration_bounds = array<i64: 2>, scalar_prefetch = 0 : i64, scratch_operands = 0 : i64, tpu.core_type = #tpu.core_type<tc>, window_params = [{transform_indices = @transform_0, window_bounds = array<i64: 6272, 128>}, {pipeline_mode = #tpu.pipeline_mode<synchronous>, transform_indices = @transform_1, window_bounds = array<i64: 1, 128>}, {pipeline_mode = #tpu.pipeline_mode<synchronous>, transform_indices = @transform_2, window_bounds = array<i64: 1, 128>}, {transform_indices = @transform_3, window_bounds = array<i64: 6272, 128>}]} {
    %c0 = arith.constant 0 : index
    %c0_0 = arith.constant 0 : index
    %0 = vector.load %arg1[%c0, %c0_0] : memref<6272x128xbf16, #tpu.memory_space<vmem>>, vector<6272x128xbf16>
    %1 = arith.extf %0 : vector<6272x128xbf16> to vector<6272x128xf32>
    %c0_1 = arith.constant 0 : index
    %c0_2 = arith.constant 0 : index
    %2 = vector.load %arg2[%c0_1, %c0_2] : memref<1x128xf32, #tpu.memory_space<vmem>>, vector<1x128xf32>
    %3 = vector.broadcast %2 : vector<1x128xf32> to vector<6272x128xf32>
    %4 = arith.mulf %1, %3 : vector<6272x128xf32>
    %c0_3 = arith.constant 0 : index
    %c0_4 = arith.constant 0 : index
    %5 = vector.load %arg3[%c0_3, %c0_4] : memref<1x128xf32, #tpu.memory_space<vmem>>, vector<1x128xf32>
    %6 = vector.broadcast %5 : vector<1x128xf32> to vector<6272x128xf32>
    %7 = arith.addf %4, %6 : vector<6272x128xf32>
    %cst = arith.constant 0.000000e+00 : f32
    %8 = vector.broadcast %cst : f32 to vector<6272x128xf32>
    %9 = arith.maximumf %7, %8 : vector<6272x128xf32>
    %10 = arith.truncf %9 : vector<6272x128xf32> to vector<6272x128xbf16>
    %c0_5 = arith.constant 0 : index
    %c0_6 = arith.constant 0 : index
    %11 = vector.load %arg4[%c0_5, %c0_6] : memref<6272x128xbf16, #tpu.memory_space<vmem>>, vector<6272x128xbf16>
    tpu.vector_store %arg4[%c0_5, %c0_6], %10 {strides = array<i32>} : memref<6272x128xbf16, #tpu.memory_space<vmem>>, vector<6272x128xbf16>,
    return
  }
  func.func @transform_0(%arg0: i32) -> (i32, i32) {
    %c0_i32 = arith.constant 0 : i32
    %c0_i32_0 = arith.constant 0 : i32
    return %arg0, %c0_i32 : i32, i32
  }
  func.func @transform_1(%arg0: i32) -> (i32, i32) {
    %c0_i32 = arith.constant 0 : i32
    %c0_i32_0 = arith.constant 0 : i32
    %c0_i32_1 = arith.constant 0 : i32
    return %c0_i32, %c0_i32_0 : i32, i32
  }
  func.func @transform_2(%arg0: i32) -> (i32, i32) {
    %c0_i32 = arith.constant 0 : i32
    %c0_i32_0 = arith.constant 0 : i32
    %c0_i32_1 = arith.constant 0 : i32
    return %c0_i32, %c0_i32_0 : i32, i32
  }
  func.func @transform_3(%arg0: i32) -> (i32, i32) {
    %c0_i32 = arith.constant 0 : i32
    %c0_i32_0 = arith.constant 0 : i32
    return %arg0, %c0_i32 : i32, i32
  }
}

</mosaic_0001>

<llo_original>
// kernel: _stem.1
$region0: #{_stem.1}
  #allocation0 [shape = 'u32[]', space=smem, size = 0x4, offset = 0x4, fixed_abs, tag = 'smem constant byte address 0x4 - core index']
  #allocation1 [shape = 'u32[144,128]{1,0:T(1,128)}', space=vmem, size = 0x12000, scoped, tag = 'internal scratch']
  %s0 = inlined_call_operand.vmem [shape: bf16[12544,128], index: 0, kind: input, shape index: {}]
  %s1 = inlined_call_operand.vmem [shape: f32[1,128], index: 1, kind: input, shape index: {}]
  %s2 = inlined_call_operand.vmem [shape: f32[1,128], index: 2, kind: input, shape index: {}]
  %s3 = inlined_call_operand.vmem [shape: bf16[12544,128], index: 3, kind: output, shape index: {}]
  %s4 = sld [smem:[#allocation0]]
  $region45: #{_stem.1} parent=0
    _
  %s6 = ssub.s32 1, %s4
  %s7 = scalar_select 0, %s6, %s4
  loop: start=0, step=1, limit=4
  $region2: #{_stem.1} parent=0 // loop_pre_header
    _
  $region3: #{_stem.1} parent=0 // loop_header
    %s9 = sphi 0, %s13
    %p10 = scmp.ge.s32.totalorder %s9, 4
    %s19 = sphi 0, %s21
    %s22 = sphi 0, %s19
    %s23 = sphi 0, %s22
    %s39 = sphi 0, %s23
    %s43 = sphi 0, %s43
    %s45 = sphi 0, %s43
    %s46 = sphi 0, %s45
    %s60 = sphi 0, %s46
    %s64 = sphi 0, %s64
    %s66 = sphi 0, %s64
    %s67 = sphi 0, %s66
    %s81 = sphi 0, %s67
    %s87 = sphi 0, %s89
    %s90 = sphi 0, %s87
    %s91 = sphi 0, %s90
    %s107 = sphi 0, %s91
  $region4: #{_stem.1} parent=0 // loop_header_branch
    %12 = sbr.rel (%p10) target = $region8
  $region5: #{_stem.1} parent=0 // loop_body
    %s14 = ssub.s32 %s9, 1
    %s15 = ssub.s32 %s9, 2
    %s16 = sadd.s32 %s9, 1
    %s17 = ssub.s32 %s9, %s16
    %p18 = scmp.eq.s32.totalorder %s17, 0
    %s20 = sadd.s32 %s19, 1
    %s21 = scalar_select %p18, %s19, %s20
    %p24 = pneg %p18
    %p25 = scmp.eq.s32.totalorder %s9, 1
    %p26 = por %p24, %p25
    %p27 = scmp.ne.s32.totalorder %s19, %s22
    %p28 = scmp.eq.s32.totalorder %s9, 0
    %p29 = por %p27, %p28
    %p30 = scmp.ne.s32.totalorder %s19, %s22
    %p31 = scmp.eq.s32.totalorder %s14, 1
    %p32 = por %p30, %p31
    %p33 = scmp.ne.s32.totalorder %s22, %s23
    %p34 = scmp.eq.s32.totalorder %s14, 0
    %p35 = por %p33, %p34
    %p36 = scmp.ne.s32.totalorder %s22, %s23
    %p37 = scmp.eq.s32.totalorder %s15, 1
    %p38 = por %p36, %p37
    %p40 = scmp.ne.s32.totalorder %s23, %s39
    %p41 = scmp.eq.s32.totalorder %s15, 0
    %p42 = por %p40, %p41
    %s44 = sadd.s32 %s43, 1
    %p47 = scmp.eq.s32.totalorder %s9, 1
    %p48 = scmp.ne.s32.totalorder %s43, %s45
    %p49 = scmp.eq.s32.totalorder %s9, 0
    %p50 = por %p48, %p49
    %p51 = scmp.ne.s32.totalorder %s43, %s45
    %p52 = scmp.eq.s32.totalorder %s14, 1
    %p53 = por %p51, %p52
    %p54 = scmp.ne.s32.totalorder %s45, %s46
    %p55 = scmp.eq.s32.totalorder %s14, 0
    %p56 = por %p54, %p55
    %p57 = scmp.ne.s32.totalorder %s45, %s46
    %p58 = scmp.eq.s32.totalorder %s15, 1
    %p59 = por %p57, %p58
    %p61 = scmp.ne.s32.totalorder %s46, %s60
    %p62 = scmp.eq.s32.totalorder %s15, 0
    %p63 = por %p61, %p62
    %s65 = sadd.s32 %s64, 1
    %p68 = scmp.eq.s32.totalorder %s9, 1
    %p69 = scmp.ne.s32.totalorder %s64, %s66
    %p70 = scmp.eq.s32.totalorder %s9, 0
    %p71 = por %p69, %p70
    %p72 = scmp.ne.s32.totalorder %s64, %s66
    %p73 = scmp.eq.s32.totalorder %s14, 1
    %p74 = por %p72, %p73
    %p75 = scmp.ne.s32.totalorder %s66, %s67
    %p76 = scmp.eq.s32.totalorder %s14, 0
    %p77 = por %p75, %p76
    %p78 = scmp.ne.s32.totalorder %s66, %s67
    %p79 = scmp.eq.s32.totalorder %s15, 1
    %p80 = por %p78, %p79
    %p82 = scmp.ne.s32.totalorder %s67, %s81
    %p83 = scmp.eq.s32.totalorder %s15, 0
    %p84 = por %p82, %p83
    %s85 = ssub.s32 %s9, %s16
    %p86 = scmp.eq.s32.totalorder %s85, 0
    %s88 = sadd.s32 %s87, 1
    %s89 = scalar_select %p86, %s87, %s88
    %p92 = pneg %p86
    %p93 = scmp.eq.s32.totalorder %s9, 1
    %p94 = por %p92, %p93
    %p95 = scmp.ne.s32.totalorder %s87, %s90
    %p96 = scmp.eq.s32.totalorder %s9, 0
    %p97 = por %p95, %p96
    %p98 = scmp.ne.s32.totalorder %s87, %s90
    %p99 = scmp.eq.s32.totalorder %s14, 1
    %p100 = por %p98, %p99
    %p101 = scmp.ne.s32.totalorder %s90, %s91
    %p102 = scmp.eq.s32.totalorder %s14, 0
    %p103 = por %p101, %p102
    %p104 = scmp.ne.s32.totalorder %s90, %s91
    %p105 = scmp.eq.s32.totalorder %s15, 1
    %p106 = por %p104, %p105
    %p108 = scmp.ne.s32.totalorder %s91, %s107
    %p109 = scmp.eq.s32.totalorder %s15, 0
    %p110 = por %p108, %p109
    %p111 = scmp.le.s32.totalorder 1, %s9
    %p112 = scmp.lt.s32.totalorder %s9, 3
    %p113 = pnand %p111, %p112
    %p114 = pneg %p113
    // Predicated region
    $region9: #{_stem.1} parent=5 // pred_check
      _
    $region10: #{_stem.1} parent=5 // pred_check_branch
      %116 = sbr.rel (%p113) target = $region12
    $region11: #{_stem.1} parent=5 // pred_region
      %s117 = ssub.s32 %s9, 1
      // Predicated region
      $region13: #{_stem.1} parent=11 // pred_check
        %p118 = pneg %p56
      $region14: #{_stem.1} parent=11 // pred_check_branch
        %120 = sbr.rel (%p118) target = $region16
      $region15: #{_stem.1} parent=11 // pred_region
        _
      $region16: #{_stem.1} parent=11 // pred_fallthru
        _
      // Predicated region
      $region17: #{_stem.1} parent=11 // pred_check
        %p121 = pneg %p77
      $region18: #{_stem.1} parent=11 // pred_check_branch
        %123 = sbr.rel (%p121) target = $region20
      $region19: #{_stem.1} parent=11 // pred_region
        _
      $region20: #{_stem.1} parent=11 // pred_fallthru
        _
    $region12: #{_stem.1} parent=5 // pred_fallthru
      _
    %p124 = scmp.lt.s32.totalorder %s9, 2
    // Predicated region
    $region21: #{_stem.1} parent=5 // pred_check
      %p125 = pneg %p124
    $region22: #{_stem.1} parent=5 // pred_check_branch
      %127 = sbr.rel (%p125) target = $region24
    $region23: #{_stem.1} parent=5 // pred_region
      // Predicated region
      $region25: #{_stem.1} parent=23 // pred_check
        %p128 = pneg %p29
      $region26: #{_stem.1} parent=23 // pred_check_branch
        %130 = sbr.rel (%p128) target = $region28
      $region27: #{_stem.1} parent=23 // pred_region
        %s131 = smul.u32 784, %s9
        %p132 = scmp.lt.s32.totalorder %s131, 1567
        %s133 = scalar_select %p132, %s131, 1567
        %s134 = smul.addr %s133, 4
        %s135 = scalar_lea.vmem %s0, %s134
        %s136 = smul.u32 784, %s9
      $region28: #{_stem.1} parent=23 // pred_fallthru
        _
    $region24: #{_stem.1} parent=5 // pred_fallthru
      _
    %p137 = scmp.le.s32.totalorder 1, %s9
    %p138 = scmp.lt.s32.totalorder %s9, 3
    %p139 = pnand %p137, %p138
    %p140 = pneg %p139
    // Predicated region
    $region29: #{_stem.1} parent=5 // pred_check
      _
    $region30: #{_stem.1} parent=5 // pred_check_branch
      %142 = sbr.rel (%p139) target = $region32
    $region31: #{_stem.1} parent=5 // pred_region
      %s143 = ssub.s32 %s9, 1
      %s144 = smul.u32 784, %s14
      %p145 = scmp.lt.s32.totalorder %s144, 1567
      %s146 = scalar_select %p145, %s144, 1567
      %s147 = smul.addr %s146, 4
      %s148 = scalar_lea.vmem %s0, %s147
      %p149 = pneg %p35
      %p150 = pneg %p32
      %p151 = pneg %p56
      %p152 = pneg %p53
      %p153 = pneg %p77
      %p154 = pneg %p74
      %p155 = pneg %p103
      %p156 = pneg %p100
      %s157 = smul.u32 784, %s14
      %p158 = scmp.lt.s32.totalorder %s157, 1567
      %s159 = scalar_select %p158, %s157, 1567
      %s160 = smul.addr %s159, 4
      %s161 = scalar_lea.vmem %s3, %s160
      %s162 = smul.u32 784, %s14
      %p163 = scmp.lt.s32.totalorder %s162, 1567
      %s164 = scalar_select %p163, %s162, 1567
      %s165 = smul.addr %s164, 4
      %s166 = scalar_lea.vmem %s0, %s165
      %s167 = smul.u32 784, %s14
      %s168 = smul.u32 784, %s14
      %p169 = scmp.lt.s32.totalorder %s168, 1567
      %s170 = scalar_select %p169, %s168, 1567
      %s171 = smul.addr %s170, 4
      %s172 = scalar_lea.vmem %s3, %s171
      %s173 = smul.u32 784, %s14
      %v174 = vld [vmem:[%s166] sm:$0xf]
      %v175 = vld [vmem:[%s166 + $0x4] sm:$0xf]
      %v176 = vld [vmem:[%s166 + $0x8] sm:$0xf]
      %v177 = vld [vmem:[%s166 + $0xc] sm:$0xf]
      %v178 = vld [vmem:[%s166 + $0x10] sm:$0xf]
      %v179 = vld [vmem:[%s166 + $0x14] sm:$0xf]
      %v180 = vld [vmem:[%s166 + $0x18] sm:$0xf]
      %v181 = vld [vmem:[%s166 + $0x1c] sm:$0xf]
      %v182 = vld [vmem:[%s166 + $0x20] sm:$0xf]
      %v183 = vld [vmem:[%s166 + $0x24] sm:$0xf]
      %v184 = vld [vmem:[%s166 + $0x28] sm:$0xf]
      %v185 = vld [vmem:[%s166 + $0x2c] sm:$0xf]
      %v186 = vld [vmem:[%s166 + $0x30] sm:$0xf]
      %v187 = vld [vmem:[%s166 + $0x34] sm:$0xf]
      %v188 = vld [vmem:[%s166 + $0x38] sm:$0xf]
      %v189 = vld [vmem:[%s166 + $0x3c] sm:$0xf]
      %v190 = vld [vmem:[%s166 + $0x40] sm:$0xf]
      %v191 = vld [vmem:[%s166 + $0x44] sm:$0xf]
      %v192 = vld [vmem:[%s166 + $0x48] sm:$0xf]
      %v193 = vld [vmem:[%s166 + $0x4c] sm:$0xf]
      %v194 = vld [vmem:[%s166 + $0x50] sm:$0xf]
      %v195 = vld [vmem:[%s166 + $0x54] sm:$0xf]
      %v196 = vld [vmem:[%s166 + $0x58] sm:$0xf]
      %v197 = vld [vmem:[%s166 + $0x5c] sm:$0xf]
      %v198 = vld [vmem:[%s166 + $0x60] sm:$0xf]
      %v199 = vld [vmem:[%s166 + $0x64] sm:$0xf]
      %v200 = vld [vmem:[%s166 + $0x68] sm:$0xf]
      %v201 = vld [vmem:[%s166 + $0x6c] sm:$0xf]
      %v202 = vld [vmem:[%s166 + $0x70] sm:$0xf]
      %v203 = vld [vmem:[%s166 + $0x74] sm:$0xf]
      %v204 = vld [vmem:[%s166 + $0x78] sm:$0xf]
      %v205 = vld [vmem:[%s166 + $0x7c] sm:$0xf]
      %v206 = vld [vmem:[%s166 + $0x80] sm:$0xf]
      %v207 = vld [vmem:[%s166 + $0x84] sm:$0xf]
      %v208 = vld [vmem:[%s166 + $0x88] sm:$0xf]
      %v209 = vld [vmem:[%s166 + $0x8c] sm:$0xf]
      %v210 = vld [vmem:[%s166 + $0x90] sm:$0xf]
      %v211 = vld [vmem:[%s166 + $0x94] sm:$0xf]
      %v212 = vld [vmem:[%s166 + $0x98] sm:$0xf]
      %v213 = vld [vmem:[%s166 + $0x9c] sm:$0xf]
      %v214 = vld [vmem:[%s166 + $0xa0] sm:$0xf]
      %v215 = vld [vmem:[%s166 + $0xa4] sm:$0xf]
      %v216 = vld [vmem:[%s166 + $0xa8] sm:$0xf]
      %v217 = vld [vmem:[%s166 + $0xac] sm:$0xf]
      %v218 = vld [vmem:[%s166 + $0xb0] sm:$0xf]
      %v219 = vld [vmem:[%s166 + $0xb4] sm:$0xf]
      %v220 = vld [vmem:[%s166 + $0xb8] sm:$0xf]
      %v221 = vld [vmem:[%s166 + $0xbc] sm:$0xf]
      %v222 = vld [vmem:[%s166 + $0xc0] sm:$0xf]
      %v223 = vld [vmem:[%s166 + $0xc4] sm:$0xf]
      %v224 = vld [vmem:[%s166 + $0xc8] sm:$0xf]
      %v225 = vld [vmem:[%s166 + $0xcc] sm:$0xf]
      %v226 = vld [vmem:[%s166 + $0xd0] sm:$0xf]
      %v227 = vld [vmem:[%s166 + $0xd4] sm:$0xf]
      %v228 = vld [vmem:[%s166 + $0xd8] sm:$0xf]
      %v229 = vld [vmem:[%s166 + $0xdc] sm:$0xf]
      %v230 = vld [vmem:[%s166 + $0xe0] sm:$0xf]
      %v231 = vld [vmem:[%s166 + $0xe4] sm:$0xf]
      %v232 = vld [vmem:[%s166 + $0xe8] sm:$0xf]
      %v233 = vld [vmem:[%s166 + $0xec] sm:$0xf]
      %v234 = vld [vmem:[%s166 + $0xf0] sm:$0xf]
      %v235 = vld [vmem:[%s166 + $0xf4] sm:$0xf]
      %v236 = vld [vmem:[%s166 + $0xf8] sm:$0xf]
      %v237 = vld [vmem:[%s166 + $0xfc] sm:$0xf]
      %v238 = vld [vmem:[%s166 + $0x100] sm:$0xf]
      %v239 = vld [vmem:[%s166 + $0x104] sm:$0xf]
      %v240 = vld [vmem:[%s166 + $0x108] sm:$0xf]
      %v241 = vld [vmem:[%s166 + $0x10c] sm:$0xf]
      %v242 = vld [vmem:[%s166 + $0x110] sm:$0xf]
      %v243 = vld [vmem:[%s166 + $0x114] sm:$0xf]
      %v244 = vld [vmem:[%s166 + $0x118] sm:$0xf]
      %v245 = vld [vmem:[%s166 + $0x11c] sm:$0xf]
      %v246 = vld [vmem:[%s166 + $0x120] sm:$0xf]
      %v247 = vld [vmem:[%s166 + $0x124] sm:$0xf]
      %v248 = vld [vmem:[%s166 + $0x128] sm:$0xf]
      %v249 = vld [vmem:[%s166 + $0x12c] sm:$0xf]
      %v250 = vld [vmem:[%s166 + $0x130] sm:$0xf]
      %v251 = vld [vmem:[%s166 + $0x134] sm:$0xf]
      %v252 = vld [vmem:[%s166 + $0x138] sm:$0xf]
      %v253 = vld [vmem:[%s166 + $0x13c] sm:$0xf]
      %v254 = vld [vmem:[%s166 + $0x140] sm:$0xf]
      %v255 = vld [vmem:[%s166 + $0x144] sm:$0xf]
      %v256 = vld [vmem:[%s166 + $0x148] sm:$0xf]
      %v257 = vld [vmem:[%s166 + $0x14c] sm:$0xf]
      %v258 = vld [vmem:[%s166 + $0x150] sm:$0xf]
      %v259 = vld [vmem:[%s166 + $0x154] sm:$0xf]
      %v260 = vld [vmem:[%s166 + $0x158] sm:$0xf]
      %v261 = vld [vmem:[%s166 + $0x15c] sm:$0xf]
      %v262 = vld [vmem:[%s166 + $0x160] sm:$0xf]
      %v263 = vld [vmem:[%s166 + $0x164] sm:$0xf]
      %v264 = vld [vmem:[%s166 + $0x168] sm:$0xf]
      %v265 = vld [vmem:[%s166 + $0x16c] sm:$0xf]
      %v266 = vld [vmem:[%s166 + $0x170] sm:$0xf]
      %v267 = vld [vmem:[%s166 + $0x174] sm:$0xf]
      %v268 = vld [vmem:[%s166 + $0x178] sm:$0xf]
      %v269 = vld [vmem:[%s166 + $0x17c] sm:$0xf]
      %v270 = vld [vmem:[%s166 + $0x180] sm:$0xf]
      %v271 = vld [vmem:[%s166 + $0x184] sm:$0xf]
      %v272 = vld [vmem:[%s166 + $0x188] sm:$0xf]
      %v273 = vld [vmem:[%s166 + $0x18c] sm:$0xf]
      %v274 = vld [vmem:[%s166 + $0x190] sm:$0xf]
      %v275 = vld [vmem:[%s166 + $0x194] sm:$0xf]
      %v276 = vld [vmem:[%s166 + $0x198] sm:$0xf]
      %v277 = vld [vmem:[%s166 + $0x19c] sm:$0xf]
      %v278 = vld [vmem:[%s166 + $0x1a0] sm:$0xf]
      %v279 = vld [vmem:[%s166 + $0x1a4] sm:$0xf]
      %v280 = vld [vmem:[%s166 + $0x1a8] sm:$0xf]
      %v281 = vld [vmem:[%s166 + $0x1ac] sm:$0xf]
      %v282 = vld [vmem:[%s166 + $0x1b0] sm:$0xf]
      %v283 = vld [vmem:[%s166 + $0x1b4] sm:$0xf]
      %v284 = vld [vmem:[%s166 + $0x1b8] sm:$0xf]
      %v285 = vld [vmem:[%s166 + $0x1bc] sm:$0xf]
      %v286 = vld [vmem:[%s166 + $0x1c0] sm:$0xf]
      %v287 = vld [vmem:[%s166 + $0x1c4] sm:$0xf]
      %v288 = vld [vmem:[%s166 + $0x1c8] sm:$0xf]
      %v289 = vld [vmem:[%s166 + $0x1cc] sm:$0xf]
      %v290 = vld [vmem:[%s166 + $0x1d0] sm:$0xf]
      %v291 = vld [vmem:[%s166 + $0x1d4] sm:$0xf]
      %v292 = vld [vmem:[%s166 + $0x1d8] sm:$0xf]
      %v293 = vld [vmem:[%s166 + $0x1dc] sm:$0xf]
      %v294 = vld [vmem:[%s166 + $0x1e0] sm:$0xf]
      %v295 = vld [vmem:[%s166 + $0x1e4] sm:$0xf]
      %v296 = vld [vmem:[%s166 + $0x1e8] sm:$0xf]
      %v297 = vld [vmem:[%s166 + $0x1ec] sm:$0xf]
      %v298 = vld [vmem:[%s166 + $0x1f0] sm:$0xf]
      %v299 = vld [vmem:[%s166 + $0x1f4] sm:$0xf]
      %v300 = vld [vmem:[%s166 + $0x1f8] sm:$0xf]
      %v301 = vld [vmem:[%s166 + $0x1fc] sm:$0xf]
      %v302 = vld [vmem:[%s166 + $0x200] sm:$0xf]
      %v303 = vld [vmem:[%s166 + $0x204] sm:$0xf]
      %v304 = vld [vmem:[%s166 + $0x208] sm:$0xf]
      %v305 = vld [vmem:[%s166 + $0x20c] sm:$0xf]
      %v306 = vld [vmem:[%s166 + $0x210] sm:$0xf]
      %v307 = vld [vmem:[%s166 + $0x214] sm:$0xf]
      %v308 = vld [vmem:[%s166 + $0x218] sm:$0xf]
      %v309 = vld [vmem:[%s166 + $0x21c] sm:$0xf]
      %v310 = vld [vmem:[%s166 + $0x220] sm:$0xf]
      %v311 = vld [vmem:[%s166 + $0x224] sm:$0xf]
      %v312 = vld [vmem:[%s166 + $0x228] sm:$0xf]
      %v313 = vld [vmem:[%s166 + $0x22c] sm:$0xf]
      %v314 = vld [vmem:[%s166 + $0x230] sm:$0xf]
      %v315 = vld [vmem:[%s166 + $0x234] sm:$0xf]
      %v316 = vld [vmem:[%s166 + $0x238] sm:$0xf]
      %v317 = vld [vmem:[%s166 + $0x23c] sm:$0xf]
      %v318 = vld [vmem:[%s166 + $0x240] sm:$0xf]
      %v319 = vld [vmem:[%s166 + $0x244] sm:$0xf]
      %v320 = vld [vmem:[%s166 + $0x248] sm:$0xf]
      %v321 = vld [vmem:[%s166 + $0x24c] sm:$0xf]
      %v322 = vld [vmem:[%s166 + $0x250] sm:$0xf]
      %v323 = vld [vmem:[%s166 + $0x254] sm:$0xf]
      %v324 = vld [vmem:[%s166 + $0x258] sm:$0xf]
      %v325 = vld [vmem:[%s166 + $0x25c] sm:$0xf]
      %v326 = vld [vmem:[%s166 + $0x260] sm:$0xf]
      %v327 = vld [vmem:[%s166 + $0x264] sm:$0xf]
      %v328 = vld [vmem:[%s166 + $0x268] sm:$0xf]
      %v329 = vld [vmem:[%s166 + $0x26c] sm:$0xf]
      %v330 = vld [vmem:[%s166 + $0x270] sm:$0xf]
      %v331 = vld [vmem:[%s166 + $0x274] sm:$0xf]
      %v332 = vld [vmem:[%s166 + $0x278] sm:$0xf]
      %v333 = vld [vmem:[%s166 + $0x27c] sm:$0xf]
      %v334 = vld [vmem:[%s166 + $0x280] sm:$0xf]
      %v335 = vld [vmem:[%s166 + $0x284] sm:$0xf]
      %v336 = vld [vmem:[%s166 + $0x288] sm:$0xf]
      %v337 = vld [vmem:[%s166 + $0x28c] sm:$0xf]
      %v338 = vld [vmem:[%s166 + $0x290] sm:$0xf]
      %v339 = vld [vmem:[%s166 + $0x294] sm:$0xf]
      %v340 = vld [vmem:[%s166 + $0x298] sm:$0xf]
      %v341 = vld [vmem:[%s166 + $0x29c] sm:$0xf]
      %v342 = vld [vmem:[%s166 + $0x2a0] sm:$0xf]
      %v343 = vld [vmem:[%s166 + $0x2a4] sm:$0xf]
      %v344 = vld [vmem:[%s166 + $0x2a8] sm:$0xf]
      %v345 = vld [vmem:[%s166 + $0x2ac] sm:$0xf]
      %v346 = vld [vmem:[%s166 + $0x2b0] sm:$0xf]
      %v347 = vld [vmem:[%s166 + $0x2b4] sm:$0xf]
      %v348 = vld [vmem:[%s166 + $0x2b8] sm:$0xf]
      %v349 = vld [vmem:[%s166 + $0x2bc] sm:$0xf]
      %v350 = vld [vmem:[%s166 + $0x2c0] sm:$0xf]
      %v351 = vld [vmem:[%s166 + $0x2c4] sm:$0xf]
      %v352 = vld [vmem:[%s166 + $0x2c8] sm:$0xf]
      %v353 = vld [vmem:[%s166 + $0x2cc] sm:$0xf]
      %v354 = vld [vmem:[%s166 + $0x2d0] sm:$0xf]
      %v355 = vld [vmem:[%s166 + $0x2d4] sm:$0xf]
      %v356 = vld [vmem:[%s166 + $0x2d8] sm:$0xf]
      %v357 = vld [vmem:[%s166 + $0x2dc] sm:$0xf]
      %v358 = vld [vmem:[%s166 + $0x2e0] sm:$0xf]
      %v359 = vld [vmem:[%s166 + $0x2e4] sm:$0xf]
      %v360 = vld [vmem:[%s166 + $0x2e8] sm:$0xf]
      %v361 = vld [vmem:[%s166 + $0x2ec] sm:$0xf]
      %v362 = vld [vmem:[%s166 + $0x2f0] sm:$0xf]
      %v363 = vld [vmem:[%s166 + $0x2f4] sm:$0xf]
      %v364 = vld [vmem:[%s166 + $0x2f8] sm:$0xf]
      %v365 = vld [vmem:[%s166 + $0x2fc] sm:$0xf]
      %v366 = vld [vmem:[%s166 + $0x300] sm:$0xf]
      %v367 = vld [vmem:[%s166 + $0x304] sm:$0xf]
      %v368 = vld [vmem:[%s166 + $0x308] sm:$0xf]
      %v369 = vld [vmem:[%s166 + $0x30c] sm:$0xf]
      %v370 = vld [vmem:[%s166 + $0x310] sm:$0xf]
      %v371 = vld [vmem:[%s166 + $0x314] sm:$0xf]
      %v372 = vld [vmem:[%s166 + $0x318] sm:$0xf]
      %v373 = vld [vmem:[%s166 + $0x31c] sm:$0xf]
      %v374 = vld [vmem:[%s166 + $0x320] sm:$0xf]
      %v375 = vld [vmem:[%s166 + $0x324] sm:$0xf]
      %v376 = vld [vmem:[%s166 + $0x328] sm:$0xf]
      %v377 = vld [vmem:[%s166 + $0x32c] sm:$0xf]
      %v378 = vld [vmem:[%s166 + $0x330] sm:$0xf]
      %v379 = vld [vmem:[%s166 + $0x334] sm:$0xf]
      %v380 = vld [vmem:[%s166 + $0x338] sm:$0xf]
      %v381 = vld [vmem:[%s166 + $0x33c] sm:$0xf]
      %v382 = vld [vmem:[%s166 + $0x340] sm:$0xf]
      %v383 = vld [vmem:[%s166 + $0x344] sm:$0xf]
      %v384 = vld [vmem:[%s166 + $0x348] sm:$0xf]
      %v385 = vld [vmem:[%s166 + $0x34c] sm:$0xf]
      %v386 = vld [vmem:[%s166 + $0x350] sm:$0xf]
      %v387 = vld [vmem:[%s166 + $0x354] sm:$0xf]
      %v388 = vld [vmem:[%s166 + $0x358] sm:$0xf]
      %v389 = vld [vmem:[%s166 + $0x35c] sm:$0xf]
      %v390 = vld [vmem:[%s166 + $0x360] sm:$0xf]
      %v391 = vld [vmem:[%s166 + $0x364] sm:$0xf]
      %v392 = vld [vmem:[%s166 + $0x368] sm:$0xf]
      %v393 = vld [vmem:[%s166 + $0x36c] sm:$0xf]
      %v394 = vld [vmem:[%s166 + $0x370] sm:$0xf]
      %v395 = vld [vmem:[%s166 + $0x374] sm:$0xf]
      %v396 = vld [vmem:[%s166 + $0x378] sm:$0xf]
      %v397 = vld [vmem:[%s166 + $0x37c] sm:$0xf]
      %v398 = vld [vmem:[%s166 + $0x380] sm:$0xf]
      %v399 = vld [vmem:[%s166 + $0x384] sm:$0xf]
      %v400 = vld [vmem:[%s166 + $0x388] sm:$0xf]
      %v401 = vld [vmem:[%s166 + $0x38c] sm:$0xf]
      %v402 = vld [vmem:[%s166 + $0x390] sm:$0xf]
      %v403 = vld [vmem:[%s166 + $0x394] sm:$0xf]
      %v404 = vld [vmem:[%s166 + $0x398] sm:$0xf]
      %v405 = vld [vmem:[%s166 + $0x39c] sm:$0xf]
      %v406 = vld [vmem:[%s166 + $0x3a0] sm:$0xf]
      %v407 = vld [vmem:[%s166 + $0x3a4] sm:$0xf]
      %v408 = vld [vmem:[%s166 + $0x3a8] sm:$0xf]
      %v409 = vld [vmem:[%s166 + $0x3ac] sm:$0xf]
      %v410 = vld [vmem:[%s166 + $0x3b0] sm:$0xf]
      %v411 = vld [vmem:[%s166 + $0x3b4] sm:$0xf]
      %v412 = vld [vmem:[%s166 + $0x3b8] sm:$0xf]
      %v413 = vld [vmem:[%s166 + $0x3bc] sm:$0xf]
      %v414 = vld [vmem:[%s166 + $0x3c0] sm:$0xf]
      %v415 = vld [vmem:[%s166 + $0x3c4] sm:$0xf]
      %v416 = vld [vmem:[%s166 + $0x3c8] sm:$0xf]
      %v417 = vld [vmem:[%s166 + $0x3cc] sm:$0xf]
      %v418 = vld [vmem:[%s166 + $0x3d0] sm:$0xf]
      %v419 = vld [vmem:[%s166 + $0x3d4] sm:$0xf]
      %v420 = vld [vmem:[%s166 + $0x3d8] sm:$0xf]
      %v421 = vld [vmem:[%s166 + $0x3dc] sm:$0xf]
      %v422 = vld [vmem:[%s166 + $0x3e0] sm:$0xf]
      %v423 = vld [vmem:[%s166 + $0x3e4] sm:$0xf]
      %v424 = vld [vmem:[%s166 + $0x3e8] sm:$0xf]
      %v425 = vld [vmem:[%s166 + $0x3ec] sm:$0xf]
      %v426 = vld [vmem:[%s166 + $0x3f0] sm:$0xf]
      %v427 = vld [vmem:[%s166 + $0x3f4] sm:$0xf]
      %v428 = vld [vmem:[%s166 + $0x3f8] sm:$0xf]
      %v429 = vld [vmem:[%s166 + $0x3fc] sm:$0xf]
      %v430 = vld [vmem:[%s166 + $0x400] sm:$0xf]
      %v431 = vld [vmem:[%s166 + $0x404] sm:$0xf]
      %v432 = vld [vmem:[%s166 + $0x408] sm:$0xf]
      %v433 = vld [vmem:[%s166 + $0x40c] sm:$0xf]
      %v434 = vld [vmem:[%s166 + $0x410] sm:$0xf]
      %v435 = vld [vmem:[%s166 + $0x414] sm:$0xf]
      %v436 = vld [vmem:[%s166 + $0x418] sm:$0xf]
      %v437 = vld [vmem:[%s166 + $0x41c] sm:$0xf]
      %v438 = vld [vmem:[%s166 + $0x420] sm:$0xf]
      %v439 = vld [vmem:[%s166 + $0x424] sm:$0xf]
      %v440 = vld [vmem:[%s166 + $0x428] sm:$0xf]
      %v441 = vld [vmem:[%s166 + $0x42c] sm:$0xf]
      %v442 = vld [vmem:[%s166 + $0x430] sm:$0xf]
      %v443 = vld [vmem:[%s166 + $0x434] sm:$0xf]
      %v444 = vld [vmem:[%s166 + $0x438] sm:$0xf]
      %v445 = vld [vmem:[%s166 + $0x43c] sm:$0xf]
      %v446 = vld [vmem:[%s166 + $0x440] sm:$0xf]
      %v447 = vld [vmem:[%s166 + $0x444] sm:$0xf]
      %v448 = vld [vmem:[%s166 + $0x448] sm:$0xf]
      %v449 = vld [vmem:[%s166 + $0x44c] sm:$0xf]
      %v450 = vld [vmem:[%s166 + $0x450] sm:$0xf]
      %v451 = vld [vmem:[%s166 + $0x454] sm:$0xf]
      %v452 = vld [vmem:[%s166 + $0x458] sm:$0xf]
      %v453 = vld [vmem:[%s166 + $0x45c] sm:$0xf]
      %v454 = vld [vmem:[%s166 + $0x460] sm:$0xf]
      %v455 = vld [vmem:[%s166 + $0x464] sm:$0xf]
      %v456 = vld [vmem:[%s166 + $0x468] sm:$0xf]
      %v457 = vld [vmem:[%s166 + $0x46c] sm:$0xf]
      %v458 = vld [vmem:[%s166 + $0x470] sm:$0xf]
      %v459 = vld [vmem:[%s166 + $0x474] sm:$0xf]
      %v460 = vld [vmem:[%s166 + $0x478] sm:$0xf]
      %v461 = vld [vmem:[%s166 + $0x47c] sm:$0xf]
      %v462 = vld [vmem:[%s166 + $0x480] sm:$0xf]
      %v463 = vld [vmem:[%s166 + $0x484] sm:$0xf]
      %v464 = vld [vmem:[%s166 + $0x488] sm:$0xf]
      %v465 = vld [vmem:[%s166 + $0x48c] sm:$0xf]
      %v466 = vld [vmem:[%s166 + $0x490] sm:$0xf]
      %v467 = vld [vmem:[%s166 + $0x494] sm:$0xf]
      %v468 = vld [vmem:[%s166 + $0x498] sm:$0xf]
      %v469 = vld [vmem:[%s166 + $0x49c] sm:$0xf]
      %v470 = vld [vmem:[%s166 + $0x4a0] sm:$0xf]
      %v471 = vld [vmem:[%s166 + $0x4a4] sm:$0xf]
      %v472 = vld [vmem:[%s166 + $0x4a8] sm:$0xf]
      %v473 = vld [vmem:[%s166 + $0x4ac] sm:$0xf]
      %v474 = vld [vmem:[%s166 + $0x4b0] sm:$0xf]
      %v475 = vld [vmem:[%s166 + $0x4b4] sm:$0xf]
      %v476 = vld [vmem:[%s166 + $0x4b8] sm:$0xf]
      %v477 = vld [vmem:[%s166 + $0x4bc] sm:$0xf]
      %v478 = vld [vmem:[%s166 + $0x4c0] sm:$0xf]
      %v479 = vld [vmem:[%s166 + $0x4c4] sm:$0xf]
      %v480 = vld [vmem:[%s166 + $0x4c8] sm:$0xf]
      %v481 = vld [vmem:[%s166 + $0x4cc] sm:$0xf]
      %v482 = vld [vmem:[%s166 + $0x4d0] sm:$0xf]
      %v483 = vld [vmem:[%s166 + $0x4d4] sm:$0xf]
      %v484 = vld [vmem:[%s166 + $0x4d8] sm:$0xf]
      %v485 = vld [vmem:[%s166 + $0x4dc] sm:$0xf]
      %v486 = vld [vmem:[%s166 + $0x4e0] sm:$0xf]
      %v487 = vld [vmem:[%s166 + $0x4e4] sm:$0xf]
      %v488 = vld [vmem:[%s166 + $0x4e8] sm:$0xf]
      %v489 = vld [vmem:[%s166 + $0x4ec] sm:$0xf]
      %v490 = vld [vmem:[%s166 + $0x4f0] sm:$0xf]
      %v491 = vld [vmem:[%s166 + $0x4f4] sm:$0xf]
      %v492 = vld [vmem:[%s166 + $0x4f8] sm:$0xf]
      %v493 = vld [vmem:[%s166 + $0x4fc] sm:$0xf]
      %v494 = vld [vmem:[%s166 + $0x500] sm:$0xf]
      %v495 = vld [vmem:[%s166 + $0x504] sm:$0xf]
      %v496 = vld [vmem:[%s166 + $0x508] sm:$0xf]
      %v497 = vld [vmem:[%s166 + $0x50c] sm:$0xf]
      %v498 = vld [vmem:[%s166 + $0x510] sm:$0xf]
      %v499 = vld [vmem:[%s166 + $0x514] sm:$0xf]
      %v500 = vld [vmem:[%s166 + $0x518] sm:$0xf]
      %v501 = vld [vmem:[%s166 + $0x51c] sm:$0xf]
      %v502 = vld [vmem:[%s166 + $0x520] sm:$0xf]
      %v503 = vld [vmem:[%s166 + $0x524] sm:$0xf]
      %v504 = vld [vmem:[%s166 + $0x528] sm:$0xf]
      %v505 = vld [vmem:[%s166 + $0x52c] sm:$0xf]
      %v506 = vld [vmem:[%s166 + $0x530] sm:$0xf]
      %v507 = vld [vmem:[%s166 + $0x534] sm:$0xf]
      %v508 = vld [vmem:[%s166 + $0x538] sm:$0xf]
      %v509 = vld [vmem:[%s166 + $0x53c] sm:$0xf]
      %v510 = vld [vmem:[%s166 + $0x540] sm:$0xf]
      %v511 = vld [vmem:[%s166 + $0x544] sm:$0xf]
      %v512 = vld [vmem:[%s166 + $0x548] sm:$0xf]
      %v513 = vld [vmem:[%s166 + $0x54c] sm:$0xf]
      %v514 = vld [vmem:[%s166 + $0x550] sm:$0xf]
      %v515 = vld [vmem:[%s166 + $0x554] sm:$0xf]
      %v516 = vld [vmem:[%s166 + $0x558] sm:$0xf]
      %v517 = vld [vmem:[%s166 + $0x55c] sm:$0xf]
      %v518 = vld [vmem:[%s166 + $0x560] sm:$0xf]
      %v519 = vld [vmem:[%s166 + $0x564] sm:$0xf]
      %v520 = vld [vmem:[%s166 + $0x568] sm:$0xf]
      %v521 = vld [vmem:[%s166 + $0x56c] sm:$0xf]
      %v522 = vld [vmem:[%s166 + $0x570] sm:$0xf]
      %v523 = vld [vmem:[%s166 + $0x574] sm:$0xf]
      %v524 = vld [vmem:[%s166 + $0x578] sm:$0xf]
      %v525 = vld [vmem:[%s166 + $0x57c] sm:$0xf]
      %v526 = vld [vmem:[%s166 + $0x580] sm:$0xf]
      %v527 = vld [vmem:[%s166 + $0x584] sm:$0xf]
      %v528 = vld [vmem:[%s166 + $0x588] sm:$0xf]
      %v529 = vld [vmem:[%s166 + $0x58c] sm:$0xf]
      %v530 = vld [vmem:[%s166 + $0x590] sm:$0xf]
      %v531 = vld [vmem:[%s166 + $0x594] sm:$0xf]
      %v532 = vld [vmem:[%s166 + $0x598] sm:$0xf]
      %v533 = vld [vmem:[%s166 + $0x59c] sm:$0xf]
      %v534 = vld [vmem:[%s166 + $0x5a0] sm:$0xf]
      %v535 = vld [vmem:[%s166 + $0x5a4] sm:$0xf]
      %v536 = vld [vmem:[%s166 + $0x5a8] sm:$0xf]
      %v537 = vld [vmem:[%s166 + $0x5ac] sm:$0xf]
      %v538 = vld [vmem:[%s166 + $0x5b0] sm:$0xf]
      %v539 = vld [vmem:[%s166 + $0x5b4] sm:$0xf]
      %v540 = vld [vmem:[%s166 + $0x5b8] sm:$0xf]
      %v541 = vld [vmem:[%s166 + $0x5bc] sm:$0xf]
      %v542 = vld [vmem:[%s166 + $0x5c0] sm:$0xf]
      %v543 = vld [vmem:[%s166 + $0x5c4] sm:$0xf]
      %v544 = vld [vmem:[%s166 + $0x5c8] sm:$0xf]
      %v545 = vld [vmem:[%s166 + $0x5cc] sm:$0xf]
      %v546 = vld [vmem:[%s166 + $0x5d0] sm:$0xf]
      %v547 = vld [vmem:[%s166 + $0x5d4] sm:$0xf]
      %v548 = vld [vmem:[%s166 + $0x5d8] sm:$0xf]
      %v549 = vld [vmem:[%s166 + $0x5dc] sm:$0xf]
      %v550 = vld [vmem:[%s166 + $0x5e0] sm:$0xf]
      %v551 = vld [vmem:[%s166 + $0x5e4] sm:$0xf]
      %v552 = vld [vmem:[%s166 + $0x5e8] sm:$0xf]
      %v553 = vld [vmem:[%s166 + $0x5ec] sm:$0xf]
      %v554 = vld [vmem:[%s166 + $0x5f0] sm:$0xf]
      %v555 = vld [vmem:[%s166 + $0x5f4] sm:$0xf]
      %v556 = vld [vmem:[%s166 + $0x5f8] sm:$0xf]
      %v557 = vld [vmem:[%s166 + $0x5fc] sm:$0xf]
      %v558 = vld [vmem:[%s166 + $0x600] sm:$0xf]
      %v559 = vld [vmem:[%s166 + $0x604] sm:$0xf]
      %v560 = vld [vmem:[%s166 + $0x608] sm:$0xf]
      %v561 = vld [vmem:[%s166 + $0x60c] sm:$0xf]
      %v562 = vld [vmem:[%s166 + $0x610] sm:$0xf]
      %v563 = vld [vmem:[%s166 + $0x614] sm:$0xf]
      %v564 = vld [vmem:[%s166 + $0x618] sm:$0xf]
      %v565 = vld [vmem:[%s166 + $0x61c] sm:$0xf]
      %v566 = vld [vmem:[%s166 + $0x620] sm:$0xf]
      %v567 = vld [vmem:[%s166 + $0x624] sm:$0xf]
      %v568 = vld [vmem:[%s166 + $0x628] sm:$0xf]
      %v569 = vld [vmem:[%s166 + $0x62c] sm:$0xf]
      %v570 = vld [vmem:[%s166 + $0x630] sm:$0xf]
      %v571 = vld [vmem:[%s166 + $0x634] sm:$0xf]
      %v572 = vld [vmem:[%s166 + $0x638] sm:$0xf]
      %v573 = vld [vmem:[%s166 + $0x63c] sm:$0xf]
      %v574 = vld [vmem:[%s166 + $0x640] sm:$0xf]
      %v575 = vld [vmem:[%s166 + $0x644] sm:$0xf]
      %v576 = vld [vmem:[%s166 + $0x648] sm:$0xf]
      %v577 = vld [vmem:[%s166 + $0x64c] sm:$0xf]
      %v578 = vld [vmem:[%s166 + $0x650] sm:$0xf]
      %v579 = vld [vmem:[%s166 + $0x654] sm:$0xf]
      %v580 = vld [vmem:[%s166 + $0x658] sm:$0xf]
      %v581 = vld [vmem:[%s166 + $0x65c] sm:$0xf]
      %v582 = vld [vmem:[%s166 + $0x660] sm:$0xf]
      %v583 = vld [vmem:[%s166 + $0x664] sm:$0xf]
      %v584 = vld [vmem:[%s166 + $0x668] sm:$0xf]
      %v585 = vld [vmem:[%s166 + $0x66c] sm:$0xf]
      %v586 = vld [vmem:[%s166 + $0x670] sm:$0xf]
      %v587 = vld [vmem:[%s166 + $0x674] sm:$0xf]
      %v588 = vld [vmem:[%s166 + $0x678] sm:$0xf]
      %v589 = vld [vmem:[%s166 + $0x67c] sm:$0xf]
      %v590 = vld [vmem:[%s166 + $0x680] sm:$0xf]
      %v591 = vld [vmem:[%s166 + $0x684] sm:$0xf]
      %v592 = vld [vmem:[%s166 + $0x688] sm:$0xf]
      %v593 = vld [vmem:[%s166 + $0x68c] sm:$0xf]
      %v594 = vld [vmem:[%s166 + $0x690] sm:$0xf]
      %v595 = vld [vmem:[%s166 + $0x694] sm:$0xf]
      %v596 = vld [vmem:[%s166 + $0x698] sm:$0xf]
      %v597 = vld [vmem:[%s166 + $0x69c] sm:$0xf]
      %v598 = vld [vmem:[%s166 + $0x6a0] sm:$0xf]
      %v599 = vld [vmem:[%s166 + $0x6a4] sm:$0xf]
      %v600 = vld [vmem:[%s166 + $0x6a8] sm:$0xf]
      %v601 = vld [vmem:[%s166 + $0x6ac] sm:$0xf]
      %v602 = vld [vmem:[%s166 + $0x6b0] sm:$0xf]
      %v603 = vld [vmem:[%s166 + $0x6b4] sm:$0xf]
      %v604 = vld [vmem:[%s166 + $0x6b8] sm:$0xf]
      %v605 = vld [vmem:[%s166 + $0x6bc] sm:$0xf]
      %v606 = vld [vmem:[%s166 + $0x6c0] sm:$0xf]
      %v607 = vld [vmem:[%s166 + $0x6c4] sm:$0xf]
      %v608 = vld [vmem:[%s166 + $0x6c8] sm:$0xf]
      %v609 = vld [vmem:[%s166 + $0x6cc] sm:$0xf]
      %v610 = vld [vmem:[%s166 + $0x6d0] sm:$0xf]
      %v611 = vld [vmem:[%s166 + $0x6d4] sm:$0xf]
      %v612 = vld [vmem:[%s166 + $0x6d8] sm:$0xf]
      %v613 = vld [vmem:[%s166 + $0x6dc] sm:$0xf]
      %v614 = vld [vmem:[%s166 + $0x6e0] sm:$0xf]
      %v615 = vld [vmem:[%s166 + $0x6e4] sm:$0xf]
      %v616 = vld [vmem:[%s166 + $0x6e8] sm:$0xf]
      %v617 = vld [vmem:[%s166 + $0x6ec] sm:$0xf]
      %v618 = vld [vmem:[%s166 + $0x6f0] sm:$0xf]
      %v619 = vld [vmem:[%s166 + $0x6f4] sm:$0xf]
      %v620 = vld [vmem:[%s166 + $0x6f8] sm:$0xf]
      %v621 = vld [vmem:[%s166 + $0x6fc] sm:$0xf]
      %v622 = vld [vmem:[%s166 + $0x700] sm:$0xf]
      %v623 = vld [vmem:[%s166 + $0x704] sm:$0xf]
      %v624 = vld [vmem:[%s166 + $0x708] sm:$0xf]
      %v625 = vld [vmem:[%s166 + $0x70c] sm:$0xf]
      %v626 = vld [vmem:[%s166 + $0x710] sm:$0xf]
      %v627 = vld [vmem:[%s166 + $0x714] sm:$0xf]
      %v628 = vld [vmem:[%s166 + $0x718] sm:$0xf]
      %v629 = vld [vmem:[%s166 + $0x71c] sm:$0xf]
      %v630 = vld [vmem:[%s166 + $0x720] sm:$0xf]
      %v631 = vld [vmem:[%s166 + $0x724] sm:$0xf]
      %v632 = vld [vmem:[%s166 + $0x728] sm:$0xf]
      %v633 = vld [vmem:[%s166 + $0x72c] sm:$0xf]
      %v634 = vld [vmem:[%s166 + $0x730] sm:$0xf]
      %v635 = vld [vmem:[%s166 + $0x734] sm:$0xf]
      %v636 = vld [vmem:[%s166 + $0x738] sm:$0xf]
      %v637 = vld [vmem:[%s166 + $0x73c] sm:$0xf]
      %v638 = vld [vmem:[%s166 + $0x740] sm:$0xf]
      %v639 = vld [vmem:[%s166 + $0x744] sm:$0xf]
      %v640 = vld [vmem:[%s166 + $0x748] sm:$0xf]
      %v641 = vld [vmem:[%s166 + $0x74c] sm:$0xf]
      %v642 = vld [vmem:[%s166 + $0x750] sm:$0xf]
      %v643 = vld [vmem:[%s166 + $0x754] sm:$0xf]
      %v644 = vld [vmem:[%s166 + $0x758] sm:$0xf]
      %v645 = vld [vmem:[%s166 + $0x75c] sm:$0xf]
      %v646 = vld [vmem:[%s166 + $0x760] sm:$0xf]
      %v647 = vld [vmem:[%s166 + $0x764] sm:$0xf]
      %v648 = vld [vmem:[%s166 + $0x768] sm:$0xf]
      %v649 = vld [vmem:[%s166 + $0x76c] sm:$0xf]
      %v650 = vld [vmem:[%s166 + $0x770] sm:$0xf]
      %v651 = vld [vmem:[%s166 + $0x774] sm:$0xf]
      %v652 = vld [vmem:[%s166 + $0x778] sm:$0xf]
      %v653 = vld [vmem:[%s166 + $0x77c] sm:$0xf]
      %v654 = vld [vmem:[%s166 + $0x780] sm:$0xf]
      %v655 = vld [vmem:[%s166 + $0x784] sm:$0xf]
      %v656 = vld [vmem:[%s166 + $0x788] sm:$0xf]
      %v657 = vld [vmem:[%s166 + $0x78c] sm:$0xf]
      %v658 = vld [vmem:[%s166 + $0x790] sm:$0xf]
      %v659 = vld [vmem:[%s166 + $0x794] sm:$0xf]
      %v660 = vld [vmem:[%s166 + $0x798] sm:$0xf]
      %v661 = vld [vmem:[%s166 + $0x79c] sm:$0xf]
      %v662 = vld [vmem:[%s166 + $0x7a0] sm:$0xf]
      %v663 = vld [vmem:[%s166 + $0x7a4] sm:$0xf]
      %v664 = vld [vmem:[%s166 + $0x7a8] sm:$0xf]
      %v665 = vld [vmem:[%s166 + $0x7ac] sm:$0xf]
      %v666 = vld [vmem:[%s166 + $0x7b0] sm:$0xf]
      %v667 = vld [vmem:[%s166 + $0x7b4] sm:$0xf]
      %v668 = vld [vmem:[%s166 + $0x7b8] sm:$0xf]
      %v669 = vld [vmem:[%s166 + $0x7bc] sm:$0xf]
      %v670 = vld [vmem:[%s166 + $0x7c0] sm:$0xf]
      %v671 = vld [vmem:[%s166 + $0x7c4] sm:$0xf]
      %v672 = vld [vmem:[%s166 + $0x7c8] sm:$0xf]
      %v673 = vld [vmem:[%s166 + $0x7cc] sm:$0xf]
      %v674 = vld [vmem:[%s166 + $0x7d0] sm:$0xf]
      %v675 = vld [vmem:[%s166 + $0x7d4] sm:$0xf]
      %v676 = vld [vmem:[%s166 + $0x7d8] sm:$0xf]
      %v677 = vld [vmem:[%s166 + $0x7dc] sm:$0xf]
      %v678 = vld [vmem:[%s166 + $0x7e0] sm:$0xf]
      %v679 = vld [vmem:[%s166 + $0x7e4] sm:$0xf]
      %v680 = vld [vmem:[%s166 + $0x7e8] sm:$0xf]
      %v681 = vld [vmem:[%s166 + $0x7ec] sm:$0xf]
      %v682 = vld [vmem:[%s166 + $0x7f0] sm:$0xf]
      %v683 = vld [vmem:[%s166 + $0x7f4] sm:$0xf]
      %v684 = vld [vmem:[%s166 + $0x7f8] sm:$0xf]
      %v685 = vld [vmem:[%s166 + $0x7fc] sm:$0xf]
      %v686 = vld [vmem:[%s166 + $0x800] sm:$0xf]
      %v687 = vld [vmem:[%s166 + $0x804] sm:$0xf]
      %v688 = vld [vmem:[%s166 + $0x808] sm:$0xf]
      %v689 = vld [vmem:[%s166 + $0x80c] sm:$0xf]
      %v690 = vld [vmem:[%s166 + $0x810] sm:$0xf]
      %v691 = vld [vmem:[%s166 + $0x814] sm:$0xf]
      %v692 = vld [vmem:[%s166 + $0x818] sm:$0xf]
      %v693 = vld [vmem:[%s166 + $0x81c] sm:$0xf]
      %v694 = vld [vmem:[%s166 + $0x820] sm:$0xf]
      %v695 = vld [vmem:[%s166 + $0x824] sm:$0xf]
      %v696 = vld [vmem:[%s166 + $0x828] sm:$0xf]
      %v697 = vld [vmem:[%s166 + $0x82c] sm:$0xf]
      %v698 = vld [vmem:[%s166 + $0x830] sm:$0xf]
      %v699 = vld [vmem:[%s166 + $0x834] sm:$0xf]
      %v700 = vld [vmem:[%s166 + $0x838] sm:$0xf]
      %v701 = vld [vmem:[%s166 + $0x83c] sm:$0xf]
      %v702 = vld [vmem:[%s166 + $0x840] sm:$0xf]
      %v703 = vld [vmem:[%s166 + $0x844] sm:$0xf]
      %v704 = vld [vmem:[%s166 + $0x848] sm:$0xf]
      %v705 = vld [vmem:[%s166 + $0x84c] sm:$0xf]
      %v706 = vld [vmem:[%s166 + $0x850] sm:$0xf]
      %v707 = vld [vmem:[%s166 + $0x854] sm:$0xf]
      %v708 = vld [vmem:[%s166 + $0x858] sm:$0xf]
      %v709 = vld [vmem:[%s166 + $0x85c] sm:$0xf]
      %v710 = vld [vmem:[%s166 + $0x860] sm:$0xf]
      %v711 = vld [vmem:[%s166 + $0x864] sm:$0xf]
      %v712 = vld [vmem:[%s166 + $0x868] sm:$0xf]
      %v713 = vld [vmem:[%s166 + $0x86c] sm:$0xf]
      %v714 = vld [vmem:[%s166 + $0x870] sm:$0xf]
      %v715 = vld [vmem:[%s166 + $0x874] sm:$0xf]
      %v716 = vld [vmem:[%s166 + $0x878] sm:$0xf]
      %v717 = vld [vmem:[%s166 + $0x87c] sm:$0xf]
      %v718 = vld [vmem:[%s166 + $0x880] sm:$0xf]
      %v719 = vld [vmem:[%s166 + $0x884] sm:$0xf]
      %v720 = vld [vmem:[%s166 + $0x888] sm:$0xf]
      %v721 = vld [vmem:[%s166 + $0x88c] sm:$0xf]
      %v722 = vld [vmem:[%s166 + $0x890] sm:$0xf]
      %v723 = vld [vmem:[%s166 + $0x894] sm:$0xf]
      %v724 = vld [vmem:[%s166 + $0x898] sm:$0xf]
      %v725 = vld [vmem:[%s166 + $0x89c] sm:$0xf]
      %v726 = vld [vmem:[%s166 + $0x8a0] sm:$0xf]
      %v727 = vld [vmem:[%s166 + $0x8a4] sm:$0xf]
      %v728 = vld [vmem:[%s166 + $0x8a8] sm:$0xf]
      %v729 = vld [vmem:[%s166 + $0x8ac] sm:$0xf]
      %v730 = vld [vmem:[%s166 + $0x8b0] sm:$0xf]
      %v731 = vld [vmem:[%s166 + $0x8b4] sm:$0xf]
      %v732 = vld [vmem:[%s166 + $0x8b8] sm:$0xf]
      %v733 = vld [vmem:[%s166 + $0x8bc] sm:$0xf]
      %v734 = vld [vmem:[%s166 + $0x8c0] sm:$0xf]
      %v735 = vld [vmem:[%s166 + $0x8c4] sm:$0xf]
      %v736 = vld [vmem:[%s166 + $0x8c8] sm:$0xf]
      %v737 = vld [vmem:[%s166 + $0x8cc] sm:$0xf]
      %v738 = vld [vmem:[%s166 + $0x8d0] sm:$0xf]
      %v739 = vld [vmem:[%s166 + $0x8d4] sm:$0xf]
      %v740 = vld [vmem:[%s166 + $0x8d8] sm:$0xf]
      %v741 = vld [vmem:[%s166 + $0x8dc] sm:$0xf]
      %v742 = vld [vmem:[%s166 + $0x8e0] sm:$0xf]
      %v743 = vld [vmem:[%s166 + $0x8e4] sm:$0xf]
      %v744 = vld [vmem:[%s166 + $0x8e8] sm:$0xf]
      %v745 = vld [vmem:[%s166 + $0x8ec] sm:$0xf]
      %v746 = vld [vmem:[%s166 + $0x8f0] sm:$0xf]
      %v747 = vld [vmem:[%s166 + $0x8f4] sm:$0xf]
      %v748 = vld [vmem:[%s166 + $0x8f8] sm:$0xf]
      %v749 = vld [vmem:[%s166 + $0x8fc] sm:$0xf]
      %v750 = vld [vmem:[%s166 + $0x900] sm:$0xf]
      %v751 = vld [vmem:[%s166 + $0x904] sm:$0xf]
      %v752 = vld [vmem:[%s166 + $0x908] sm:$0xf]
      %v753 = vld [vmem:[%s166 + $0x90c] sm:$0xf]
      %v754 = vld [vmem:[%s166 + $0x910] sm:$0xf]
      %v755 = vld [vmem:[%s166 + $0x914] sm:$0xf]
      %v756 = vld [vmem:[%s166 + $0x918] sm:$0xf]
      %v757 = vld [vmem:[%s166 + $0x91c] sm:$0xf]
      %v758 = vld [vmem:[%s166 + $0x920] sm:$0xf]
      %v759 = vld [vmem:[%s166 + $0x924] sm:$0xf]
      %v760 = vld [vmem:[%s166 + $0x928] sm:$0xf]
      %v761 = vld [vmem:[%s166 + $0x92c] sm:$0xf]
      %v762 = vld [vmem:[%s166 + $0x930] sm:$0xf]
      %v763 = vld [vmem:[%s166 + $0x934] sm:$0xf]
      %v764 = vld [vmem:[%s166 + $0x938] sm:$0xf]
      %v765 = vld [vmem:[%s166 + $0x93c] sm:$0xf]
      %v766 = vld [vmem:[%s166 + $0x940] sm:$0xf]
      %v767 = vld [vmem:[%s166 + $0x944] sm:$0xf]
      %v768 = vld [vmem:[%s166 + $0x948] sm:$0xf]
      %v769 = vld [vmem:[%s166 + $0x94c] sm:$0xf]
      %v770 = vld [vmem:[%s166 + $0x950] sm:$0xf]
      %v771 = vld [vmem:[%s166 + $0x954] sm:$0xf]
      %v772 = vld [vmem:[%s166 + $0x958] sm:$0xf]
      %v773 = vld [vmem:[%s166 + $0x95c] sm:$0xf]
      %v774 = vld [vmem:[%s166 + $0x960] sm:$0xf]
      %v775 = vld [vmem:[%s166 + $0x964] sm:$0xf]
      %v776 = vld [vmem:[%s166 + $0x968] sm:$0xf]
      %v777 = vld [vmem:[%s166 + $0x96c] sm:$0xf]
      %v778 = vld [vmem:[%s166 + $0x970] sm:$0xf]
      %v779 = vld [vmem:[%s166 + $0x974] sm:$0xf]
      %v780 = vld [vmem:[%s166 + $0x978] sm:$0xf]
      %v781 = vld [vmem:[%s166 + $0x97c] sm:$0xf]
      %v782 = vld [vmem:[%s166 + $0x980] sm:$0xf]
      %v783 = vld [vmem:[%s166 + $0x984] sm:$0xf]
      %v784 = vld [vmem:[%s166 + $0x988] sm:$0xf]
      %v785 = vld [vmem:[%s166 + $0x98c] sm:$0xf]
      %v786 = vld [vmem:[%s166 + $0x990] sm:$0xf]
      %v787 = vld [vmem:[%s166 + $0x994] sm:$0xf]
      %v788 = vld [vmem:[%s166 + $0x998] sm:$0xf]
      %v789 = vld [vmem:[%s166 + $0x99c] sm:$0xf]
      %v790 = vld [vmem:[%s166 + $0x9a0] sm:$0xf]
      %v791 = vld [vmem:[%s166 + $0x9a4] sm:$0xf]
      %v792 = vld [vmem:[%s166 + $0x9a8] sm:$0xf]
      %v793 = vld [vmem:[%s166 + $0x9ac] sm:$0xf]
      %v794 = vld [vmem:[%s166 + $0x9b0] sm:$0xf]
      %v795 = vld [vmem:[%s166 + $0x9b4] sm:$0xf]
      %v796 = vld [vmem:[%s166 + $0x9b8] sm:$0xf]
      %v797 = vld [vmem:[%s166 + $0x9bc] sm:$0xf]
      %v798 = vld [vmem:[%s166 + $0x9c0] sm:$0xf]
      %v799 = vld [vmem:[%s166 + $0x9c4] sm:$0xf]
      %v800 = vld [vmem:[%s166 + $0x9c8] sm:$0xf]
      %v801 = vld [vmem:[%s166 + $0x9cc] sm:$0xf]
      %v802 = vld [vmem:[%s166 + $0x9d0] sm:$0xf]
      %v803 = vld [vmem:[%s166 + $0x9d4] sm:$0xf]
      %v804 = vld [vmem:[%s166 + $0x9d8] sm:$0xf]
      %v805 = vld [vmem:[%s166 + $0x9dc] sm:$0xf]
      %v806 = vld [vmem:[%s166 + $0x9e0] sm:$0xf]
      %v807 = vld [vmem:[%s166 + $0x9e4] sm:$0xf]
      %v808 = vld [vmem:[%s166 + $0x9e8] sm:$0xf]
      %v809 = vld [vmem:[%s166 + $0x9ec] sm:$0xf]
      %v810 = vld [vmem:[%s166 + $0x9f0] sm:$0xf]
      %v811 = vld [vmem:[%s166 + $0x9f4] sm:$0xf]
      %v812 = vld [vmem:[%s166 + $0x9f8] sm:$0xf]
      %v813 = vld [vmem:[%s166 + $0x9fc] sm:$0xf]
      %v814 = vld [vmem:[%s166 + $0xa00] sm:$0xf]
      %v815 = vld [vmem:[%s166 + $0xa04] sm:$0xf]
      %v816 = vld [vmem:[%s166 + $0xa08] sm:$0xf]
      %v817 = vld [vmem:[%s166 + $0xa0c] sm:$0xf]
      %v818 = vld [vmem:[%s166 + $0xa10] sm:$0xf]
      %v819 = vld [vmem:[%s166 + $0xa14] sm:$0xf]
      %v820 = vld [vmem:[%s166 + $0xa18] sm:$0xf]
      %v821 = vld [vmem:[%s166 + $0xa1c] sm:$0xf]
      %v822 = vld [vmem:[%s166 + $0xa20] sm:$0xf]
      %v823 = vld [vmem:[%s166 + $0xa24] sm:$0xf]
      %v824 = vld [vmem:[%s166 + $0xa28] sm:$0xf]
      %v825 = vld [vmem:[%s166 + $0xa2c] sm:$0xf]
      %v826 = vld [vmem:[%s166 + $0xa30] sm:$0xf]
      %v827 = vld [vmem:[%s166 + $0xa34] sm:$0xf]
      %v828 = vld [vmem:[%s166 + $0xa38] sm:$0xf]
      %v829 = vld [vmem:[%s166 + $0xa3c] sm:$0xf]
      %v830 = vld [vmem:[%s166 + $0xa40] sm:$0xf]
      %v831 = vld [vmem:[%s166 + $0xa44] sm:$0xf]
      %v832 = vld [vmem:[%s166 + $0xa48] sm:$0xf]
      %v833 = vld [vmem:[%s166 + $0xa4c] sm:$0xf]
      %v834 = vld [vmem:[%s166 + $0xa50] sm:$0xf]
      %v835 = vld [vmem:[%s166 + $0xa54] sm:$0xf]
      %v836 = vld [vmem:[%s166 + $0xa58] sm:$0xf]
      %v837 = vld [vmem:[%s166 + $0xa5c] sm:$0xf]
      %v838 = vld [vmem:[%s166 + $0xa60] sm:$0xf]
      %v839 = vld [vmem:[%s166 + $0xa64] sm:$0xf]
      %v840 = vld [vmem:[%s166 + $0xa68] sm:$0xf]
      %v841 = vld [vmem:[%s166 + $0xa6c] sm:$0xf]
      %v842 = vld [vmem:[%s166 + $0xa70] sm:$0xf]
      %v843 = vld [vmem:[%s166 + $0xa74] sm:$0xf]
      %v844 = vld [vmem:[%s166 + $0xa78] sm:$0xf]
      %v845 = vld [vmem:[%s166 + $0xa7c] sm:$0xf]
      %v846 = vld [vmem:[%s166 + $0xa80] sm:$0xf]
      %v847 = vld [vmem:[%s166 + $0xa84] sm:$0xf]
      %v848 = vld [vmem:[%s166 + $0xa88] sm:$0xf]
      %v849 = vld [vmem:[%s166 + $0xa8c] sm:$0xf]
      %v850 = vld [vmem:[%s166 + $0xa90] sm:$0xf]
      %v851 = vld [vmem:[%s166 + $0xa94] sm:$0xf]
      %v852 = vld [vmem:[%s166 + $0xa98] sm:$0xf]
      %v853 = vld [vmem:[%s166 + $0xa9c] sm:$0xf]
      %v854 = vld [vmem:[%s166 + $0xaa0] sm:$0xf]
      %v855 = vld [vmem:[%s166 + $0xaa4] sm:$0xf]
      %v856 = vld [vmem:[%s166 + $0xaa8] sm:$0xf]
      %v857 = vld [vmem:[%s166 + $0xaac] sm:$0xf]
      %v858 = vld [vmem:[%s166 + $0xab0] sm:$0xf]
      %v859 = vld [vmem:[%s166 + $0xab4] sm:$0xf]
      %v860 = vld [vmem:[%s166 + $0xab8] sm:$0xf]
      %v861 = vld [vmem:[%s166 + $0xabc] sm:$0xf]
      %v862 = vld [vmem:[%s166 + $0xac0] sm:$0xf]
      %v863 = vld [vmem:[%s166 + $0xac4] sm:$0xf]
      %v864 = vld [vmem:[%s166 + $0xac8] sm:$0xf]
      %v865 = vld [vmem:[%s166 + $0xacc] sm:$0xf]
      %v866 = vld [vmem:[%s166 + $0xad0] sm:$0xf]
      %v867 = vld [vmem:[%s166 + $0xad4] sm:$0xf]
      %v868 = vld [vmem:[%s166 + $0xad8] sm:$0xf]
      %v869 = vld [vmem:[%s166 + $0xadc] sm:$0xf]
      %v870 = vld [vmem:[%s166 + $0xae0] sm:$0xf]
      %v871 = vld [vmem:[%s166 + $0xae4] sm:$0xf]
      %v872 = vld [vmem:[%s166 + $0xae8] sm:$0xf]
      %v873 = vld [vmem:[%s166 + $0xaec] sm:$0xf]
      %v874 = vld [vmem:[%s166 + $0xaf0] sm:$0xf]
      %v875 = vld [vmem:[%s166 + $0xaf4] sm:$0xf]
      %v876 = vld [vmem:[%s166 + $0xaf8] sm:$0xf]
      %v877 = vld [vmem:[%s166 + $0xafc] sm:$0xf]
      %v878 = vld [vmem:[%s166 + $0xb00] sm:$0xf]
      %v879 = vld [vmem:[%s166 + $0xb04] sm:$0xf]
      %v880 = vld [vmem:[%s166 + $0xb08] sm:$0xf]
      %v881 = vld [vmem:[%s166 + $0xb0c] sm:$0xf]
      %v882 = vld [vmem:[%s166 + $0xb10] sm:$0xf]
      %v883 = vld [vmem:[%s166 + $0xb14] sm:$0xf]
      %v884 = vld [vmem:[%s166 + $0xb18] sm:$0xf]
      %v885 = vld [vmem:[%s166 + $0xb1c] sm:$0xf]
      %v886 = vld [vmem:[%s166 + $0xb20] sm:$0xf]
      %v887 = vld [vmem:[%s166 + $0xb24] sm:$0xf]
      %v888 = vld [vmem:[%s166 + $0xb28] sm:$0xf]
      %v889 = vld [vmem:[%s166 + $0xb2c] sm:$0xf]
      %v890 = vld [vmem:[%s166 + $0xb30] sm:$0xf]
      %v891 = vld [vmem:[%s166 + $0xb34] sm:$0xf]
      %v892 = vld [vmem:[%s166 + $0xb38] sm:$0xf]
      %v893 = vld [vmem:[%s166 + $0xb3c] sm:$0xf]
      %v894 = vld [vmem:[%s166 + $0xb40] sm:$0xf]
      %v895 = vld [vmem:[%s166 + $0xb44] sm:$0xf]
      %v896 = vld [vmem:[%s166 + $0xb48] sm:$0xf]
      %v897 = vld [vmem:[%s166 + $0xb4c] sm:$0xf]
      %v898 = vld [vmem:[%s166 + $0xb50] sm:$0xf]
      %v899 = vld [vmem:[%s166 + $0xb54] sm:$0xf]
      %v900 = vld [vmem:[%s166 + $0xb58] sm:$0xf]
      %v901 = vld [vmem:[%s166 + $0xb5c] sm:$0xf]
      %v902 = vld [vmem:[%s166 + $0xb60] sm:$0xf]
      %v903 = vld [vmem:[%s166 + $0xb64] sm:$0xf]
      %v904 = vld [vmem:[%s166 + $0xb68] sm:$0xf]
      %v905 = vld [vmem:[%s166 + $0xb6c] sm:$0xf]
      %v906 = vld [vmem:[%s166 + $0xb70] sm:$0xf]
      %v907 = vld [vmem:[%s166 + $0xb74] sm:$0xf]
      %v908 = vld [vmem:[%s166 + $0xb78] sm:$0xf]
      %v909 = vld [vmem:[%s166 + $0xb7c] sm:$0xf]
      %v910 = vld [vmem:[%s166 + $0xb80] sm:$0xf]
      %v911 = vld [vmem:[%s166 + $0xb84] sm:$0xf]
      %v912 = vld [vmem:[%s166 + $0xb88] sm:$0xf]
      %v913 = vld [vmem:[%s166 + $0xb8c] sm:$0xf]
      %v914 = vld [vmem:[%s166 + $0xb90] sm:$0xf]
      %v915 = vld [vmem:[%s166 + $0xb94] sm:$0xf]
      %v916 = vld [vmem:[%s166 + $0xb98] sm:$0xf]
      %v917 = vld [vmem:[%s166 + $0xb9c] sm:$0xf]
      %v918 = vld [vmem:[%s166 + $0xba0] sm:$0xf]
      %v919 = vld [vmem:[%s166 + $0xba4] sm:$0xf]
      %v920 = vld [vmem:[%s166 + $0xba8] sm:$0xf]
      %v921 = vld [vmem:[%s166 + $0xbac] sm:$0xf]
      %v922 = vld [vmem:[%s166 + $0xbb0] sm:$0xf]
      %v923 = vld [vmem:[%s166 + $0xbb4] sm:$0xf]
      %v924 = vld [vmem:[%s166 + $0xbb8] sm:$0xf]
      %v925 = vld [vmem:[%s166 + $0xbbc] sm:$0xf]
      %v926 = vld [vmem:[%s166 + $0xbc0] sm:$0xf]
      %v927 = vld [vmem:[%s166 + $0xbc4] sm:$0xf]
      %v928 = vld [vmem:[%s166 + $0xbc8] sm:$0xf]
      %v929 = vld [vmem:[%s166 + $0xbcc] sm:$0xf]
      %v930 = vld [vmem:[%s166 + $0xbd0] sm:$0xf]
      %v931 = vld [vmem:[%s166 + $0xbd4] sm:$0xf]
      %v932 = vld [vmem:[%s166 + $0xbd8] sm:$0xf]
      %v933 = vld [vmem:[%s166 + $0xbdc] sm:$0xf]
      %v934 = vld [vmem:[%s166 + $0xbe0] sm:$0xf]
      %v935 = vld [vmem:[%s166 + $0xbe4] sm:$0xf]
      %v936 = vld [vmem:[%s166 + $0xbe8] sm:$0xf]
      %v937 = vld [vmem:[%s166 + $0xbec] sm:$0xf]
      %v938 = vld [vmem:[%s166 + $0xbf0] sm:$0xf]
      %v939 = vld [vmem:[%s166 + $0xbf4] sm:$0xf]
      %v940 = vld [vmem:[%s166 + $0xbf8] sm:$0xf]
      %v941 = vld [vmem:[%s166 + $0xbfc] sm:$0xf]
      %v942 = vld [vmem:[%s166 + $0xc00] sm:$0xf]
      %v943 = vld [vmem:[%s166 + $0xc04] sm:$0xf]
      %v944 = vld [vmem:[%s166 + $0xc08] sm:$0xf]
      %v945 = vld [vmem:[%s166 + $0xc0c] sm:$0xf]
      %v946 = vld [vmem:[%s166 + $0xc10] sm:$0xf]
      %v947 = vld [vmem:[%s166 + $0xc14] sm:$0xf]
      %v948 = vld [vmem:[%s166 + $0xc18] sm:$0xf]
      %v949 = vld [vmem:[%s166 + $0xc1c] sm:$0xf]
      %v950 = vld [vmem:[%s166 + $0xc20] sm:$0xf]
      %v951 = vld [vmem:[%s166 + $0xc24] sm:$0xf]
      %v952 = vld [vmem:[%s166 + $0xc28] sm:$0xf]
      %v953 = vld [vmem:[%s166 + $0xc2c] sm:$0xf]
      %v954 = vld [vmem:[%s166 + $0xc30] sm:$0xf]
      %v955 = vld [vmem:[%s166 + $0xc34] sm:$0xf]
      %v956 = vld [vmem:[%s166 + $0xc38] sm:$0xf]
      %v957 = vld [vmem:[%s166 + $0xc3c] sm:$0xf]
      %v958 = vunpack.c.l.bf16 %v174
      %v959 = vunpack.c.l.bf16 %v175
      %v960 = vunpack.c.l.bf16 %v176
      %v961 = vunpack.c.l.bf16 %v177
      %v962 = vunpack.c.l.bf16 %v178
      %v963 = vunpack.c.l.bf16 %v179
      %v964 = vunpack.c.l.bf16 %v180
      %v965 = vunpack.c.l.bf16 %v181
      %v966 = vunpack.c.l.bf16 %v182
      %v967 = vunpack.c.l.bf16 %v183
      %v968 = vunpack.c.l.bf16 %v184
      %v969 = vunpack.c.l.bf16 %v185
      %v970 = vunpack.c.l.bf16 %v186
      %v971 = vunpack.c.l.bf16 %v187
      %v972 = vunpack.c.l.bf16 %v188
      %v973 = vunpack.c.l.bf16 %v189
      %v974 = vunpack.c.l.bf16 %v190
      %v975 = vunpack.c.l.bf16 %v191
      %v976 = vunpack.c.l.bf16 %v192
      %v977 = vunpack.c.l.bf16 %v193
      %v978 = vunpack.c.l.bf16 %v194
      %v979 = vunpack.c.l.bf16 %v195
      %v980 = vunpack.c.l.bf16 %v196
      %v981 = vunpack.c.l.bf16 %v197
      %v982 = vunpack.c.l.bf16 %v198
      %v983 = vunpack.c.l.bf16 %v199
      %v984 = vunpack.c.l.bf16 %v200
      %v985 = vunpack.c.l.bf16 %v201
      %v986 = vunpack.c.l.bf16 %v202
      %v987 = vunpack.c.l.bf16 %v203
      %v988 = vunpack.c.l.bf16 %v204
      %v989 = vunpack.c.l.bf16 %v205
      %v990 = vunpack.c.l.bf16 %v206
      %v991 = vunpack.c.l.bf16 %v207
      %v992 = vunpack.c.l.bf16 %v208
      %v993 = vunpack.c.l.bf16 %v209
      %v994 = vunpack.c.l.bf16 %v210
      %v995 = vunpack.c.l.bf16 %v211
      %v996 = vunpack.c.l.bf16 %v212
      %v997 = vunpack.c.l.bf16 %v213
      %v998 = vunpack.c.l.bf16 %v214
      %v999 = vunpack.c.l.bf16 %v215
      %v1000 = vunpack.c.l.bf16 %v216
      %v1001 = vunpack.c.l.bf16 %v217
      %v1002 = vunpack.c.l.bf16 %v218
      %v1003 = vunpack.c.l.bf16 %v219
      %v1004 = vunpack.c.l.bf16 %v220
      %v1005 = vunpack.c.l.bf16 %v221
      %v1006 = vunpack.c.l.bf16 %v222
      %v1007 = vunpack.c.l.bf16 %v223
      %v1008 = vunpack.c.l.bf16 %v224
      %v1009 = vunpack.c.l.bf16 %v225
      %v1010 = vunpack.c.l.bf16 %v226
      %v1011 = vunpack.c.l.bf16 %v227
      %v1012 = vunpack.c.l.bf16 %v228
      %v1013 = vunpack.c.l.bf16 %v229
      %v1014 = vunpack.c.l.bf16 %v230
      %v1015 = vunpack.c.l.bf16 %v231
      %v1016 = vunpack.c.l.bf16 %v232
      %v1017 = vunpack.c.l.bf16 %v233
      %v1018 = vunpack.c.l.bf16 %v234
      %v1019 = vunpack.c.l.bf16 %v235
      %v1020 = vunpack.c.l.bf16 %v236
      %v1021 = vunpack.c.l.bf16 %v237
      %v1022 = vunpack.c.l.bf16 %v238
      %v1023 = vunpack.c.l.bf16 %v239
      %v1024 = vunpack.c.l.bf16 %v240
      %v1025 = vunpack.c.l.bf16 %v241
      %v1026 = vunpack.c.l.bf16 %v242
      %v1027 = vunpack.c.l.bf16 %v243
      %v1028 = vunpack.c.l.bf16 %v244
      %v1029 = vunpack.c.l.bf16 %v245
      %v1030 = vunpack.c.l.bf16 %v246
      %v1031 = vunpack.c.l.bf16 %v247
      %v1032 = vunpack.c.l.bf16 %v248
      %v1033 = vunpack.c.l.bf16 %v249
      %v1034 = vunpack.c.l.bf16 %v250
      %v1035 = vunpack.c.l.bf16 %v251
      %v1036 = vunpack.c.l.bf16 %v252
      %v1037 = vunpack.c.l.bf16 %v253
      %v1038 = vunpack.c.l.bf16 %v254
      %v1039 = vunpack.c.l.bf16 %v255
      %v1040 = vunpack.c.l.bf16 %v256
      %v1041 = vunpack.c.l.bf16 %v257
      %v1042 = vunpack.c.l.bf16 %v258
      %v1043 = vunpack.c.l.bf16 %v259
      %v1044 = vunpack.c.l.bf16 %v260
      %v1045 = vunpack.c.l.bf16 %v261
      %v1046 = vunpack.c.l.bf16 %v262
      %v1047 = vunpack.c.l.bf16 %v263
      %v1048 = vunpack.c.l.bf16 %v264
      %v1049 = vunpack.c.l.bf16 %v265
      %v1050 = vunpack.c.l.bf16 %v266
      %v1051 = vunpack.c.l.bf16 %v267
      %v1052 = vunpack.c.l.bf16 %v268
      %v1053 = vunpack.c.l.bf16 %v269
      %v1054 = vunpack.c.l.bf16 %v270
      %v1055 = vunpack.c.l.bf16 %v271
      %v1056 = vunpack.c.l.bf16 %v272
      %v1057 = vunpack.c.l.bf16 %v273
      %v1058 = vunpack.c.l.bf16 %v274
      %v1059 = vunpack.c.l.bf16 %v275
      %v1060 = vunpack.c.l.bf16 %v276
      %v1061 = vunpack.c.l.bf16 %v277
      %v1062 = vunpack.c.l.bf16 %v278
      %v1063 = vunpack.c.l.bf16 %v279
      %v1064 = vunpack.c.l.bf16 %v280
      %v1065 = vunpack.c.l.bf16 %v281
      %v1066 = vunpack.c.l.bf16 %v282
      %v1067 = vunpack.c.l.bf16 %v283
      %v1068 = vunpack.c.l.bf16 %v284
      %v1069 = vunpack.c.l.bf16 %v285
      %v1070 = vunpack.c.l.bf16 %v286
      %v1071 = vunpack.c.l.bf16 %v287
      %v1072 = vunpack.c.l.bf16 %v288
      %v1073 = vunpack.c.l.bf16 %v289
      %v1074 = vunpack.c.l.bf16 %v290
      %v1075 = vunpack.c.l.bf16 %v291
      %v1076 = vunpack.c.l.bf16 %v292
      %v1077 = vunpack.c.l.bf16 %v293
      %v1078 = vunpack.c.l.bf16 %v294
      %v1079 = vunpack.c.l.bf16 %v295
      %v1080 = vunpack.c.l.bf16 %v296
      %v1081 = vunpack.c.l.bf16 %v297
      %v1082 = vunpack.c.l.bf16 %v298
      %v1083 = vunpack.c.l.bf16 %v299
      %v1084 = vunpack.c.l.bf16 %v300
      %v1085 = vunpack.c.l.bf16 %v301
      %v1086 = vunpack.c.l.bf16 %v302
      %v1087 = vunpack.c.l.bf16 %v303
      %v1088 = vunpack.c.l.bf16 %v304
      %v1089 = vunpack.c.l.bf16 %v305
      %v1090 = vunpack.c.l.bf16 %v306
      %v1091 = vunpack.c.l.bf16 %v307
      %v1092 = vunpack.c.l.bf16 %v308
      %v1093 = vunpack.c.l.bf16 %v309
      %v1094 = vunpack.c.l.bf16 %v310
      %v1095 = vunpack.c.l.bf16 %v311
      %v1096 = vunpack.c.l.bf16 %v312
      %v1097 = vunpack.c.l.bf16 %v313
      %v1098 = vunpack.c.l.bf16 %v314
      %v1099 = vunpack.c.l.bf16 %v315
      %v1100 = vunpack.c.l.bf16 %v316
      %v1101 = vunpack.c.l.bf16 %v317
      %v1102 = vunpack.c.l.bf16 %v318
      %v1103 = vunpack.c.l.bf16 %v319
      %v1104 = vunpack.c.l.bf16 %v320
      %v1105 = vunpack.c.l.bf16 %v321
      %v1106 = vunpack.c.l.bf16 %v322
      %v1107 = vunpack.c.l.bf16 %v323
      %v1108 = vunpack.c.l.bf16 %v324
      %v1109 = vunpack.c.l.bf16 %v325
      %v1110 = vunpack.c.l.bf16 %v326
      %v1111 = vunpack.c.l.bf16 %v327
      %v1112 = vunpack.c.l.bf16 %v328
      %v1113 = vunpack.c.l.bf16 %v329
      %v1114 = vunpack.c.l.bf16 %v330
      %v1115 = vunpack.c.l.bf16 %v331
      %v1116 = vunpack.c.l.bf16 %v332
      %v1117 = vunpack.c.l.bf16 %v333
      %v1118 = vunpack.c.l.bf16 %v334
      %v1119 = vunpack.c.l.bf16 %v335
      %v1120 = vunpack.c.l.bf16 %v336
      %v1121 = vunpack.c.l.bf16 %v337
      %v1122 = vunpack.c.l.bf16 %v338
      %v1123 = vunpack.c.l.bf16 %v339
      %v1124 = vunpack.c.l.bf16 %v340
      %v1125 = vunpack.c.l.bf16 %v341
      %v1126 = vunpack.c.l.bf16 %v342
      %v1127 = vunpack.c.l.bf16 %v343
      %v1128 = vunpack.c.l.bf16 %v344
      %v1129 = vunpack.c.l.bf16 %v345
      %v1130 = vunpack.c.l.bf16 %v346
      %v1131 = vunpack.c.l.bf16 %v347
      %v1132 = vunpack.c.l.bf16 %v348
      %v1133 = vunpack.c.l.bf16 %v349
      %v1134 = vunpack.c.l.bf16 %v350
      %v1135 = vunpack.c.l.bf16 %v351
      %v1136 = vunpack.c.l.bf16 %v352
      %v1137 = vunpack.c.l.bf16 %v353
      %v1138 = vunpack.c.l.bf16 %v354
      %v1139 = vunpack.c.l.bf16 %v355
      %v1140 = vunpack.c.l.bf16 %v356
      %v1141 = vunpack.c.l.bf16 %v357
      %v1142 = vunpack.c.l.bf16 %v358
      %v1143 = vunpack.c.l.bf16 %v359
      %v1144 = vunpack.c.l.bf16 %v360
      %v1145 = vunpack.c.l.bf16 %v361
      %v1146 = vunpack.c.l.bf16 %v362
      %v1147 = vunpack.c.l.bf16 %v363
      %v1148 = vunpack.c.l.bf16 %v364
      %v1149 = vunpack.c.l.bf16 %v365
      %v1150 = vunpack.c.l.bf16 %v366
      %v1151 = vunpack.c.l.bf16 %v367
      %v1152 = vunpack.c.l.bf16 %v368
      %v1153 = vunpack.c.l.bf16 %v369
      %v1154 = vunpack.c.l.bf16 %v370
      %v1155 = vunpack.c.l.bf16 %v371
      %v1156 = vunpack.c.l.bf16 %v372
      %v1157 = vunpack.c.l.bf16 %v373
      %v1158 = vunpack.c.l.bf16 %v374
      %v1159 = vunpack.c.l.bf16 %v375
      %v1160 = vunpack.c.l.bf16 %v376
      %v1161 = vunpack.c.l.bf16 %v377
      %v1162 = vunpack.c.l.bf16 %v378
      %v1163 = vunpack.c.l.bf16 %v379
      %v1164 = vunpack.c.l.bf16 %v380
      %v1165 = vunpack.c.l.bf16 %v381
      %v1166 = vunpack.c.l.bf16 %v382
      %v1167 = vunpack.c.l.bf16 %v383
      %v1168 = vunpack.c.l.bf16 %v384
      %v1169 = vunpack.c.l.bf16 %v385
      %v1170 = vunpack.c.l.bf16 %v386
      %v1171 = vunpack.c.l.bf16 %v387
      %v1172 = vunpack.c.l.bf16 %v388
      %v1173 = vunpack.c.l.bf16 %v389
      %v1174 = vunpack.c.l.bf16 %v390
      %v1175 = vunpack.c.l.bf16 %v391
      %v1176 = vunpack.c.l.bf16 %v392
      %v1177 = vunpack.c.l.bf16 %v393
      %v1178 = vunpack.c.l.bf16 %v394
      %v1179 = vunpack.c.l.bf16 %v395
      %v1180 = vunpack.c.l.bf16 %v396
      %v1181 = vunpack.c.l.bf16 %v397
      %v1182 = vunpack.c.l.bf16 %v398
      %v1183 = vunpack.c.l.bf16 %v399
      %v1184 = vunpack.c.l.bf16 %v400
      %v1185 = vunpack.c.l.bf16 %v401
      %v1186 = vunpack.c.l.bf16 %v402
      %v1187 = vunpack.c.l.bf16 %v403
      %v1188 = vunpack.c.l.bf16 %v404
      %v1189 = vunpack.c.l.bf16 %v405
      %v1190 = vunpack.c.l.bf16 %v406
      %v1191 = vunpack.c.l.bf16 %v407
      %v1192 = vunpack.c.l.bf16 %v408
      %v1193 = vunpack.c.l.bf16 %v409
      %v1194 = vunpack.c.l.bf16 %v410
      %v1195 = vunpack.c.l.bf16 %v411
      %v1196 = vunpack.c.l.bf16 %v412
      %v1197 = vunpack.c.l.bf16 %v413
      %v1198 = vunpack.c.l.bf16 %v414
      %v1199 = vunpack.c.l.bf16 %v415
      %v1200 = vunpack.c.l.bf16 %v416
      %v1201 = vunpack.c.l.bf16 %v417
      %v1202 = vunpack.c.l.bf16 %v418
      %v1203 = vunpack.c.l.bf16 %v419
      %v1204 = vunpack.c.l.bf16 %v420
      %v1205 = vunpack.c.l.bf16 %v421
      %v1206 = vunpack.c.l.bf16 %v422
      %v1207 = vunpack.c.l.bf16 %v423
      %v1208 = vunpack.c.l.bf16 %v424
      %v1209 = vunpack.c.l.bf16 %v425
      %v1210 = vunpack.c.l.bf16 %v426
      %v1211 = vunpack.c.l.bf16 %v427
      %v1212 = vunpack.c.l.bf16 %v428
      %v1213 = vunpack.c.l.bf16 %v429
      %v1214 = vunpack.c.l.bf16 %v430
      %v1215 = vunpack.c.l.bf16 %v431
      %v1216 = vunpack.c.l.bf16 %v432
      %v1217 = vunpack.c.l.bf16 %v433
      %v1218 = vunpack.c.l.bf16 %v434
      %v1219 = vunpack.c.l.bf16 %v435
      %v1220 = vunpack.c.l.bf16 %v436
      %v1221 = vunpack.c.l.bf16 %v437
      %v1222 = vunpack.c.l.bf16 %v438
      %v1223 = vunpack.c.l.bf16 %v439
      %v1224 = vunpack.c.l.bf16 %v440
      %v1225 = vunpack.c.l.bf16 %v441
      %v1226 = vunpack.c.l.bf16 %v442
      %v1227 = vunpack.c.l.bf16 %v443
      %v1228 = vunpack.c.l.bf16 %v444
      %v1229 = vunpack.c.l.bf16 %v445
      %v1230 = vunpack.c.l.bf16 %v446
      %v1231 = vunpack.c.l.bf16 %v447
      %v1232 = vunpack.c.l.bf16 %v448
      %v1233 = vunpack.c.l.bf16 %v449
      %v1234 = vunpack.c.l.bf16 %v450
      %v1235 = vunpack.c.l.bf16 %v451
      %v1236 = vunpack.c.l.bf16 %v452
      %v1237 = vunpack.c.l.bf16 %v453
      %v1238 = vunpack.c.l.bf16 %v454
      %v1239 = vunpack.c.l.bf16 %v455
      %v1240 = vunpack.c.l.bf16 %v456
      %v1241 = vunpack.c.l.bf16 %v457
      %v1242 = vunpack.c.l.bf16 %v458
      %v1243 = vunpack.c.l.bf16 %v459
      %v1244 = vunpack.c.l.bf16 %v460
      %v1245 = vunpack.c.l.bf16 %v461
      %v1246 = vunpack.c.l.bf16 %v462
      %v1247 = vunpack.c.l.bf16 %v463
      %v1248 = vunpack.c.l.bf16 %v464
      %v1249 = vunpack.c.l.bf16 %v465
      %v1250 = vunpack.c.l.bf16 %v466
      %v1251 = vunpack.c.l.bf16 %v467
      %v1252 = vunpack.c.l.bf16 %v468
      %v1253 = vunpack.c.l.bf16 %v469
      %v1254 = vunpack.c.l.bf16 %v470
      %v1255 = vunpack.c.l.bf16 %v471
      %v1256 = vunpack.c.l.bf16 %v472
      %v1257 = vunpack.c.l.bf16 %v473
      %v1258 = vunpack.c.l.bf16 %v474
      %v1259 = vunpack.c.l.bf16 %v475
      %v1260 = vunpack.c.l.bf16 %v476
      %v1261 = vunpack.c.l.bf16 %v477
      %v1262 = vunpack.c.l.bf16 %v478
      %v1263 = vunpack.c.l.bf16 %v479
      %v1264 = vunpack.c.l.bf16 %v480
      %v1265 = vunpack.c.l.bf16 %v481
      %v1266 = vunpack.c.l.bf16 %v482
      %v1267 = vunpack.c.l.bf16 %v483
      %v1268 = vunpack.c.l.bf16 %v484
      %v1269 = vunpack.c.l.bf16 %v485
      %v1270 = vunpack.c.l.bf16 %v486
      %v1271 = vunpack.c.l.bf16 %v487
      %v1272 = vunpack.c.l.bf16 %v488
      %v1273 = vunpack.c.l.bf16 %v489
      %v1274 = vunpack.c.l.bf16 %v490
      %v1275 = vunpack.c.l.bf16 %v491
      %v1276 = vunpack.c.l.bf16 %v492
      %v1277 = vunpack.c.l.bf16 %v493
      %v1278 = vunpack.c.l.bf16 %v494
      %v1279 = vunpack.c.l.bf16 %v495
      %v1280 = vunpack.c.l.bf16 %v496
      %v1281 = vunpack.c.l.bf16 %v497
      %v1282 = vunpack.c.l.bf16 %v498
      %v1283 = vunpack.c.l.bf16 %v499
      %v1284 = vunpack.c.l.bf16 %v500
      %v1285 = vunpack.c.l.bf16 %v501
      %v1286 = vunpack.c.l.bf16 %v502
      %v1287 = vunpack.c.l.bf16 %v503
      %v1288 = vunpack.c.l.bf16 %v504
      %v1289 = vunpack.c.l.bf16 %v505
      %v1290 = vunpack.c.l.bf16 %v506
      %v1291 = vunpack.c.l.bf16 %v507
      %v1292 = vunpack.c.l.bf16 %v508
      %v1293 = vunpack.c.l.bf16 %v509
      %v1294 = vunpack.c.l.bf16 %v510
      %v1295 = vunpack.c.l.bf16 %v511
      %v1296 = vunpack.c.l.bf16 %v512
      %v1297 = vunpack.c.l.bf16 %v513
      %v1298 = vunpack.c.l.bf16 %v514
      %v1299 = vunpack.c.l.bf16 %v515
      %v1300 = vunpack.c.l.bf16 %v516
      %v1301 = vunpack.c.l.bf16 %v517
      %v1302 = vunpack.c.l.bf16 %v518
      %v1303 = vunpack.c.l.bf16 %v519
      %v1304 = vunpack.c.l.bf16 %v520
      %v1305 = vunpack.c.l.bf16 %v521
      %v1306 = vunpack.c.l.bf16 %v522
      %v1307 = vunpack.c.l.bf16 %v523
      %v1308 = vunpack.c.l.bf16 %v524
      %v1309 = vunpack.c.l.bf16 %v525
      %v1310 = vunpack.c.l.bf16 %v526
      %v1311 = vunpack.c.l.bf16 %v527
      %v1312 = vunpack.c.l.bf16 %v528
      %v1313 = vunpack.c.l.bf16 %v529
      %v1314 = vunpack.c.l.bf16 %v530
      %v1315 = vunpack.c.l.bf16 %v531
      %v1316 = vunpack.c.l.bf16 %v532
      %v1317 = vunpack.c.l.bf16 %v533
      %v1318 = vunpack.c.l.bf16 %v534
      %v1319 = vunpack.c.l.bf16 %v535
      %v1320 = vunpack.c.l.bf16 %v536
      %v1321 = vunpack.c.l.bf16 %v537
      %v1322 = vunpack.c.l.bf16 %v538
      %v1323 = vunpack.c.l.bf16 %v539
      %v1324 = vunpack.c.l.bf16 %v540
      %v1325 = vunpack.c.l.bf16 %v541
      %v1326 = vunpack.c.l.bf16 %v542
      %v1327 = vunpack.c.l.bf16 %v543
      %v1328 = vunpack.c.l.bf16 %v544
      %v1329 = vunpack.c.l.bf16 %v545
      %v1330 = vunpack.c.l.bf16 %v546
      %v1331 = vunpack.c.l.bf16 %v547
      %v1332 = vunpack.c.l.bf16 %v548
      %v1333 = vunpack.c.l.bf16 %v549
      %v1334 = vunpack.c.l.bf16 %v550
      %v1335 = vunpack.c.l.bf16 %v551
      %v1336 = vunpack.c.l.bf16 %v552
      %v1337 = vunpack.c.l.bf16 %v553
      %v1338 = vunpack.c.l.bf16 %v554
      %v1339 = vunpack.c.l.bf16 %v555
      %v1340 = vunpack.c.l.bf16 %v556
      %v1341 = vunpack.c.l.bf16 %v557
      %v1342 = vunpack.c.l.bf16 %v558
      %v1343 = vunpack.c.l.bf16 %v559
      %v1344 = vunpack.c.l.bf16 %v560
      %v1345 = vunpack.c.l.bf16 %v561
      %v1346 = vunpack.c.l.bf16 %v562
      %v1347 = vunpack.c.l.bf16 %v563
      %v1348 = vunpack.c.l.bf16 %v564
      %v1349 = vunpack.c.l.bf16 %v565
      %v1350 = vunpack.c.l.bf16 %v566
      %v1351 = vunpack.c.l.bf16 %v567
      %v1352 = vunpack.c.l.bf16 %v568
      %v1353 = vunpack.c.l.bf16 %v569
      %v1354 = vunpack.c.l.bf16 %v570
      %v1355 = vunpack.c.l.bf16 %v571
      %v1356 = vunpack.c.l.bf16 %v572
      %v1357 = vunpack.c.l.bf16 %v573
      %v1358 = vunpack.c.l.bf16 %v574
      %v1359 = vunpack.c.l.bf16 %v575
      %v1360 = vunpack.c.l.bf16 %v576
      %v1361 = vunpack.c.l.bf16 %v577
      %v1362 = vunpack.c.l.bf16 %v578
      %v1363 = vunpack.c.l.bf16 %v579
      %v1364 = vunpack.c.l.bf16 %v580
      %v1365 = vunpack.c.l.bf16 %v581
      %v1366 = vunpack.c.l.bf16 %v582
      %v1367 = vunpack.c.l.bf16 %v583
      %v1368 = vunpack.c.l.bf16 %v584
      %v1369 = vunpack.c.l.bf16 %v585
      %v1370 = vunpack.c.l.bf16 %v586
      %v1371 = vunpack.c.l.bf16 %v587
      %v1372 = vunpack.c.l.bf16 %v588
      %v1373 = vunpack.c.l.bf16 %v589
      %v1374 = vunpack.c.l.bf16 %v590
      %v1375 = vunpack.c.l.bf16 %v591
      %v1376 = vunpack.c.l.bf16 %v592
      %v1377 = vunpack.c.l.bf16 %v593
      %v1378 = vunpack.c.l.bf16 %v594
      %v1379 = vunpack.c.l.bf16 %v595
      %v1380 = vunpack.c.l.bf16 %v596
      %v1381 = vunpack.c.l.bf16 %v597
      %v1382 = vunpack.c.l.bf16 %v598
      %v1383 = vunpack.c.l.bf16 %v599
      %v1384 = vunpack.c.l.bf16 %v600
      %v1385 = vunpack.c.l.bf16 %v601
      %v1386 = vunpack.c.l.bf16 %v602
      %v1387 = vunpack.c.l.bf16 %v603
      %v1388 = vunpack.c.l.bf16 %v604
      %v1389 = vunpack.c.l.bf16 %v605
      %v1390 = vunpack.c.l.bf16 %v606
      %v1391 = vunpack.c.l.bf16 %v607
      %v1392 = vunpack.c.l.bf16 %v608
      %v1393 = vunpack.c.l.bf16 %v609
      %v1394 = vunpack.c.l.bf16 %v610
      %v1395 = vunpack.c.l.bf16 %v611
      %v1396 = vunpack.c.l.bf16 %v612
      %v1397 = vunpack.c.l.bf16 %v613
      %v1398 = vunpack.c.l.bf16 %v614
      %v1399 = vunpack.c.l.bf16 %v615
      %v1400 = vunpack.c.l.bf16 %v616
      %v1401 = vunpack.c.l.bf16 %v617
      %v1402 = vunpack.c.l.bf16 %v618
      %v1403 = vunpack.c.l.bf16 %v619
      %v1404 = vunpack.c.l.bf16 %v620
      %v1405 = vunpack.c.l.bf16 %v621
      %v1406 = vunpack.c.l.bf16 %v622
      %v1407 = vunpack.c.l.bf16 %v623
      %v1408 = vunpack.c.l.bf16 %v624
      %v1409 = vunpack.c.l.bf16 %v625
      %v1410 = vunpack.c.l.bf16 %v626
      %v1411 = vunpack.c.l.bf16 %v627
      %v1412 = vunpack.c.l.bf16 %v628
      %v1413 = vunpack.c.l.bf16 %v629
      %v1414 = vunpack.c.l.bf16 %v630
      %v1415 = vunpack.c.l.bf16 %v631
      %v1416 = vunpack.c.l.bf16 %v632
      %v1417 = vunpack.c.l.bf16 %v633
      %v1418 = vunpack.c.l.bf16 %v634
      %v1419 = vunpack.c.l.bf16 %v635
      %v1420 = vunpack.c.l.bf16 %v636
      %v1421 = vunpack.c.l.bf16 %v637
      %v1422 = vunpack.c.l.bf16 %v638
      %v1423 = vunpack.c.l.bf16 %v639
      %v1424 = vunpack.c.l.bf16 %v640
      %v1425 = vunpack.c.l.bf16 %v641
      %v1426 = vunpack.c.l.bf16 %v642
      %v1427 = vunpack.c.l.bf16 %v643
      %v1428 = vunpack.c.l.bf16 %v644
      %v1429 = vunpack.c.l.bf16 %v645
      %v1430 = vunpack.c.l.bf16 %v646
      %v1431 = vunpack.c.l.bf16 %v647
      %v1432 = vunpack.c.l.bf16 %v648
      %v1433 = vunpack.c.l.bf16 %v649
      %v1434 = vunpack.c.l.bf16 %v650
      %v1435 = vunpack.c.l.bf16 %v651
      %v1436 = vunpack.c.l.bf16 %v652
      %v1437 = vunpack.c.l.bf16 %v653
      %v1438 = vunpack.c.l.bf16 %v654
      %v1439 = vunpack.c.l.bf16 %v655
      %v1440 = vunpack.c.l.bf16 %v656
      %v1441 = vunpack.c.l.bf16 %v657
      %v1442 = vunpack.c.l.bf16 %v658
      %v1443 = vunpack.c.l.bf16 %v659
      %v1444 = vunpack.c.l.bf16 %v660
      %v1445 = vunpack.c.l.bf16 %v661
      %v1446 = vunpack.c.l.bf16 %v662
      %v1447 = vunpack.c.l.bf16 %v663
      %v1448 = vunpack.c.l.bf16 %v664
      %v1449 = vunpack.c.l.bf16 %v665
      %v1450 = vunpack.c.l.bf16 %v666
      %v1451 = vunpack.c.l.bf16 %v667
      %v1452 = vunpack.c.l.bf16 %v668
      %v1453 = vunpack.c.l.bf16 %v669
      %v1454 = vunpack.c.l.bf16 %v670
      %v1455 = vunpack.c.l.bf16 %v671
      %v1456 = vunpack.c.l.bf16 %v672
      %v1457 = vunpack.c.l.bf16 %v673
      %v1458 = vunpack.c.l.bf16 %v674
      %v1459 = vunpack.c.l.bf16 %v675
      %v1460 = vunpack.c.l.bf16 %v676
      %v1461 = vunpack.c.l.bf16 %v677
      %v1462 = vunpack.c.l.bf16 %v678
      %v1463 = vunpack.c.l.bf16 %v679
      %v1464 = vunpack.c.l.bf16 %v680
      %v1465 = vunpack.c.l.bf16 %v681
      %v1466 = vunpack.c.l.bf16 %v682
      %v1467 = vunpack.c.l.bf16 %v683
      %v1468 = vunpack.c.l.bf16 %v684
      %v1469 = vunpack.c.l.bf16 %v685
      %v1470 = vunpack.c.l.bf16 %v686
      %v1471 = vunpack.c.l.bf16 %v687
      %v1472 = vunpack.c.l.bf16 %v688
      %v1473 = vunpack.c.l.bf16 %v689
      %v1474 = vunpack.c.l.bf16 %v690
      %v1475 = vunpack.c.l.bf16 %v691
      %v1476 = vunpack.c.l.bf16 %v692
      %v1477 = vunpack.c.l.bf16 %v693
      %v1478 = vunpack.c.l.bf16 %v694
      %v1479 = vunpack.c.l.bf16 %v695
      %v1480 = vunpack.c.l.bf16 %v696
      %v1481 = vunpack.c.l.bf16 %v697
      %v1482 = vunpack.c.l.bf16 %v698
      %v1483 = vunpack.c.l.bf16 %v699
      %v1484 = vunpack.c.l.bf16 %v700
      %v1485 = vunpack.c.l.bf16 %v701
      %v1486 = vunpack.c.l.bf16 %v702
      %v1487 = vunpack.c.l.bf16 %v703
      %v1488 = vunpack.c.l.bf16 %v704
      %v1489 = vunpack.c.l.bf16 %v705
      %v1490 = vunpack.c.l.bf16 %v706
      %v1491 = vunpack.c.l.bf16 %v707
      %v1492 = vunpack.c.l.bf16 %v708
      %v1493 = vunpack.c.l.bf16 %v709
      %v1494 = vunpack.c.l.bf16 %v710
      %v1495 = vunpack.c.l.bf16 %v711
      %v1496 = vunpack.c.l.bf16 %v712
      %v1497 = vunpack.c.l.bf16 %v713
      %v1498 = vunpack.c.l.bf16 %v714
      %v1499 = vunpack.c.l.bf16 %v715
      %v1500 = vunpack.c.l.bf16 %v716
      %v1501 = vunpack.c.l.bf16 %v717
      %v1502 = vunpack.c.l.bf16 %v718
      %v1503 = vunpack.c.l.bf16 %v719
      %v1504 = vunpack.c.l.bf16 %v720
      %v1505 = vunpack.c.l.bf16 %v721
      %v1506 = vunpack.c.l.bf16 %v722
      %v1507 = vunpack.c.l.bf16 %v723
      %v1508 = vunpack.c.l.bf16 %v724
      %v1509 = vunpack.c.l.bf16 %v725
      %v1510 = vunpack.c.l.bf16 %v726
      %v1511 = vunpack.c.l.bf16 %v727
      %v1512 = vunpack.c.l.bf16 %v728
      %v1513 = vunpack.c.l.bf16 %v729
      %v1514 = vunpack.c.l.bf16 %v730
      %v1515 = vunpack.c.l.bf16 %v731
      %v1516 = vunpack.c.l.bf16 %v732
      %v1517 = vunpack.c.l.bf16 %v733
      %v1518 = vunpack.c.l.bf16 %v734
      %v1519 = vunpack.c.l.bf16 %v735
      %v1520 = vunpack.c.l.bf16 %v736
      %v1521 = vunpack.c.l.bf16 %v737
      %v1522 = vunpack.c.l.bf16 %v738
      %v1523 = vunpack.c.l.bf16 %v739
      %v1524 = vunpack.c.l.bf16 %v740
      %v1525 = vunpack.c.l.bf16 %v741
      %v1526 = vunpack.c.l.bf16 %v742
      %v1527 = vunpack.c.l.bf16 %v743
      %v1528 = vunpack.c.l.bf16 %v744
      %v1529 = vunpack.c.l.bf16 %v745
      %v1530 = vunpack.c.l.bf16 %v746
      %v1531 = vunpack.c.l.bf16 %v747
      %v1532 = vunpack.c.l.bf16 %v748
      %v1533 = vunpack.c.l.bf16 %v749
      %v1534 = vunpack.c.l.bf16 %v750
      %v1535 = vunpack.c.l.bf16 %v751
      %v1536 = vunpack.c.l.bf16 %v752
      %v1537 = vunpack.c.l.bf16 %v753
      %v1538 = vunpack.c.l.bf16 %v754
      %v1539 = vunpack.c.l.bf16 %v755
      %v1540 = vunpack.c.l.bf16 %v756
      %v1541 = vunpack.c.l.bf16 %v757
      %v1542 = vunpack.c.l.bf16 %v758
      %v1543 = vunpack.c.l.bf16 %v759
      %v1544 = vunpack.c.l.bf16 %v760
      %v1545 = vunpack.c.l.bf16 %v761
      %v1546 = vunpack.c.l.bf16 %v762
      %v1547 = vunpack.c.l.bf16 %v763
      %v1548 = vunpack.c.l.bf16 %v764
      %v1549 = vunpack.c.l.bf16 %v765
      %v1550 = vunpack.c.l.bf16 %v766
      %v1551 = vunpack.c.l.bf16 %v767
      %v1552 = vunpack.c.l.bf16 %v768
      %v1553 = vunpack.c.l.bf16 %v769
      %v1554 = vunpack.c.l.bf16 %v770
      %v1555 = vunpack.c.l.bf16 %v771
      %v1556 = vunpack.c.l.bf16 %v772
      %v1557 = vunpack.c.l.bf16 %v773
      %v1558 = vunpack.c.l.bf16 %v774
      %v1559 = vunpack.c.l.bf16 %v775
      %v1560 = vunpack.c.l.bf16 %v776
      %v1561 = vunpack.c.l.bf16 %v777
      %v1562 = vunpack.c.l.bf16 %v778
      %v1563 = vunpack.c.l.bf16 %v779
      %v1564 = vunpack.c.l.bf16 %v780
      %v1565 = vunpack.c.l.bf16 %v781
      %v1566 = vunpack.c.l.bf16 %v782
      %v1567 = vunpack.c.l.bf16 %v783
      %v1568 = vunpack.c.l.bf16 %v784
      %v1569 = vunpack.c.l.bf16 %v785
      %v1570 = vunpack.c.l.bf16 %v786
      %v1571 = vunpack.c.l.bf16 %v787
      %v1572 = vunpack.c.l.bf16 %v788
      %v1573 = vunpack.c.l.bf16 %v789
      %v1574 = vunpack.c.l.bf16 %v790
      %v1575 = vunpack.c.l.bf16 %v791
      %v1576 = vunpack.c.l.bf16 %v792
      %v1577 = vunpack.c.l.bf16 %v793
      %v1578 = vunpack.c.l.bf16 %v794
      %v1579 = vunpack.c.l.bf16 %v795
      %v1580 = vunpack.c.l.bf16 %v796
      %v1581 = vunpack.c.l.bf16 %v797
      %v1582 = vunpack.c.l.bf16 %v798
      %v1583 = vunpack.c.l.bf16 %v799
      %v1584 = vunpack.c.l.bf16 %v800
      %v1585 = vunpack.c.l.bf16 %v801
      %v1586 = vunpack.c.l.bf16 %v802
      %v1587 = vunpack.c.l.bf16 %v803
      %v1588 = vunpack.c.l.bf16 %v804
      %v1589 = vunpack.c.l.bf16 %v805
      %v1590 = vunpack.c.l.bf16 %v806
      %v1591 = vunpack.c.l.bf16 %v807
      %v1592 = vunpack.c.l.bf16 %v808
      %v1593 = vunpack.c.l.bf16 %v809
      %v1594 = vunpack.c.l.bf16 %v810
      %v1595 = vunpack.c.l.bf16 %v811
      %v1596 = vunpack.c.l.bf16 %v812
      %v1597 = vunpack.c.l.bf16 %v813
      %v1598 = vunpack.c.l.bf16 %v814
      %v1599 = vunpack.c.l.bf16 %v815
      %v1600 = vunpack.c.l.bf16 %v816
      %v1601 = vunpack.c.l.bf16 %v817
      %v1602 = vunpack.c.l.bf16 %v818
      %v1603 = vunpack.c.l.bf16 %v819
      %v1604 = vunpack.c.l.bf16 %v820
      %v1605 = vunpack.c.l.bf16 %v821
      %v1606 = vunpack.c.l.bf16 %v822
      %v1607 = vunpack.c.l.bf16 %v823
      %v1608 = vunpack.c.l.bf16 %v824
      %v1609 = vunpack.c.l.bf16 %v825
      %v1610 = vunpack.c.l.bf16 %v826
      %v1611 = vunpack.c.l.bf16 %v827
      %v1612 = vunpack.c.l.bf16 %v828
      %v1613 = vunpack.c.l.bf16 %v829
      %v1614 = vunpack.c.l.bf16 %v830
      %v1615 = vunpack.c.l.bf16 %v831
      %v1616 = vunpack.c.l.bf16 %v832
      %v1617 = vunpack.c.l.bf16 %v833
      %v1618 = vunpack.c.l.bf16 %v834
      %v1619 = vunpack.c.l.bf16 %v835
      %v1620 = vunpack.c.l.bf16 %v836
      %v1621 = vunpack.c.l.bf16 %v837
      %v1622 = vunpack.c.l.bf16 %v838
      %v1623 = vunpack.c.l.bf16 %v839
      %v1624 = vunpack.c.l.bf16 %v840
      %v1625 = vunpack.c.l.bf16 %v841
      %v1626 = vunpack.c.l.bf16 %v842
      %v1627 = vunpack.c.l.bf16 %v843
      %v1628 = vunpack.c.l.bf16 %v844
      %v1629 = vunpack.c.l.bf16 %v845
      %v1630 = vunpack.c.l.bf16 %v846
      %v1631 = vunpack.c.l.bf16 %v847
      %v1632 = vunpack.c.l.bf16 %v848
      %v1633 = vunpack.c.l.bf16 %v849
      %v1634 = vunpack.c.l.bf16 %v850
      %v1635 = vunpack.c.l.bf16 %v851
      %v1636 = vunpack.c.l.bf16 %v852
      %v1637 = vunpack.c.l.bf16 %v853
      %v1638 = vunpack.c.l.bf16 %v854
      %v1639 = vunpack.c.l.bf16 %v855
      %v1640 = vunpack.c.l.bf16 %v856
      %v1641 = vunpack.c.l.bf16 %v857
      %v1642 = vunpack.c.l.bf16 %v858
      %v1643 = vunpack.c.l.bf16 %v859
      %v1644 = vunpack.c.l.bf16 %v860
      %v1645 = vunpack.c.l.bf16 %v861
      %v1646 = vunpack.c.l.bf16 %v862
      %v1647 = vunpack.c.l.bf16 %v863
      %v1648 = vunpack.c.l.bf16 %v864
      %v1649 = vunpack.c.l.bf16 %v865
      %v1650 = vunpack.c.l.bf16 %v866
      %v1651 = vunpack.c.l.bf16 %v867
      %v1652 = vunpack.c.l.bf16 %v868
      %v1653 = vunpack.c.l.bf16 %v869
      %v1654 = vunpack.c.l.bf16 %v870
      %v1655 = vunpack.c.l.bf16 %v871
      %v1656 = vunpack.c.l.bf16 %v872
      %v1657 = vunpack.c.l.bf16 %v873
      %v1658 = vunpack.c.l.bf16 %v874
      %v1659 = vunpack.c.l.bf16 %v875
      %v1660 = vunpack.c.l.bf16 %v876
      %v1661 = vunpack.c.l.bf16 %v877
      %v1662 = vunpack.c.l.bf16 %v878
      %v1663 = vunpack.c.l.bf16 %v879
      %v1664 = vunpack.c.l.bf16 %v880
      %v1665 = vunpack.c.l.bf16 %v881
      %v1666 = vunpack.c.l.bf16 %v882
      %v1667 = vunpack.c.l.bf16 %v883
      %v1668 = vunpack.c.l.bf16 %v884
      %v1669 = vunpack.c.l.bf16 %v885
      %v1670 = vunpack.c.l.bf16 %v886
      %v1671 = vunpack.c.l.bf16 %v887
      %v1672 = vunpack.c.l.bf16 %v888
      %v1673 = vunpack.c.l.bf16 %v889
      %v1674 = vunpack.c.l.bf16 %v890
      %v1675 = vunpack.c.l.bf16 %v891
      %v1676 = vunpack.c.l.bf16 %v892
      %v1677 = vunpack.c.l.bf16 %v893
      %v1678 = vunpack.c.l.bf16 %v894
      %v1679 = vunpack.c.l.bf16 %v895
      %v1680 = vunpack.c.l.bf16 %v896
      %v1681 = vunpack.c.l.bf16 %v897
      %v1682 = vunpack.c.l.bf16 %v898
      %v1683 = vunpack.c.l.bf16 %v899
      %v1684 = vunpack.c.l.bf16 %v900
      %v1685 = vunpack.c.l.bf16 %v901
      %v1686 = vunpack.c.l.bf16 %v902
      %v1687 = vunpack.c.l.bf16 %v903
      %v1688 = vunpack.c.l.bf16 %v904
      %v1689 = vunpack.c.l.bf16 %v905
      %v1690 = vunpack.c.l.bf16 %v906
      %v1691 = vunpack.c.l.bf16 %v907
      %v1692 = vunpack.c.l.bf16 %v908
      %v1693 = vunpack.c.l.bf16 %v909
      %v1694 = vunpack.c.l.bf16 %v910
      %v1695 = vunpack.c.l.bf16 %v911
      %v1696 = vunpack.c.l.bf16 %v912
      %v1697 = vunpack.c.l.bf16 %v913
      %v1698 = vunpack.c.l.bf16 %v914
      %v1699 = vunpack.c.l.bf16 %v915
      %v1700 = vunpack.c.l.bf16 %v916
      %v1701 = vunpack.c.l.bf16 %v917
      %v1702 = vunpack.c.l.bf16 %v918
      %v1703 = vunpack.c.l.bf16 %v919
      %v1704 = vunpack.c.l.bf16 %v920
      %v1705 = vunpack.c.l.bf16 %v921
      %v1706 = vunpack.c.l.bf16 %v922
      %v1707 = vunpack.c.l.bf16 %v923
      %v1708 = vunpack.c.l.bf16 %v924
      %v1709 = vunpack.c.l.bf16 %v925
      %v1710 = vunpack.c.l.bf16 %v926
      %v1711 = vunpack.c.l.bf16 %v927
      %v1712 = vunpack.c.l.bf16 %v928
      %v1713 = vunpack.c.l.bf16 %v929
      %v1714 = vunpack.c.l.bf16 %v930
      %v1715 = vunpack.c.l.bf16 %v931
      %v1716 = vunpack.c.l.bf16 %v932
      %v1717 = vunpack.c.l.bf16 %v933
      %v1718 = vunpack.c.l.bf16 %v934
      %v1719 = vunpack.c.l.bf16 %v935
      %v1720 = vunpack.c.l.bf16 %v936
      %v1721 = vunpack.c.l.bf16 %v937
      %v1722 = vunpack.c.l.bf16 %v938
      %v1723 = vunpack.c.l.bf16 %v939
      %v1724 = vunpack.c.l.bf16 %v940
      %v1725 = vunpack.c.l.bf16 %v941
      %v1726 = vunpack.c.l.bf16 %v942
      %v1727 = vunpack.c.l.bf16 %v943
      %v1728 = vunpack.c.l.bf16 %v944
      %v1729 = vunpack.c.l.bf16 %v945
      %v1730 = vunpack.c.l.bf16 %v946
      %v1731 = vunpack.c.l.bf16 %v947
      %v1732 = vunpack.c.l.bf16 %v948
      %v1733 = vunpack.c.l.bf16 %v949
      %v1734 = vunpack.c.l.bf16 %v950
      %v1735 = vunpack.c.l.bf16 %v951
      %v1736 = vunpack.c.l.bf16 %v952
      %v1737 = vunpack.c.l.bf16 %v953
      %v1738 = vunpack.c.l.bf16 %v954
      %v1739 = vunpack.c.l.bf16 %v955
      %v1740 = vunpack.c.l.bf16 %v956
      %v1741 = vunpack.c.l.bf16 %v957
      %v1742 = vld [vmem:[%s1] sm:$0x1]
      %v1744 = vlaneseq
      %v1745 = vshrl.u32 %v1744, 7
      %v1746 = vsub.s32 0, %v1745
      %v1747 = vrot.slane %v1742, %v1746
      %v1749 = vmul.f32 %v958, %v1747
      %v1750 = vmul.f32 %v959, %v1747
      %v1751 = vmul.f32 %v960, %v1747
      %v1752 = vmul.f32 %v961, %v1747
      %v1753 = vmul.f32 %v962, %v1747
      %v1754 = vmul.f32 %v963, %v1747
      %v1755 = vmul.f32 %v964, %v1747
      %v1756 = vmul.f32 %v965, %v1747
      %v1757 = vmul.f32 %v966, %v1747
      %v1758 = vmul.f32 %v967, %v1747
      %v1759 = vmul.f32 %v968, %v1747
      %v1760 = vmul.f32 %v969, %v1747
      %v1761 = vmul.f32 %v970, %v1747
      %v1762 = vmul.f32 %v971, %v1747
      %v1763 = vmul.f32 %v972, %v1747
      %v1764 = vmul.f32 %v973, %v1747
      %v1765 = vmul.f32 %v974, %v1747
      %v1766 = vmul.f32 %v975, %v1747
      %v1767 = vmul.f32 %v976, %v1747
      %v1768 = vmul.f32 %v977, %v1747
      %v1769 = vmul.f32 %v978, %v1747
      %v1770 = vmul.f32 %v979, %v1747
      %v1771 = vmul.f32 %v980, %v1747
      %v1772 = vmul.f32 %v981, %v1747
      %v1773 = vmul.f32 %v982, %v1747
      %v1774 = vmul.f32 %v983, %v1747
      %v1775 = vmul.f32 %v984, %v1747
      %v1776 = vmul.f32 %v985, %v1747
      %v1777 = vmul.f32 %v986, %v1747
      %v1778 = vmul.f32 %v987, %v1747
      %v1779 = vmul.f32 %v988, %v1747
      %v1780 = vmul.f32 %v989, %v1747
      %v1781 = vmul.f32 %v990, %v1747
      %v1782 = vmul.f32 %v991, %v1747
      %v1783 = vmul.f32 %v992, %v1747
      %v1784 = vmul.f32 %v993, %v1747
      %v1785 = vmul.f32 %v994, %v1747
      %v1786 = vmul.f32 %v995, %v1747
      %v1787 = vmul.f32 %v996, %v1747
      %v1788 = vmul.f32 %v997, %v1747
      %v1789 = vmul.f32 %v998, %v1747
      %v1790 = vmul.f32 %v999, %v1747
      %v1791 = vmul.f32 %v1000, %v1747
      %v1792 = vmul.f32 %v1001, %v1747
      %v1793 = vmul.f32 %v1002, %v1747
      %v1794 = vmul.f32 %v1003, %v1747
      %v1795 = vmul.f32 %v1004, %v1747
      %v1796 = vmul.f32 %v1005, %v1747
      %v1797 = vmul.f32 %v1006, %v1747
      %v1798 = vmul.f32 %v1007, %v1747
      %v1799 = vmul.f32 %v1008, %v1747
      %v1800 = vmul.f32 %v1009, %v1747
      %v1801 = vmul.f32 %v1010, %v1747
      %v1802 = vmul.f32 %v1011, %v1747
      %v1803 = vmul.f32 %v1012, %v1747
      %v1804 = vmul.f32 %v1013, %v1747
      %v1805 = vmul.f32 %v1014, %v1747
      %v1806 = vmul.f32 %v1015, %v1747
      %v1807 = vmul.f32 %v1016, %v1747
      %v1808 = vmul.f32 %v1017, %v1747
      %v1809 = vmul.f32 %v1018, %v1747
      %v1810 = vmul.f32 %v1019, %v1747
      %v1811 = vmul.f32 %v1020, %v1747
      %v1812 = vmul.f32 %v1021, %v1747
      %v1813 = vmul.f32 %v1022, %v1747
      %v1814 = vmul.f32 %v1023, %v1747
      %v1815 = vmul.f32 %v1024, %v1747
      %v1816 = vmul.f32 %v1025, %v1747
      %v1817 = vmul.f32 %v1026, %v1747
      %v1818 = vmul.f32 %v1027, %v1747
      %v1819 = vmul.f32 %v1028, %v1747
      %v1820 = vmul.f32 %v1029, %v1747
      %v1821 = vmul.f32 %v1030, %v1747
      %v1822 = vmul.f32 %v1031, %v1747
      %v1823 = vmul.f32 %v1032, %v1747
      %v1824 = vmul.f32 %v1033, %v1747
      %v1825 = vmul.f32 %v1034, %v1747
      %v1826 = vmul.f32 %v1035, %v1747
      %v1827 = vmul.f32 %v1036, %v1747
      %v1828 = vmul.f32 %v1037, %v1747
      %v1829 = vmul.f32 %v1038, %v1747
      %v1830 = vmul.f32 %v1039, %v1747
      %v1831 = vmul.f32 %v1040, %v1747
      %v1832 = vmul.f32 %v1041, %v1747
      %v1833 = vmul.f32 %v1042, %v1747
      %v1834 = vmul.f32 %v1043, %v1747
      %v1835 = vmul.f32 %v1044, %v1747
      %v1836 = vmul.f32 %v1045, %v1747
      %v1837 = vmul.f32 %v1046, %v1747
      %v1838 = vmul.f32 %v1047, %v1747
      %v1839 = vmul.f32 %v1048, %v1747
      %v1840 = vmul.f32 %v1049, %v1747
      %v1841 = vmul.f32 %v1050, %v1747
      %v1842 = vmul.f32 %v1051, %v1747
      %v1843 = vmul.f32 %v1052, %v1747
      %v1844 = vmul.f32 %v1053, %v1747
      %v1845 = vmul.f32 %v1054, %v1747
      %v1846 = vmul.f32 %v1055, %v1747
      %v1847 = vmul.f32 %v1056, %v1747
      %v1848 = vmul.f32 %v1057, %v1747
      %v1849 = vmul.f32 %v1058, %v1747
      %v1850 = vmul.f32 %v1059, %v1747
      %v1851 = vmul.f32 %v1060, %v1747
      %v1852 = vmul.f32 %v1061, %v1747
      %v1853 = vmul.f32 %v1062, %v1747
      %v1854 = vmul.f32 %v1063, %v1747
      %v1855 = vmul.f32 %v1064, %v1747
      %v1856 = vmul.f32 %v1065, %v1747
      %v1857 = vmul.f32 %v1066, %v1747
      %v1858 = vmul.f32 %v1067, %v1747
      %v1859 = vmul.f32 %v1068, %v1747
      %v1860 = vmul.f32 %v1069, %v1747
      %v1861 = vmul.f32 %v1070, %v1747
      %v1862 = vmul.f32 %v1071, %v1747
      %v1863 = vmul.f32 %v1072, %v1747
      %v1864 = vmul.f32 %v1073, %v1747
      %v1865 = vmul.f32 %v1074, %v1747
      %v1866 = vmul.f32 %v1075, %v1747
      %v1867 = vmul.f32 %v1076, %v1747
      %v1868 = vmul.f32 %v1077, %v1747
      %v1869 = vmul.f32 %v1078, %v1747
      %v1870 = vmul.f32 %v1079, %v1747
      %v1871 = vmul.f32 %v1080, %v1747
      %v1872 = vmul.f32 %v1081, %v1747
      %v1873 = vmul.f32 %v1082, %v1747
      %v1874 = vmul.f32 %v1083, %v1747
      %v1875 = vmul.f32 %v1084, %v1747
      %v1876 = vmul.f32 %v1085, %v1747
      %v1877 = vmul.f32 %v1086, %v1747
      %v1878 = vmul.f32 %v1087, %v1747
      %v1879 = vmul.f32 %v1088, %v1747
      %v1880 = vmul.f32 %v1089, %v1747
      %v1881 = vmul.f32 %v1090, %v1747
      %v1882 = vmul.f32 %v1091, %v1747
      %v1883 = vmul.f32 %v1092, %v1747
      %v1884 = vmul.f32 %v1093, %v1747
      %v1885 = vmul.f32 %v1094, %v1747
      %v1886 = vmul.f32 %v1095, %v1747
      %v1887 = vmul.f32 %v1096, %v1747
      %v1888 = vmul.f32 %v1097, %v1747
      %v1889 = vmul.f32 %v1098, %v1747
      %v1890 = vmul.f32 %v1099, %v1747
      %v1891 = vmul.f32 %v1100, %v1747
      %v1892 = vmul.f32 %v1101, %v1747
      %v1893 = vmul.f32 %v1102, %v1747
      %v1894 = vmul.f32 %v1103, %v1747
      %v1895 = vmul.f32 %v1104, %v1747
      %v1896 = vmul.f32 %v1105, %v1747
      %v1897 = vmul.f32 %v1106, %v1747
      %v1898 = vmul.f32 %v1107, %v1747
      %v1899 = vmul.f32 %v1108, %v1747
      %v1900 = vmul.f32 %v1109, %v1747
      %v1901 = vmul.f32 %v1110, %v1747
      %v1902 = vmul.f32 %v1111, %v1747
      %v1903 = vmul.f32 %v1112, %v1747
      %v1904 = vmul.f32 %v1113, %v1747
      %v1905 = vmul.f32 %v1114, %v1747
      %v1906 = vmul.f32 %v1115, %v1747
      %v1907 = vmul.f32 %v1116, %v1747
      %v1908 = vmul.f32 %v1117, %v1747
      %v1909 = vmul.f32 %v1118, %v1747
      %v1910 = vmul.f32 %v1119, %v1747
      %v1911 = vmul.f32 %v1120, %v1747
      %v1912 = vmul.f32 %v1121, %v1747
      %v1913 = vmul.f32 %v1122, %v1747
      %v1914 = vmul.f32 %v1123, %v1747
      %v1915 = vmul.f32 %v1124, %v1747
      %v1916 = vmul.f32 %v1125, %v1747
      %v1917 = vmul.f32 %v1126, %v1747
      %v1918 = vmul.f32 %v1127, %v1747
      %v1919 = vmul.f32 %v1128, %v1747
      %v1920 = vmul.f32 %v1129, %v1747
      %v1921 = vmul.f32 %v1130, %v1747
      %v1922 = vmul.f32 %v1131, %v1747
      %v1923 = vmul.f32 %v1132, %v1747
      %v1924 = vmul.f32 %v1133, %v1747
      %v1925 = vmul.f32 %v1134, %v1747
      %v1926 = vmul.f32 %v1135, %v1747
      %v1927 = vmul.f32 %v1136, %v1747
      %v1928 = vmul.f32 %v1137, %v1747
      %v1929 = vmul.f32 %v1138, %v1747
      %v1930 = vmul.f32 %v1139, %v1747
      %v1931 = vmul.f32 %v1140, %v1747
      %v1932 = vmul.f32 %v1141, %v1747
      %v1933 = vmul.f32 %v1142, %v1747
      %v1934 = vmul.f32 %v1143, %v1747
      %v1935 = vmul.f32 %v1144, %v1747
      %v1936 = vmul.f32 %v1145, %v1747
      %v1937 = vmul.f32 %v1146, %v1747
      %v1938 = vmul.f32 %v1147, %v1747
      %v1939 = vmul.f32 %v1148, %v1747
      %v1940 = vmul.f32 %v1149, %v1747
      %v1941 = vmul.f32 %v1150, %v1747
      %v1942 = vmul.f32 %v1151, %v1747
      %v1943 = vmul.f32 %v1152, %v1747
      %v1944 = vmul.f32 %v1153, %v1747
      %v1945 = vmul.f32 %v1154, %v1747
      %v1946 = vmul.f32 %v1155, %v1747
      %v1947 = vmul.f32 %v1156, %v1747
      %v1948 = vmul.f32 %v1157, %v1747
      %v1949 = vmul.f32 %v1158, %v1747
      %v1950 = vmul.f32 %v1159, %v1747
      %v1951 = vmul.f32 %v1160, %v1747
      %v1952 = vmul.f32 %v1161, %v1747
      %v1953 = vmul.f32 %v1162, %v1747
      %v1954 = vmul.f32 %v1163, %v1747
      %v1955 = vmul.f32 %v1164, %v1747
      %v1956 = vmul.f32 %v1165, %v1747
      %v1957 = vmul.f32 %v1166, %v1747
      %v1958 = vmul.f32 %v1167, %v1747
      %v1959 = vmul.f32 %v1168, %v1747
      %v1960 = vmul.f32 %v1169, %v1747
      %v1961 = vmul.f32 %v1170, %v1747
      %v1962 = vmul.f32 %v1171, %v1747
      %v1963 = vmul.f32 %v1172, %v1747
      %v1964 = vmul.f32 %v1173, %v1747
      %v1965 = vmul.f32 %v1174, %v1747
      %v1966 = vmul.f32 %v1175, %v1747
      %v1967 = vmul.f32 %v1176, %v1747
      %v1968 = vmul.f32 %v1177, %v1747
      %v1969 = vmul.f32 %v1178, %v1747
      %v1970 = vmul.f32 %v1179, %v1747
      %v1971 = vmul.f32 %v1180, %v1747
      %v1972 = vmul.f32 %v1181, %v1747
      %v1973 = vmul.f32 %v1182, %v1747
      %v1974 = vmul.f32 %v1183, %v1747
      %v1975 = vmul.f32 %v1184, %v1747
      %v1976 = vmul.f32 %v1185, %v1747
      %v1977 = vmul.f32 %v1186, %v1747
      %v1978 = vmul.f32 %v1187, %v1747
      %v1979 = vmul.f32 %v1188, %v1747
      %v1980 = vmul.f32 %v1189, %v1747
      %v1981 = vmul.f32 %v1190, %v1747
      %v1982 = vmul.f32 %v1191, %v1747
      %v1983 = vmul.f32 %v1192, %v1747
      %v1984 = vmul.f32 %v1193, %v1747
      %v1985 = vmul.f32 %v1194, %v1747
      %v1986 = vmul.f32 %v1195, %v1747
      %v1987 = vmul.f32 %v1196, %v1747
      %v1988 = vmul.f32 %v1197, %v1747
      %v1989 = vmul.f32 %v1198, %v1747
      %v1990 = vmul.f32 %v1199, %v1747
      %v1991 = vmul.f32 %v1200, %v1747
      %v1992 = vmul.f32 %v1201, %v1747
      %v1993 = vmul.f32 %v1202, %v1747
      %v1994 = vmul.f32 %v1203, %v1747
      %v1995 = vmul.f32 %v1204, %v1747
      %v1996 = vmul.f32 %v1205, %v1747
      %v1997 = vmul.f32 %v1206, %v1747
      %v1998 = vmul.f32 %v1207, %v1747
      %v1999 = vmul.f32 %v1208, %v1747
      %v2000 = vmul.f32 %v1209, %v1747
      %v2001 = vmul.f32 %v1210, %v1747
      %v2002 = vmul.f32 %v1211, %v1747
      %v2003 = vmul.f32 %v1212, %v1747
      %v2004 = vmul.f32 %v1213, %v1747
      %v2005 = vmul.f32 %v1214, %v1747
      %v2006 = vmul.f32 %v1215, %v1747
      %v2007 = vmul.f32 %v1216, %v1747
      %v2008 = vmul.f32 %v1217, %v1747
      %v2009 = vmul.f32 %v1218, %v1747
      %v2010 = vmul.f32 %v1219, %v1747
      %v2011 = vmul.f32 %v1220, %v1747
      %v2012 = vmul.f32 %v1221, %v1747
      %v2013 = vmul.f32 %v1222, %v1747
      %v2014 = vmul.f32 %v1223, %v1747
      %v2015 = vmul.f32 %v1224, %v1747
      %v2016 = vmul.f32 %v1225, %v1747
      %v2017 = vmul.f32 %v1226, %v1747
      %v2018 = vmul.f32 %v1227, %v1747
      %v2019 = vmul.f32 %v1228, %v1747
      %v2020 = vmul.f32 %v1229, %v1747
      %v2021 = vmul.f32 %v1230, %v1747
      %v2022 = vmul.f32 %v1231, %v1747
      %v2023 = vmul.f32 %v1232, %v1747
      %v2024 = vmul.f32 %v1233, %v1747
      %v2025 = vmul.f32 %v1234, %v1747
      %v2026 = vmul.f32 %v1235, %v1747
      %v2027 = vmul.f32 %v1236, %v1747
      %v2028 = vmul.f32 %v1237, %v1747
      %v2029 = vmul.f32 %v1238, %v1747
      %v2030 = vmul.f32 %v1239, %v1747
      %v2031 = vmul.f32 %v1240, %v1747
      %v2032 = vmul.f32 %v1241, %v1747
      %v2033 = vmul.f32 %v1242, %v1747
      %v2034 = vmul.f32 %v1243, %v1747
      %v2035 = vmul.f32 %v1244, %v1747
      %v2036 = vmul.f32 %v1245, %v1747
      %v2037 = vmul.f32 %v1246, %v1747
      %v2038 = vmul.f32 %v1247, %v1747
      %v2039 = vmul.f32 %v1248, %v1747
      %v2040 = vmul.f32 %v1249, %v1747
      %v2041 = vmul.f32 %v1250, %v1747
      %v2042 = vmul.f32 %v1251, %v1747
      %v2043 = vmul.f32 %v1252, %v1747
      %v2044 = vmul.f32 %v1253, %v1747
      %v2045 = vmul.f32 %v1254, %v1747
      %v2046 = vmul.f32 %v1255, %v1747
      %v2047 = vmul.f32 %v1256, %v1747
      %v2048 = vmul.f32 %v1257, %v1747
      %v2049 = vmul.f32 %v1258, %v1747
      %v2050 = vmul.f32 %v1259, %v1747
      %v2051 = vmul.f32 %v1260, %v1747
      %v2052 = vmul.f32 %v1261, %v1747
      %v2053 = vmul.f32 %v1262, %v1747
      %v2054 = vmul.f32 %v1263, %v1747
      %v2055 = vmul.f32 %v1264, %v1747
      %v2056 = vmul.f32 %v1265, %v1747
      %v2057 = vmul.f32 %v1266, %v1747
      %v2058 = vmul.f32 %v1267, %v1747
      %v2059 = vmul.f32 %v1268, %v1747
      %v2060 = vmul.f32 %v1269, %v1747
      %v2061 = vmul.f32 %v1270, %v1747
      %v2062 = vmul.f32 %v1271, %v1747
      %v2063 = vmul.f32 %v1272, %v1747
      %v2064 = vmul.f32 %v1273, %v1747
      %v2065 = vmul.f32 %v1274, %v1747
      %v2066 = vmul.f32 %v1275, %v1747
      %v2067 = vmul.f32 %v1276, %v1747
      %v2068 = vmul.f32 %v1277, %v1747
      %v2069 = vmul.f32 %v1278, %v1747
      %v2070 = vmul.f32 %v1279, %v1747
      %v2071 = vmul.f32 %v1280, %v1747
      %v2072 = vmul.f32 %v1281, %v1747
      %v2073 = vmul.f32 %v1282, %v1747
      %v2074 = vmul.f32 %v1283, %v1747
      %v2075 = vmul.f32 %v1284, %v1747
      %v2076 = vmul.f32 %v1285, %v1747
      %v2077 = vmul.f32 %v1286, %v1747
      %v2078 = vmul.f32 %v1287, %v1747
      %v2079 = vmul.f32 %v1288, %v1747
      %v2080 = vmul.f32 %v1289, %v1747
      %v2081 = vmul.f32 %v1290, %v1747
      %v2082 = vmul.f32 %v1291, %v1747
      %v2083 = vmul.f32 %v1292, %v1747
      %v2084 = vmul.f32 %v1293, %v1747
      %v2085 = vmul.f32 %v1294, %v1747
      %v2086 = vmul.f32 %v1295, %v1747
      %v2087 = vmul.f32 %v1296, %v1747
      %v2088 = vmul.f32 %v1297, %v1747
      %v2089 = vmul.f32 %v1298, %v1747
      %v2090 = vmul.f32 %v1299, %v1747
      %v2091 = vmul.f32 %v1300, %v1747
      %v2092 = vmul.f32 %v1301, %v1747
      %v2093 = vmul.f32 %v1302, %v1747
      %v2094 = vmul.f32 %v1303, %v1747
      %v2095 = vmul.f32 %v1304, %v1747
      %v2096 = vmul.f32 %v1305, %v1747
      %v2097 = vmul.f32 %v1306, %v1747
      %v2098 = vmul.f32 %v1307, %v1747
      %v2099 = vmul.f32 %v1308, %v1747
      %v2100 = vmul.f32 %v1309, %v1747
      %v2101 = vmul.f32 %v1310, %v1747
      %v2102 = vmul.f32 %v1311, %v1747
      %v2103 = vmul.f32 %v1312, %v1747
      %v2104 = vmul.f32 %v1313, %v1747
      %v2105 = vmul.f32 %v1314, %v1747
      %v2106 = vmul.f32 %v1315, %v1747
      %v2107 = vmul.f32 %v1316, %v1747
      %v2108 = vmul.f32 %v1317, %v1747
      %v2109 = vmul.f32 %v1318, %v1747
      %v2110 = vmul.f32 %v1319, %v1747
      %v2111 = vmul.f32 %v1320, %v1747
      %v2112 = vmul.f32 %v1321, %v1747
      %v2113 = vmul.f32 %v1322, %v1747
      %v2114 = vmul.f32 %v1323, %v1747
      %v2115 = vmul.f32 %v1324, %v1747
      %v2116 = vmul.f32 %v1325, %v1747
      %v2117 = vmul.f32 %v1326, %v1747
      %v2118 = vmul.f32 %v1327, %v1747
      %v2119 = vmul.f32 %v1328, %v1747
      %v2120 = vmul.f32 %v1329, %v1747
      %v2121 = vmul.f32 %v1330, %v1747
      %v2122 = vmul.f32 %v1331, %v1747
      %v2123 = vmul.f32 %v1332, %v1747
      %v2124 = vmul.f32 %v1333, %v1747
      %v2125 = vmul.f32 %v1334, %v1747
      %v2126 = vmul.f32 %v1335, %v1747
      %v2127 = vmul.f32 %v1336, %v1747
      %v2128 = vmul.f32 %v1337, %v1747
      %v2129 = vmul.f32 %v1338, %v1747
      %v2130 = vmul.f32 %v1339, %v1747
      %v2131 = vmul.f32 %v1340, %v1747
      %v2132 = vmul.f32 %v1341, %v1747
      %v2133 = vmul.f32 %v1342, %v1747
      %v2134 = vmul.f32 %v1343, %v1747
      %v2135 = vmul.f32 %v1344, %v1747
      %v2136 = vmul.f32 %v1345, %v1747
      %v2137 = vmul.f32 %v1346, %v1747
      %v2138 = vmul.f32 %v1347, %v1747
      %v2139 = vmul.f32 %v1348, %v1747
      %v2140 = vmul.f32 %v1349, %v1747
      %v2141 = vmul.f32 %v1350, %v1747
      %v2142 = vmul.f32 %v1351, %v1747
      %v2143 = vmul.f32 %v1352, %v1747
      %v2144 = vmul.f32 %v1353, %v1747
      %v2145 = vmul.f32 %v1354, %v1747
      %v2146 = vmul.f32 %v1355, %v1747
      %v2147 = vmul.f32 %v1356, %v1747
      %v2148 = vmul.f32 %v1357, %v1747
      %v2149 = vmul.f32 %v1358, %v1747
      %v2150 = vmul.f32 %v1359, %v1747
      %v2151 = vmul.f32 %v1360, %v1747
      %v2152 = vmul.f32 %v1361, %v1747
      %v2153 = vmul.f32 %v1362, %v1747
      %v2154 = vmul.f32 %v1363, %v1747
      %v2155 = vmul.f32 %v1364, %v1747
      %v2156 = vmul.f32 %v1365, %v1747
      %v2157 = vmul.f32 %v1366, %v1747
      %v2158 = vmul.f32 %v1367, %v1747
      %v2159 = vmul.f32 %v1368, %v1747
      %v2160 = vmul.f32 %v1369, %v1747
      %v2161 = vmul.f32 %v1370, %v1747
      %v2162 = vmul.f32 %v1371, %v1747
      %v2163 = vmul.f32 %v1372, %v1747
      %v2164 = vmul.f32 %v1373, %v1747
      %v2165 = vmul.f32 %v1374, %v1747
      %v2166 = vmul.f32 %v1375, %v1747
      %v2167 = vmul.f32 %v1376, %v1747
      %v2168 = vmul.f32 %v1377, %v1747
      %v2169 = vmul.f32 %v1378, %v1747
      %v2170 = vmul.f32 %v1379, %v1747
      %v2171 = vmul.f32 %v1380, %v1747
      %v2172 = vmul.f32 %v1381, %v1747
      %v2173 = vmul.f32 %v1382, %v1747
      %v2174 = vmul.f32 %v1383, %v1747
      %v2175 = vmul.f32 %v1384, %v1747
      %v2176 = vmul.f32 %v1385, %v1747
      %v2177 = vmul.f32 %v1386, %v1747
      %v2178 = vmul.f32 %v1387, %v1747
      %v2179 = vmul.f32 %v1388, %v1747
      %v2180 = vmul.f32 %v1389, %v1747
      %v2181 = vmul.f32 %v1390, %v1747
      %v2182 = vmul.f32 %v1391, %v1747
      %v2183 = vmul.f32 %v1392, %v1747
      %v2184 = vmul.f32 %v1393, %v1747
      %v2185 = vmul.f32 %v1394, %v1747
      %v2186 = vmul.f32 %v1395, %v1747
      %v2187 = vmul.f32 %v1396, %v1747
      %v2188 = vmul.f32 %v1397, %v1747
      %v2189 = vmul.f32 %v1398, %v1747
      %v2190 = vmul.f32 %v1399, %v1747
      %v2191 = vmul.f32 %v1400, %v1747
      %v2192 = vmul.f32 %v1401, %v1747
      %v2193 = vmul.f32 %v1402, %v1747
      %v2194 = vmul.f32 %v1403, %v1747
      %v2195 = vmul.f32 %v1404, %v1747
      %v2196 = vmul.f32 %v1405, %v1747
      %v2197 = vmul.f32 %v1406, %v1747
      %v2198 = vmul.f32 %v1407, %v1747
      %v2199 = vmul.f32 %v1408, %v1747
      %v2200 = vmul.f32 %v1409, %v1747
      %v2201 = vmul.f32 %v1410, %v1747
      %v2202 = vmul.f32 %v1411, %v1747
      %v2203 = vmul.f32 %v1412, %v1747
      %v2204 = vmul.f32 %v1413, %v1747
      %v2205 = vmul.f32 %v1414, %v1747
      %v2206 = vmul.f32 %v1415, %v1747
      %v2207 = vmul.f32 %v1416, %v1747
      %v2208 = vmul.f32 %v1417, %v1747
      %v2209 = vmul.f32 %v1418, %v1747
      %v2210 = vmul.f32 %v1419, %v1747
      %v2211 = vmul.f32 %v1420, %v1747
      %v2212 = vmul.f32 %v1421, %v1747
      %v2213 = vmul.f32 %v1422, %v1747
      %v2214 = vmul.f32 %v1423, %v1747
      %v2215 = vmul.f32 %v1424, %v1747
      %v2216 = vmul.f32 %v1425, %v1747
      %v2217 = vmul.f32 %v1426, %v1747
      %v2218 = vmul.f32 %v1427, %v1747
      %v2219 = vmul.f32 %v1428, %v1747
      %v2220 = vmul.f32 %v1429, %v1747
      %v2221 = vmul.f32 %v1430, %v1747
      %v2222 = vmul.f32 %v1431, %v1747
      %v2223 = vmul.f32 %v1432, %v1747
      %v2224 = vmul.f32 %v1433, %v1747
      %v2225 = vmul.f32 %v1434, %v1747
      %v2226 = vmul.f32 %v1435, %v1747
      %v2227 = vmul.f32 %v1436, %v1747
      %v2228 = vmul.f32 %v1437, %v1747
      %v2229 = vmul.f32 %v1438, %v1747
      %v2230 = vmul.f32 %v1439, %v1747
      %v2231 = vmul.f32 %v1440, %v1747
      %v2232 = vmul.f32 %v1441, %v1747
      %v2233 = vmul.f32 %v1442, %v1747
      %v2234 = vmul.f32 %v1443, %v1747
      %v2235 = vmul.f32 %v1444, %v1747
      %v2236 = vmul.f32 %v1445, %v1747
      %v2237 = vmul.f32 %v1446, %v1747
      %v2238 = vmul.f32 %v1447, %v1747
      %v2239 = vmul.f32 %v1448, %v1747
      %v2240 = vmul.f32 %v1449, %v1747
      %v2241 = vmul.f32 %v1450, %v1747
      %v2242 = vmul.f32 %v1451, %v1747
      %v2243 = vmul.f32 %v1452, %v1747
      %v2244 = vmul.f32 %v1453, %v1747
      %v2245 = vmul.f32 %v1454, %v1747
      %v2246 = vmul.f32 %v1455, %v1747
      %v2247 = vmul.f32 %v1456, %v1747
      %v2248 = vmul.f32 %v1457, %v1747
      %v2249 = vmul.f32 %v1458, %v1747
      %v2250 = vmul.f32 %v1459, %v1747
      %v2251 = vmul.f32 %v1460, %v1747
      %v2252 = vmul.f32 %v1461, %v1747
      %v2253 = vmul.f32 %v1462, %v1747
      %v2254 = vmul.f32 %v1463, %v1747
      %v2255 = vmul.f32 %v1464, %v1747
      %v2256 = vmul.f32 %v1465, %v1747
      %v2257 = vmul.f32 %v1466, %v1747
      %v2258 = vmul.f32 %v1467, %v1747
      %v2259 = vmul.f32 %v1468, %v1747
      %v2260 = vmul.f32 %v1469, %v1747
      %v2261 = vmul.f32 %v1470, %v1747
      %v2262 = vmul.f32 %v1471, %v1747
      %v2263 = vmul.f32 %v1472, %v1747
      %v2264 = vmul.f32 %v1473, %v1747
      %v2265 = vmul.f32 %v1474, %v1747
      %v2266 = vmul.f32 %v1475, %v1747
      %v2267 = vmul.f32 %v1476, %v1747
      %v2268 = vmul.f32 %v1477, %v1747
      %v2269 = vmul.f32 %v1478, %v1747
      %v2270 = vmul.f32 %v1479, %v1747
      %v2271 = vmul.f32 %v1480, %v1747
      %v2272 = vmul.f32 %v1481, %v1747
      %v2273 = vmul.f32 %v1482, %v1747
      %v2274 = vmul.f32 %v1483, %v1747
      %v2275 = vmul.f32 %v1484, %v1747
      %v2276 = vmul.f32 %v1485, %v1747
      %v2277 = vmul.f32 %v1486, %v1747
      %v2278 = vmul.f32 %v1487, %v1747
      %v2279 = vmul.f32 %v1488, %v1747
      %v2280 = vmul.f32 %v1489, %v1747
      %v2281 = vmul.f32 %v1490, %v1747
      %v2282 = vmul.f32 %v1491, %v1747
      %v2283 = vmul.f32 %v1492, %v1747
      %v2284 = vmul.f32 %v1493, %v1747
      %v2285 = vmul.f32 %v1494, %v1747
      %v2286 = vmul.f32 %v1495, %v1747
      %v2287 = vmul.f32 %v1496, %v1747
      %v2288 = vmul.f32 %v1497, %v1747
      %v2289 = vmul.f32 %v1498, %v1747
      %v2290 = vmul.f32 %v1499, %v1747
      %v2291 = vmul.f32 %v1500, %v1747
      %v2292 = vmul.f32 %v1501, %v1747
      %v2293 = vmul.f32 %v1502, %v1747
      %v2294 = vmul.f32 %v1503, %v1747
      %v2295 = vmul.f32 %v1504, %v1747
      %v2296 = vmul.f32 %v1505, %v1747
      %v2297 = vmul.f32 %v1506, %v1747
      %v2298 = vmul.f32 %v1507, %v1747
      %v2299 = vmul.f32 %v1508, %v1747
      %v2300 = vmul.f32 %v1509, %v1747
      %v2301 = vmul.f32 %v1510, %v1747
      %v2302 = vmul.f32 %v1511, %v1747
      %v2303 = vmul.f32 %v1512, %v1747
      %v2304 = vmul.f32 %v1513, %v1747
      %v2305 = vmul.f32 %v1514, %v1747
      %v2306 = vmul.f32 %v1515, %v1747
      %v2307 = vmul.f32 %v1516, %v1747
      %v2308 = vmul.f32 %v1517, %v1747
      %v2309 = vmul.f32 %v1518, %v1747
      %v2310 = vmul.f32 %v1519, %v1747
      %v2311 = vmul.f32 %v1520, %v1747
      %v2312 = vmul.f32 %v1521, %v1747
      %v2313 = vmul.f32 %v1522, %v1747
      %v2314 = vmul.f32 %v1523, %v1747
      %v2315 = vmul.f32 %v1524, %v1747
      %v2316 = vmul.f32 %v1525, %v1747
      %v2317 = vmul.f32 %v1526, %v1747
      %v2318 = vmul.f32 %v1527, %v1747
      %v2319 = vmul.f32 %v1528, %v1747
      %v2320 = vmul.f32 %v1529, %v1747
      %v2321 = vmul.f32 %v1530, %v1747
      %v2322 = vmul.f32 %v1531, %v1747
      %v2323 = vmul.f32 %v1532, %v1747
      %v2324 = vmul.f32 %v1533, %v1747
      %v2325 = vmul.f32 %v1534, %v1747
      %v2326 = vmul.f32 %v1535, %v1747
      %v2327 = vmul.f32 %v1536, %v1747
      %v2328 = vmul.f32 %v1537, %v1747
      %v2329 = vmul.f32 %v1538, %v1747
      %v2330 = vmul.f32 %v1539, %v1747
      %v2331 = vmul.f32 %v1540, %v1747
      %v2332 = vmul.f32 %v1541, %v1747
      %v2333 = vmul.f32 %v1542, %v1747
      %v2334 = vmul.f32 %v1543, %v1747
      %v2335 = vmul.f32 %v1544, %v1747
      %v2336 = vmul.f32 %v1545, %v1747
      %v2337 = vmul.f32 %v1546, %v1747
      %v2338 = vmul.f32 %v1547, %v1747
      %v2339 = vmul.f32 %v1548, %v1747
      %v2340 = vmul.f32 %v1549, %v1747
      %v2341 = vmul.f32 %v1550, %v1747
      %v2342 = vmul.f32 %v1551, %v1747
      %v2343 = vmul.f32 %v1552, %v1747
      %v2344 = vmul.f32 %v1553, %v1747
      %v2345 = vmul.f32 %v1554, %v1747
      %v2346 = vmul.f32 %v1555, %v1747
      %v2347 = vmul.f32 %v1556, %v1747
      %v2348 = vmul.f32 %v1557, %v1747
      %v2349 = vmul.f32 %v1558, %v1747
      %v2350 = vmul.f32 %v1559, %v1747
      %v2351 = vmul.f32 %v1560, %v1747
      %v2352 = vmul.f32 %v1561, %v1747
      %v2353 = vmul.f32 %v1562, %v1747
      %v2354 = vmul.f32 %v1563, %v1747
      %v2355 = vmul.f32 %v1564, %v1747
      %v2356 = vmul.f32 %v1565, %v1747
      %v2357 = vmul.f32 %v1566, %v1747
      %v2358 = vmul.f32 %v1567, %v1747
      %v2359 = vmul.f32 %v1568, %v1747
      %v2360 = vmul.f32 %v1569, %v1747
      %v2361 = vmul.f32 %v1570, %v1747
      %v2362 = vmul.f32 %v1571, %v1747
      %v2363 = vmul.f32 %v1572, %v1747
      %v2364 = vmul.f32 %v1573, %v1747
      %v2365 = vmul.f32 %v1574, %v1747
      %v2366 = vmul.f32 %v1575, %v1747
      %v2367 = vmul.f32 %v1576, %v1747
      %v2368 = vmul.f32 %v1577, %v1747
      %v2369 = vmul.f32 %v1578, %v1747
      %v2370 = vmul.f32 %v1579, %v1747
      %v2371 = vmul.f32 %v1580, %v1747
      %v2372 = vmul.f32 %v1581, %v1747
      %v2373 = vmul.f32 %v1582, %v1747
      %v2374 = vmul.f32 %v1583, %v1747
      %v2375 = vmul.f32 %v1584, %v1747
      %v2376 = vmul.f32 %v1585, %v1747
      %v2377 = vmul.f32 %v1586, %v1747
      %v2378 = vmul.f32 %v1587, %v1747
      %v2379 = vmul.f32 %v1588, %v1747
      %v2380 = vmul.f32 %v1589, %v1747
      %v2381 = vmul.f32 %v1590, %v1747
      %v2382 = vmul.f32 %v1591, %v1747
      %v2383 = vmul.f32 %v1592, %v1747
      %v2384 = vmul.f32 %v1593, %v1747
      %v2385 = vmul.f32 %v1594, %v1747
      %v2386 = vmul.f32 %v1595, %v1747
      %v2387 = vmul.f32 %v1596, %v1747
      %v2388 = vmul.f32 %v1597, %v1747
      %v2389 = vmul.f32 %v1598, %v1747
      %v2390 = vmul.f32 %v1599, %v1747
      %v2391 = vmul.f32 %v1600, %v1747
      %v2392 = vmul.f32 %v1601, %v1747
      %v2393 = vmul.f32 %v1602, %v1747
      %v2394 = vmul.f32 %v1603, %v1747
      %v2395 = vmul.f32 %v1604, %v1747
      %v2396 = vmul.f32 %v1605, %v1747
      %v2397 = vmul.f32 %v1606, %v1747
      %v2398 = vmul.f32 %v1607, %v1747
      %v2399 = vmul.f32 %v1608, %v1747
      %v2400 = vmul.f32 %v1609, %v1747
      %v2401 = vmul.f32 %v1610, %v1747
      %v2402 = vmul.f32 %v1611, %v1747
      %v2403 = vmul.f32 %v1612, %v1747
      %v2404 = vmul.f32 %v1613, %v1747
      %v2405 = vmul.f32 %v1614, %v1747
      %v2406 = vmul.f32 %v1615, %v1747
      %v2407 = vmul.f32 %v1616, %v1747
      %v2408 = vmul.f32 %v1617, %v1747
      %v2409 = vmul.f32 %v1618, %v1747
      %v2410 = vmul.f32 %v1619, %v1747
      %v2411 = vmul.f32 %v1620, %v1747
      %v2412 = vmul.f32 %v1621, %v1747
      %v2413 = vmul.f32 %v1622, %v1747
      %v2414 = vmul.f32 %v1623, %v1747
      %v2415 = vmul.f32 %v1624, %v1747
      %v2416 = vmul.f32 %v1625, %v1747
      %v2417 = vmul.f32 %v1626, %v1747
      %v2418 = vmul.f32 %v1627, %v1747
      %v2419 = vmul.f32 %v1628, %v1747
      %v2420 = vmul.f32 %v1629, %v1747
      %v2421 = vmul.f32 %v1630, %v1747
      %v2422 = vmul.f32 %v1631, %v1747
      %v2423 = vmul.f32 %v1632, %v1747
      %v2424 = vmul.f32 %v1633, %v1747
      %v2425 = vmul.f32 %v1634, %v1747
      %v2426 = vmul.f32 %v1635, %v1747
      %v2427 = vmul.f32 %v1636, %v1747
      %v2428 = vmul.f32 %v1637, %v1747
      %v2429 = vmul.f32 %v1638, %v1747
      %v2430 = vmul.f32 %v1639, %v1747
      %v2431 = vmul.f32 %v1640, %v1747
      %v2432 = vmul.f32 %v1641, %v1747
      %v2433 = vmul.f32 %v1642, %v1747
      %v2434 = vmul.f32 %v1643, %v1747
      %v2435 = vmul.f32 %v1644, %v1747
      %v2436 = vmul.f32 %v1645, %v1747
      %v2437 = vmul.f32 %v1646, %v1747
      %v2438 = vmul.f32 %v1647, %v1747
      %v2439 = vmul.f32 %v1648, %v1747
      %v2440 = vmul.f32 %v1649, %v1747
      %v2441 = vmul.f32 %v1650, %v1747
      %v2442 = vmul.f32 %v1651, %v1747
      %v2443 = vmul.f32 %v1652, %v1747
      %v2444 = vmul.f32 %v1653, %v1747
      %v2445 = vmul.f32 %v1654, %v1747
      %v2446 = vmul.f32 %v1655, %v1747
      %v2447 = vmul.f32 %v1656, %v1747
      %v2448 = vmul.f32 %v1657, %v1747
      %v2449 = vmul.f32 %v1658, %v1747
      %v2450 = vmul.f32 %v1659, %v1747
      %v2451 = vmul.f32 %v1660, %v1747
      %v2452 = vmul.f32 %v1661, %v1747
      %v2453 = vmul.f32 %v1662, %v1747
      %v2454 = vmul.f32 %v1663, %v1747
      %v2455 = vmul.f32 %v1664, %v1747
      %v2456 = vmul.f32 %v1665, %v1747
      %v2457 = vmul.f32 %v1666, %v1747
      %v2458 = vmul.f32 %v1667, %v1747
      %v2459 = vmul.f32 %v1668, %v1747
      %v2460 = vmul.f32 %v1669, %v1747
      %v2461 = vmul.f32 %v1670, %v1747
      %v2462 = vmul.f32 %v1671, %v1747
      %v2463 = vmul.f32 %v1672, %v1747
      %v2464 = vmul.f32 %v1673, %v1747
      %v2465 = vmul.f32 %v1674, %v1747
      %v2466 = vmul.f32 %v1675, %v1747
      %v2467 = vmul.f32 %v1676, %v1747
      %v2468 = vmul.f32 %v1677, %v1747
      %v2469 = vmul.f32 %v1678, %v1747
      %v2470 = vmul.f32 %v1679, %v1747
      %v2471 = vmul.f32 %v1680, %v1747
      %v2472 = vmul.f32 %v1681, %v1747
      %v2473 = vmul.f32 %v1682, %v1747
      %v2474 = vmul.f32 %v1683, %v1747
      %v2475 = vmul.f32 %v1684, %v1747
      %v2476 = vmul.f32 %v1685, %v1747
      %v2477 = vmul.f32 %v1686, %v1747
      %v2478 = vmul.f32 %v1687, %v1747
      %v2479 = vmul.f32 %v1688, %v1747
      %v2480 = vmul.f32 %v1689, %v1747
      %v2481 = vmul.f32 %v1690, %v1747
      %v2482 = vmul.f32 %v1691, %v1747
      %v2483 = vmul.f32 %v1692, %v1747
      %v2484 = vmul.f32 %v1693, %v1747
      %v2485 = vmul.f32 %v1694, %v1747
      %v2486 = vmul.f32 %v1695, %v1747
      %v2487 = vmul.f32 %v1696, %v1747
      %v2488 = vmul.f32 %v1697, %v1747
      %v2489 = vmul.f32 %v1698, %v1747
      %v2490 = vmul.f32 %v1699, %v1747
      %v2491 = vmul.f32 %v1700, %v1747
      %v2492 = vmul.f32 %v1701, %v1747
      %v2493 = vmul.f32 %v1702, %v1747
      %v2494 = vmul.f32 %v1703, %v1747
      %v2495 = vmul.f32 %v1704, %v1747
      %v2496 = vmul.f32 %v1705, %v1747
      %v2497 = vmul.f32 %v1706, %v1747
      %v2498 = vmul.f32 %v1707, %v1747
      %v2499 = vmul.f32 %v1708, %v1747
      %v2500 = vmul.f32 %v1709, %v1747
      %v2501 = vmul.f32 %v1710, %v1747
      %v2502 = vmul.f32 %v1711, %v1747
      %v2503 = vmul.f32 %v1712, %v1747
      %v2504 = vmul.f32 %v1713, %v1747
      %v2505 = vmul.f32 %v1714, %v1747
      %v2506 = vmul.f32 %v1715, %v1747
      %v2507 = vmul.f32 %v1716, %v1747
      %v2508 = vmul.f32 %v1717, %v1747
      %v2509 = vmul.f32 %v1718, %v1747
      %v2510 = vmul.f32 %v1719, %v1747
      %v2511 = vmul.f32 %v1720, %v1747
      %v2512 = vmul.f32 %v1721, %v1747
      %v2513 = vmul.f32 %v1722, %v1747
      %v2514 = vmul.f32 %v1723, %v1747
      %v2515 = vmul.f32 %v1724, %v1747
      %v2516 = vmul.f32 %v1725, %v1747
      %v2517 = vmul.f32 %v1726, %v1747
      %v2518 = vmul.f32 %v1727, %v1747
      %v2519 = vmul.f32 %v1728, %v1747
      %v2520 = vmul.f32 %v1729, %v1747
      %v2521 = vmul.f32 %v1730, %v1747
      %v2522 = vmul.f32 %v1731, %v1747
      %v2523 = vmul.f32 %v1732, %v1747
      %v2524 = vmul.f32 %v1733, %v1747
      %v2525 = vmul.f32 %v1734, %v1747
      %v2526 = vmul.f32 %v1735, %v1747
      %v2527 = vmul.f32 %v1736, %v1747
      %v2528 = vmul.f32 %v1737, %v1747
      %v2529 = vmul.f32 %v1738, %v1747
      %v2530 = vmul.f32 %v1739, %v1747
      %v2531 = vmul.f32 %v1740, %v1747
      %v2532 = vmul.f32 %v1741, %v1747
      %v2533 = vld [vmem:[%s2] sm:$0x1]
      %v2535 = vlaneseq
      %v2536 = vshrl.u32 %v2535, 7
      %v2537 = vsub.s32 0, %v2536
      %v2538 = vrot.slane %v2533, %v2537
      %v2540 = vadd.f32 %v1749, %v2538
      %v2541 = vadd.f32 %v1750, %v2538
      %v2542 = vadd.f32 %v1751, %v2538
      %v2543 = vadd.f32 %v1752, %v2538
      %v2544 = vadd.f32 %v1753, %v2538
      %v2545 = vadd.f32 %v1754, %v2538
      %v2546 = vadd.f32 %v1755, %v2538
      %v2547 = vadd.f32 %v1756, %v2538
      %v2548 = vadd.f32 %v1757, %v2538
      %v2549 = vadd.f32 %v1758, %v2538
      %v2550 = vadd.f32 %v1759, %v2538
      %v2551 = vadd.f32 %v1760, %v2538
      %v2552 = vadd.f32 %v1761, %v2538
      %v2553 = vadd.f32 %v1762, %v2538
      %v2554 = vadd.f32 %v1763, %v2538
      %v2555 = vadd.f32 %v1764, %v2538
      %v2556 = vadd.f32 %v1765, %v2538
      %v2557 = vadd.f32 %v1766, %v2538
      %v2558 = vadd.f32 %v1767, %v2538
      %v2559 = vadd.f32 %v1768, %v2538
      %v2560 = vadd.f32 %v1769, %v2538
      %v2561 = vadd.f32 %v1770, %v2538
      %v2562 = vadd.f32 %v1771, %v2538
      %v2563 = vadd.f32 %v1772, %v2538
      %v2564 = vadd.f32 %v1773, %v2538
      %v2565 = vadd.f32 %v1774, %v2538
      %v2566 = vadd.f32 %v1775, %v2538
      %v2567 = vadd.f32 %v1776, %v2538
      %v2568 = vadd.f32 %v1777, %v2538
      %v2569 = vadd.f32 %v1778, %v2538
      %v2570 = vadd.f32 %v1779, %v2538
      %v2571 = vadd.f32 %v1780, %v2538
      %v2572 = vadd.f32 %v1781, %v2538
      %v2573 = vadd.f32 %v1782, %v2538
      %v2574 = vadd.f32 %v1783, %v2538
      %v2575 = vadd.f32 %v1784, %v2538
      %v2576 = vadd.f32 %v1785, %v2538
      %v2577 = vadd.f32 %v1786, %v2538
      %v2578 = vadd.f32 %v1787, %v2538
      %v2579 = vadd.f32 %v1788, %v2538
      %v2580 = vadd.f32 %v1789, %v2538
      %v2581 = vadd.f32 %v1790, %v2538
      %v2582 = vadd.f32 %v1791, %v2538
      %v2583 = vadd.f32 %v1792, %v2538
      %v2584 = vadd.f32 %v1793, %v2538
      %v2585 = vadd.f32 %v1794, %v2538
      %v2586 = vadd.f32 %v1795, %v2538
      %v2587 = vadd.f32 %v1796, %v2538
      %v2588 = vadd.f32 %v1797, %v2538
      %v2589 = vadd.f32 %v1798, %v2538
      %v2590 = vadd.f32 %v1799, %v2538
      %v2591 = vadd.f32 %v1800, %v2538
      %v2592 = vadd.f32 %v1801, %v2538
      %v2593 = vadd.f32 %v1802, %v2538
      %v2594 = vadd.f32 %v1803, %v2538
      %v2595 = vadd.f32 %v1804, %v2538
      %v2596 = vadd.f32 %v1805, %v2538
      %v2597 = vadd.f32 %v1806, %v2538
      %v2598 = vadd.f32 %v1807, %v2538
      %v2599 = vadd.f32 %v1808, %v2538
      %v2600 = vadd.f32 %v1809, %v2538
      %v2601 = vadd.f32 %v1810, %v2538
      %v2602 = vadd.f32 %v1811, %v2538
      %v2603 = vadd.f32 %v1812, %v2538
      %v2604 = vadd.f32 %v1813, %v2538
      %v2605 = vadd.f32 %v1814, %v2538
      %v2606 = vadd.f32 %v1815, %v2538
      %v2607 = vadd.f32 %v1816, %v2538
      %v2608 = vadd.f32 %v1817, %v2538
      %v2609 = vadd.f32 %v1818, %v2538
      %v2610 = vadd.f32 %v1819, %v2538
      %v2611 = vadd.f32 %v1820, %v2538
      %v2612 = vadd.f32 %v1821, %v2538
      %v2613 = vadd.f32 %v1822, %v2538
      %v2614 = vadd.f32 %v1823, %v2538
      %v2615 = vadd.f32 %v1824, %v2538
      %v2616 = vadd.f32 %v1825, %v2538
      %v2617 = vadd.f32 %v1826, %v2538
      %v2618 = vadd.f32 %v1827, %v2538
      %v2619 = vadd.f32 %v1828, %v2538
      %v2620 = vadd.f32 %v1829, %v2538
      %v2621 = vadd.f32 %v1830, %v2538
      %v2622 = vadd.f32 %v1831, %v2538
      %v2623 = vadd.f32 %v1832, %v2538
      %v2624 = vadd.f32 %v1833, %v2538
      %v2625 = vadd.f32 %v1834, %v2538
      %v2626 = vadd.f32 %v1835, %v2538
      %v2627 = vadd.f32 %v1836, %v2538
      %v2628 = vadd.f32 %v1837, %v2538
      %v2629 = vadd.f32 %v1838, %v2538
      %v2630 = vadd.f32 %v1839, %v2538
      %v2631 = vadd.f32 %v1840, %v2538
      %v2632 = vadd.f32 %v1841, %v2538
      %v2633 = vadd.f32 %v1842, %v2538
      %v2634 = vadd.f32 %v1843, %v2538
      %v2635 = vadd.f32 %v1844, %v2538
      %v2636 = vadd.f32 %v1845, %v2538
      %v2637 = vadd.f32 %v1846, %v2538
      %v2638 = vadd.f32 %v1847, %v2538
      %v2639 = vadd.f32 %v1848, %v2538
      %v2640 = vadd.f32 %v1849, %v2538
      %v2641 = vadd.f32 %v1850, %v2538
      %v2642 = vadd.f32 %v1851, %v2538
      %v2643 = vadd.f32 %v1852, %v2538
      %v2644 = vadd.f32 %v1853, %v2538
      %v2645 = vadd.f32 %v1854, %v2538
      %v2646 = vadd.f32 %v1855, %v2538
      %v2647 = vadd.f32 %v1856, %v2538
      %v2648 = vadd.f32 %v1857, %v2538
      %v2649 = vadd.f32 %v1858, %v2538
      %v2650 = vadd.f32 %v1859, %v2538
      %v2651 = vadd.f32 %v1860, %v2538
      %v2652 = vadd.f32 %v1861, %v2538
      %v2653 = vadd.f32 %v1862, %v2538
      %v2654 = vadd.f32 %v1863, %v2538
      %v2655 = vadd.f32 %v1864, %v2538
      %v2656 = vadd.f32 %v1865, %v2538
      %v2657 = vadd.f32 %v1866, %v2538
      %v2658 = vadd.f32 %v1867, %v2538
      %v2659 = vadd.f32 %v1868, %v2538
      %v2660 = vadd.f32 %v1869, %v2538
      %v2661 = vadd.f32 %v1870, %v2538
      %v2662 = vadd.f32 %v1871, %v2538
      %v2663 = vadd.f32 %v1872, %v2538
      %v2664 = vadd.f32 %v1873, %v2538
      %v2665 = vadd.f32 %v1874, %v2538
      %v2666 = vadd.f32 %v1875, %v2538
      %v2667 = vadd.f32 %v1876, %v2538
      %v2668 = vadd.f32 %v1877, %v2538
      %v2669 = vadd.f32 %v1878, %v2538
      %v2670 = vadd.f32 %v1879, %v2538
      %v2671 = vadd.f32 %v1880, %v2538
      %v2672 = vadd.f32 %v1881, %v2538
      %v2673 = vadd.f32 %v1882, %v2538
      %v2674 = vadd.f32 %v1883, %v2538
      %v2675 = vadd.f32 %v1884, %v2538
      %v2676 = vadd.f32 %v1885, %v2538
      %v2677 = vadd.f32 %v1886, %v2538
      %v2678 = vadd.f32 %v1887, %v2538
      %v2679 = vadd.f32 %v1888, %v2538
      %v2680 = vadd.f32 %v1889, %v2538
      %v2681 = vadd.f32 %v1890, %v2538
      %v2682 = vadd.f32 %v1891, %v2538
      %v2683 = vadd.f32 %v1892, %v2538
      %v2684 = vadd.f32 %v1893, %v2538
      %v2685 = vadd.f32 %v1894, %v2538
      %v2686 = vadd.f32 %v1895, %v2538
      %v2687 = vadd.f32 %v1896, %v2538
      %v2688 = vadd.f32 %v1897, %v2538
      %v2689 = vadd.f32 %v1898, %v2538
      %v2690 = vadd.f32 %v1899, %v2538
      %v2691 = vadd.f32 %v1900, %v2538
      %v2692 = vadd.f32 %v1901, %v2538
      %v2693 = vadd.f32 %v1902, %v2538
      %v2694 = vadd.f32 %v1903, %v2538
      %v2695 = vadd.f32 %v1904, %v2538
      %v2696 = vadd.f32 %v1905, %v2538
      %v2697 = vadd.f32 %v1906, %v2538
      %v2698 = vadd.f32 %v1907, %v2538
      %v2699 = vadd.f32 %v1908, %v2538
      %v2700 = vadd.f32 %v1909, %v2538
      %v2701 = vadd.f32 %v1910, %v2538
      %v2702 = vadd.f32 %v1911, %v2538
      %v2703 = vadd.f32 %v1912, %v2538
      %v2704 = vadd.f32 %v1913, %v2538
      %v2705 = vadd.f32 %v1914, %v2538
      %v2706 = vadd.f32 %v1915, %v2538
      %v2707 = vadd.f32 %v1916, %v2538
      %v2708 = vadd.f32 %v1917, %v2538
      %v2709 = vadd.f32 %v1918, %v2538
      %v2710 = vadd.f32 %v1919, %v2538
      %v2711 = vadd.f32 %v1920, %v2538
      %v2712 = vadd.f32 %v1921, %v2538
      %v2713 = vadd.f32 %v1922, %v2538
      %v2714 = vadd.f32 %v1923, %v2538
      %v2715 = vadd.f32 %v1924, %v2538
      %v2716 = vadd.f32 %v1925, %v2538
      %v2717 = vadd.f32 %v1926, %v2538
      %v2718 = vadd.f32 %v1927, %v2538
      %v2719 = vadd.f32 %v1928, %v2538
      %v2720 = vadd.f32 %v1929, %v2538
      %v2721 = vadd.f32 %v1930, %v2538
      %v2722 = vadd.f32 %v1931, %v2538
      %v2723 = vadd.f32 %v1932, %v2538
      %v2724 = vadd.f32 %v1933, %v2538
      %v2725 = vadd.f32 %v1934, %v2538
      %v2726 = vadd.f32 %v1935, %v2538
      %v2727 = vadd.f32 %v1936, %v2538
      %v2728 = vadd.f32 %v1937, %v2538
      %v2729 = vadd.f32 %v1938, %v2538
      %v2730 = vadd.f32 %v1939, %v2538
      %v2731 = vadd.f32 %v1940, %v2538
      %v2732 = vadd.f32 %v1941, %v2538
      %v2733 = vadd.f32 %v1942, %v2538
      %v2734 = vadd.f32 %v1943, %v2538
      %v2735 = vadd.f32 %v1944, %v2538
      %v2736 = vadd.f32 %v1945, %v2538
      %v2737 = vadd.f32 %v1946, %v2538
      %v2738 = vadd.f32 %v1947, %v2538
      %v2739 = vadd.f32 %v1948, %v2538
      %v2740 = vadd.f32 %v1949, %v2538
      %v2741 = vadd.f32 %v1950, %v2538
      %v2742 = vadd.f32 %v1951, %v2538
      %v2743 = vadd.f32 %v1952, %v2538
      %v2744 = vadd.f32 %v1953, %v2538
      %v2745 = vadd.f32 %v1954, %v2538
      %v2746 = vadd.f32 %v1955, %v2538
      %v2747 = vadd.f32 %v1956, %v2538
      %v2748 = vadd.f32 %v1957, %v2538
      %v2749 = vadd.f32 %v1958, %v2538
      %v2750 = vadd.f32 %v1959, %v2538
      %v2751 = vadd.f32 %v1960, %v2538
      %v2752 = vadd.f32 %v1961, %v2538
      %v2753 = vadd.f32 %v1962, %v2538
      %v2754 = vadd.f32 %v1963, %v2538
      %v2755 = vadd.f32 %v1964, %v2538
      %v2756 = vadd.f32 %v1965, %v2538
      %v2757 = vadd.f32 %v1966, %v2538
      %v2758 = vadd.f32 %v1967, %v2538
      %v2759 = vadd.f32 %v1968, %v2538
      %v2760 = vadd.f32 %v1969, %v2538
      %v2761 = vadd.f32 %v1970, %v2538
      %v2762 = vadd.f32 %v1971, %v2538
      %v2763 = vadd.f32 %v1972, %v2538
      %v2764 = vadd.f32 %v1973, %v2538
      %v2765 = vadd.f32 %v1974, %v2538
      %v2766 = vadd.f32 %v1975, %v2538
      %v2767 = vadd.f32 %v1976, %v2538
      %v2768 = vadd.f32 %v1977, %v2538
      %v2769 = vadd.f32 %v1978, %v2538
      %v2770 = vadd.f32 %v1979, %v2538
      %v2771 = vadd.f32 %v1980, %v2538
      %v2772 = vadd.f32 %v1981, %v2538
      %v2773 = vadd.f32 %v1982, %v2538
      %v2774 = vadd.f32 %v1983, %v2538
      %v2775 = vadd.f32 %v1984, %v2538
      %v2776 = vadd.f32 %v1985, %v2538
      %v2777 = vadd.f32 %v1986, %v2538
      %v2778 = vadd.f32 %v1987, %v2538
      %v2779 = vadd.f32 %v1988, %v2538
      %v2780 = vadd.f32 %v1989, %v2538
      %v2781 = vadd.f32 %v1990, %v2538
      %v2782 = vadd.f32 %v1991, %v2538
      %v2783 = vadd.f32 %v1992, %v2538
      %v2784 = vadd.f32 %v1993, %v2538
      %v2785 = vadd.f32 %v1994, %v2538
      %v2786 = vadd.f32 %v1995, %v2538
      %v2787 = vadd.f32 %v1996, %v2538
      %v2788 = vadd.f32 %v1997, %v2538
      %v2789 = vadd.f32 %v1998, %v2538
      %v2790 = vadd.f32 %v1999, %v2538
      %v2791 = vadd.f32 %v2000, %v2538
      %v2792 = vadd.f32 %v2001, %v2538
      %v2793 = vadd.f32 %v2002, %v2538
      %v2794 = vadd.f32 %v2003, %v2538
      %v2795 = vadd.f32 %v2004, %v2538
      %v2796 = vadd.f32 %v2005, %v2538
      %v2797 = vadd.f32 %v2006, %v2538
      %v2798 = vadd.f32 %v2007, %v2538
      %v2799 = vadd.f32 %v2008, %v2538
      %v2800 = vadd.f32 %v2009, %v2538
      %v2801 = vadd.f32 %v2010, %v2538
      %v2802 = vadd.f32 %v2011, %v2538
      %v2803 = vadd.f32 %v2012, %v2538
      %v2804 = vadd.f32 %v2013, %v2538
      %v2805 = vadd.f32 %v2014, %v2538
      %v2806 = vadd.f32 %v2015, %v2538
      %v2807 = vadd.f32 %v2016, %v2538
      %v2808 = vadd.f32 %v2017, %v2538
      %v2809 = vadd.f32 %v2018, %v2538
      %v2810 = vadd.f32 %v2019, %v2538
      %v2811 = vadd.f32 %v2020, %v2538
      %v2812 = vadd.f32 %v2021, %v2538
      %v2813 = vadd.f32 %v2022, %v2538
      %v2814 = vadd.f32 %v2023, %v2538
      %v2815 = vadd.f32 %v2024, %v2538
      %v2816 = vadd.f32 %v2025, %v2538
      %v2817 = vadd.f32 %v2026, %v2538
      %v2818 = vadd.f32 %v2027, %v2538
      %v2819 = vadd.f32 %v2028, %v2538
      %v2820 = vadd.f32 %v2029, %v2538
      %v2821 = vadd.f32 %v2030, %v2538
      %v2822 = vadd.f32 %v2031, %v2538
      %v2823 = vadd.f32 %v2032, %v2538
      %v2824 = vadd.f32 %v2033, %v2538
      %v2825 = vadd.f32 %v2034, %v2538
      %v2826 = vadd.f32 %v2035, %v2538
      %v2827 = vadd.f32 %v2036, %v2538
      %v2828 = vadd.f32 %v2037, %v2538
      %v2829 = vadd.f32 %v2038, %v2538
      %v2830 = vadd.f32 %v2039, %v2538
      %v2831 = vadd.f32 %v2040, %v2538
      %v2832 = vadd.f32 %v2041, %v2538
      %v2833 = vadd.f32 %v2042, %v2538
      %v2834 = vadd.f32 %v2043, %v2538
      %v2835 = vadd.f32 %v2044, %v2538
      %v2836 = vadd.f32 %v2045, %v2538
      %v2837 = vadd.f32 %v2046, %v2538
      %v2838 = vadd.f32 %v2047, %v2538
      %v2839 = vadd.f32 %v2048, %v2538
      %v2840 = vadd.f32 %v2049, %v2538
      %v2841 = vadd.f32 %v2050, %v2538
      %v2842 = vadd.f32 %v2051, %v2538
      %v2843 = vadd.f32 %v2052, %v2538
      %v2844 = vadd.f32 %v2053, %v2538
      %v2845 = vadd.f32 %v2054, %v2538
      %v2846 = vadd.f32 %v2055, %v2538
      %v2847 = vadd.f32 %v2056, %v2538
      %v2848 = vadd.f32 %v2057, %v2538
      %v2849 = vadd.f32 %v2058, %v2538
      %v2850 = vadd.f32 %v2059, %v2538
      %v2851 = vadd.f32 %v2060, %v2538
      %v2852 = vadd.f32 %v2061, %v2538
      %v2853 = vadd.f32 %v2062, %v2538
      %v2854 = vadd.f32 %v2063, %v2538
      %v2855 = vadd.f32 %v2064, %v2538
      %v2856 = vadd.f32 %v2065, %v2538
      %v2857 = vadd.f32 %v2066, %v2538
      %v2858 = vadd.f32 %v2067, %v2538
      %v2859 = vadd.f32 %v2068, %v2538
      %v2860 = vadd.f32 %v2069, %v2538
      %v2861 = vadd.f32 %v2070, %v2538
      %v2862 = vadd.f32 %v2071, %v2538
      %v2863 = vadd.f32 %v2072, %v2538
      %v2864 = vadd.f32 %v2073, %v2538
      %v2865 = vadd.f32 %v2074, %v2538
      %v2866 = vadd.f32 %v2075, %v2538
      %v2867 = vadd.f32 %v2076, %v2538
      %v2868 = vadd.f32 %v2077, %v2538
      %v2869 = vadd.f32 %v2078, %v2538
      %v2870 = vadd.f32 %v2079, %v2538
      %v2871 = vadd.f32 %v2080, %v2538
      %v2872 = vadd.f32 %v2081, %v2538
      %v2873 = vadd.f32 %v2082, %v2538
      %v2874 = vadd.f32 %v2083, %v2538
      %v2875 = vadd.f32 %v2084, %v2538
      %v2876 = vadd.f32 %v2085, %v2538
      %v2877 = vadd.f32 %v2086, %v2538
      %v2878 = vadd.f32 %v2087, %v2538
      %v2879 = vadd.f32 %v2088, %v2538
      %v2880 = vadd.f32 %v2089, %v2538
      %v2881 = vadd.f32 %v2090, %v2538
      %v2882 = vadd.f32 %v2091, %v2538
      %v2883 = vadd.f32 %v2092, %v2538
      %v2884 = vadd.f32 %v2093, %v2538
      %v2885 = vadd.f32 %v2094, %v2538
      %v2886 = vadd.f32 %v2095, %v2538
      %v2887 = vadd.f32 %v2096, %v2538
      %v2888 = vadd.f32 %v2097, %v2538
      %v2889 = vadd.f32 %v2098, %v2538
      %v2890 = vadd.f32 %v2099, %v2538
      %v2891 = vadd.f32 %v2100, %v2538
      %v2892 = vadd.f32 %v2101, %v2538
      %v2893 = vadd.f32 %v2102, %v2538
      %v2894 = vadd.f32 %v2103, %v2538
      %v2895 = vadd.f32 %v2104, %v2538
      %v2896 = vadd.f32 %v2105, %v2538
      %v2897 = vadd.f32 %v2106, %v2538
      %v2898 = vadd.f32 %v2107, %v2538
      %v2899 = vadd.f32 %v2108, %v2538
      %v2900 = vadd.f32 %v2109, %v2538
      %v2901 = vadd.f32 %v2110, %v2538
      %v2902 = vadd.f32 %v2111, %v2538
      %v2903 = vadd.f32 %v2112, %v2538
      %v2904 = vadd.f32 %v2113, %v2538
      %v2905 = vadd.f32 %v2114, %v2538
      %v2906 = vadd.f32 %v2115, %v2538
      %v2907 = vadd.f32 %v2116, %v2538
      %v2908 = vadd.f32 %v2117, %v2538
      %v2909 = vadd.f32 %v2118, %v2538
      %v2910 = vadd.f32 %v2119, %v2538
      %v2911 = vadd.f32 %v2120, %v2538
      %v2912 = vadd.f32 %v2121, %v2538
      %v2913 = vadd.f32 %v2122, %v2538
      %v2914 = vadd.f32 %v2123, %v2538
      %v2915 = vadd.f32 %v2124, %v2538
      %v2916 = vadd.f32 %v2125, %v2538
      %v2917 = vadd.f32 %v2126, %v2538
      %v2918 = vadd.f32 %v2127, %v2538
      %v2919 = vadd.f32 %v2128, %v2538
      %v2920 = vadd.f32 %v2129, %v2538
      %v2921 = vadd.f32 %v2130, %v2538
      %v2922 = vadd.f32 %v2131, %v2538
      %v2923 = vadd.f32 %v2132, %v2538
      %v2924 = vadd.f32 %v2133, %v2538
      %v2925 = vadd.f32 %v2134, %v2538
      %v2926 = vadd.f32 %v2135, %v2538
      %v2927 = vadd.f32 %v2136, %v2538
      %v2928 = vadd.f32 %v2137, %v2538
      %v2929 = vadd.f32 %v2138, %v2538
      %v2930 = vadd.f32 %v2139, %v2538
      %v2931 = vadd.f32 %v2140, %v2538
      %v2932 = vadd.f32 %v2141, %v2538
      %v2933 = vadd.f32 %v2142, %v2538
      %v2934 = vadd.f32 %v2143, %v2538
      %v2935 = vadd.f32 %v2144, %v2538
      %v2936 = vadd.f32 %v2145, %v2538
      %v2937 = vadd.f32 %v2146, %v2538
      %v2938 = vadd.f32 %v2147, %v2538
      %v2939 = vadd.f32 %v2148, %v2538
      %v2940 = vadd.f32 %v2149, %v2538
      %v2941 = vadd.f32 %v2150, %v2538
      %v2942 = vadd.f32 %v2151, %v2538
      %v2943 = vadd.f32 %v2152, %v2538
      %v2944 = vadd.f32 %v2153, %v2538
      %v2945 = vadd.f32 %v2154, %v2538
      %v2946 = vadd.f32 %v2155, %v2538
      %v2947 = vadd.f32 %v2156, %v2538
      %v2948 = vadd.f32 %v2157, %v2538
      %v2949 = vadd.f32 %v2158, %v2538
      %v2950 = vadd.f32 %v2159, %v2538
      %v2951 = vadd.f32 %v2160, %v2538
      %v2952 = vadd.f32 %v2161, %v2538
      %v2953 = vadd.f32 %v2162, %v2538
      %v2954 = vadd.f32 %v2163, %v2538
      %v2955 = vadd.f32 %v2164, %v2538
      %v2956 = vadd.f32 %v2165, %v2538
      %v2957 = vadd.f32 %v2166, %v2538
      %v2958 = vadd.f32 %v2167, %v2538
      %v2959 = vadd.f32 %v2168, %v2538
      %v2960 = vadd.f32 %v2169, %v2538
      %v2961 = vadd.f32 %v2170, %v2538
      %v2962 = vadd.f32 %v2171, %v2538
      %v2963 = vadd.f32 %v2172, %v2538
      %v2964 = vadd.f32 %v2173, %v2538
      %v2965 = vadd.f32 %v2174, %v2538
      %v2966 = vadd.f32 %v2175, %v2538
      %v2967 = vadd.f32 %v2176, %v2538
      %v2968 = vadd.f32 %v2177, %v2538
      %v2969 = vadd.f32 %v2178, %v2538
      %v2970 = vadd.f32 %v2179, %v2538
      %v2971 = vadd.f32 %v2180, %v2538
      %v2972 = vadd.f32 %v2181, %v2538
      %v2973 = vadd.f32 %v2182, %v2538
      %v2974 = vadd.f32 %v2183, %v2538
      %v2975 = vadd.f32 %v2184, %v2538
      %v2976 = vadd.f32 %v2185, %v2538
      %v2977 = vadd.f32 %v2186, %v2538
      %v2978 = vadd.f32 %v2187, %v2538
      %v2979 = vadd.f32 %v2188, %v2538
      %v2980 = vadd.f32 %v2189, %v2538
      %v2981 = vadd.f32 %v2190, %v2538
      %v2982 = vadd.f32 %v2191, %v2538
      %v2983 = vadd.f32 %v2192, %v2538
      %v2984 = vadd.f32 %v2193, %v2538
      %v2985 = vadd.f32 %v2194, %v2538
      %v2986 = vadd.f32 %v2195, %v2538
      %v2987 = vadd.f32 %v2196, %v2538
      %v2988 = vadd.f32 %v2197, %v2538
      %v2989 = vadd.f32 %v2198, %v2538
      %v2990 = vadd.f32 %v2199, %v2538
      %v2991 = vadd.f32 %v2200, %v2538
      %v2992 = vadd.f32 %v2201, %v2538
      %v2993 = vadd.f32 %v2202, %v2538
      %v2994 = vadd.f32 %v2203, %v2538
      %v2995 = vadd.f32 %v2204, %v2538
      %v2996 = vadd.f32 %v2205, %v2538
      %v2997 = vadd.f32 %v2206, %v2538
      %v2998 = vadd.f32 %v2207, %v2538
      %v2999 = vadd.f32 %v2208, %v2538
      %v3000 = vadd.f32 %v2209, %v2538
      %v3001 = vadd.f32 %v2210, %v2538
      %v3002 = vadd.f32 %v2211, %v2538
      %v3003 = vadd.f32 %v2212, %v2538
      %v3004 = vadd.f32 %v2213, %v2538
      %v3005 = vadd.f32 %v2214, %v2538
      %v3006 = vadd.f32 %v2215, %v2538
      %v3007 = vadd.f32 %v2216, %v2538
      %v3008 = vadd.f32 %v2217, %v2538
      %v3009 = vadd.f32 %v2218, %v2538
      %v3010 = vadd.f32 %v2219, %v2538
      %v3011 = vadd.f32 %v2220, %v2538
      %v3012 = vadd.f32 %v2221, %v2538
      %v3013 = vadd.f32 %v2222, %v2538
      %v3014 = vadd.f32 %v2223, %v2538
      %v3015 = vadd.f32 %v2224, %v2538
      %v3016 = vadd.f32 %v2225, %v2538
      %v3017 = vadd.f32 %v2226, %v2538
      %v3018 = vadd.f32 %v2227, %v2538
      %v3019 = vadd.f32 %v2228, %v2538
      %v3020 = vadd.f32 %v2229, %v2538
      %v3021 = vadd.f32 %v2230, %v2538
      %v3022 = vadd.f32 %v2231, %v2538
      %v3023 = vadd.f32 %v2232, %v2538
      %v3024 = vadd.f32 %v2233, %v2538
      %v3025 = vadd.f32 %v2234, %v2538
      %v3026 = vadd.f32 %v2235, %v2538
      %v3027 = vadd.f32 %v2236, %v2538
      %v3028 = vadd.f32 %v2237, %v2538
      %v3029 = vadd.f32 %v2238, %v2538
      %v3030 = vadd.f32 %v2239, %v2538
      %v3031 = vadd.f32 %v2240, %v2538
      %v3032 = vadd.f32 %v2241, %v2538
      %v3033 = vadd.f32 %v2242, %v2538
      %v3034 = vadd.f32 %v2243, %v2538
      %v3035 = vadd.f32 %v2244, %v2538
      %v3036 = vadd.f32 %v2245, %v2538
      %v3037 = vadd.f32 %v2246, %v2538
      %v3038 = vadd.f32 %v2247, %v2538
      %v3039 = vadd.f32 %v2248, %v2538
      %v3040 = vadd.f32 %v2249, %v2538
      %v3041 = vadd.f32 %v2250, %v2538
      %v3042 = vadd.f32 %v2251, %v2538
      %v3043 = vadd.f32 %v2252, %v2538
      %v3044 = vadd.f32 %v2253, %v2538
      %v3045 = vadd.f32 %v2254, %v2538
      %v3046 = vadd.f32 %v2255, %v2538
      %v3047 = vadd.f32 %v2256, %v2538
      %v3048 = vadd.f32 %v2257, %v2538
      %v3049 = vadd.f32 %v2258, %v2538
      %v3050 = vadd.f32 %v2259, %v2538
      %v3051 = vadd.f32 %v2260, %v2538
      %v3052 = vadd.f32 %v2261, %v2538
      %v3053 = vadd.f32 %v2262, %v2538
      %v3054 = vadd.f32 %v2263, %v2538
      %v3055 = vadd.f32 %v2264, %v2538
      %v3056 = vadd.f32 %v2265, %v2538
      %v3057 = vadd.f32 %v2266, %v2538
      %v3058 = vadd.f32 %v2267, %v2538
      %v3059 = vadd.f32 %v2268, %v2538
      %v3060 = vadd.f32 %v2269, %v2538
      %v3061 = vadd.f32 %v2270, %v2538
      %v3062 = vadd.f32 %v2271, %v2538
      %v3063 = vadd.f32 %v2272, %v2538
      %v3064 = vadd.f32 %v2273, %v2538
      %v3065 = vadd.f32 %v2274, %v2538
      %v3066 = vadd.f32 %v2275, %v2538
      %v3067 = vadd.f32 %v2276, %v2538
      %v3068 = vadd.f32 %v2277, %v2538
      %v3069 = vadd.f32 %v2278, %v2538
      %v3070 = vadd.f32 %v2279, %v2538
      %v3071 = vadd.f32 %v2280, %v2538
      %v3072 = vadd.f32 %v2281, %v2538
      %v3073 = vadd.f32 %v2282, %v2538
      %v3074 = vadd.f32 %v2283, %v2538
      %v3075 = vadd.f32 %v2284, %v2538
      %v3076 = vadd.f32 %v2285, %v2538
      %v3077 = vadd.f32 %v2286, %v2538
      %v3078 = vadd.f32 %v2287, %v2538
      %v3079 = vadd.f32 %v2288, %v2538
      %v3080 = vadd.f32 %v2289, %v2538
      %v3081 = vadd.f32 %v2290, %v2538
      %v3082 = vadd.f32 %v2291, %v2538
      %v3083 = vadd.f32 %v2292, %v2538
      %v3084 = vadd.f32 %v2293, %v2538
      %v3085 = vadd.f32 %v2294, %v2538
      %v3086 = vadd.f32 %v2295, %v2538
      %v3087 = vadd.f32 %v2296, %v2538
      %v3088 = vadd.f32 %v2297, %v2538
      %v3089 = vadd.f32 %v2298, %v2538
      %v3090 = vadd.f32 %v2299, %v2538
      %v3091 = vadd.f32 %v2300, %v2538
      %v3092 = vadd.f32 %v2301, %v2538
      %v3093 = vadd.f32 %v2302, %v2538
      %v3094 = vadd.f32 %v2303, %v2538
      %v3095 = vadd.f32 %v2304, %v2538
      %v3096 = vadd.f32 %v2305, %v2538
      %v3097 = vadd.f32 %v2306, %v2538
      %v3098 = vadd.f32 %v2307, %v2538
      %v3099 = vadd.f32 %v2308, %v2538
      %v3100 = vadd.f32 %v2309, %v2538
      %v3101 = vadd.f32 %v2310, %v2538
      %v3102 = vadd.f32 %v2311, %v2538
      %v3103 = vadd.f32 %v2312, %v2538
      %v3104 = vadd.f32 %v2313, %v2538
      %v3105 = vadd.f32 %v2314, %v2538
      %v3106 = vadd.f32 %v2315, %v2538
      %v3107 = vadd.f32 %v2316, %v2538
      %v3108 = vadd.f32 %v2317, %v2538
      %v3109 = vadd.f32 %v2318, %v2538
      %v3110 = vadd.f32 %v2319, %v2538
      %v3111 = vadd.f32 %v2320, %v2538
      %v3112 = vadd.f32 %v2321, %v2538
      %v3113 = vadd.f32 %v2322, %v2538
      %v3114 = vadd.f32 %v2323, %v2538
      %v3115 = vadd.f32 %v2324, %v2538
      %v3116 = vadd.f32 %v2325, %v2538
      %v3117 = vadd.f32 %v2326, %v2538
      %v3118 = vadd.f32 %v2327, %v2538
      %v3119 = vadd.f32 %v2328, %v2538
      %v3120 = vadd.f32 %v2329, %v2538
      %v3121 = vadd.f32 %v2330, %v2538
      %v3122 = vadd.f32 %v2331, %v2538
      %v3123 = vadd.f32 %v2332, %v2538
      %v3124 = vadd.f32 %v2333, %v2538
      %v3125 = vadd.f32 %v2334, %v2538
      %v3126 = vadd.f32 %v2335, %v2538
      %v3127 = vadd.f32 %v2336, %v2538
      %v3128 = vadd.f32 %v2337, %v2538
      %v3129 = vadd.f32 %v2338, %v2538
      %v3130 = vadd.f32 %v2339, %v2538
      %v3131 = vadd.f32 %v2340, %v2538
      %v3132 = vadd.f32 %v2341, %v2538
      %v3133 = vadd.f32 %v2342, %v2538
      %v3134 = vadd.f32 %v2343, %v2538
      %v3135 = vadd.f32 %v2344, %v2538
      %v3136 = vadd.f32 %v2345, %v2538
      %v3137 = vadd.f32 %v2346, %v2538
      %v3138 = vadd.f32 %v2347, %v2538
      %v3139 = vadd.f32 %v2348, %v2538
      %v3140 = vadd.f32 %v2349, %v2538
      %v3141 = vadd.f32 %v2350, %v2538
      %v3142 = vadd.f32 %v2351, %v2538
      %v3143 = vadd.f32 %v2352, %v2538
      %v3144 = vadd.f32 %v2353, %v2538
      %v3145 = vadd.f32 %v2354, %v2538
      %v3146 = vadd.f32 %v2355, %v2538
      %v3147 = vadd.f32 %v2356, %v2538
      %v3148 = vadd.f32 %v2357, %v2538
      %v3149 = vadd.f32 %v2358, %v2538
      %v3150 = vadd.f32 %v2359, %v2538
      %v3151 = vadd.f32 %v2360, %v2538
      %v3152 = vadd.f32 %v2361, %v2538
      %v3153 = vadd.f32 %v2362, %v2538
      %v3154 = vadd.f32 %v2363, %v2538
      %v3155 = vadd.f32 %v2364, %v2538
      %v3156 = vadd.f32 %v2365, %v2538
      %v3157 = vadd.f32 %v2366, %v2538
      %v3158 = vadd.f32 %v2367, %v2538
      %v3159 = vadd.f32 %v2368, %v2538
      %v3160 = vadd.f32 %v2369, %v2538
      %v3161 = vadd.f32 %v2370, %v2538
      %v3162 = vadd.f32 %v2371, %v2538
      %v3163 = vadd.f32 %v2372, %v2538
      %v3164 = vadd.f32 %v2373, %v2538
      %v3165 = vadd.f32 %v2374, %v2538
      %v3166 = vadd.f32 %v2375, %v2538
      %v3167 = vadd.f32 %v2376, %v2538
      %v3168 = vadd.f32 %v2377, %v2538
      %v3169 = vadd.f32 %v2378, %v2538
      %v3170 = vadd.f32 %v2379, %v2538
      %v3171 = vadd.f32 %v2380, %v2538
      %v3172 = vadd.f32 %v2381, %v2538
      %v3173 = vadd.f32 %v2382, %v2538
      %v3174 = vadd.f32 %v2383, %v2538
      %v3175 = vadd.f32 %v2384, %v2538
      %v3176 = vadd.f32 %v2385, %v2538
      %v3177 = vadd.f32 %v2386, %v2538
      %v3178 = vadd.f32 %v2387, %v2538
      %v3179 = vadd.f32 %v2388, %v2538
      %v3180 = vadd.f32 %v2389, %v2538
      %v3181 = vadd.f32 %v2390, %v2538
      %v3182 = vadd.f32 %v2391, %v2538
      %v3183 = vadd.f32 %v2392, %v2538
      %v3184 = vadd.f32 %v2393, %v2538
      %v3185 = vadd.f32 %v2394, %v2538
      %v3186 = vadd.f32 %v2395, %v2538
      %v3187 = vadd.f32 %v2396, %v2538
      %v3188 = vadd.f32 %v2397, %v2538
      %v3189 = vadd.f32 %v2398, %v2538
      %v3190 = vadd.f32 %v2399, %v2538
      %v3191 = vadd.f32 %v2400, %v2538
      %v3192 = vadd.f32 %v2401, %v2538
      %v3193 = vadd.f32 %v2402, %v2538
      %v3194 = vadd.f32 %v2403, %v2538
      %v3195 = vadd.f32 %v2404, %v2538
      %v3196 = vadd.f32 %v2405, %v2538
      %v3197 = vadd.f32 %v2406, %v2538
      %v3198 = vadd.f32 %v2407, %v2538
      %v3199 = vadd.f32 %v2408, %v2538
      %v3200 = vadd.f32 %v2409, %v2538
      %v3201 = vadd.f32 %v2410, %v2538
      %v3202 = vadd.f32 %v2411, %v2538
      %v3203 = vadd.f32 %v2412, %v2538
      %v3204 = vadd.f32 %v2413, %v2538
      %v3205 = vadd.f32 %v2414, %v2538
      %v3206 = vadd.f32 %v2415, %v2538
      %v3207 = vadd.f32 %v2416, %v2538
      %v3208 = vadd.f32 %v2417, %v2538
      %v3209 = vadd.f32 %v2418, %v2538
      %v3210 = vadd.f32 %v2419, %v2538
      %v3211 = vadd.f32 %v2420, %v2538
      %v3212 = vadd.f32 %v2421, %v2538
      %v3213 = vadd.f32 %v2422, %v2538
      %v3214 = vadd.f32 %v2423, %v2538
      %v3215 = vadd.f32 %v2424, %v2538
      %v3216 = vadd.f32 %v2425, %v2538
      %v3217 = vadd.f32 %v2426, %v2538
      %v3218 = vadd.f32 %v2427, %v2538
      %v3219 = vadd.f32 %v2428, %v2538
      %v3220 = vadd.f32 %v2429, %v2538
      %v3221 = vadd.f32 %v2430, %v2538
      %v3222 = vadd.f32 %v2431, %v2538
      %v3223 = vadd.f32 %v2432, %v2538
      %v3224 = vadd.f32 %v2433, %v2538
      %v3225 = vadd.f32 %v2434, %v2538
      %v3226 = vadd.f32 %v2435, %v2538
      %v3227 = vadd.f32 %v2436, %v2538
      %v3228 = vadd.f32 %v2437, %v2538
      %v3229 = vadd.f32 %v2438, %v2538
      %v3230 = vadd.f32 %v2439, %v2538
      %v3231 = vadd.f32 %v2440, %v2538
      %v3232 = vadd.f32 %v2441, %v2538
      %v3233 = vadd.f32 %v2442, %v2538
      %v3234 = vadd.f32 %v2443, %v2538
      %v3235 = vadd.f32 %v2444, %v2538
      %v3236 = vadd.f32 %v2445, %v2538
      %v3237 = vadd.f32 %v2446, %v2538
      %v3238 = vadd.f32 %v2447, %v2538
      %v3239 = vadd.f32 %v2448, %v2538
      %v3240 = vadd.f32 %v2449, %v2538
      %v3241 = vadd.f32 %v2450, %v2538
      %v3242 = vadd.f32 %v2451, %v2538
      %v3243 = vadd.f32 %v2452, %v2538
      %v3244 = vadd.f32 %v2453, %v2538
      %v3245 = vadd.f32 %v2454, %v2538
      %v3246 = vadd.f32 %v2455, %v2538
      %v3247 = vadd.f32 %v2456, %v2538
      %v3248 = vadd.f32 %v2457, %v2538
      %v3249 = vadd.f32 %v2458, %v2538
      %v3250 = vadd.f32 %v2459, %v2538
      %v3251 = vadd.f32 %v2460, %v2538
      %v3252 = vadd.f32 %v2461, %v2538
      %v3253 = vadd.f32 %v2462, %v2538
      %v3254 = vadd.f32 %v2463, %v2538
      %v3255 = vadd.f32 %v2464, %v2538
      %v3256 = vadd.f32 %v2465, %v2538
      %v3257 = vadd.f32 %v2466, %v2538
      %v3258 = vadd.f32 %v2467, %v2538
      %v3259 = vadd.f32 %v2468, %v2538
      %v3260 = vadd.f32 %v2469, %v2538
      %v3261 = vadd.f32 %v2470, %v2538
      %v3262 = vadd.f32 %v2471, %v2538
      %v3263 = vadd.f32 %v2472, %v2538
      %v3264 = vadd.f32 %v2473, %v2538
      %v3265 = vadd.f32 %v2474, %v2538
      %v3266 = vadd.f32 %v2475, %v2538
      %v3267 = vadd.f32 %v2476, %v2538
      %v3268 = vadd.f32 %v2477, %v2538
      %v3269 = vadd.f32 %v2478, %v2538
      %v3270 = vadd.f32 %v2479, %v2538
      %v3271 = vadd.f32 %v2480, %v2538
      %v3272 = vadd.f32 %v2481, %v2538
      %v3273 = vadd.f32 %v2482, %v2538
      %v3274 = vadd.f32 %v2483, %v2538
      %v3275 = vadd.f32 %v2484, %v2538
      %v3276 = vadd.f32 %v2485, %v2538
      %v3277 = vadd.f32 %v2486, %v2538
      %v3278 = vadd.f32 %v2487, %v2538
      %v3279 = vadd.f32 %v2488, %v2538
      %v3280 = vadd.f32 %v2489, %v2538
      %v3281 = vadd.f32 %v2490, %v2538
      %v3282 = vadd.f32 %v2491, %v2538
      %v3283 = vadd.f32 %v2492, %v2538
      %v3284 = vadd.f32 %v2493, %v2538
      %v3285 = vadd.f32 %v2494, %v2538
      %v3286 = vadd.f32 %v2495, %v2538
      %v3287 = vadd.f32 %v2496, %v2538
      %v3288 = vadd.f32 %v2497, %v2538
      %v3289 = vadd.f32 %v2498, %v2538
      %v3290 = vadd.f32 %v2499, %v2538
      %v3291 = vadd.f32 %v2500, %v2538
      %v3292 = vadd.f32 %v2501, %v2538
      %v3293 = vadd.f32 %v2502, %v2538
      %v3294 = vadd.f32 %v2503, %v2538
      %v3295 = vadd.f32 %v2504, %v2538
      %v3296 = vadd.f32 %v2505, %v2538
      %v3297 = vadd.f32 %v2506, %v2538
      %v3298 = vadd.f32 %v2507, %v2538
      %v3299 = vadd.f32 %v2508, %v2538
      %v3300 = vadd.f32 %v2509, %v2538
      %v3301 = vadd.f32 %v2510, %v2538
      %v3302 = vadd.f32 %v2511, %v2538
      %v3303 = vadd.f32 %v2512, %v2538
      %v3304 = vadd.f32 %v2513, %v2538
      %v3305 = vadd.f32 %v2514, %v2538
      %v3306 = vadd.f32 %v2515, %v2538
      %v3307 = vadd.f32 %v2516, %v2538
      %v3308 = vadd.f32 %v2517, %v2538
      %v3309 = vadd.f32 %v2518, %v2538
      %v3310 = vadd.f32 %v2519, %v2538
      %v3311 = vadd.f32 %v2520, %v2538
      %v3312 = vadd.f32 %v2521, %v2538
      %v3313 = vadd.f32 %v2522, %v2538
      %v3314 = vadd.f32 %v2523, %v2538
      %v3315 = vadd.f32 %v2524, %v2538
      %v3316 = vadd.f32 %v2525, %v2538
      %v3317 = vadd.f32 %v2526, %v2538
      %v3318 = vadd.f32 %v2527, %v2538
      %v3319 = vadd.f32 %v2528, %v2538
      %v3320 = vadd.f32 %v2529, %v2538
      %v3321 = vadd.f32 %v2530, %v2538
      %v3322 = vadd.f32 %v2531, %v2538
      %v3323 = vadd.f32 %v2532, %v2538
      %v3324 = vmax.f32 %v2540, 0.0
      %v3325 = vmax.f32 %v2541, 0.0
      %v3326 = vmax.f32 %v2542, 0.0
      %v3327 = vmax.f32 %v2543, 0.0
      %v3328 = vmax.f32 %v2544, 0.0
      %v3329 = vmax.f32 %v2545, 0.0
      %v3330 = vmax.f32 %v2546, 0.0
      %v3331 = vmax.f32 %v2547, 0.0
      %v3332 = vmax.f32 %v2548, 0.0
      %v3333 = vmax.f32 %v2549, 0.0
      %v3334 = vmax.f32 %v2550, 0.0
      %v3335 = vmax.f32 %v2551, 0.0
      %v3336 = vmax.f32 %v2552, 0.0
      %v3337 = vmax.f32 %v2553, 0.0
      %v3338 = vmax.f32 %v2554, 0.0
      %v3339 = vmax.f32 %v2555, 0.0
      %v3340 = vmax.f32 %v2556, 0.0
      %v3341 = vmax.f32 %v2557, 0.0
      %v3342 = vmax.f32 %v2558, 0.0
      %v3343 = vmax.f32 %v2559, 0.0
      %v3344 = vmax.f32 %v2560, 0.0
      %v3345 = vmax.f32 %v2561, 0.0
      %v3346 = vmax.f32 %v2562, 0.0
      %v3347 = vmax.f32 %v2563, 0.0
      %v3348 = vmax.f32 %v2564, 0.0
      %v3349 = vmax.f32 %v2565, 0.0
      %v3350 = vmax.f32 %v2566, 0.0
      %v3351 = vmax.f32 %v2567, 0.0
      %v3352 = vmax.f32 %v2568, 0.0
      %v3353 = vmax.f32 %v2569, 0.0
      %v3354 = vmax.f32 %v2570, 0.0
      %v3355 = vmax.f32 %v2571, 0.0
      %v3356 = vmax.f32 %v2572, 0.0
      %v3357 = vmax.f32 %v2573, 0.0
      %v3358 = vmax.f32 %v2574, 0.0
      %v3359 = vmax.f32 %v2575, 0.0
      %v3360 = vmax.f32 %v2576, 0.0
      %v3361 = vmax.f32 %v2577, 0.0
      %v3362 = vmax.f32 %v2578, 0.0
      %v3363 = vmax.f32 %v2579, 0.0
      %v3364 = vmax.f32 %v2580, 0.0
      %v3365 = vmax.f32 %v2581, 0.0
      %v3366 = vmax.f32 %v2582, 0.0
      %v3367 = vmax.f32 %v2583, 0.0
      %v3368 = vmax.f32 %v2584, 0.0
      %v3369 = vmax.f32 %v2585, 0.0
      %v3370 = vmax.f32 %v2586, 0.0
      %v3371 = vmax.f32 %v2587, 0.0
      %v3372 = vmax.f32 %v2588, 0.0
      %v3373 = vmax.f32 %v2589, 0.0
      %v3374 = vmax.f32 %v2590, 0.0
      %v3375 = vmax.f32 %v2591, 0.0
      %v3376 = vmax.f32 %v2592, 0.0
      %v3377 = vmax.f32 %v2593, 0.0
      %v3378 = vmax.f32 %v2594, 0.0
      %v3379 = vmax.f32 %v2595, 0.0
      %v3380 = vmax.f32 %v2596, 0.0
      %v3381 = vmax.f32 %v2597, 0.0
      %v3382 = vmax.f32 %v2598, 0.0
      %v3383 = vmax.f32 %v2599, 0.0
      %v3384 = vmax.f32 %v2600, 0.0
      %v3385 = vmax.f32 %v2601, 0.0
      %v3386 = vmax.f32 %v2602, 0.0
      %v3387 = vmax.f32 %v2603, 0.0
      %v3388 = vmax.f32 %v2604, 0.0
      %v3389 = vmax.f32 %v2605, 0.0
      %v3390 = vmax.f32 %v2606, 0.0
      %v3391 = vmax.f32 %v2607, 0.0
      %v3392 = vmax.f32 %v2608, 0.0
      %v3393 = vmax.f32 %v2609, 0.0
      %v3394 = vmax.f32 %v2610, 0.0
      %v3395 = vmax.f32 %v2611, 0.0
      %v3396 = vmax.f32 %v2612, 0.0
      %v3397 = vmax.f32 %v2613, 0.0
      %v3398 = vmax.f32 %v2614, 0.0
      %v3399 = vmax.f32 %v2615, 0.0
      %v3400 = vmax.f32 %v2616, 0.0
      %v3401 = vmax.f32 %v2617, 0.0
      %v3402 = vmax.f32 %v2618, 0.0
      %v3403 = vmax.f32 %v2619, 0.0
      %v3404 = vmax.f32 %v2620, 0.0
      %v3405 = vmax.f32 %v2621, 0.0
      %v3406 = vmax.f32 %v2622, 0.0
      %v3407 = vmax.f32 %v2623, 0.0
      %v3408 = vmax.f32 %v2624, 0.0
      %v3409 = vmax.f32 %v2625, 0.0
      %v3410 = vmax.f32 %v2626, 0.0
      %v3411 = vmax.f32 %v2627, 0.0
      %v3412 = vmax.f32 %v2628, 0.0
      %v3413 = vmax.f32 %v2629, 0.0
      %v3414 = vmax.f32 %v2630, 0.0
      %v3415 = vmax.f32 %v2631, 0.0
      %v3416 = vmax.f32 %v2632, 0.0
      %v3417 = vmax.f32 %v2633, 0.0
      %v3418 = vmax.f32 %v2634, 0.0
      %v3419 = vmax.f32 %v2635, 0.0
      %v3420 = vmax.f32 %v2636, 0.0
      %v3421 = vmax.f32 %v2637, 0.0
      %v3422 = vmax.f32 %v2638, 0.0
      %v3423 = vmax.f32 %v2639, 0.0
      %v3424 = vmax.f32 %v2640, 0.0
      %v3425 = vmax.f32 %v2641, 0.0
      %v3426 = vmax.f32 %v2642, 0.0
      %v3427 = vmax.f32 %v2643, 0.0
      %v3428 = vmax.f32 %v2644, 0.0
      %v3429 = vmax.f32 %v2645, 0.0
      %v3430 = vmax.f32 %v2646, 0.0
      %v3431 = vmax.f32 %v2647, 0.0
      %v3432 = vmax.f32 %v2648, 0.0
      %v3433 = vmax.f32 %v2649, 0.0
      %v3434 = vmax.f32 %v2650, 0.0
      %v3435 = vmax.f32 %v2651, 0.0
      %v3436 = vmax.f32 %v2652, 0.0
      %v3437 = vmax.f32 %v2653, 0.0
      %v3438 = vmax.f32 %v2654, 0.0
      %v3439 = vmax.f32 %v2655, 0.0
      %v3440 = vmax.f32 %v2656, 0.0
      %v3441 = vmax.f32 %v2657, 0.0
      %v3442 = vmax.f32 %v2658, 0.0
      %v3443 = vmax.f32 %v2659, 0.0
      %v3444 = vmax.f32 %v2660, 0.0
      %v3445 = vmax.f32 %v2661, 0.0
      %v3446 = vmax.f32 %v2662, 0.0
      %v3447 = vmax.f32 %v2663, 0.0
      %v3448 = vmax.f32 %v2664, 0.0
      %v3449 = vmax.f32 %v2665, 0.0
      %v3450 = vmax.f32 %v2666, 0.0
      %v3451 = vmax.f32 %v2667, 0.0
      %v3452 = vmax.f32 %v2668, 0.0
      %v3453 = vmax.f32 %v2669, 0.0
      %v3454 = vmax.f32 %v2670, 0.0
      %v3455 = vmax.f32 %v2671, 0.0
      %v3456 = vmax.f32 %v2672, 0.0
      %v3457 = vmax.f32 %v2673, 0.0
      %v3458 = vmax.f32 %v2674, 0.0
      %v3459 = vmax.f32 %v2675, 0.0
      %v3460 = vmax.f32 %v2676, 0.0
      %v3461 = vmax.f32 %v2677, 0.0
      %v3462 = vmax.f32 %v2678, 0.0
      %v3463 = vmax.f32 %v2679, 0.0
      %v3464 = vmax.f32 %v2680, 0.0
      %v3465 = vmax.f32 %v2681, 0.0
      %v3466 = vmax.f32 %v2682, 0.0
      %v3467 = vmax.f32 %v2683, 0.0
      %v3468 = vmax.f32 %v2684, 0.0
      %v3469 = vmax.f32 %v2685, 0.0
      %v3470 = vmax.f32 %v2686, 0.0
      %v3471 = vmax.f32 %v2687, 0.0
      %v3472 = vmax.f32 %v2688, 0.0
      %v3473 = vmax.f32 %v2689, 0.0
      %v3474 = vmax.f32 %v2690, 0.0
      %v3475 = vmax.f32 %v2691, 0.0
      %v3476 = vmax.f32 %v2692, 0.0
      %v3477 = vmax.f32 %v2693, 0.0
      %v3478 = vmax.f32 %v2694, 0.0
      %v3479 = vmax.f32 %v2695, 0.0
      %v3480 = vmax.f32 %v2696, 0.0
      %v3481 = vmax.f32 %v2697, 0.0
      %v3482 = vmax.f32 %v2698, 0.0
      %v3483 = vmax.f32 %v2699, 0.0
      %v3484 = vmax.f32 %v2700, 0.0
      %v3485 = vmax.f32 %v2701, 0.0
      %v3486 = vmax.f32 %v2702, 0.0
      %v3487 = vmax.f32 %v2703, 0.0
      %v3488 = vmax.f32 %v2704, 0.0
      %v3489 = vmax.f32 %v2705, 0.0
      %v3490 = vmax.f32 %v2706, 0.0
      %v3491 = vmax.f32 %v2707, 0.0
      %v3492 = vmax.f32 %v2708, 0.0
      %v3493 = vmax.f32 %v2709, 0.0
      %v3494 = vmax.f32 %v2710, 0.0
      %v3495 = vmax.f32 %v2711, 0.0
      %v3496 = vmax.f32 %v2712, 0.0
      %v3497 = vmax.f32 %v2713, 0.0
      %v3498 = vmax.f32 %v2714, 0.0
      %v3499 = vmax.f32 %v2715, 0.0
      %v3500 = vmax.f32 %v2716, 0.0
      %v3501 = vmax.f32 %v2717, 0.0
      %v3502 = vmax.f32 %v2718, 0.0
      %v3503 = vmax.f32 %v2719, 0.0
      %v3504 = vmax.f32 %v2720, 0.0
      %v3505 = vmax.f32 %v2721, 0.0
      %v3506 = vmax.f32 %v2722, 0.0
      %v3507 = vmax.f32 %v2723, 0.0
      %v3508 = vmax.f32 %v2724, 0.0
      %v3509 = vmax.f32 %v2725, 0.0
      %v3510 = vmax.f32 %v2726, 0.0
      %v3511 = vmax.f32 %v2727, 0.0
      %v3512 = vmax.f32 %v2728, 0.0
      %v3513 = vmax.f32 %v2729, 0.0
      %v3514 = vmax.f32 %v2730, 0.0
      %v3515 = vmax.f32 %v2731, 0.0
      %v3516 = vmax.f32 %v2732, 0.0
      %v3517 = vmax.f32 %v2733, 0.0
      %v3518 = vmax.f32 %v2734, 0.0
      %v3519 = vmax.f32 %v2735, 0.0
      %v3520 = vmax.f32 %v2736, 0.0
      %v3521 = vmax.f32 %v2737, 0.0
      %v3522 = vmax.f32 %v2738, 0.0
      %v3523 = vmax.f32 %v2739, 0.0
      %v3524 = vmax.f32 %v2740, 0.0
      %v3525 = vmax.f32 %v2741, 0.0
      %v3526 = vmax.f32 %v2742, 0.0
      %v3527 = vmax.f32 %v2743, 0.0
      %v3528 = vmax.f32 %v2744, 0.0
      %v3529 = vmax.f32 %v2745, 0.0
      %v3530 = vmax.f32 %v2746, 0.0
      %v3531 = vmax.f32 %v2747, 0.0
      %v3532 = vmax.f32 %v2748, 0.0
      %v3533 = vmax.f32 %v2749, 0.0
      %v3534 = vmax.f32 %v2750, 0.0
      %v3535 = vmax.f32 %v2751, 0.0
      %v3536 = vmax.f32 %v2752, 0.0
      %v3537 = vmax.f32 %v2753, 0.0
      %v3538 = vmax.f32 %v2754, 0.0
      %v3539 = vmax.f32 %v2755, 0.0
      %v3540 = vmax.f32 %v2756, 0.0
      %v3541 = vmax.f32 %v2757, 0.0
      %v3542 = vmax.f32 %v2758, 0.0
      %v3543 = vmax.f32 %v2759, 0.0
      %v3544 = vmax.f32 %v2760, 0.0
      %v3545 = vmax.f32 %v2761, 0.0
      %v3546 = vmax.f32 %v2762, 0.0
      %v3547 = vmax.f32 %v2763, 0.0
      %v3548 = vmax.f32 %v2764, 0.0
      %v3549 = vmax.f32 %v2765, 0.0
      %v3550 = vmax.f32 %v2766, 0.0
      %v3551 = vmax.f32 %v2767, 0.0
      %v3552 = vmax.f32 %v2768, 0.0
      %v3553 = vmax.f32 %v2769, 0.0
      %v3554 = vmax.f32 %v2770, 0.0
      %v3555 = vmax.f32 %v2771, 0.0
      %v3556 = vmax.f32 %v2772, 0.0
      %v3557 = vmax.f32 %v2773, 0.0
      %v3558 = vmax.f32 %v2774, 0.0
      %v3559 = vmax.f32 %v2775, 0.0
      %v3560 = vmax.f32 %v2776, 0.0
      %v3561 = vmax.f32 %v2777, 0.0
      %v3562 = vmax.f32 %v2778, 0.0
      %v3563 = vmax.f32 %v2779, 0.0
      %v3564 = vmax.f32 %v2780, 0.0
      %v3565 = vmax.f32 %v2781, 0.0
      %v3566 = vmax.f32 %v2782, 0.0
      %v3567 = vmax.f32 %v2783, 0.0
      %v3568 = vmax.f32 %v2784, 0.0
      %v3569 = vmax.f32 %v2785, 0.0
      %v3570 = vmax.f32 %v2786, 0.0
      %v3571 = vmax.f32 %v2787, 0.0
      %v3572 = vmax.f32 %v2788, 0.0
      %v3573 = vmax.f32 %v2789, 0.0
      %v3574 = vmax.f32 %v2790, 0.0
      %v3575 = vmax.f32 %v2791, 0.0
      %v3576 = vmax.f32 %v2792, 0.0
      %v3577 = vmax.f32 %v2793, 0.0
      %v3578 = vmax.f32 %v2794, 0.0
      %v3579 = vmax.f32 %v2795, 0.0
      %v3580 = vmax.f32 %v2796, 0.0
      %v3581 = vmax.f32 %v2797, 0.0
      %v3582 = vmax.f32 %v2798, 0.0
      %v3583 = vmax.f32 %v2799, 0.0
      %v3584 = vmax.f32 %v2800, 0.0
      %v3585 = vmax.f32 %v2801, 0.0
      %v3586 = vmax.f32 %v2802, 0.0
      %v3587 = vmax.f32 %v2803, 0.0
      %v3588 = vmax.f32 %v2804, 0.0
      %v3589 = vmax.f32 %v2805, 0.0
      %v3590 = vmax.f32 %v2806, 0.0
      %v3591 = vmax.f32 %v2807, 0.0
      %v3592 = vmax.f32 %v2808, 0.0
      %v3593 = vmax.f32 %v2809, 0.0
      %v3594 = vmax.f32 %v2810, 0.0
      %v3595 = vmax.f32 %v2811, 0.0
      %v3596 = vmax.f32 %v2812, 0.0
      %v3597 = vmax.f32 %v2813, 0.0
      %v3598 = vmax.f32 %v2814, 0.0
      %v3599 = vmax.f32 %v2815, 0.0
      %v3600 = vmax.f32 %v2816, 0.0
      %v3601 = vmax.f32 %v2817, 0.0
      %v3602 = vmax.f32 %v2818, 0.0
      %v3603 = vmax.f32 %v2819, 0.0
      %v3604 = vmax.f32 %v2820, 0.0
      %v3605 = vmax.f32 %v2821, 0.0
      %v3606 = vmax.f32 %v2822, 0.0
      %v3607 = vmax.f32 %v2823, 0.0
      %v3608 = vmax.f32 %v2824, 0.0
      %v3609 = vmax.f32 %v2825, 0.0
      %v3610 = vmax.f32 %v2826, 0.0
      %v3611 = vmax.f32 %v2827, 0.0
      %v3612 = vmax.f32 %v2828, 0.0
      %v3613 = vmax.f32 %v2829, 0.0
      %v3614 = vmax.f32 %v2830, 0.0
      %v3615 = vmax.f32 %v2831, 0.0
      %v3616 = vmax.f32 %v2832, 0.0
      %v3617 = vmax.f32 %v2833, 0.0
      %v3618 = vmax.f32 %v2834, 0.0
      %v3619 = vmax.f32 %v2835, 0.0
      %v3620 = vmax.f32 %v2836, 0.0
      %v3621 = vmax.f32 %v2837, 0.0
      %v3622 = vmax.f32 %v2838, 0.0
      %v3623 = vmax.f32 %v2839, 0.0
      %v3624 = vmax.f32 %v2840, 0.0
      %v3625 = vmax.f32 %v2841, 0.0
      %v3626 = vmax.f32 %v2842, 0.0
      %v3627 = vmax.f32 %v2843, 0.0
      %v3628 = vmax.f32 %v2844, 0.0
      %v3629 = vmax.f32 %v2845, 0.0
      %v3630 = vmax.f32 %v2846, 0.0
      %v3631 = vmax.f32 %v2847, 0.0
      %v3632 = vmax.f32 %v2848, 0.0
      %v3633 = vmax.f32 %v2849, 0.0
      %v3634 = vmax.f32 %v2850, 0.0
      %v3635 = vmax.f32 %v2851, 0.0
      %v3636 = vmax.f32 %v2852, 0.0
      %v3637 = vmax.f32 %v2853, 0.0
      %v3638 = vmax.f32 %v2854, 0.0
      %v3639 = vmax.f32 %v2855, 0.0
      %v3640 = vmax.f32 %v2856, 0.0
      %v3641 = vmax.f32 %v2857, 0.0
      %v3642 = vmax.f32 %v2858, 0.0
      %v3643 = vmax.f32 %v2859, 0.0
      %v3644 = vmax.f32 %v2860, 0.0
      %v3645 = vmax.f32 %v2861, 0.0
      %v3646 = vmax.f32 %v2862, 0.0
      %v3647 = vmax.f32 %v2863, 0.0
      %v3648 = vmax.f32 %v2864, 0.0
      %v3649 = vmax.f32 %v2865, 0.0
      %v3650 = vmax.f32 %v2866, 0.0
      %v3651 = vmax.f32 %v2867, 0.0
      %v3652 = vmax.f32 %v2868, 0.0
      %v3653 = vmax.f32 %v2869, 0.0
      %v3654 = vmax.f32 %v2870, 0.0
      %v3655 = vmax.f32 %v2871, 0.0
      %v3656 = vmax.f32 %v2872, 0.0
      %v3657 = vmax.f32 %v2873, 0.0
      %v3658 = vmax.f32 %v2874, 0.0
      %v3659 = vmax.f32 %v2875, 0.0
      %v3660 = vmax.f32 %v2876, 0.0
      %v3661 = vmax.f32 %v2877, 0.0
      %v3662 = vmax.f32 %v2878, 0.0
      %v3663 = vmax.f32 %v2879, 0.0
      %v3664 = vmax.f32 %v2880, 0.0
      %v3665 = vmax.f32 %v2881, 0.0
      %v3666 = vmax.f32 %v2882, 0.0
      %v3667 = vmax.f32 %v2883, 0.0
      %v3668 = vmax.f32 %v2884, 0.0
      %v3669 = vmax.f32 %v2885, 0.0
      %v3670 = vmax.f32 %v2886, 0.0
      %v3671 = vmax.f32 %v2887, 0.0
      %v3672 = vmax.f32 %v2888, 0.0
      %v3673 = vmax.f32 %v2889, 0.0
      %v3674 = vmax.f32 %v2890, 0.0
      %v3675 = vmax.f32 %v2891, 0.0
      %v3676 = vmax.f32 %v2892, 0.0
      %v3677 = vmax.f32 %v2893, 0.0
      %v3678 = vmax.f32 %v2894, 0.0
      %v3679 = vmax.f32 %v2895, 0.0
      %v3680 = vmax.f32 %v2896, 0.0
      %v3681 = vmax.f32 %v2897, 0.0
      %v3682 = vmax.f32 %v2898, 0.0
      %v3683 = vmax.f32 %v2899, 0.0
      %v3684 = vmax.f32 %v2900, 0.0
      %v3685 = vmax.f32 %v2901, 0.0
      %v3686 = vmax.f32 %v2902, 0.0
      %v3687 = vmax.f32 %v2903, 0.0
      %v3688 = vmax.f32 %v2904, 0.0
      %v3689 = vmax.f32 %v2905, 0.0
      %v3690 = vmax.f32 %v2906, 0.0
      %v3691 = vmax.f32 %v2907, 0.0
      %v3692 = vmax.f32 %v2908, 0.0
      %v3693 = vmax.f32 %v2909, 0.0
      %v3694 = vmax.f32 %v2910, 0.0
      %v3695 = vmax.f32 %v2911, 0.0
      %v3696 = vmax.f32 %v2912, 0.0
      %v3697 = vmax.f32 %v2913, 0.0
      %v3698 = vmax.f32 %v2914, 0.0
      %v3699 = vmax.f32 %v2915, 0.0
      %v3700 = vmax.f32 %v2916, 0.0
      %v3701 = vmax.f32 %v2917, 0.0
      %v3702 = vmax.f32 %v2918, 0.0
      %v3703 = vmax.f32 %v2919, 0.0
      %v3704 = vmax.f32 %v2920, 0.0
      %v3705 = vmax.f32 %v2921, 0.0
      %v3706 = vmax.f32 %v2922, 0.0
      %v3707 = vmax.f32 %v2923, 0.0
      %v3708 = vmax.f32 %v2924, 0.0
      %v3709 = vmax.f32 %v2925, 0.0
      %v3710 = vmax.f32 %v2926, 0.0
      %v3711 = vmax.f32 %v2927, 0.0
      %v3712 = vmax.f32 %v2928, 0.0
      %v3713 = vmax.f32 %v2929, 0.0
      %v3714 = vmax.f32 %v2930, 0.0
      %v3715 = vmax.f32 %v2931, 0.0
      %v3716 = vmax.f32 %v2932, 0.0
      %v3717 = vmax.f32 %v2933, 0.0
      %v3718 = vmax.f32 %v2934, 0.0
      %v3719 = vmax.f32 %v2935, 0.0
      %v3720 = vmax.f32 %v2936, 0.0
      %v3721 = vmax.f32 %v2937, 0.0
      %v3722 = vmax.f32 %v2938, 0.0
      %v3723 = vmax.f32 %v2939, 0.0
      %v3724 = vmax.f32 %v2940, 0.0
      %v3725 = vmax.f32 %v2941, 0.0
      %v3726 = vmax.f32 %v2942, 0.0
      %v3727 = vmax.f32 %v2943, 0.0
      %v3728 = vmax.f32 %v2944, 0.0
      %v3729 = vmax.f32 %v2945, 0.0
      %v3730 = vmax.f32 %v2946, 0.0
      %v3731 = vmax.f32 %v2947, 0.0
      %v3732 = vmax.f32 %v2948, 0.0
      %v3733 = vmax.f32 %v2949, 0.0
      %v3734 = vmax.f32 %v2950, 0.0
      %v3735 = vmax.f32 %v2951, 0.0
      %v3736 = vmax.f32 %v2952, 0.0
      %v3737 = vmax.f32 %v2953, 0.0
      %v3738 = vmax.f32 %v2954, 0.0
      %v3739 = vmax.f32 %v2955, 0.0
      %v3740 = vmax.f32 %v2956, 0.0
      %v3741 = vmax.f32 %v2957, 0.0
      %v3742 = vmax.f32 %v2958, 0.0
      %v3743 = vmax.f32 %v2959, 0.0
      %v3744 = vmax.f32 %v2960, 0.0
      %v3745 = vmax.f32 %v2961, 0.0
      %v3746 = vmax.f32 %v2962, 0.0
      %v3747 = vmax.f32 %v2963, 0.0
      %v3748 = vmax.f32 %v2964, 0.0
      %v3749 = vmax.f32 %v2965, 0.0
      %v3750 = vmax.f32 %v2966, 0.0
      %v3751 = vmax.f32 %v2967, 0.0
      %v3752 = vmax.f32 %v2968, 0.0
      %v3753 = vmax.f32 %v2969, 0.0
      %v3754 = vmax.f32 %v2970, 0.0
      %v3755 = vmax.f32 %v2971, 0.0
      %v3756 = vmax.f32 %v2972, 0.0
      %v3757 = vmax.f32 %v2973, 0.0
      %v3758 = vmax.f32 %v2974, 0.0
      %v3759 = vmax.f32 %v2975, 0.0
      %v3760 = vmax.f32 %v2976, 0.0
      %v3761 = vmax.f32 %v2977, 0.0
      %v3762 = vmax.f32 %v2978, 0.0
      %v3763 = vmax.f32 %v2979, 0.0
      %v3764 = vmax.f32 %v2980, 0.0
      %v3765 = vmax.f32 %v2981, 0.0
      %v3766 = vmax.f32 %v2982, 0.0
      %v3767 = vmax.f32 %v2983, 0.0
      %v3768 = vmax.f32 %v2984, 0.0
      %v3769 = vmax.f32 %v2985, 0.0
      %v3770 = vmax.f32 %v2986, 0.0
      %v3771 = vmax.f32 %v2987, 0.0
      %v3772 = vmax.f32 %v2988, 0.0
      %v3773 = vmax.f32 %v2989, 0.0
      %v3774 = vmax.f32 %v2990, 0.0
      %v3775 = vmax.f32 %v2991, 0.0
      %v3776 = vmax.f32 %v2992, 0.0
      %v3777 = vmax.f32 %v2993, 0.0
      %v3778 = vmax.f32 %v2994, 0.0
      %v3779 = vmax.f32 %v2995, 0.0
      %v3780 = vmax.f32 %v2996, 0.0
      %v3781 = vmax.f32 %v2997, 0.0
      %v3782 = vmax.f32 %v2998, 0.0
      %v3783 = vmax.f32 %v2999, 0.0
      %v3784 = vmax.f32 %v3000, 0.0
      %v3785 = vmax.f32 %v3001, 0.0
      %v3786 = vmax.f32 %v3002, 0.0
      %v3787 = vmax.f32 %v3003, 0.0
      %v3788 = vmax.f32 %v3004, 0.0
      %v3789 = vmax.f32 %v3005, 0.0
      %v3790 = vmax.f32 %v3006, 0.0
      %v3791 = vmax.f32 %v3007, 0.0
      %v3792 = vmax.f32 %v3008, 0.0
      %v3793 = vmax.f32 %v3009, 0.0
      %v3794 = vmax.f32 %v3010, 0.0
      %v3795 = vmax.f32 %v3011, 0.0
      %v3796 = vmax.f32 %v3012, 0.0
      %v3797 = vmax.f32 %v3013, 0.0
      %v3798 = vmax.f32 %v3014, 0.0
      %v3799 = vmax.f32 %v3015, 0.0
      %v3800 = vmax.f32 %v3016, 0.0
      %v3801 = vmax.f32 %v3017, 0.0
      %v3802 = vmax.f32 %v3018, 0.0
      %v3803 = vmax.f32 %v3019, 0.0
      %v3804 = vmax.f32 %v3020, 0.0
      %v3805 = vmax.f32 %v3021, 0.0
      %v3806 = vmax.f32 %v3022, 0.0
      %v3807 = vmax.f32 %v3023, 0.0
      %v3808 = vmax.f32 %v3024, 0.0
      %v3809 = vmax.f32 %v3025, 0.0
      %v3810 = vmax.f32 %v3026, 0.0
      %v3811 = vmax.f32 %v3027, 0.0
      %v3812 = vmax.f32 %v3028, 0.0
      %v3813 = vmax.f32 %v3029, 0.0
      %v3814 = vmax.f32 %v3030, 0.0
      %v3815 = vmax.f32 %v3031, 0.0
      %v3816 = vmax.f32 %v3032, 0.0
      %v3817 = vmax.f32 %v3033, 0.0
      %v3818 = vmax.f32 %v3034, 0.0
      %v3819 = vmax.f32 %v3035, 0.0
      %v3820 = vmax.f32 %v3036, 0.0
      %v3821 = vmax.f32 %v3037, 0.0
      %v3822 = vmax.f32 %v3038, 0.0
      %v3823 = vmax.f32 %v3039, 0.0
      %v3824 = vmax.f32 %v3040, 0.0
      %v3825 = vmax.f32 %v3041, 0.0
      %v3826 = vmax.f32 %v3042, 0.0
      %v3827 = vmax.f32 %v3043, 0.0
      %v3828 = vmax.f32 %v3044, 0.0
      %v3829 = vmax.f32 %v3045, 0.0
      %v3830 = vmax.f32 %v3046, 0.0
      %v3831 = vmax.f32 %v3047, 0.0
      %v3832 = vmax.f32 %v3048, 0.0
      %v3833 = vmax.f32 %v3049, 0.0
      %v3834 = vmax.f32 %v3050, 0.0
      %v3835 = vmax.f32 %v3051, 0.0
      %v3836 = vmax.f32 %v3052, 0.0
      %v3837 = vmax.f32 %v3053, 0.0
      %v3838 = vmax.f32 %v3054, 0.0
      %v3839 = vmax.f32 %v3055, 0.0
      %v3840 = vmax.f32 %v3056, 0.0
      %v3841 = vmax.f32 %v3057, 0.0
      %v3842 = vmax.f32 %v3058, 0.0
      %v3843 = vmax.f32 %v3059, 0.0
      %v3844 = vmax.f32 %v3060, 0.0
      %v3845 = vmax.f32 %v3061, 0.0
      %v3846 = vmax.f32 %v3062, 0.0
      %v3847 = vmax.f32 %v3063, 0.0
      %v3848 = vmax.f32 %v3064, 0.0
      %v3849 = vmax.f32 %v3065, 0.0
      %v3850 = vmax.f32 %v3066, 0.0
      %v3851 = vmax.f32 %v3067, 0.0
      %v3852 = vmax.f32 %v3068, 0.0
      %v3853 = vmax.f32 %v3069, 0.0
      %v3854 = vmax.f32 %v3070, 0.0
      %v3855 = vmax.f32 %v3071, 0.0
      %v3856 = vmax.f32 %v3072, 0.0
      %v3857 = vmax.f32 %v3073, 0.0
      %v3858 = vmax.f32 %v3074, 0.0
      %v3859 = vmax.f32 %v3075, 0.0
      %v3860 = vmax.f32 %v3076, 0.0
      %v3861 = vmax.f32 %v3077, 0.0
      %v3862 = vmax.f32 %v3078, 0.0
      %v3863 = vmax.f32 %v3079, 0.0
      %v3864 = vmax.f32 %v3080, 0.0
      %v3865 = vmax.f32 %v3081, 0.0
      %v3866 = vmax.f32 %v3082, 0.0
      %v3867 = vmax.f32 %v3083, 0.0
      %v3868 = vmax.f32 %v3084, 0.0
      %v3869 = vmax.f32 %v3085, 0.0
      %v3870 = vmax.f32 %v3086, 0.0
      %v3871 = vmax.f32 %v3087, 0.0
      %v3872 = vmax.f32 %v3088, 0.0
      %v3873 = vmax.f32 %v3089, 0.0
      %v3874 = vmax.f32 %v3090, 0.0
      %v3875 = vmax.f32 %v3091, 0.0
      %v3876 = vmax.f32 %v3092, 0.0
      %v3877 = vmax.f32 %v3093, 0.0
      %v3878 = vmax.f32 %v3094, 0.0
      %v3879 = vmax.f32 %v3095, 0.0
      %v3880 = vmax.f32 %v3096, 0.0
      %v3881 = vmax.f32 %v3097, 0.0
      %v3882 = vmax.f32 %v3098, 0.0
      %v3883 = vmax.f32 %v3099, 0.0
      %v3884 = vmax.f32 %v3100, 0.0
      %v3885 = vmax.f32 %v3101, 0.0
      %v3886 = vmax.f32 %v3102, 0.0
      %v3887 = vmax.f32 %v3103, 0.0
      %v3888 = vmax.f32 %v3104, 0.0
      %v3889 = vmax.f32 %v3105, 0.0
      %v3890 = vmax.f32 %v3106, 0.0
      %v3891 = vmax.f32 %v3107, 0.0
      %v3892 = vmax.f32 %v3108, 0.0
      %v3893 = vmax.f32 %v3109, 0.0
      %v3894 = vmax.f32 %v3110, 0.0
      %v3895 = vmax.f32 %v3111, 0.0
      %v3896 = vmax.f32 %v3112, 0.0
      %v3897 = vmax.f32 %v3113, 0.0
      %v3898 = vmax.f32 %v3114, 0.0
      %v3899 = vmax.f32 %v3115, 0.0
      %v3900 = vmax.f32 %v3116, 0.0
      %v3901 = vmax.f32 %v3117, 0.0
      %v3902 = vmax.f32 %v3118, 0.0
      %v3903 = vmax.f32 %v3119, 0.0
      %v3904 = vmax.f32 %v3120, 0.0
      %v3905 = vmax.f32 %v3121, 0.0
      %v3906 = vmax.f32 %v3122, 0.0
      %v3907 = vmax.f32 %v3123, 0.0
      %v3908 = vmax.f32 %v3124, 0.0
      %v3909 = vmax.f32 %v3125, 0.0
      %v3910 = vmax.f32 %v3126, 0.0
      %v3911 = vmax.f32 %v3127, 0.0
      %v3912 = vmax.f32 %v3128, 0.0
      %v3913 = vmax.f32 %v3129, 0.0
      %v3914 = vmax.f32 %v3130, 0.0
      %v3915 = vmax.f32 %v3131, 0.0
      %v3916 = vmax.f32 %v3132, 0.0
      %v3917 = vmax.f32 %v3133, 0.0
      %v3918 = vmax.f32 %v3134, 0.0
      %v3919 = vmax.f32 %v3135, 0.0
      %v3920 = vmax.f32 %v3136, 0.0
      %v3921 = vmax.f32 %v3137, 0.0
      %v3922 = vmax.f32 %v3138, 0.0
      %v3923 = vmax.f32 %v3139, 0.0
      %v3924 = vmax.f32 %v3140, 0.0
      %v3925 = vmax.f32 %v3141, 0.0
      %v3926 = vmax.f32 %v3142, 0.0
      %v3927 = vmax.f32 %v3143, 0.0
      %v3928 = vmax.f32 %v3144, 0.0
      %v3929 = vmax.f32 %v3145, 0.0
      %v3930 = vmax.f32 %v3146, 0.0
      %v3931 = vmax.f32 %v3147, 0.0
      %v3932 = vmax.f32 %v3148, 0.0
      %v3933 = vmax.f32 %v3149, 0.0
      %v3934 = vmax.f32 %v3150, 0.0
      %v3935 = vmax.f32 %v3151, 0.0
      %v3936 = vmax.f32 %v3152, 0.0
      %v3937 = vmax.f32 %v3153, 0.0
      %v3938 = vmax.f32 %v3154, 0.0
      %v3939 = vmax.f32 %v3155, 0.0
      %v3940 = vmax.f32 %v3156, 0.0
      %v3941 = vmax.f32 %v3157, 0.0
      %v3942 = vmax.f32 %v3158, 0.0
      %v3943 = vmax.f32 %v3159, 0.0
      %v3944 = vmax.f32 %v3160, 0.0
      %v3945 = vmax.f32 %v3161, 0.0
      %v3946 = vmax.f32 %v3162, 0.0
      %v3947 = vmax.f32 %v3163, 0.0
      %v3948 = vmax.f32 %v3164, 0.0
      %v3949 = vmax.f32 %v3165, 0.0
      %v3950 = vmax.f32 %v3166, 0.0
      %v3951 = vmax.f32 %v3167, 0.0
      %v3952 = vmax.f32 %v3168, 0.0
      %v3953 = vmax.f32 %v3169, 0.0
      %v3954 = vmax.f32 %v3170, 0.0
      %v3955 = vmax.f32 %v3171, 0.0
      %v3956 = vmax.f32 %v3172, 0.0
      %v3957 = vmax.f32 %v3173, 0.0
      %v3958 = vmax.f32 %v3174, 0.0
      %v3959 = vmax.f32 %v3175, 0.0
      %v3960 = vmax.f32 %v3176, 0.0
      %v3961 = vmax.f32 %v3177, 0.0
      %v3962 = vmax.f32 %v3178, 0.0
      %v3963 = vmax.f32 %v3179, 0.0
      %v3964 = vmax.f32 %v3180, 0.0
      %v3965 = vmax.f32 %v3181, 0.0
      %v3966 = vmax.f32 %v3182, 0.0
      %v3967 = vmax.f32 %v3183, 0.0
      %v3968 = vmax.f32 %v3184, 0.0
      %v3969 = vmax.f32 %v3185, 0.0
      %v3970 = vmax.f32 %v3186, 0.0
      %v3971 = vmax.f32 %v3187, 0.0
      %v3972 = vmax.f32 %v3188, 0.0
      %v3973 = vmax.f32 %v3189, 0.0
      %v3974 = vmax.f32 %v3190, 0.0
      %v3975 = vmax.f32 %v3191, 0.0
      %v3976 = vmax.f32 %v3192, 0.0
      %v3977 = vmax.f32 %v3193, 0.0
      %v3978 = vmax.f32 %v3194, 0.0
      %v3979 = vmax.f32 %v3195, 0.0
      %v3980 = vmax.f32 %v3196, 0.0
      %v3981 = vmax.f32 %v3197, 0.0
      %v3982 = vmax.f32 %v3198, 0.0
      %v3983 = vmax.f32 %v3199, 0.0
      %v3984 = vmax.f32 %v3200, 0.0
      %v3985 = vmax.f32 %v3201, 0.0
      %v3986 = vmax.f32 %v3202, 0.0
      %v3987 = vmax.f32 %v3203, 0.0
      %v3988 = vmax.f32 %v3204, 0.0
      %v3989 = vmax.f32 %v3205, 0.0
      %v3990 = vmax.f32 %v3206, 0.0
      %v3991 = vmax.f32 %v3207, 0.0
      %v3992 = vmax.f32 %v3208, 0.0
      %v3993 = vmax.f32 %v3209, 0.0
      %v3994 = vmax.f32 %v3210, 0.0
      %v3995 = vmax.f32 %v3211, 0.0
      %v3996 = vmax.f32 %v3212, 0.0
      %v3997 = vmax.f32 %v3213, 0.0
      %v3998 = vmax.f32 %v3214, 0.0
      %v3999 = vmax.f32 %v3215, 0.0
      %v4000 = vmax.f32 %v3216, 0.0
      %v4001 = vmax.f32 %v3217, 0.0
      %v4002 = vmax.f32 %v3218, 0.0
      %v4003 = vmax.f32 %v3219, 0.0
      %v4004 = vmax.f32 %v3220, 0.0
      %v4005 = vmax.f32 %v3221, 0.0
      %v4006 = vmax.f32 %v3222, 0.0
      %v4007 = vmax.f32 %v3223, 0.0
      %v4008 = vmax.f32 %v3224, 0.0
      %v4009 = vmax.f32 %v3225, 0.0
      %v4010 = vmax.f32 %v3226, 0.0
      %v4011 = vmax.f32 %v3227, 0.0
      %v4012 = vmax.f32 %v3228, 0.0
      %v4013 = vmax.f32 %v3229, 0.0
      %v4014 = vmax.f32 %v3230, 0.0
      %v4015 = vmax.f32 %v3231, 0.0
      %v4016 = vmax.f32 %v3232, 0.0
      %v4017 = vmax.f32 %v3233, 0.0
      %v4018 = vmax.f32 %v3234, 0.0
      %v4019 = vmax.f32 %v3235, 0.0
      %v4020 = vmax.f32 %v3236, 0.0
      %v4021 = vmax.f32 %v3237, 0.0
      %v4022 = vmax.f32 %v3238, 0.0
      %v4023 = vmax.f32 %v3239, 0.0
      %v4024 = vmax.f32 %v3240, 0.0
      %v4025 = vmax.f32 %v3241, 0.0
      %v4026 = vmax.f32 %v3242, 0.0
      %v4027 = vmax.f32 %v3243, 0.0
      %v4028 = vmax.f32 %v3244, 0.0
      %v4029 = vmax.f32 %v3245, 0.0
      %v4030 = vmax.f32 %v3246, 0.0
      %v4031 = vmax.f32 %v3247, 0.0
      %v4032 = vmax.f32 %v3248, 0.0
      %v4033 = vmax.f32 %v3249, 0.0
      %v4034 = vmax.f32 %v3250, 0.0
      %v4035 = vmax.f32 %v3251, 0.0
      %v4036 = vmax.f32 %v3252, 0.0
      %v4037 = vmax.f32 %v3253, 0.0
      %v4038 = vmax.f32 %v3254, 0.0
      %v4039 = vmax.f32 %v3255, 0.0
      %v4040 = vmax.f32 %v3256, 0.0
      %v4041 = vmax.f32 %v3257, 0.0
      %v4042 = vmax.f32 %v3258, 0.0
      %v4043 = vmax.f32 %v3259, 0.0
      %v4044 = vmax.f32 %v3260, 0.0
      %v4045 = vmax.f32 %v3261, 0.0
      %v4046 = vmax.f32 %v3262, 0.0
      %v4047 = vmax.f32 %v3263, 0.0
      %v4048 = vmax.f32 %v3264, 0.0
      %v4049 = vmax.f32 %v3265, 0.0
      %v4050 = vmax.f32 %v3266, 0.0
      %v4051 = vmax.f32 %v3267, 0.0
      %v4052 = vmax.f32 %v3268, 0.0
      %v4053 = vmax.f32 %v3269, 0.0
      %v4054 = vmax.f32 %v3270, 0.0
      %v4055 = vmax.f32 %v3271, 0.0
      %v4056 = vmax.f32 %v3272, 0.0
      %v4057 = vmax.f32 %v3273, 0.0
      %v4058 = vmax.f32 %v3274, 0.0
      %v4059 = vmax.f32 %v3275, 0.0
      %v4060 = vmax.f32 %v3276, 0.0
      %v4061 = vmax.f32 %v3277, 0.0
      %v4062 = vmax.f32 %v3278, 0.0
      %v4063 = vmax.f32 %v3279, 0.0
      %v4064 = vmax.f32 %v3280, 0.0
      %v4065 = vmax.f32 %v3281, 0.0
      %v4066 = vmax.f32 %v3282, 0.0
      %v4067 = vmax.f32 %v3283, 0.0
      %v4068 = vmax.f32 %v3284, 0.0
      %v4069 = vmax.f32 %v3285, 0.0
      %v4070 = vmax.f32 %v3286, 0.0
      %v4071 = vmax.f32 %v3287, 0.0
      %v4072 = vmax.f32 %v3288, 0.0
      %v4073 = vmax.f32 %v3289, 0.0
      %v4074 = vmax.f32 %v3290, 0.0
      %v4075 = vmax.f32 %v3291, 0.0
      %v4076 = vmax.f32 %v3292, 0.0
      %v4077 = vmax.f32 %v3293, 0.0
      %v4078 = vmax.f32 %v3294, 0.0
      %v4079 = vmax.f32 %v3295, 0.0
      %v4080 = vmax.f32 %v3296, 0.0
      %v4081 = vmax.f32 %v3297, 0.0
      %v4082 = vmax.f32 %v3298, 0.0
      %v4083 = vmax.f32 %v3299, 0.0
      %v4084 = vmax.f32 %v3300, 0.0
      %v4085 = vmax.f32 %v3301, 0.0
      %v4086 = vmax.f32 %v3302, 0.0
      %v4087 = vmax.f32 %v3303, 0.0
      %v4088 = vmax.f32 %v3304, 0.0
      %v4089 = vmax.f32 %v3305, 0.0
      %v4090 = vmax.f32 %v3306, 0.0
      %v4091 = vmax.f32 %v3307, 0.0
      %v4092 = vmax.f32 %v3308, 0.0
      %v4093 = vmax.f32 %v3309, 0.0
      %v4094 = vmax.f32 %v3310, 0.0
      %v4095 = vmax.f32 %v3311, 0.0
      %v4096 = vmax.f32 %v3312, 0.0
      %v4097 = vmax.f32 %v3313, 0.0
      %v4098 = vmax.f32 %v3314, 0.0
      %v4099 = vmax.f32 %v3315, 0.0
      %v4100 = vmax.f32 %v3316, 0.0
      %v4101 = vmax.f32 %v3317, 0.0
      %v4102 = vmax.f32 %v3318, 0.0
      %v4103 = vmax.f32 %v3319, 0.0
      %v4104 = vmax.f32 %v3320, 0.0
      %v4105 = vmax.f32 %v3321, 0.0
      %v4106 = vmax.f32 %v3322, 0.0
      %v4107 = vmax.f32 %v3323, 0.0
      %v4108 = vpack.c.bf16 %v3325, %v3324
      %v4109 = vpack.c.bf16 %v3327, %v3326
      %v4110 = vpack.c.bf16 %v3329, %v3328
      %v4111 = vpack.c.bf16 %v3331, %v3330
      %v4112 = vpack.c.bf16 %v3333, %v3332
      %v4113 = vpack.c.bf16 %v3335, %v3334
      %v4114 = vpack.c.bf16 %v3337, %v3336
      %v4115 = vpack.c.bf16 %v3339, %v3338
      %v4116 = vpack.c.bf16 %v3341, %v3340
      %v4117 = vpack.c.bf16 %v3343, %v3342
      %v4118 = vpack.c.bf16 %v3345, %v3344
      %v4119 = vpack.c.bf16 %v3347, %v3346
      %v4120 = vpack.c.bf16 %v3349, %v3348
      %v4121 = vpack.c.bf16 %v3351, %v3350
      %v4122 = vpack.c.bf16 %v3353, %v3352
      %v4123 = vpack.c.bf16 %v3355, %v3354
      %v4124 = vpack.c.bf16 %v3357, %v3356
      %v4125 = vpack.c.bf16 %v3359, %v3358
      %v4126 = vpack.c.bf16 %v3361, %v3360
      %v4127 = vpack.c.bf16 %v3363, %v3362
      %v4128 = vpack.c.bf16 %v3365, %v3364
      %v4129 = vpack.c.bf16 %v3367, %v3366
      %v4130 = vpack.c.bf16 %v3369, %v3368
      %v4131 = vpack.c.bf16 %v3371, %v3370
      %v4132 = vpack.c.bf16 %v3373, %v3372
      %v4133 = vpack.c.bf16 %v3375, %v3374
      %v4134 = vpack.c.bf16 %v3377, %v3376
      %v4135 = vpack.c.bf16 %v3379, %v3378
      %v4136 = vpack.c.bf16 %v3381, %v3380
      %v4137 = vpack.c.bf16 %v3383, %v3382
      %v4138 = vpack.c.bf16 %v3385, %v3384
      %v4139 = vpack.c.bf16 %v3387, %v3386
      %v4140 = vpack.c.bf16 %v3389, %v3388
      %v4141 = vpack.c.bf16 %v3391, %v3390
      %v4142 = vpack.c.bf16 %v3393, %v3392
      %v4143 = vpack.c.bf16 %v3395, %v3394
      %v4144 = vpack.c.bf16 %v3397, %v3396
      %v4145 = vpack.c.bf16 %v3399, %v3398
      %v4146 = vpack.c.bf16 %v3401, %v3400
      %v4147 = vpack.c.bf16 %v3403, %v3402
      %v4148 = vpack.c.bf16 %v3405, %v3404
      %v4149 = vpack.c.bf16 %v3407, %v3406
      %v4150 = vpack.c.bf16 %v3409, %v3408
      %v4151 = vpack.c.bf16 %v3411, %v3410
      %v4152 = vpack.c.bf16 %v3413, %v3412
      %v4153 = vpack.c.bf16 %v3415, %v3414
      %v4154 = vpack.c.bf16 %v3417, %v3416
      %v4155 = vpack.c.bf16 %v3419, %v3418
      %v4156 = vpack.c.bf16 %v3421, %v3420
      %v4157 = vpack.c.bf16 %v3423, %v3422
      %v4158 = vpack.c.bf16 %v3425, %v3424
      %v4159 = vpack.c.bf16 %v3427, %v3426
      %v4160 = vpack.c.bf16 %v3429, %v3428
      %v4161 = vpack.c.bf16 %v3431, %v3430
      %v4162 = vpack.c.bf16 %v3433, %v3432
      %v4163 = vpack.c.bf16 %v3435, %v3434
      %v4164 = vpack.c.bf16 %v3437, %v3436
      %v4165 = vpack.c.bf16 %v3439, %v3438
      %v4166 = vpack.c.bf16 %v3441, %v3440
      %v4167 = vpack.c.bf16 %v3443, %v3442
      %v4168 = vpack.c.bf16 %v3445, %v3444
      %v4169 = vpack.c.bf16 %v3447, %v3446
      %v4170 = vpack.c.bf16 %v3449, %v3448
      %v4171 = vpack.c.bf16 %v3451, %v3450
      %v4172 = vpack.c.bf16 %v3453, %v3452
      %v4173 = vpack.c.bf16 %v3455, %v3454
      %v4174 = vpack.c.bf16 %v3457, %v3456
      %v4175 = vpack.c.bf16 %v3459, %v3458
      %v4176 = vpack.c.bf16 %v3461, %v3460
      %v4177 = vpack.c.bf16 %v3463, %v3462
      %v4178 = vpack.c.bf16 %v3465, %v3464
      %v4179 = vpack.c.bf16 %v3467, %v3466
      %v4180 = vpack.c.bf16 %v3469, %v3468
      %v4181 = vpack.c.bf16 %v3471, %v3470
      %v4182 = vpack.c.bf16 %v3473, %v3472
      %v4183 = vpack.c.bf16 %v3475, %v3474
      %v4184 = vpack.c.bf16 %v3477, %v3476
      %v4185 = vpack.c.bf16 %v3479, %v3478
      %v4186 = vpack.c.bf16 %v3481, %v3480
      %v4187 = vpack.c.bf16 %v3483, %v3482
      %v4188 = vpack.c.bf16 %v3485, %v3484
      %v4189 = vpack.c.bf16 %v3487, %v3486
      %v4190 = vpack.c.bf16 %v3489, %v3488
      %v4191 = vpack.c.bf16 %v3491, %v3490
      %v4192 = vpack.c.bf16 %v3493, %v3492
      %v4193 = vpack.c.bf16 %v3495, %v3494
      %v4194 = vpack.c.bf16 %v3497, %v3496
      %v4195 = vpack.c.bf16 %v3499, %v3498
      %v4196 = vpack.c.bf16 %v3501, %v3500
      %v4197 = vpack.c.bf16 %v3503, %v3502
      %v4198 = vpack.c.bf16 %v3505, %v3504
      %v4199 = vpack.c.bf16 %v3507, %v3506
      %v4200 = vpack.c.bf16 %v3509, %v3508
      %v4201 = vpack.c.bf16 %v3511, %v3510
      %v4202 = vpack.c.bf16 %v3513, %v3512
      %v4203 = vpack.c.bf16 %v3515, %v3514
      %v4204 = vpack.c.bf16 %v3517, %v3516
      %v4205 = vpack.c.bf16 %v3519, %v3518
      %v4206 = vpack.c.bf16 %v3521, %v3520
      %v4207 = vpack.c.bf16 %v3523, %v3522
      %v4208 = vpack.c.bf16 %v3525, %v3524
      %v4209 = vpack.c.bf16 %v3527, %v3526
      %v4210 = vpack.c.bf16 %v3529, %v3528
      %v4211 = vpack.c.bf16 %v3531, %v3530
      %v4212 = vpack.c.bf16 %v3533, %v3532
      %v4213 = vpack.c.bf16 %v3535, %v3534
      %v4214 = vpack.c.bf16 %v3537, %v3536
      %v4215 = vpack.c.bf16 %v3539, %v3538
      %v4216 = vpack.c.bf16 %v3541, %v3540
      %v4217 = vpack.c.bf16 %v3543, %v3542
      %v4218 = vpack.c.bf16 %v3545, %v3544
      %v4219 = vpack.c.bf16 %v3547, %v3546
      %v4220 = vpack.c.bf16 %v3549, %v3548
      %v4221 = vpack.c.bf16 %v3551, %v3550
      %v4222 = vpack.c.bf16 %v3553, %v3552
      %v4223 = vpack.c.bf16 %v3555, %v3554
      %v4224 = vpack.c.bf16 %v3557, %v3556
      %v4225 = vpack.c.bf16 %v3559, %v3558
      %v4226 = vpack.c.bf16 %v3561, %v3560
      %v4227 = vpack.c.bf16 %v3563, %v3562
      %v4228 = vpack.c.bf16 %v3565, %v3564
      %v4229 = vpack.c.bf16 %v3567, %v3566
      %v4230 = vpack.c.bf16 %v3569, %v3568
      %v4231 = vpack.c.bf16 %v3571, %v3570
      %v4232 = vpack.c.bf16 %v3573, %v3572
      %v4233 = vpack.c.bf16 %v3575, %v3574
      %v4234 = vpack.c.bf16 %v3577, %v3576
      %v4235 = vpack.c.bf16 %v3579, %v3578
      %v4236 = vpack.c.bf16 %v3581, %v3580
      %v4237 = vpack.c.bf16 %v3583, %v3582
      %v4238 = vpack.c.bf16 %v3585, %v3584
      %v4239 = vpack.c.bf16 %v3587, %v3586
      %v4240 = vpack.c.bf16 %v3589, %v3588
      %v4241 = vpack.c.bf16 %v3591, %v3590
      %v4242 = vpack.c.bf16 %v3593, %v3592
      %v4243 = vpack.c.bf16 %v3595, %v3594
      %v4244 = vpack.c.bf16 %v3597, %v3596
      %v4245 = vpack.c.bf16 %v3599, %v3598
      %v4246 = vpack.c.bf16 %v3601, %v3600
      %v4247 = vpack.c.bf16 %v3603, %v3602
      %v4248 = vpack.c.bf16 %v3605, %v3604
      %v4249 = vpack.c.bf16 %v3607, %v3606
      %v4250 = vpack.c.bf16 %v3609, %v3608
      %v4251 = vpack.c.bf16 %v3611, %v3610
      %v4252 = vpack.c.bf16 %v3613, %v3612
      %v4253 = vpack.c.bf16 %v3615, %v3614
      %v4254 = vpack.c.bf16 %v3617, %v3616
      %v4255 = vpack.c.bf16 %v3619, %v3618
      %v4256 = vpack.c.bf16 %v3621, %v3620
      %v4257 = vpack.c.bf16 %v3623, %v3622
      %v4258 = vpack.c.bf16 %v3625, %v3624
      %v4259 = vpack.c.bf16 %v3627, %v3626
      %v4260 = vpack.c.bf16 %v3629, %v3628
      %v4261 = vpack.c.bf16 %v3631, %v3630
      %v4262 = vpack.c.bf16 %v3633, %v3632
      %v4263 = vpack.c.bf16 %v3635, %v3634
      %v4264 = vpack.c.bf16 %v3637, %v3636
      %v4265 = vpack.c.bf16 %v3639, %v3638
      %v4266 = vpack.c.bf16 %v3641, %v3640
      %v4267 = vpack.c.bf16 %v3643, %v3642
      %v4268 = vpack.c.bf16 %v3645, %v3644
      %v4269 = vpack.c.bf16 %v3647, %v3646
      %v4270 = vpack.c.bf16 %v3649, %v3648
      %v4271 = vpack.c.bf16 %v3651, %v3650
      %v4272 = vpack.c.bf16 %v3653, %v3652
      %v4273 = vpack.c.bf16 %v3655, %v3654
      %v4274 = vpack.c.bf16 %v3657, %v3656
      %v4275 = vpack.c.bf16 %v3659, %v3658
      %v4276 = vpack.c.bf16 %v3661, %v3660
      %v4277 = vpack.c.bf16 %v3663, %v3662
      %v4278 = vpack.c.bf16 %v3665, %v3664
      %v4279 = vpack.c.bf16 %v3667, %v3666
      %v4280 = vpack.c.bf16 %v3669, %v3668
      %v4281 = vpack.c.bf16 %v3671, %v3670
      %v4282 = vpack.c.bf16 %v3673, %v3672
      %v4283 = vpack.c.bf16 %v3675, %v3674
      %v4284 = vpack.c.bf16 %v3677, %v3676
      %v4285 = vpack.c.bf16 %v3679, %v3678
      %v4286 = vpack.c.bf16 %v3681, %v3680
      %v4287 = vpack.c.bf16 %v3683, %v3682
      %v4288 = vpack.c.bf16 %v3685, %v3684
      %v4289 = vpack.c.bf16 %v3687, %v3686
      %v4290 = vpack.c.bf16 %v3689, %v3688
      %v4291 = vpack.c.bf16 %v3691, %v3690
      %v4292 = vpack.c.bf16 %v3693, %v3692
      %v4293 = vpack.c.bf16 %v3695, %v3694
      %v4294 = vpack.c.bf16 %v3697, %v3696
      %v4295 = vpack.c.bf16 %v3699, %v3698
      %v4296 = vpack.c.bf16 %v3701, %v3700
      %v4297 = vpack.c.bf16 %v3703, %v3702
      %v4298 = vpack.c.bf16 %v3705, %v3704
      %v4299 = vpack.c.bf16 %v3707, %v3706
      %v4300 = vpack.c.bf16 %v3709, %v3708
      %v4301 = vpack.c.bf16 %v3711, %v3710
      %v4302 = vpack.c.bf16 %v3713, %v3712
      %v4303 = vpack.c.bf16 %v3715, %v3714
      %v4304 = vpack.c.bf16 %v3717, %v3716
      %v4305 = vpack.c.bf16 %v3719, %v3718
      %v4306 = vpack.c.bf16 %v3721, %v3720
      %v4307 = vpack.c.bf16 %v3723, %v3722
      %v4308 = vpack.c.bf16 %v3725, %v3724
      %v4309 = vpack.c.bf16 %v3727, %v3726
      %v4310 = vpack.c.bf16 %v3729, %v3728
      %v4311 = vpack.c.bf16 %v3731, %v3730
      %v4312 = vpack.c.bf16 %v3733, %v3732
      %v4313 = vpack.c.bf16 %v3735, %v3734
      %v4314 = vpack.c.bf16 %v3737, %v3736
      %v4315 = vpack.c.bf16 %v3739, %v3738
      %v4316 = vpack.c.bf16 %v3741, %v3740
      %v4317 = vpack.c.bf16 %v3743, %v3742
      %v4318 = vpack.c.bf16 %v3745, %v3744
      %v4319 = vpack.c.bf16 %v3747, %v3746
      %v4320 = vpack.c.bf16 %v3749, %v3748
      %v4321 = vpack.c.bf16 %v3751, %v3750
      %v4322 = vpack.c.bf16 %v3753, %v3752
      %v4323 = vpack.c.bf16 %v3755, %v3754
      %v4324 = vpack.c.bf16 %v3757, %v3756
      %v4325 = vpack.c.bf16 %v3759, %v3758
      %v4326 = vpack.c.bf16 %v3761, %v3760
      %v4327 = vpack.c.bf16 %v3763, %v3762
      %v4328 = vpack.c.bf16 %v3765, %v3764
      %v4329 = vpack.c.bf16 %v3767, %v3766
      %v4330 = vpack.c.bf16 %v3769, %v3768
      %v4331 = vpack.c.bf16 %v3771, %v3770
      %v4332 = vpack.c.bf16 %v3773, %v3772
      %v4333 = vpack.c.bf16 %v3775, %v3774
      %v4334 = vpack.c.bf16 %v3777, %v3776
      %v4335 = vpack.c.bf16 %v3779, %v3778
      %v4336 = vpack.c.bf16 %v3781, %v3780
      %v4337 = vpack.c.bf16 %v3783, %v3782
      %v4338 = vpack.c.bf16 %v3785, %v3784
      %v4339 = vpack.c.bf16 %v3787, %v3786
      %v4340 = vpack.c.bf16 %v3789, %v3788
      %v4341 = vpack.c.bf16 %v3791, %v3790
      %v4342 = vpack.c.bf16 %v3793, %v3792
      %v4343 = vpack.c.bf16 %v3795, %v3794
      %v4344 = vpack.c.bf16 %v3797, %v3796
      %v4345 = vpack.c.bf16 %v3799, %v3798
      %v4346 = vpack.c.bf16 %v3801, %v3800
      %v4347 = vpack.c.bf16 %v3803, %v3802
      %v4348 = vpack.c.bf16 %v3805, %v3804
      %v4349 = vpack.c.bf16 %v3807, %v3806
      %v4350 = vpack.c.bf16 %v3809, %v3808
      %v4351 = vpack.c.bf16 %v3811, %v3810
      %v4352 = vpack.c.bf16 %v3813, %v3812
      %v4353 = vpack.c.bf16 %v3815, %v3814
      %v4354 = vpack.c.bf16 %v3817, %v3816
      %v4355 = vpack.c.bf16 %v3819, %v3818
      %v4356 = vpack.c.bf16 %v3821, %v3820
      %v4357 = vpack.c.bf16 %v3823, %v3822
      %v4358 = vpack.c.bf16 %v3825, %v3824
      %v4359 = vpack.c.bf16 %v3827, %v3826
      %v4360 = vpack.c.bf16 %v3829, %v3828
      %v4361 = vpack.c.bf16 %v3831, %v3830
      %v4362 = vpack.c.bf16 %v3833, %v3832
      %v4363 = vpack.c.bf16 %v3835, %v3834
      %v4364 = vpack.c.bf16 %v3837, %v3836
      %v4365 = vpack.c.bf16 %v3839, %v3838
      %v4366 = vpack.c.bf16 %v3841, %v3840
      %v4367 = vpack.c.bf16 %v3843, %v3842
      %v4368 = vpack.c.bf16 %v3845, %v3844
      %v4369 = vpack.c.bf16 %v3847, %v3846
      %v4370 = vpack.c.bf16 %v3849, %v3848
      %v4371 = vpack.c.bf16 %v3851, %v3850
      %v4372 = vpack.c.bf16 %v3853, %v3852
      %v4373 = vpack.c.bf16 %v3855, %v3854
      %v4374 = vpack.c.bf16 %v3857, %v3856
      %v4375 = vpack.c.bf16 %v3859, %v3858
      %v4376 = vpack.c.bf16 %v3861, %v3860
      %v4377 = vpack.c.bf16 %v3863, %v3862
      %v4378 = vpack.c.bf16 %v3865, %v3864
      %v4379 = vpack.c.bf16 %v3867, %v3866
      %v4380 = vpack.c.bf16 %v3869, %v3868
      %v4381 = vpack.c.bf16 %v3871, %v3870
      %v4382 = vpack.c.bf16 %v3873, %v3872
      %v4383 = vpack.c.bf16 %v3875, %v3874
      %v4384 = vpack.c.bf16 %v3877, %v3876
      %v4385 = vpack.c.bf16 %v3879, %v3878
      %v4386 = vpack.c.bf16 %v3881, %v3880
      %v4387 = vpack.c.bf16 %v3883, %v3882
      %v4388 = vpack.c.bf16 %v3885, %v3884
      %v4389 = vpack.c.bf16 %v3887, %v3886
      %v4390 = vpack.c.bf16 %v3889, %v3888
      %v4391 = vpack.c.bf16 %v3891, %v3890
      %v4392 = vpack.c.bf16 %v3893, %v3892
      %v4393 = vpack.c.bf16 %v3895, %v3894
      %v4394 = vpack.c.bf16 %v3897, %v3896
      %v4395 = vpack.c.bf16 %v3899, %v3898
      %v4396 = vpack.c.bf16 %v3901, %v3900
      %v4397 = vpack.c.bf16 %v3903, %v3902
      %v4398 = vpack.c.bf16 %v3905, %v3904
      %v4399 = vpack.c.bf16 %v3907, %v3906
      %v4400 = vpack.c.bf16 %v3909, %v3908
      %v4401 = vpack.c.bf16 %v3911, %v3910
      %v4402 = vpack.c.bf16 %v3913, %v3912
      %v4403 = vpack.c.bf16 %v3915, %v3914
      %v4404 = vpack.c.bf16 %v3917, %v3916
      %v4405 = vpack.c.bf16 %v3919, %v3918
      %v4406 = vpack.c.bf16 %v3921, %v3920
      %v4407 = vpack.c.bf16 %v3923, %v3922
      %v4408 = vpack.c.bf16 %v3925, %v3924
      %v4409 = vpack.c.bf16 %v3927, %v3926
      %v4410 = vpack.c.bf16 %v3929, %v3928
      %v4411 = vpack.c.bf16 %v3931, %v3930
      %v4412 = vpack.c.bf16 %v3933, %v3932
      %v4413 = vpack.c.bf16 %v3935, %v3934
      %v4414 = vpack.c.bf16 %v3937, %v3936
      %v4415 = vpack.c.bf16 %v3939, %v3938
      %v4416 = vpack.c.bf16 %v3941, %v3940
      %v4417 = vpack.c.bf16 %v3943, %v3942
      %v4418 = vpack.c.bf16 %v3945, %v3944
      %v4419 = vpack.c.bf16 %v3947, %v3946
      %v4420 = vpack.c.bf16 %v3949, %v3948
      %v4421 = vpack.c.bf16 %v3951, %v3950
      %v4422 = vpack.c.bf16 %v3953, %v3952
      %v4423 = vpack.c.bf16 %v3955, %v3954
      %v4424 = vpack.c.bf16 %v3957, %v3956
      %v4425 = vpack.c.bf16 %v3959, %v3958
      %v4426 = vpack.c.bf16 %v3961, %v3960
      %v4427 = vpack.c.bf16 %v3963, %v3962
      %v4428 = vpack.c.bf16 %v3965, %v3964
      %v4429 = vpack.c.bf16 %v3967, %v3966
      %v4430 = vpack.c.bf16 %v3969, %v3968
      %v4431 = vpack.c.bf16 %v3971, %v3970
      %v4432 = vpack.c.bf16 %v3973, %v3972
      %v4433 = vpack.c.bf16 %v3975, %v3974
      %v4434 = vpack.c.bf16 %v3977, %v3976
      %v4435 = vpack.c.bf16 %v3979, %v3978
      %v4436 = vpack.c.bf16 %v3981, %v3980
      %v4437 = vpack.c.bf16 %v3983, %v3982
      %v4438 = vpack.c.bf16 %v3985, %v3984
      %v4439 = vpack.c.bf16 %v3987, %v3986
      %v4440 = vpack.c.bf16 %v3989, %v3988
      %v4441 = vpack.c.bf16 %v3991, %v3990
      %v4442 = vpack.c.bf16 %v3993, %v3992
      %v4443 = vpack.c.bf16 %v3995, %v3994
      %v4444 = vpack.c.bf16 %v3997, %v3996
      %v4445 = vpack.c.bf16 %v3999, %v3998
      %v4446 = vpack.c.bf16 %v4001, %v4000
      %v4447 = vpack.c.bf16 %v4003, %v4002
      %v4448 = vpack.c.bf16 %v4005, %v4004
      %v4449 = vpack.c.bf16 %v4007, %v4006
      %v4450 = vpack.c.bf16 %v4009, %v4008
      %v4451 = vpack.c.bf16 %v4011, %v4010
      %v4452 = vpack.c.bf16 %v4013, %v4012
      %v4453 = vpack.c.bf16 %v4015, %v4014
      %v4454 = vpack.c.bf16 %v4017, %v4016
      %v4455 = vpack.c.bf16 %v4019, %v4018
      %v4456 = vpack.c.bf16 %v4021, %v4020
      %v4457 = vpack.c.bf16 %v4023, %v4022
      %v4458 = vpack.c.bf16 %v4025, %v4024
      %v4459 = vpack.c.bf16 %v4027, %v4026
      %v4460 = vpack.c.bf16 %v4029, %v4028
      %v4461 = vpack.c.bf16 %v4031, %v4030
      %v4462 = vpack.c.bf16 %v4033, %v4032
      %v4463 = vpack.c.bf16 %v4035, %v4034
      %v4464 = vpack.c.bf16 %v4037, %v4036
      %v4465 = vpack.c.bf16 %v4039, %v4038
      %v4466 = vpack.c.bf16 %v4041, %v4040
      %v4467 = vpack.c.bf16 %v4043, %v4042
      %v4468 = vpack.c.bf16 %v4045, %v4044
      %v4469 = vpack.c.bf16 %v4047, %v4046
      %v4470 = vpack.c.bf16 %v4049, %v4048
      %v4471 = vpack.c.bf16 %v4051, %v4050
      %v4472 = vpack.c.bf16 %v4053, %v4052
      %v4473 = vpack.c.bf16 %v4055, %v4054
      %v4474 = vpack.c.bf16 %v4057, %v4056
      %v4475 = vpack.c.bf16 %v4059, %v4058
      %v4476 = vpack.c.bf16 %v4061, %v4060
      %v4477 = vpack.c.bf16 %v4063, %v4062
      %v4478 = vpack.c.bf16 %v4065, %v4064
      %v4479 = vpack.c.bf16 %v4067, %v4066
      %v4480 = vpack.c.bf16 %v4069, %v4068
      %v4481 = vpack.c.bf16 %v4071, %v4070
      %v4482 = vpack.c.bf16 %v4073, %v4072
      %v4483 = vpack.c.bf16 %v4075, %v4074
      %v4484 = vpack.c.bf16 %v4077, %v4076
      %v4485 = vpack.c.bf16 %v4079, %v4078
      %v4486 = vpack.c.bf16 %v4081, %v4080
      %v4487 = vpack.c.bf16 %v4083, %v4082
      %v4488 = vpack.c.bf16 %v4085, %v4084
      %v4489 = vpack.c.bf16 %v4087, %v4086
      %v4490 = vpack.c.bf16 %v4089, %v4088
      %v4491 = vpack.c.bf16 %v4091, %v4090
      %v4492 = vpack.c.bf16 %v4093, %v4092
      %v4493 = vpack.c.bf16 %v4095, %v4094
      %v4494 = vpack.c.bf16 %v4097, %v4096
      %v4495 = vpack.c.bf16 %v4099, %v4098
      %v4496 = vpack.c.bf16 %v4101, %v4100
      %v4497 = vpack.c.bf16 %v4103, %v4102
      %v4498 = vpack.c.bf16 %v4105, %v4104
      %v4499 = vpack.c.bf16 %v4107, %v4106
      %v4892 = vunpack.c.l.b16 %v4108
      %v4893 = vunpack.c.h.b16 %v4108
      %v4894 = vunpack.c.l.b16 %v4109
      %v4895 = vunpack.c.h.b16 %v4109
      %v4896 = vunpack.c.l.b16 %v4110
      %v4897 = vunpack.c.h.b16 %v4110
      %v4898 = vunpack.c.l.b16 %v4111
      %v4899 = vunpack.c.h.b16 %v4111
      %v4900 = vunpack.c.l.b16 %v4112
      %v4901 = vunpack.c.h.b16 %v4112
      %v4902 = vunpack.c.l.b16 %v4113
      %v4903 = vunpack.c.h.b16 %v4113
      %v4904 = vunpack.c.l.b16 %v4114
      %v4905 = vunpack.c.h.b16 %v4114
      %v4906 = vunpack.c.l.b16 %v4115
      %v4907 = vunpack.c.h.b16 %v4115
      %v4908 = vunpack.c.l.b16 %v4116
      %v4909 = vunpack.c.h.b16 %v4116
      %v4910 = vunpack.c.l.b16 %v4117
      %v4911 = vunpack.c.h.b16 %v4117
      %v4912 = vunpack.c.l.b16 %v4118
      %v4913 = vunpack.c.h.b16 %v4118
      %v4914 = vunpack.c.l.b16 %v4119
      %v4915 = vunpack.c.h.b16 %v4119
      %v4916 = vunpack.c.l.b16 %v4120
      %v4917 = vunpack.c.h.b16 %v4120
      %v4918 = vunpack.c.l.b16 %v4121
      %v4919 = vunpack.c.h.b16 %v4121
      %v4920 = vunpack.c.l.b16 %v4122
      %v4921 = vunpack.c.h.b16 %v4122
      %v4922 = vunpack.c.l.b16 %v4123
      %v4923 = vunpack.c.h.b16 %v4123
      %v4924 = vunpack.c.l.b16 %v4124
      %v4925 = vunpack.c.h.b16 %v4124
      %v4926 = vunpack.c.l.b16 %v4125
      %v4927 = vunpack.c.h.b16 %v4125
      %v4928 = vunpack.c.l.b16 %v4126
      %v4929 = vunpack.c.h.b16 %v4126
      %v4930 = vunpack.c.l.b16 %v4127
      %v4931 = vunpack.c.h.b16 %v4127
      %v4932 = vunpack.c.l.b16 %v4128
      %v4933 = vunpack.c.h.b16 %v4128
      %v4934 = vunpack.c.l.b16 %v4129
      %v4935 = vunpack.c.h.b16 %v4129
      %v4936 = vunpack.c.l.b16 %v4130
      %v4937 = vunpack.c.h.b16 %v4130
      %v4938 = vunpack.c.l.b16 %v4131
      %v4939 = vunpack.c.h.b16 %v4131
      %v4940 = vunpack.c.l.b16 %v4132
      %v4941 = vunpack.c.h.b16 %v4132
      %v4942 = vunpack.c.l.b16 %v4133
      %v4943 = vunpack.c.h.b16 %v4133
      %v4944 = vunpack.c.l.b16 %v4134
      %v4945 = vunpack.c.h.b16 %v4134
      %v4946 = vunpack.c.l.b16 %v4135
      %v4947 = vunpack.c.h.b16 %v4135
      %v4948 = vunpack.c.l.b16 %v4136
      %v4949 = vunpack.c.h.b16 %v4136
      %v4950 = vunpack.c.l.b16 %v4137
      %v4951 = vunpack.c.h.b16 %v4137
      %v4952 = vunpack.c.l.b16 %v4138
      %v4953 = vunpack.c.h.b16 %v4138
      %v4954 = vunpack.c.l.b16 %v4139
      %v4955 = vunpack.c.h.b16 %v4139
      %v4956 = vunpack.c.l.b16 %v4140
      %v4957 = vunpack.c.h.b16 %v4140
      %v4958 = vunpack.c.l.b16 %v4141
      %v4959 = vunpack.c.h.b16 %v4141
      %v4960 = vunpack.c.l.b16 %v4142
      %v4961 = vunpack.c.h.b16 %v4142
      %v4962 = vunpack.c.l.b16 %v4143
      %v4963 = vunpack.c.h.b16 %v4143
      %v4964 = vunpack.c.l.b16 %v4144
      %v4965 = vunpack.c.h.b16 %v4144
      %v4966 = vunpack.c.l.b16 %v4145
      %v4967 = vunpack.c.h.b16 %v4145
      %v4968 = vunpack.c.l.b16 %v4146
      %v4969 = vunpack.c.h.b16 %v4146
      %v4970 = vunpack.c.l.b16 %v4147
      %v4971 = vunpack.c.h.b16 %v4147
      %v4972 = vunpack.c.l.b16 %v4148
      %v4973 = vunpack.c.h.b16 %v4148
      %v4974 = vunpack.c.l.b16 %v4149
      %v4975 = vunpack.c.h.b16 %v4149
      %v4976 = vunpack.c.l.b16 %v4150
      %v4977 = vunpack.c.h.b16 %v4150
      %v4978 = vunpack.c.l.b16 %v4151
      %v4979 = vunpack.c.h.b16 %v4151
      %v4980 = vunpack.c.l.b16 %v4152
      %v4981 = vunpack.c.h.b16 %v4152
      %v4982 = vunpack.c.l.b16 %v4153
      %v4983 = vunpack.c.h.b16 %v4153
      %v4984 = vunpack.c.l.b16 %v4154
      %v4985 = vunpack.c.h.b16 %v4154
      %v4986 = vunpack.c.l.b16 %v4155
      %v4987 = vunpack.c.h.b16 %v4155
      %v4988 = vunpack.c.l.b16 %v4156
      %v4989 = vunpack.c.h.b16 %v4156
      %v4990 = vunpack.c.l.b16 %v4157
      %v4991 = vunpack.c.h.b16 %v4157
      %v4992 = vunpack.c.l.b16 %v4158
      %v4993 = vunpack.c.h.b16 %v4158
      %v4994 = vunpack.c.l.b16 %v4159
      %v4995 = vunpack.c.h.b16 %v4159
      %v4996 = vunpack.c.l.b16 %v4160
      %v4997 = vunpack.c.h.b16 %v4160
      %v4998 = vunpack.c.l.b16 %v4161
      %v4999 = vunpack.c.h.b16 %v4161
      %v5000 = vunpack.c.l.b16 %v4162
      %v5001 = vunpack.c.h.b16 %v4162
      %v5002 = vunpack.c.l.b16 %v4163
      %v5003 = vunpack.c.h.b16 %v4163
      %v5004 = vunpack.c.l.b16 %v4164
      %v5005 = vunpack.c.h.b16 %v4164
      %v5006 = vunpack.c.l.b16 %v4165
      %v5007 = vunpack.c.h.b16 %v4165
      %v5008 = vunpack.c.l.b16 %v4166
      %v5009 = vunpack.c.h.b16 %v4166
      %v5010 = vunpack.c.l.b16 %v4167
      %v5011 = vunpack.c.h.b16 %v4167
      %v5012 = vunpack.c.l.b16 %v4168
      %v5013 = vunpack.c.h.b16 %v4168
      %v5014 = vunpack.c.l.b16 %v4169
      %v5015 = vunpack.c.h.b16 %v4169
      %v5016 = vunpack.c.l.b16 %v4170
      %v5017 = vunpack.c.h.b16 %v4170
      %v5018 = vunpack.c.l.b16 %v4171
      %v5019 = vunpack.c.h.b16 %v4171
      %v5020 = vunpack.c.l.b16 %v4172
      %v5021 = vunpack.c.h.b16 %v4172
      %v5022 = vunpack.c.l.b16 %v4173
      %v5023 = vunpack.c.h.b16 %v4173
      %v5024 = vunpack.c.l.b16 %v4174
      %v5025 = vunpack.c.h.b16 %v4174
      %v5026 = vunpack.c.l.b16 %v4175
      %v5027 = vunpack.c.h.b16 %v4175
      %v5028 = vunpack.c.l.b16 %v4176
      %v5029 = vunpack.c.h.b16 %v4176
      %v5030 = vunpack.c.l.b16 %v4177
      %v5031 = vunpack.c.h.b16 %v4177
      %v5032 = vunpack.c.l.b16 %v4178
      %v5033 = vunpack.c.h.b16 %v4178
      %v5034 = vunpack.c.l.b16 %v4179
      %v5035 = vunpack.c.h.b16 %v4179
      %v5036 = vunpack.c.l.b16 %v4180
      %v5037 = vunpack.c.h.b16 %v4180
      %v5038 = vunpack.c.l.b16 %v4181
      %v5039 = vunpack.c.h.b16 %v4181
      %v5040 = vunpack.c.l.b16 %v4182
      %v5041 = vunpack.c.h.b16 %v4182
      %v5042 = vunpack.c.l.b16 %v4183
      %v5043 = vunpack.c.h.b16 %v4183
      %v5044 = vunpack.c.l.b16 %v4184
      %v5045 = vunpack.c.h.b16 %v4184
      %v5046 = vunpack.c.l.b16 %v4185
      %v5047 = vunpack.c.h.b16 %v4185
      %v5048 = vunpack.c.l.b16 %v4186
      %v5049 = vunpack.c.h.b16 %v4186
      %v5050 = vunpack.c.l.b16 %v4187
      %v5051 = vunpack.c.h.b16 %v4187
      %v5052 = vunpack.c.l.b16 %v4188
      %v5053 = vunpack.c.h.b16 %v4188
      %v5054 = vunpack.c.l.b16 %v4189
      %v5055 = vunpack.c.h.b16 %v4189
      %v5056 = vunpack.c.l.b16 %v4190
      %v5057 = vunpack.c.h.b16 %v4190
      %v5058 = vunpack.c.l.b16 %v4191
      %v5059 = vunpack.c.h.b16 %v4191
      %v5060 = vunpack.c.l.b16 %v4192
      %v5061 = vunpack.c.h.b16 %v4192
      %v5062 = vunpack.c.l.b16 %v4193
      %v5063 = vunpack.c.h.b16 %v4193
      %v5064 = vunpack.c.l.b16 %v4194
      %v5065 = vunpack.c.h.b16 %v4194
      %v5066 = vunpack.c.l.b16 %v4195
      %v5067 = vunpack.c.h.b16 %v4195
      %v5068 = vunpack.c.l.b16 %v4196
      %v5069 = vunpack.c.h.b16 %v4196
      %v5070 = vunpack.c.l.b16 %v4197
      %v5071 = vunpack.c.h.b16 %v4197
      %v5072 = vunpack.c.l.b16 %v4198
      %v5073 = vunpack.c.h.b16 %v4198
      %v5074 = vunpack.c.l.b16 %v4199
      %v5075 = vunpack.c.h.b16 %v4199
      %v5076 = vunpack.c.l.b16 %v4200
      %v5077 = vunpack.c.h.b16 %v4200
      %v5078 = vunpack.c.l.b16 %v4201
      %v5079 = vunpack.c.h.b16 %v4201
      %v5080 = vunpack.c.l.b16 %v4202
      %v5081 = vunpack.c.h.b16 %v4202
      %v5082 = vunpack.c.l.b16 %v4203
      %v5083 = vunpack.c.h.b16 %v4203
      %v5084 = vunpack.c.l.b16 %v4204
      %v5085 = vunpack.c.h.b16 %v4204
      %v5086 = vunpack.c.l.b16 %v4205
      %v5087 = vunpack.c.h.b16 %v4205
      %v5088 = vunpack.c.l.b16 %v4206
      %v5089 = vunpack.c.h.b16 %v4206
      %v5090 = vunpack.c.l.b16 %v4207
      %v5091 = vunpack.c.h.b16 %v4207
      %v5092 = vunpack.c.l.b16 %v4208
      %v5093 = vunpack.c.h.b16 %v4208
      %v5094 = vunpack.c.l.b16 %v4209
      %v5095 = vunpack.c.h.b16 %v4209
      %v5096 = vunpack.c.l.b16 %v4210
      %v5097 = vunpack.c.h.b16 %v4210
      %v5098 = vunpack.c.l.b16 %v4211
      %v5099 = vunpack.c.h.b16 %v4211
      %v5100 = vunpack.c.l.b16 %v4212
      %v5101 = vunpack.c.h.b16 %v4212
      %v5102 = vunpack.c.l.b16 %v4213
      %v5103 = vunpack.c.h.b16 %v4213
      %v5104 = vunpack.c.l.b16 %v4214
      %v5105 = vunpack.c.h.b16 %v4214
      %v5106 = vunpack.c.l.b16 %v4215
      %v5107 = vunpack.c.h.b16 %v4215
      %v5108 = vunpack.c.l.b16 %v4216
      %v5109 = vunpack.c.h.b16 %v4216
      %v5110 = vunpack.c.l.b16 %v4217
      %v5111 = vunpack.c.h.b16 %v4217
      %v5112 = vunpack.c.l.b16 %v4218
      %v5113 = vunpack.c.h.b16 %v4218
      %v5114 = vunpack.c.l.b16 %v4219
      %v5115 = vunpack.c.h.b16 %v4219
      %v5116 = vunpack.c.l.b16 %v4220
      %v5117 = vunpack.c.h.b16 %v4220
      %v5118 = vunpack.c.l.b16 %v4221
      %v5119 = vunpack.c.h.b16 %v4221
      %v5120 = vunpack.c.l.b16 %v4222
      %v5121 = vunpack.c.h.b16 %v4222
      %v5122 = vunpack.c.l.b16 %v4223
      %v5123 = vunpack.c.h.b16 %v4223
      %v5124 = vunpack.c.l.b16 %v4224
      %v5125 = vunpack.c.h.b16 %v4224
      %v5126 = vunpack.c.l.b16 %v4225
      %v5127 = vunpack.c.h.b16 %v4225
      %v5128 = vunpack.c.l.b16 %v4226
      %v5129 = vunpack.c.h.b16 %v4226
      %v5130 = vunpack.c.l.b16 %v4227
      %v5131 = vunpack.c.h.b16 %v4227
      %v5132 = vunpack.c.l.b16 %v4228
      %v5133 = vunpack.c.h.b16 %v4228
      %v5134 = vunpack.c.l.b16 %v4229
      %v5135 = vunpack.c.h.b16 %v4229
      %v5136 = vunpack.c.l.b16 %v4230
      %v5137 = vunpack.c.h.b16 %v4230
      %v5138 = vunpack.c.l.b16 %v4231
      %v5139 = vunpack.c.h.b16 %v4231
      %v5140 = vunpack.c.l.b16 %v4232
      %v5141 = vunpack.c.h.b16 %v4232
      %v5142 = vunpack.c.l.b16 %v4233
      %v5143 = vunpack.c.h.b16 %v4233
      %v5144 = vunpack.c.l.b16 %v4234
      %v5145 = vunpack.c.h.b16 %v4234
      %v5146 = vunpack.c.l.b16 %v4235
      %v5147 = vunpack.c.h.b16 %v4235
      %v5148 = vunpack.c.l.b16 %v4236
      %v5149 = vunpack.c.h.b16 %v4236
      %v5150 = vunpack.c.l.b16 %v4237
      %v5151 = vunpack.c.h.b16 %v4237
      %v5152 = vunpack.c.l.b16 %v4238
      %v5153 = vunpack.c.h.b16 %v4238
      %v5154 = vunpack.c.l.b16 %v4239
      %v5155 = vunpack.c.h.b16 %v4239
      %v5156 = vunpack.c.l.b16 %v4240
      %v5157 = vunpack.c.h.b16 %v4240
      %v5158 = vunpack.c.l.b16 %v4241
      %v5159 = vunpack.c.h.b16 %v4241
      %v5160 = vunpack.c.l.b16 %v4242
      %v5161 = vunpack.c.h.b16 %v4242
      %v5162 = vunpack.c.l.b16 %v4243
      %v5163 = vunpack.c.h.b16 %v4243
      %v5164 = vunpack.c.l.b16 %v4244
      %v5165 = vunpack.c.h.b16 %v4244
      %v5166 = vunpack.c.l.b16 %v4245
      %v5167 = vunpack.c.h.b16 %v4245
      %v5168 = vunpack.c.l.b16 %v4246
      %v5169 = vunpack.c.h.b16 %v4246
      %v5170 = vunpack.c.l.b16 %v4247
      %v5171 = vunpack.c.h.b16 %v4247
      %v5172 = vunpack.c.l.b16 %v4248
      %v5173 = vunpack.c.h.b16 %v4248
      %v5174 = vunpack.c.l.b16 %v4249
      %v5175 = vunpack.c.h.b16 %v4249
      %v5176 = vunpack.c.l.b16 %v4250
      %v5177 = vunpack.c.h.b16 %v4250
      %v5178 = vunpack.c.l.b16 %v4251
      %v5179 = vunpack.c.h.b16 %v4251
      %v5180 = vunpack.c.l.b16 %v4252
      %v5181 = vunpack.c.h.b16 %v4252
      %v5182 = vunpack.c.l.b16 %v4253
      %v5183 = vunpack.c.h.b16 %v4253
      %v5184 = vunpack.c.l.b16 %v4254
      %v5185 = vunpack.c.h.b16 %v4254
      %v5186 = vunpack.c.l.b16 %v4255
      %v5187 = vunpack.c.h.b16 %v4255
      %v5188 = vunpack.c.l.b16 %v4256
      %v5189 = vunpack.c.h.b16 %v4256
      %v5190 = vunpack.c.l.b16 %v4257
      %v5191 = vunpack.c.h.b16 %v4257
      %v5192 = vunpack.c.l.b16 %v4258
      %v5193 = vunpack.c.h.b16 %v4258
      %v5194 = vunpack.c.l.b16 %v4259
      %v5195 = vunpack.c.h.b16 %v4259
      %v5196 = vunpack.c.l.b16 %v4260
      %v5197 = vunpack.c.h.b16 %v4260
      %v5198 = vunpack.c.l.b16 %v4261
      %v5199 = vunpack.c.h.b16 %v4261
      %v5200 = vunpack.c.l.b16 %v4262
      %v5201 = vunpack.c.h.b16 %v4262
      %v5202 = vunpack.c.l.b16 %v4263
      %v5203 = vunpack.c.h.b16 %v4263
      %v5204 = vunpack.c.l.b16 %v4264
      %v5205 = vunpack.c.h.b16 %v4264
      %v5206 = vunpack.c.l.b16 %v4265
      %v5207 = vunpack.c.h.b16 %v4265
      %v5208 = vunpack.c.l.b16 %v4266
      %v5209 = vunpack.c.h.b16 %v4266
      %v5210 = vunpack.c.l.b16 %v4267
      %v5211 = vunpack.c.h.b16 %v4267
      %v5212 = vunpack.c.l.b16 %v4268
      %v5213 = vunpack.c.h.b16 %v4268
      %v5214 = vunpack.c.l.b16 %v4269
      %v5215 = vunpack.c.h.b16 %v4269
      %v5216 = vunpack.c.l.b16 %v4270
      %v5217 = vunpack.c.h.b16 %v4270
      %v5218 = vunpack.c.l.b16 %v4271
      %v5219 = vunpack.c.h.b16 %v4271
      %v5220 = vunpack.c.l.b16 %v4272
      %v5221 = vunpack.c.h.b16 %v4272
      %v5222 = vunpack.c.l.b16 %v4273
      %v5223 = vunpack.c.h.b16 %v4273
      %v5224 = vunpack.c.l.b16 %v4274
      %v5225 = vunpack.c.h.b16 %v4274
      %v5226 = vunpack.c.l.b16 %v4275
      %v5227 = vunpack.c.h.b16 %v4275
      %v5228 = vunpack.c.l.b16 %v4276
      %v5229 = vunpack.c.h.b16 %v4276
      %v5230 = vunpack.c.l.b16 %v4277
      %v5231 = vunpack.c.h.b16 %v4277
      %v5232 = vunpack.c.l.b16 %v4278
      %v5233 = vunpack.c.h.b16 %v4278
      %v5234 = vunpack.c.l.b16 %v4279
      %v5235 = vunpack.c.h.b16 %v4279
      %v5236 = vunpack.c.l.b16 %v4280
      %v5237 = vunpack.c.h.b16 %v4280
      %v5238 = vunpack.c.l.b16 %v4281
      %v5239 = vunpack.c.h.b16 %v4281
      %v5240 = vunpack.c.l.b16 %v4282
      %v5241 = vunpack.c.h.b16 %v4282
      %v5242 = vunpack.c.l.b16 %v4283
      %v5243 = vunpack.c.h.b16 %v4283
      %v5244 = vunpack.c.l.b16 %v4284
      %v5245 = vunpack.c.h.b16 %v4284
      %v5246 = vunpack.c.l.b16 %v4285
      %v5247 = vunpack.c.h.b16 %v4285
      %v5248 = vunpack.c.l.b16 %v4286
      %v5249 = vunpack.c.h.b16 %v4286
      %v5250 = vunpack.c.l.b16 %v4287
      %v5251 = vunpack.c.h.b16 %v4287
      %v5252 = vunpack.c.l.b16 %v4288
      %v5253 = vunpack.c.h.b16 %v4288
      %v5254 = vunpack.c.l.b16 %v4289
      %v5255 = vunpack.c.h.b16 %v4289
      %v5256 = vunpack.c.l.b16 %v4290
      %v5257 = vunpack.c.h.b16 %v4290
      %v5258 = vunpack.c.l.b16 %v4291
      %v5259 = vunpack.c.h.b16 %v4291
      %v5260 = vunpack.c.l.b16 %v4292
      %v5261 = vunpack.c.h.b16 %v4292
      %v5262 = vunpack.c.l.b16 %v4293
      %v5263 = vunpack.c.h.b16 %v4293
      %v5264 = vunpack.c.l.b16 %v4294
      %v5265 = vunpack.c.h.b16 %v4294
      %v5266 = vunpack.c.l.b16 %v4295
      %v5267 = vunpack.c.h.b16 %v4295
      %v5268 = vunpack.c.l.b16 %v4296
      %v5269 = vunpack.c.h.b16 %v4296
      %v5270 = vunpack.c.l.b16 %v4297
      %v5271 = vunpack.c.h.b16 %v4297
      %v5272 = vunpack.c.l.b16 %v4298
      %v5273 = vunpack.c.h.b16 %v4298
      %v5274 = vunpack.c.l.b16 %v4299
      %v5275 = vunpack.c.h.b16 %v4299
      %v5276 = vunpack.c.l.b16 %v4300
      %v5277 = vunpack.c.h.b16 %v4300
      %v5278 = vunpack.c.l.b16 %v4301
      %v5279 = vunpack.c.h.b16 %v4301
      %v5280 = vunpack.c.l.b16 %v4302
      %v5281 = vunpack.c.h.b16 %v4302
      %v5282 = vunpack.c.l.b16 %v4303
      %v5283 = vunpack.c.h.b16 %v4303
      %v5284 = vunpack.c.l.b16 %v4304
      %v5285 = vunpack.c.h.b16 %v4304
      %v5286 = vunpack.c.l.b16 %v4305
      %v5287 = vunpack.c.h.b16 %v4305
      %v5288 = vunpack.c.l.b16 %v4306
      %v5289 = vunpack.c.h.b16 %v4306
      %v5290 = vunpack.c.l.b16 %v4307
      %v5291 = vunpack.c.h.b16 %v4307
      %v5292 = vunpack.c.l.b16 %v4308
      %v5293 = vunpack.c.h.b16 %v4308
      %v5294 = vunpack.c.l.b16 %v4309
      %v5295 = vunpack.c.h.b16 %v4309
      %v5296 = vunpack.c.l.b16 %v4310
      %v5297 = vunpack.c.h.b16 %v4310
      %v5298 = vunpack.c.l.b16 %v4311
      %v5299 = vunpack.c.h.b16 %v4311
      %v5300 = vunpack.c.l.b16 %v4312
      %v5301 = vunpack.c.h.b16 %v4312
      %v5302 = vunpack.c.l.b16 %v4313
      %v5303 = vunpack.c.h.b16 %v4313
      %v5304 = vunpack.c.l.b16 %v4314
      %v5305 = vunpack.c.h.b16 %v4314
      %v5306 = vunpack.c.l.b16 %v4315
      %v5307 = vunpack.c.h.b16 %v4315
      %v5308 = vunpack.c.l.b16 %v4316
      %v5309 = vunpack.c.h.b16 %v4316
      %v5310 = vunpack.c.l.b16 %v4317
      %v5311 = vunpack.c.h.b16 %v4317
      %v5312 = vunpack.c.l.b16 %v4318
      %v5313 = vunpack.c.h.b16 %v4318
      %v5314 = vunpack.c.l.b16 %v4319
      %v5315 = vunpack.c.h.b16 %v4319
      %v5316 = vunpack.c.l.b16 %v4320
      %v5317 = vunpack.c.h.b16 %v4320
      %v5318 = vunpack.c.l.b16 %v4321
      %v5319 = vunpack.c.h.b16 %v4321
      %v5320 = vunpack.c.l.b16 %v4322
      %v5321 = vunpack.c.h.b16 %v4322
      %v5322 = vunpack.c.l.b16 %v4323
      %v5323 = vunpack.c.h.b16 %v4323
      %v5324 = vunpack.c.l.b16 %v4324
      %v5325 = vunpack.c.h.b16 %v4324
      %v5326 = vunpack.c.l.b16 %v4325
      %v5327 = vunpack.c.h.b16 %v4325
      %v5328 = vunpack.c.l.b16 %v4326
      %v5329 = vunpack.c.h.b16 %v4326
      %v5330 = vunpack.c.l.b16 %v4327
      %v5331 = vunpack.c.h.b16 %v4327
      %v5332 = vunpack.c.l.b16 %v4328
      %v5333 = vunpack.c.h.b16 %v4328
      %v5334 = vunpack.c.l.b16 %v4329
      %v5335 = vunpack.c.h.b16 %v4329
      %v5336 = vunpack.c.l.b16 %v4330
      %v5337 = vunpack.c.h.b16 %v4330
      %v5338 = vunpack.c.l.b16 %v4331
      %v5339 = vunpack.c.h.b16 %v4331
      %v5340 = vunpack.c.l.b16 %v4332
      %v5341 = vunpack.c.h.b16 %v4332
      %v5342 = vunpack.c.l.b16 %v4333
      %v5343 = vunpack.c.h.b16 %v4333
      %v5344 = vunpack.c.l.b16 %v4334
      %v5345 = vunpack.c.h.b16 %v4334
      %v5346 = vunpack.c.l.b16 %v4335
      %v5347 = vunpack.c.h.b16 %v4335
      %v5348 = vunpack.c.l.b16 %v4336
      %v5349 = vunpack.c.h.b16 %v4336
      %v5350 = vunpack.c.l.b16 %v4337
      %v5351 = vunpack.c.h.b16 %v4337
      %v5352 = vunpack.c.l.b16 %v4338
      %v5353 = vunpack.c.h.b16 %v4338
      %v5354 = vunpack.c.l.b16 %v4339
      %v5355 = vunpack.c.h.b16 %v4339
      %v5356 = vunpack.c.l.b16 %v4340
      %v5357 = vunpack.c.h.b16 %v4340
      %v5358 = vunpack.c.l.b16 %v4341
      %v5359 = vunpack.c.h.b16 %v4341
      %v5360 = vunpack.c.l.b16 %v4342
      %v5361 = vunpack.c.h.b16 %v4342
      %v5362 = vunpack.c.l.b16 %v4343
      %v5363 = vunpack.c.h.b16 %v4343
      %v5364 = vunpack.c.l.b16 %v4344
      %v5365 = vunpack.c.h.b16 %v4344
      %v5366 = vunpack.c.l.b16 %v4345
      %v5367 = vunpack.c.h.b16 %v4345
      %v5368 = vunpack.c.l.b16 %v4346
      %v5369 = vunpack.c.h.b16 %v4346
      %v5370 = vunpack.c.l.b16 %v4347
      %v5371 = vunpack.c.h.b16 %v4347
      %v5372 = vunpack.c.l.b16 %v4348
      %v5373 = vunpack.c.h.b16 %v4348
      %v5374 = vunpack.c.l.b16 %v4349
      %v5375 = vunpack.c.h.b16 %v4349
      %v5376 = vunpack.c.l.b16 %v4350
      %v5377 = vunpack.c.h.b16 %v4350
      %v5378 = vunpack.c.l.b16 %v4351
      %v5379 = vunpack.c.h.b16 %v4351
      %v5380 = vunpack.c.l.b16 %v4352
      %v5381 = vunpack.c.h.b16 %v4352
      %v5382 = vunpack.c.l.b16 %v4353
      %v5383 = vunpack.c.h.b16 %v4353
      %v5384 = vunpack.c.l.b16 %v4354
      %v5385 = vunpack.c.h.b16 %v4354
      %v5386 = vunpack.c.l.b16 %v4355
      %v5387 = vunpack.c.h.b16 %v4355
      %v5388 = vunpack.c.l.b16 %v4356
      %v5389 = vunpack.c.h.b16 %v4356
      %v5390 = vunpack.c.l.b16 %v4357
      %v5391 = vunpack.c.h.b16 %v4357
      %v5392 = vunpack.c.l.b16 %v4358
      %v5393 = vunpack.c.h.b16 %v4358
      %v5394 = vunpack.c.l.b16 %v4359
      %v5395 = vunpack.c.h.b16 %v4359
      %v5396 = vunpack.c.l.b16 %v4360
      %v5397 = vunpack.c.h.b16 %v4360
      %v5398 = vunpack.c.l.b16 %v4361
      %v5399 = vunpack.c.h.b16 %v4361
      %v5400 = vunpack.c.l.b16 %v4362
      %v5401 = vunpack.c.h.b16 %v4362
      %v5402 = vunpack.c.l.b16 %v4363
      %v5403 = vunpack.c.h.b16 %v4363
      %v5404 = vunpack.c.l.b16 %v4364
      %v5405 = vunpack.c.h.b16 %v4364
      %v5406 = vunpack.c.l.b16 %v4365
      %v5407 = vunpack.c.h.b16 %v4365
      %v5408 = vunpack.c.l.b16 %v4366
      %v5409 = vunpack.c.h.b16 %v4366
      %v5410 = vunpack.c.l.b16 %v4367
      %v5411 = vunpack.c.h.b16 %v4367
      %v5412 = vunpack.c.l.b16 %v4368
      %v5413 = vunpack.c.h.b16 %v4368
      %v5414 = vunpack.c.l.b16 %v4369
      %v5415 = vunpack.c.h.b16 %v4369
      %v5416 = vunpack.c.l.b16 %v4370
      %v5417 = vunpack.c.h.b16 %v4370
      %v5418 = vunpack.c.l.b16 %v4371
      %v5419 = vunpack.c.h.b16 %v4371
      %v5420 = vunpack.c.l.b16 %v4372
      %v5421 = vunpack.c.h.b16 %v4372
      %v5422 = vunpack.c.l.b16 %v4373
      %v5423 = vunpack.c.h.b16 %v4373
      %v5424 = vunpack.c.l.b16 %v4374
      %v5425 = vunpack.c.h.b16 %v4374
      %v5426 = vunpack.c.l.b16 %v4375
      %v5427 = vunpack.c.h.b16 %v4375
      %v5428 = vunpack.c.l.b16 %v4376
      %v5429 = vunpack.c.h.b16 %v4376
      %v5430 = vunpack.c.l.b16 %v4377
      %v5431 = vunpack.c.h.b16 %v4377
      %v5432 = vunpack.c.l.b16 %v4378
      %v5433 = vunpack.c.h.b16 %v4378
      %v5434 = vunpack.c.l.b16 %v4379
      %v5435 = vunpack.c.h.b16 %v4379
      %v5436 = vunpack.c.l.b16 %v4380
      %v5437 = vunpack.c.h.b16 %v4380
      %v5438 = vunpack.c.l.b16 %v4381
      %v5439 = vunpack.c.h.b16 %v4381
      %v5440 = vunpack.c.l.b16 %v4382
      %v5441 = vunpack.c.h.b16 %v4382
      %v5442 = vunpack.c.l.b16 %v4383
      %v5443 = vunpack.c.h.b16 %v4383
      %v5444 = vunpack.c.l.b16 %v4384
      %v5445 = vunpack.c.h.b16 %v4384
      %v5446 = vunpack.c.l.b16 %v4385
      %v5447 = vunpack.c.h.b16 %v4385
      %v5448 = vunpack.c.l.b16 %v4386
      %v5449 = vunpack.c.h.b16 %v4386
      %v5450 = vunpack.c.l.b16 %v4387
      %v5451 = vunpack.c.h.b16 %v4387
      %v5452 = vunpack.c.l.b16 %v4388
      %v5453 = vunpack.c.h.b16 %v4388
      %v5454 = vunpack.c.l.b16 %v4389
      %v5455 = vunpack.c.h.b16 %v4389
      %v5456 = vunpack.c.l.b16 %v4390
      %v5457 = vunpack.c.h.b16 %v4390
      %v5458 = vunpack.c.l.b16 %v4391
      %v5459 = vunpack.c.h.b16 %v4391
      %v5460 = vunpack.c.l.b16 %v4392
      %v5461 = vunpack.c.h.b16 %v4392
      %v5462 = vunpack.c.l.b16 %v4393
      %v5463 = vunpack.c.h.b16 %v4393
      %v5464 = vunpack.c.l.b16 %v4394
      %v5465 = vunpack.c.h.b16 %v4394
      %v5466 = vunpack.c.l.b16 %v4395
      %v5467 = vunpack.c.h.b16 %v4395
      %v5468 = vunpack.c.l.b16 %v4396
      %v5469 = vunpack.c.h.b16 %v4396
      %v5470 = vunpack.c.l.b16 %v4397
      %v5471 = vunpack.c.h.b16 %v4397
      %v5472 = vunpack.c.l.b16 %v4398
      %v5473 = vunpack.c.h.b16 %v4398
      %v5474 = vunpack.c.l.b16 %v4399
      %v5475 = vunpack.c.h.b16 %v4399
      %v5476 = vunpack.c.l.b16 %v4400
      %v5477 = vunpack.c.h.b16 %v4400
      %v5478 = vunpack.c.l.b16 %v4401
      %v5479 = vunpack.c.h.b16 %v4401
      %v5480 = vunpack.c.l.b16 %v4402
      %v5481 = vunpack.c.h.b16 %v4402
      %v5482 = vunpack.c.l.b16 %v4403
      %v5483 = vunpack.c.h.b16 %v4403
      %v5484 = vunpack.c.l.b16 %v4404
      %v5485 = vunpack.c.h.b16 %v4404
      %v5486 = vunpack.c.l.b16 %v4405
      %v5487 = vunpack.c.h.b16 %v4405
      %v5488 = vunpack.c.l.b16 %v4406
      %v5489 = vunpack.c.h.b16 %v4406
      %v5490 = vunpack.c.l.b16 %v4407
      %v5491 = vunpack.c.h.b16 %v4407
      %v5492 = vunpack.c.l.b16 %v4408
      %v5493 = vunpack.c.h.b16 %v4408
      %v5494 = vunpack.c.l.b16 %v4409
      %v5495 = vunpack.c.h.b16 %v4409
      %v5496 = vunpack.c.l.b16 %v4410
      %v5497 = vunpack.c.h.b16 %v4410
      %v5498 = vunpack.c.l.b16 %v4411
      %v5499 = vunpack.c.h.b16 %v4411
      %v5500 = vunpack.c.l.b16 %v4412
      %v5501 = vunpack.c.h.b16 %v4412
      %v5502 = vunpack.c.l.b16 %v4413
      %v5503 = vunpack.c.h.b16 %v4413
      %v5504 = vunpack.c.l.b16 %v4414
      %v5505 = vunpack.c.h.b16 %v4414
      %v5506 = vunpack.c.l.b16 %v4415
      %v5507 = vunpack.c.h.b16 %v4415
      %v5508 = vunpack.c.l.b16 %v4416
      %v5509 = vunpack.c.h.b16 %v4416
      %v5510 = vunpack.c.l.b16 %v4417
      %v5511 = vunpack.c.h.b16 %v4417
      %v5512 = vunpack.c.l.b16 %v4418
      %v5513 = vunpack.c.h.b16 %v4418
      %v5514 = vunpack.c.l.b16 %v4419
      %v5515 = vunpack.c.h.b16 %v4419
      %v5516 = vunpack.c.l.b16 %v4420
      %v5517 = vunpack.c.h.b16 %v4420
      %v5518 = vunpack.c.l.b16 %v4421
      %v5519 = vunpack.c.h.b16 %v4421
      %v5520 = vunpack.c.l.b16 %v4422
      %v5521 = vunpack.c.h.b16 %v4422
      %v5522 = vunpack.c.l.b16 %v4423
      %v5523 = vunpack.c.h.b16 %v4423
      %v5524 = vunpack.c.l.b16 %v4424
      %v5525 = vunpack.c.h.b16 %v4424
      %v5526 = vunpack.c.l.b16 %v4425
      %v5527 = vunpack.c.h.b16 %v4425
      %v5528 = vunpack.c.l.b16 %v4426
      %v5529 = vunpack.c.h.b16 %v4426
      %v5530 = vunpack.c.l.b16 %v4427
      %v5531 = vunpack.c.h.b16 %v4427
      %v5532 = vunpack.c.l.b16 %v4428
      %v5533 = vunpack.c.h.b16 %v4428
      %v5534 = vunpack.c.l.b16 %v4429
      %v5535 = vunpack.c.h.b16 %v4429
      %v5536 = vunpack.c.l.b16 %v4430
      %v5537 = vunpack.c.h.b16 %v4430
      %v5538 = vunpack.c.l.b16 %v4431
      %v5539 = vunpack.c.h.b16 %v4431
      %v5540 = vunpack.c.l.b16 %v4432
      %v5541 = vunpack.c.h.b16 %v4432
      %v5542 = vunpack.c.l.b16 %v4433
      %v5543 = vunpack.c.h.b16 %v4433
      %v5544 = vunpack.c.l.b16 %v4434
      %v5545 = vunpack.c.h.b16 %v4434
      %v5546 = vunpack.c.l.b16 %v4435
      %v5547 = vunpack.c.h.b16 %v4435
      %v5548 = vunpack.c.l.b16 %v4436
      %v5549 = vunpack.c.h.b16 %v4436
      %v5550 = vunpack.c.l.b16 %v4437
      %v5551 = vunpack.c.h.b16 %v4437
      %v5552 = vunpack.c.l.b16 %v4438
      %v5553 = vunpack.c.h.b16 %v4438
      %v5554 = vunpack.c.l.b16 %v4439
      %v5555 = vunpack.c.h.b16 %v4439
      %v5556 = vunpack.c.l.b16 %v4440
      %v5557 = vunpack.c.h.b16 %v4440
      %v5558 = vunpack.c.l.b16 %v4441
      %v5559 = vunpack.c.h.b16 %v4441
      %v5560 = vunpack.c.l.b16 %v4442
      %v5561 = vunpack.c.h.b16 %v4442
      %v5562 = vunpack.c.l.b16 %v4443
      %v5563 = vunpack.c.h.b16 %v4443
      %v5564 = vunpack.c.l.b16 %v4444
      %v5565 = vunpack.c.h.b16 %v4444
      %v5566 = vunpack.c.l.b16 %v4445
      %v5567 = vunpack.c.h.b16 %v4445
      %v5568 = vunpack.c.l.b16 %v4446
      %v5569 = vunpack.c.h.b16 %v4446
      %v5570 = vunpack.c.l.b16 %v4447
      %v5571 = vunpack.c.h.b16 %v4447
      %v5572 = vunpack.c.l.b16 %v4448
      %v5573 = vunpack.c.h.b16 %v4448
      %v5574 = vunpack.c.l.b16 %v4449
      %v5575 = vunpack.c.h.b16 %v4449
      %v5576 = vunpack.c.l.b16 %v4450
      %v5577 = vunpack.c.h.b16 %v4450
      %v5578 = vunpack.c.l.b16 %v4451
      %v5579 = vunpack.c.h.b16 %v4451
      %v5580 = vunpack.c.l.b16 %v4452
      %v5581 = vunpack.c.h.b16 %v4452
      %v5582 = vunpack.c.l.b16 %v4453
      %v5583 = vunpack.c.h.b16 %v4453
      %v5584 = vunpack.c.l.b16 %v4454
      %v5585 = vunpack.c.h.b16 %v4454
      %v5586 = vunpack.c.l.b16 %v4455
      %v5587 = vunpack.c.h.b16 %v4455
      %v5588 = vunpack.c.l.b16 %v4456
      %v5589 = vunpack.c.h.b16 %v4456
      %v5590 = vunpack.c.l.b16 %v4457
      %v5591 = vunpack.c.h.b16 %v4457
      %v5592 = vunpack.c.l.b16 %v4458
      %v5593 = vunpack.c.h.b16 %v4458
      %v5594 = vunpack.c.l.b16 %v4459
      %v5595 = vunpack.c.h.b16 %v4459
      %v5596 = vunpack.c.l.b16 %v4460
      %v5597 = vunpack.c.h.b16 %v4460
      %v5598 = vunpack.c.l.b16 %v4461
      %v5599 = vunpack.c.h.b16 %v4461
      %v5600 = vunpack.c.l.b16 %v4462
      %v5601 = vunpack.c.h.b16 %v4462
      %v5602 = vunpack.c.l.b16 %v4463
      %v5603 = vunpack.c.h.b16 %v4463
      %v5604 = vunpack.c.l.b16 %v4464
      %v5605 = vunpack.c.h.b16 %v4464
      %v5606 = vunpack.c.l.b16 %v4465
      %v5607 = vunpack.c.h.b16 %v4465
      %v5608 = vunpack.c.l.b16 %v4466
      %v5609 = vunpack.c.h.b16 %v4466
      %v5610 = vunpack.c.l.b16 %v4467
      %v5611 = vunpack.c.h.b16 %v4467
      %v5612 = vunpack.c.l.b16 %v4468
      %v5613 = vunpack.c.h.b16 %v4468
      %v5614 = vunpack.c.l.b16 %v4469
      %v5615 = vunpack.c.h.b16 %v4469
      %v5616 = vunpack.c.l.b16 %v4470
      %v5617 = vunpack.c.h.b16 %v4470
      %v5618 = vunpack.c.l.b16 %v4471
      %v5619 = vunpack.c.h.b16 %v4471
      %v5620 = vunpack.c.l.b16 %v4472
      %v5621 = vunpack.c.h.b16 %v4472
      %v5622 = vunpack.c.l.b16 %v4473
      %v5623 = vunpack.c.h.b16 %v4473
      %v5624 = vunpack.c.l.b16 %v4474
      %v5625 = vunpack.c.h.b16 %v4474
      %v5626 = vunpack.c.l.b16 %v4475
      %v5627 = vunpack.c.h.b16 %v4475
      %v5628 = vunpack.c.l.b16 %v4476
      %v5629 = vunpack.c.h.b16 %v4476
      %v5630 = vunpack.c.l.b16 %v4477
      %v5631 = vunpack.c.h.b16 %v4477
      %v5632 = vunpack.c.l.b16 %v4478
      %v5633 = vunpack.c.h.b16 %v4478
      %v5634 = vunpack.c.l.b16 %v4479
      %v5635 = vunpack.c.h.b16 %v4479
      %v5636 = vunpack.c.l.b16 %v4480
      %v5637 = vunpack.c.h.b16 %v4480
      %v5638 = vunpack.c.l.b16 %v4481
      %v5639 = vunpack.c.h.b16 %v4481
      %v5640 = vunpack.c.l.b16 %v4482
      %v5641 = vunpack.c.h.b16 %v4482
      %v5642 = vunpack.c.l.b16 %v4483
      %v5643 = vunpack.c.h.b16 %v4483
      %v5644 = vunpack.c.l.b16 %v4484
      %v5645 = vunpack.c.h.b16 %v4484
      %v5646 = vunpack.c.l.b16 %v4485
      %v5647 = vunpack.c.h.b16 %v4485
      %v5648 = vunpack.c.l.b16 %v4486
      %v5649 = vunpack.c.h.b16 %v4486
      %v5650 = vunpack.c.l.b16 %v4487
      %v5651 = vunpack.c.h.b16 %v4487
      %v5652 = vunpack.c.l.b16 %v4488
      %v5653 = vunpack.c.h.b16 %v4488
      %v5654 = vunpack.c.l.b16 %v4489
      %v5655 = vunpack.c.h.b16 %v4489
      %v5656 = vunpack.c.l.b16 %v4490
      %v5657 = vunpack.c.h.b16 %v4490
      %v5658 = vunpack.c.l.b16 %v4491
      %v5659 = vunpack.c.h.b16 %v4491
      %v5660 = vunpack.c.l.b16 %v4492
      %v5661 = vunpack.c.h.b16 %v4492
      %v5662 = vunpack.c.l.b16 %v4493
      %v5663 = vunpack.c.h.b16 %v4493
      %v5664 = vunpack.c.l.b16 %v4494
      %v5665 = vunpack.c.h.b16 %v4494
      %v5666 = vunpack.c.l.b16 %v4495
      %v5667 = vunpack.c.h.b16 %v4495
      %v5668 = vunpack.c.l.b16 %v4496
      %v5669 = vunpack.c.h.b16 %v4496
      %v5670 = vunpack.c.l.b16 %v4497
      %v5671 = vunpack.c.h.b16 %v4497
      %v5672 = vunpack.c.l.b16 %v4498
      %v5673 = vunpack.c.h.b16 %v4498
      %v5674 = vunpack.c.l.b16 %v4499
      %v5675 = vunpack.c.h.b16 %v4499
      %v5676 = vpack.c.b16 %v4892, %v4892
      %v5677 = vpack.c.b16 %v4893, %v4893
      %v5678 = vpack.c.b16 %v4894, %v4894
      %v5679 = vpack.c.b16 %v4895, %v4895
      %v5680 = vpack.c.b16 %v4896, %v4896
      %v5681 = vpack.c.b16 %v4897, %v4897
      %v5682 = vpack.c.b16 %v4898, %v4898
      %v5683 = vpack.c.b16 %v4899, %v4899
      %v5684 = vpack.c.b16 %v4900, %v4900
      %v5685 = vpack.c.b16 %v4901, %v4901
      %v5686 = vpack.c.b16 %v4902, %v4902
      %v5687 = vpack.c.b16 %v4903, %v4903
      %v5688 = vpack.c.b16 %v4904, %v4904
      %v5689 = vpack.c.b16 %v4905, %v4905
      %v5690 = vpack.c.b16 %v4906, %v4906
      %v5691 = vpack.c.b16 %v4907, %v4907
      %v5692 = vpack.c.b16 %v4908, %v4908
      %v5693 = vpack.c.b16 %v4909, %v4909
      %v5694 = vpack.c.b16 %v4910, %v4910
      %v5695 = vpack.c.b16 %v4911, %v4911
      %v5696 = vpack.c.b16 %v4912, %v4912
      %v5697 = vpack.c.b16 %v4913, %v4913
      %v5698 = vpack.c.b16 %v4914, %v4914
      %v5699 = vpack.c.b16 %v4915, %v4915
      %v5700 = vpack.c.b16 %v4916, %v4916
      %v5701 = vpack.c.b16 %v4917, %v4917
      %v5702 = vpack.c.b16 %v4918, %v4918
      %v5703 = vpack.c.b16 %v4919, %v4919
      %v5704 = vpack.c.b16 %v4920, %v4920
      %v5705 = vpack.c.b16 %v4921, %v4921
      %v5706 = vpack.c.b16 %v4922, %v4922
      %v5707 = vpack.c.b16 %v4923, %v4923
      %v5708 = vpack.c.b16 %v4924, %v4924
      %v5709 = vpack.c.b16 %v4925, %v4925
      %v5710 = vpack.c.b16 %v4926, %v4926
      %v5711 = vpack.c.b16 %v4927, %v4927
      %v5712 = vpack.c.b16 %v4928, %v4928
      %v5713 = vpack.c.b16 %v4929, %v4929
      %v5714 = vpack.c.b16 %v4930, %v4930
      %v5715 = vpack.c.b16 %v4931, %v4931
      %v5716 = vpack.c.b16 %v4932, %v4932
      %v5717 = vpack.c.b16 %v4933, %v4933
      %v5718 = vpack.c.b16 %v4934, %v4934
      %v5719 = vpack.c.b16 %v4935, %v4935
      %v5720 = vpack.c.b16 %v4936, %v4936
      %v5721 = vpack.c.b16 %v4937, %v4937
      %v5722 = vpack.c.b16 %v4938, %v4938
      %v5723 = vpack.c.b16 %v4939, %v4939
      %v5724 = vpack.c.b16 %v4940, %v4940
      %v5725 = vpack.c.b16 %v4941, %v4941
      %v5726 = vpack.c.b16 %v4942, %v4942
      %v5727 = vpack.c.b16 %v4943, %v4943
      %v5728 = vpack.c.b16 %v4944, %v4944
      %v5729 = vpack.c.b16 %v4945, %v4945
      %v5730 = vpack.c.b16 %v4946, %v4946
      %v5731 = vpack.c.b16 %v4947, %v4947
      %v5732 = vpack.c.b16 %v4948, %v4948
      %v5733 = vpack.c.b16 %v4949, %v4949
      %v5734 = vpack.c.b16 %v4950, %v4950
      %v5735 = vpack.c.b16 %v4951, %v4951
      %v5736 = vpack.c.b16 %v4952, %v4952
      %v5737 = vpack.c.b16 %v4953, %v4953
      %v5738 = vpack.c.b16 %v4954, %v4954
      %v5739 = vpack.c.b16 %v4955, %v4955
      %v5740 = vpack.c.b16 %v4956, %v4956
      %v5741 = vpack.c.b16 %v4957, %v4957
      %v5742 = vpack.c.b16 %v4958, %v4958
      %v5743 = vpack.c.b16 %v4959, %v4959
      %v5744 = vpack.c.b16 %v4960, %v4960
      %v5745 = vpack.c.b16 %v4961, %v4961
      %v5746 = vpack.c.b16 %v4962, %v4962
      %v5747 = vpack.c.b16 %v4963, %v4963
      %v5748 = vpack.c.b16 %v4964, %v4964
      %v5749 = vpack.c.b16 %v4965, %v4965
      %v5750 = vpack.c.b16 %v4966, %v4966
      %v5751 = vpack.c.b16 %v4967, %v4967
      %v5752 = vpack.c.b16 %v4968, %v4968
      %v5753 = vpack.c.b16 %v4969, %v4969
      %v5754 = vpack.c.b16 %v4970, %v4970
      %v5755 = vpack.c.b16 %v4971, %v4971
      %v5756 = vpack.c.b16 %v4972, %v4972
      %v5757 = vpack.c.b16 %v4973, %v4973
      %v5758 = vpack.c.b16 %v4974, %v4974
      %v5759 = vpack.c.b16 %v4975, %v4975
      %v5760 = vpack.c.b16 %v4976, %v4976
      %v5761 = vpack.c.b16 %v4977, %v4977
      %v5762 = vpack.c.b16 %v4978, %v4978
      %v5763 = vpack.c.b16 %v4979, %v4979
      %v5764 = vpack.c.b16 %v4980, %v4980
      %v5765 = vpack.c.b16 %v4981, %v4981
      %v5766 = vpack.c.b16 %v4982, %v4982
      %v5767 = vpack.c.b16 %v4983, %v4983
      %v5768 = vpack.c.b16 %v4984, %v4984
      %v5769 = vpack.c.b16 %v4985, %v4985
      %v5770 = vpack.c.b16 %v4986, %v4986
      %v5771 = vpack.c.b16 %v4987, %v4987
      %v5772 = vpack.c.b16 %v4988, %v4988
      %v5773 = vpack.c.b16 %v4989, %v4989
      %v5774 = vpack.c.b16 %v4990, %v4990
      %v5775 = vpack.c.b16 %v4991, %v4991
      %v5776 = vpack.c.b16 %v4992, %v4992
      %v5777 = vpack.c.b16 %v4993, %v4993
      %v5778 = vpack.c.b16 %v4994, %v4994
      %v5779 = vpack.c.b16 %v4995, %v4995
      %v5780 = vpack.c.b16 %v4996, %v4996
      %v5781 = vpack.c.b16 %v4997, %v4997
      %v5782 = vpack.c.b16 %v4998, %v4998
      %v5783 = vpack.c.b16 %v4999, %v4999
      %v5784 = vpack.c.b16 %v5000, %v5000
      %v5785 = vpack.c.b16 %v5001, %v5001
      %v5786 = vpack.c.b16 %v5002, %v5002
      %v5787 = vpack.c.b16 %v5003, %v5003
      %v5788 = vpack.c.b16 %v5004, %v5004
      %v5789 = vpack.c.b16 %v5005, %v5005
      %v5790 = vpack.c.b16 %v5006, %v5006
      %v5791 = vpack.c.b16 %v5007, %v5007
      %v5792 = vpack.c.b16 %v5008, %v5008
      %v5793 = vpack.c.b16 %v5009, %v5009
      %v5794 = vpack.c.b16 %v5010, %v5010
      %v5795 = vpack.c.b16 %v5011, %v5011
      %v5796 = vpack.c.b16 %v5012, %v5012
      %v5797 = vpack.c.b16 %v5013, %v5013
      %v5798 = vpack.c.b16 %v5014, %v5014
      %v5799 = vpack.c.b16 %v5015, %v5015
      %v5800 = vpack.c.b16 %v5016, %v5016
      %v5801 = vpack.c.b16 %v5017, %v5017
      %v5802 = vpack.c.b16 %v5018, %v5018
      %v5803 = vpack.c.b16 %v5019, %v5019
      %v5804 = vpack.c.b16 %v5020, %v5020
      %v5805 = vpack.c.b16 %v5021, %v5021
      %v5806 = vpack.c.b16 %v5022, %v5022
      %v5807 = vpack.c.b16 %v5023, %v5023
      %v5808 = vpack.c.b16 %v5024, %v5024
      %v5809 = vpack.c.b16 %v5025, %v5025
      %v5810 = vpack.c.b16 %v5026, %v5026
      %v5811 = vpack.c.b16 %v5027, %v5027
      %v5812 = vpack.c.b16 %v5028, %v5028
      %v5813 = vpack.c.b16 %v5029, %v5029
      %v5814 = vpack.c.b16 %v5030, %v5030
      %v5815 = vpack.c.b16 %v5031, %v5031
      %v5816 = vpack.c.b16 %v5032, %v5032
      %v5817 = vpack.c.b16 %v5033, %v5033
      %v5818 = vpack.c.b16 %v5034, %v5034
      %v5819 = vpack.c.b16 %v5035, %v5035
      %v5820 = vpack.c.b16 %v5036, %v5036
      %v5821 = vpack.c.b16 %v5037, %v5037
      %v5822 = vpack.c.b16 %v5038, %v5038
      %v5823 = vpack.c.b16 %v5039, %v5039
      %v5824 = vpack.c.b16 %v5040, %v5040
      %v5825 = vpack.c.b16 %v5041, %v5041
      %v5826 = vpack.c.b16 %v5042, %v5042
      %v5827 = vpack.c.b16 %v5043, %v5043
      %v5828 = vpack.c.b16 %v5044, %v5044
      %v5829 = vpack.c.b16 %v5045, %v5045
      %v5830 = vpack.c.b16 %v5046, %v5046
      %v5831 = vpack.c.b16 %v5047, %v5047
      %v5832 = vpack.c.b16 %v5048, %v5048
      %v5833 = vpack.c.b16 %v5049, %v5049
      %v5834 = vpack.c.b16 %v5050, %v5050
      %v5835 = vpack.c.b16 %v5051, %v5051
      %v5836 = vpack.c.b16 %v5052, %v5052
      %v5837 = vpack.c.b16 %v5053, %v5053
      %v5838 = vpack.c.b16 %v5054, %v5054
      %v5839 = vpack.c.b16 %v5055, %v5055
      %v5840 = vpack.c.b16 %v5056, %v5056
      %v5841 = vpack.c.b16 %v5057, %v5057
      %v5842 = vpack.c.b16 %v5058, %v5058
      %v5843 = vpack.c.b16 %v5059, %v5059
      %v5844 = vpack.c.b16 %v5060, %v5060
      %v5845 = vpack.c.b16 %v5061, %v5061
      %v5846 = vpack.c.b16 %v5062, %v5062
      %v5847 = vpack.c.b16 %v5063, %v5063
      %v5848 = vpack.c.b16 %v5064, %v5064
      %v5849 = vpack.c.b16 %v5065, %v5065
      %v5850 = vpack.c.b16 %v5066, %v5066
      %v5851 = vpack.c.b16 %v5067, %v5067
      %v5852 = vpack.c.b16 %v5068, %v5068
      %v5853 = vpack.c.b16 %v5069, %v5069
      %v5854 = vpack.c.b16 %v5070, %v5070
      %v5855 = vpack.c.b16 %v5071, %v5071
      %v5856 = vpack.c.b16 %v5072, %v5072
      %v5857 = vpack.c.b16 %v5073, %v5073
      %v5858 = vpack.c.b16 %v5074, %v5074
      %v5859 = vpack.c.b16 %v5075, %v5075
      %v5860 = vpack.c.b16 %v5076, %v5076
      %v5861 = vpack.c.b16 %v5077, %v5077
      %v5862 = vpack.c.b16 %v5078, %v5078
      %v5863 = vpack.c.b16 %v5079, %v5079
      %v5864 = vpack.c.b16 %v5080, %v5080
      %v5865 = vpack.c.b16 %v5081, %v5081
      %v5866 = vpack.c.b16 %v5082, %v5082
      %v5867 = vpack.c.b16 %v5083, %v5083
      %v5868 = vpack.c.b16 %v5084, %v5084
      %v5869 = vpack.c.b16 %v5085, %v5085
      %v5870 = vpack.c.b16 %v5086, %v5086
      %v5871 = vpack.c.b16 %v5087, %v5087
      %v5872 = vpack.c.b16 %v5088, %v5088
      %v5873 = vpack.c.b16 %v5089, %v5089
      %v5874 = vpack.c.b16 %v5090, %v5090
      %v5875 = vpack.c.b16 %v5091, %v5091
      %v5876 = vpack.c.b16 %v5092, %v5092
      %v5877 = vpack.c.b16 %v5093, %v5093
      %v5878 = vpack.c.b16 %v5094, %v5094
      %v5879 = vpack.c.b16 %v5095, %v5095
      %v5880 = vpack.c.b16 %v5096, %v5096
      %v5881 = vpack.c.b16 %v5097, %v5097
      %v5882 = vpack.c.b16 %v5098, %v5098
      %v5883 = vpack.c.b16 %v5099, %v5099
      %v5884 = vpack.c.b16 %v5100, %v5100
      %v5885 = vpack.c.b16 %v5101, %v5101
      %v5886 = vpack.c.b16 %v5102, %v5102
      %v5887 = vpack.c.b16 %v5103, %v5103
      %v5888 = vpack.c.b16 %v5104, %v5104
      %v5889 = vpack.c.b16 %v5105, %v5105
      %v5890 = vpack.c.b16 %v5106, %v5106
      %v5891 = vpack.c.b16 %v5107, %v5107
      %v5892 = vpack.c.b16 %v5108, %v5108
      %v5893 = vpack.c.b16 %v5109, %v5109
      %v5894 = vpack.c.b16 %v5110, %v5110
      %v5895 = vpack.c.b16 %v5111, %v5111
      %v5896 = vpack.c.b16 %v5112, %v5112
      %v5897 = vpack.c.b16 %v5113, %v5113
      %v5898 = vpack.c.b16 %v5114, %v5114
      %v5899 = vpack.c.b16 %v5115, %v5115
      %v5900 = vpack.c.b16 %v5116, %v5116
      %v5901 = vpack.c.b16 %v5117, %v5117
      %v5902 = vpack.c.b16 %v5118, %v5118
      %v5903 = vpack.c.b16 %v5119, %v5119
      %v5904 = vpack.c.b16 %v5120, %v5120
      %v5905 = vpack.c.b16 %v5121, %v5121
      %v5906 = vpack.c.b16 %v5122, %v5122
      %v5907 = vpack.c.b16 %v5123, %v5123
      %v5908 = vpack.c.b16 %v5124, %v5124
      %v5909 = vpack.c.b16 %v5125, %v5125
      %v5910 = vpack.c.b16 %v5126, %v5126
      %v5911 = vpack.c.b16 %v5127, %v5127
      %v5912 = vpack.c.b16 %v5128, %v5128
      %v5913 = vpack.c.b16 %v5129, %v5129
      %v5914 = vpack.c.b16 %v5130, %v5130
      %v5915 = vpack.c.b16 %v5131, %v5131
      %v5916 = vpack.c.b16 %v5132, %v5132
      %v5917 = vpack.c.b16 %v5133, %v5133
      %v5918 = vpack.c.b16 %v5134, %v5134
      %v5919 = vpack.c.b16 %v5135, %v5135
      %v5920 = vpack.c.b16 %v5136, %v5136
      %v5921 = vpack.c.b16 %v5137, %v5137
      %v5922 = vpack.c.b16 %v5138, %v5138
      %v5923 = vpack.c.b16 %v5139, %v5139
      %v5924 = vpack.c.b16 %v5140, %v5140
      %v5925 = vpack.c.b16 %v5141, %v5141
      %v5926 = vpack.c.b16 %v5142, %v5142
      %v5927 = vpack.c.b16 %v5143, %v5143
      %v5928 = vpack.c.b16 %v5144, %v5144
      %v5929 = vpack.c.b16 %v5145, %v5145
      %v5930 = vpack.c.b16 %v5146, %v5146
      %v5931 = vpack.c.b16 %v5147, %v5147
      %v5932 = vpack.c.b16 %v5148, %v5148
      %v5933 = vpack.c.b16 %v5149, %v5149
      %v5934 = vpack.c.b16 %v5150, %v5150
      %v5935 = vpack.c.b16 %v5151, %v5151
      %v5936 = vpack.c.b16 %v5152, %v5152
      %v5937 = vpack.c.b16 %v5153, %v5153
      %v5938 = vpack.c.b16 %v5154, %v5154
      %v5939 = vpack.c.b16 %v5155, %v5155
      %v5940 = vpack.c.b16 %v5156, %v5156
      %v5941 = vpack.c.b16 %v5157, %v5157
      %v5942 = vpack.c.b16 %v5158, %v5158
      %v5943 = vpack.c.b16 %v5159, %v5159
      %v5944 = vpack.c.b16 %v5160, %v5160
      %v5945 = vpack.c.b16 %v5161, %v5161
      %v5946 = vpack.c.b16 %v5162, %v5162
      %v5947 = vpack.c.b16 %v5163, %v5163
      %v5948 = vpack.c.b16 %v5164, %v5164
      %v5949 = vpack.c.b16 %v5165, %v5165
      %v5950 = vpack.c.b16 %v5166, %v5166
      %v5951 = vpack.c.b16 %v5167, %v5167
      %v5952 = vpack.c.b16 %v5168, %v5168
      %v5953 = vpack.c.b16 %v5169, %v5169
      %v5954 = vpack.c.b16 %v5170, %v5170
      %v5955 = vpack.c.b16 %v5171, %v5171
      %v5956 = vpack.c.b16 %v5172, %v5172
      %v5957 = vpack.c.b16 %v5173, %v5173
      %v5958 = vpack.c.b16 %v5174, %v5174
      %v5959 = vpack.c.b16 %v5175, %v5175
      %v5960 = vpack.c.b16 %v5176, %v5176
      %v5961 = vpack.c.b16 %v5177, %v5177
      %v5962 = vpack.c.b16 %v5178, %v5178
      %v5963 = vpack.c.b16 %v5179, %v5179
      %v5964 = vpack.c.b16 %v5180, %v5180
      %v5965 = vpack.c.b16 %v5181, %v5181
      %v5966 = vpack.c.b16 %v5182, %v5182
      %v5967 = vpack.c.b16 %v5183, %v5183
      %v5968 = vpack.c.b16 %v5184, %v5184
      %v5969 = vpack.c.b16 %v5185, %v5185
      %v5970 = vpack.c.b16 %v5186, %v5186
      %v5971 = vpack.c.b16 %v5187, %v5187
      %v5972 = vpack.c.b16 %v5188, %v5188
      %v5973 = vpack.c.b16 %v5189, %v5189
      %v5974 = vpack.c.b16 %v5190, %v5190
      %v5975 = vpack.c.b16 %v5191, %v5191
      %v5976 = vpack.c.b16 %v5192, %v5192
      %v5977 = vpack.c.b16 %v5193, %v5193
      %v5978 = vpack.c.b16 %v5194, %v5194
      %v5979 = vpack.c.b16 %v5195, %v5195
      %v5980 = vpack.c.b16 %v5196, %v5196
      %v5981 = vpack.c.b16 %v5197, %v5197
      %v5982 = vpack.c.b16 %v5198, %v5198
      %v5983 = vpack.c.b16 %v5199, %v5199
      %v5984 = vpack.c.b16 %v5200, %v5200
      %v5985 = vpack.c.b16 %v5201, %v5201
      %v5986 = vpack.c.b16 %v5202, %v5202
      %v5987 = vpack.c.b16 %v5203, %v5203
      %v5988 = vpack.c.b16 %v5204, %v5204
      %v5989 = vpack.c.b16 %v5205, %v5205
      %v5990 = vpack.c.b16 %v5206, %v5206
      %v5991 = vpack.c.b16 %v5207, %v5207
      %v5992 = vpack.c.b16 %v5208, %v5208
      %v5993 = vpack.c.b16 %v5209, %v5209
      %v5994 = vpack.c.b16 %v5210, %v5210
      %v5995 = vpack.c.b16 %v5211, %v5211
      %v5996 = vpack.c.b16 %v5212, %v5212
      %v5997 = vpack.c.b16 %v5213, %v5213
      %v5998 = vpack.c.b16 %v5214, %v5214
      %v5999 = vpack.c.b16 %v5215, %v5215
      %v6000 = vpack.c.b16 %v5216, %v5216
      %v6001 = vpack.c.b16 %v5217, %v5217
      %v6002 = vpack.c.b16 %v5218, %v5218
      %v6003 = vpack.c.b16 %v5219, %v5219
      %v6004 = vpack.c.b16 %v5220, %v5220
      %v6005 = vpack.c.b16 %v5221, %v5221
      %v6006 = vpack.c.b16 %v5222, %v5222
      %v6007 = vpack.c.b16 %v5223, %v5223
      %v6008 = vpack.c.b16 %v5224, %v5224
      %v6009 = vpack.c.b16 %v5225, %v5225
      %v6010 = vpack.c.b16 %v5226, %v5226
      %v6011 = vpack.c.b16 %v5227, %v5227
      %v6012 = vpack.c.b16 %v5228, %v5228
      %v6013 = vpack.c.b16 %v5229, %v5229
      %v6014 = vpack.c.b16 %v5230, %v5230
      %v6015 = vpack.c.b16 %v5231, %v5231
      %v6016 = vpack.c.b16 %v5232, %v5232
      %v6017 = vpack.c.b16 %v5233, %v5233
      %v6018 = vpack.c.b16 %v5234, %v5234
      %v6019 = vpack.c.b16 %v5235, %v5235
      %v6020 = vpack.c.b16 %v5236, %v5236
      %v6021 = vpack.c.b16 %v5237, %v5237
      %v6022 = vpack.c.b16 %v5238, %v5238
      %v6023 = vpack.c.b16 %v5239, %v5239
      %v6024 = vpack.c.b16 %v5240, %v5240
      %v6025 = vpack.c.b16 %v5241, %v5241
      %v6026 = vpack.c.b16 %v5242, %v5242
      %v6027 = vpack.c.b16 %v5243, %v5243
      %v6028 = vpack.c.b16 %v5244, %v5244
      %v6029 = vpack.c.b16 %v5245, %v5245
      %v6030 = vpack.c.b16 %v5246, %v5246
      %v6031 = vpack.c.b16 %v5247, %v5247
      %v6032 = vpack.c.b16 %v5248, %v5248
      %v6033 = vpack.c.b16 %v5249, %v5249
      %v6034 = vpack.c.b16 %v5250, %v5250
      %v6035 = vpack.c.b16 %v5251, %v5251
      %v6036 = vpack.c.b16 %v5252, %v5252
      %v6037 = vpack.c.b16 %v5253, %v5253
      %v6038 = vpack.c.b16 %v5254, %v5254
      %v6039 = vpack.c.b16 %v5255, %v5255
      %v6040 = vpack.c.b16 %v5256, %v5256
      %v6041 = vpack.c.b16 %v5257, %v5257
      %v6042 = vpack.c.b16 %v5258, %v5258
      %v6043 = vpack.c.b16 %v5259, %v5259
      %v6044 = vpack.c.b16 %v5260, %v5260
      %v6045 = vpack.c.b16 %v5261, %v5261
      %v6046 = vpack.c.b16 %v5262, %v5262
      %v6047 = vpack.c.b16 %v5263, %v5263
      %v6048 = vpack.c.b16 %v5264, %v5264
      %v6049 = vpack.c.b16 %v5265, %v5265
      %v6050 = vpack.c.b16 %v5266, %v5266
      %v6051 = vpack.c.b16 %v5267, %v5267
      %v6052 = vpack.c.b16 %v5268, %v5268
      %v6053 = vpack.c.b16 %v5269, %v5269
      %v6054 = vpack.c.b16 %v5270, %v5270
      %v6055 = vpack.c.b16 %v5271, %v5271
      %v6056 = vpack.c.b16 %v5272, %v5272
      %v6057 = vpack.c.b16 %v5273, %v5273
      %v6058 = vpack.c.b16 %v5274, %v5274
      %v6059 = vpack.c.b16 %v5275, %v5275
      %v6060 = vpack.c.b16 %v5276, %v5276
      %v6061 = vpack.c.b16 %v5277, %v5277
      %v6062 = vpack.c.b16 %v5278, %v5278
      %v6063 = vpack.c.b16 %v5279, %v5279
      %v6064 = vpack.c.b16 %v5280, %v5280
      %v6065 = vpack.c.b16 %v5281, %v5281
      %v6066 = vpack.c.b16 %v5282, %v5282
      %v6067 = vpack.c.b16 %v5283, %v5283
      %v6068 = vpack.c.b16 %v5284, %v5284
      %v6069 = vpack.c.b16 %v5285, %v5285
      %v6070 = vpack.c.b16 %v5286, %v5286
      %v6071 = vpack.c.b16 %v5287, %v5287
      %v6072 = vpack.c.b16 %v5288, %v5288
      %v6073 = vpack.c.b16 %v5289, %v5289
      %v6074 = vpack.c.b16 %v5290, %v5290
      %v6075 = vpack.c.b16 %v5291, %v5291
      %v6076 = vpack.c.b16 %v5292, %v5292
      %v6077 = vpack.c.b16 %v5293, %v5293
      %v6078 = vpack.c.b16 %v5294, %v5294
      %v6079 = vpack.c.b16 %v5295, %v5295
      %v6080 = vpack.c.b16 %v5296, %v5296
      %v6081 = vpack.c.b16 %v5297, %v5297
      %v6082 = vpack.c.b16 %v5298, %v5298
      %v6083 = vpack.c.b16 %v5299, %v5299
      %v6084 = vpack.c.b16 %v5300, %v5300
      %v6085 = vpack.c.b16 %v5301, %v5301
      %v6086 = vpack.c.b16 %v5302, %v5302
      %v6087 = vpack.c.b16 %v5303, %v5303
      %v6088 = vpack.c.b16 %v5304, %v5304
      %v6089 = vpack.c.b16 %v5305, %v5305
      %v6090 = vpack.c.b16 %v5306, %v5306
      %v6091 = vpack.c.b16 %v5307, %v5307
      %v6092 = vpack.c.b16 %v5308, %v5308
      %v6093 = vpack.c.b16 %v5309, %v5309
      %v6094 = vpack.c.b16 %v5310, %v5310
      %v6095 = vpack.c.b16 %v5311, %v5311
      %v6096 = vpack.c.b16 %v5312, %v5312
      %v6097 = vpack.c.b16 %v5313, %v5313
      %v6098 = vpack.c.b16 %v5314, %v5314
      %v6099 = vpack.c.b16 %v5315, %v5315
      %v6100 = vpack.c.b16 %v5316, %v5316
      %v6101 = vpack.c.b16 %v5317, %v5317
      %v6102 = vpack.c.b16 %v5318, %v5318
      %v6103 = vpack.c.b16 %v5319, %v5319
      %v6104 = vpack.c.b16 %v5320, %v5320
      %v6105 = vpack.c.b16 %v5321, %v5321
      %v6106 = vpack.c.b16 %v5322, %v5322
      %v6107 = vpack.c.b16 %v5323, %v5323
      %v6108 = vpack.c.b16 %v5324, %v5324
      %v6109 = vpack.c.b16 %v5325, %v5325
      %v6110 = vpack.c.b16 %v5326, %v5326
      %v6111 = vpack.c.b16 %v5327, %v5327
      %v6112 = vpack.c.b16 %v5328, %v5328
      %v6113 = vpack.c.b16 %v5329, %v5329
      %v6114 = vpack.c.b16 %v5330, %v5330
      %v6115 = vpack.c.b16 %v5331, %v5331
      %v6116 = vpack.c.b16 %v5332, %v5332
      %v6117 = vpack.c.b16 %v5333, %v5333
      %v6118 = vpack.c.b16 %v5334, %v5334
      %v6119 = vpack.c.b16 %v5335, %v5335
      %v6120 = vpack.c.b16 %v5336, %v5336
      %v6121 = vpack.c.b16 %v5337, %v5337
      %v6122 = vpack.c.b16 %v5338, %v5338
      %v6123 = vpack.c.b16 %v5339, %v5339
      %v6124 = vpack.c.b16 %v5340, %v5340
      %v6125 = vpack.c.b16 %v5341, %v5341
      %v6126 = vpack.c.b16 %v5342, %v5342
      %v6127 = vpack.c.b16 %v5343, %v5343
      %v6128 = vpack.c.b16 %v5344, %v5344
      %v6129 = vpack.c.b16 %v5345, %v5345
      %v6130 = vpack.c.b16 %v5346, %v5346
      %v6131 = vpack.c.b16 %v5347, %v5347
      %v6132 = vpack.c.b16 %v5348, %v5348
      %v6133 = vpack.c.b16 %v5349, %v5349
      %v6134 = vpack.c.b16 %v5350, %v5350
      %v6135 = vpack.c.b16 %v5351, %v5351
      %v6136 = vpack.c.b16 %v5352, %v5352
      %v6137 = vpack.c.b16 %v5353, %v5353
      %v6138 = vpack.c.b16 %v5354, %v5354
      %v6139 = vpack.c.b16 %v5355, %v5355
      %v6140 = vpack.c.b16 %v5356, %v5356
      %v6141 = vpack.c.b16 %v5357, %v5357
      %v6142 = vpack.c.b16 %v5358, %v5358
      %v6143 = vpack.c.b16 %v5359, %v5359
      %v6144 = vpack.c.b16 %v5360, %v5360
      %v6145 = vpack.c.b16 %v5361, %v5361
      %v6146 = vpack.c.b16 %v5362, %v5362
      %v6147 = vpack.c.b16 %v5363, %v5363
      %v6148 = vpack.c.b16 %v5364, %v5364
      %v6149 = vpack.c.b16 %v5365, %v5365
      %v6150 = vpack.c.b16 %v5366, %v5366
      %v6151 = vpack.c.b16 %v5367, %v5367
      %v6152 = vpack.c.b16 %v5368, %v5368
      %v6153 = vpack.c.b16 %v5369, %v5369
      %v6154 = vpack.c.b16 %v5370, %v5370
      %v6155 = vpack.c.b16 %v5371, %v5371
      %v6156 = vpack.c.b16 %v5372, %v5372
      %v6157 = vpack.c.b16 %v5373, %v5373
      %v6158 = vpack.c.b16 %v5374, %v5374
      %v6159 = vpack.c.b16 %v5375, %v5375
      %v6160 = vpack.c.b16 %v5376, %v5376
      %v6161 = vpack.c.b16 %v5377, %v5377
      %v6162 = vpack.c.b16 %v5378, %v5378
      %v6163 = vpack.c.b16 %v5379, %v5379
      %v6164 = vpack.c.b16 %v5380, %v5380
      %v6165 = vpack.c.b16 %v5381, %v5381
      %v6166 = vpack.c.b16 %v5382, %v5382
      %v6167 = vpack.c.b16 %v5383, %v5383
      %v6168 = vpack.c.b16 %v5384, %v5384
      %v6169 = vpack.c.b16 %v5385, %v5385
      %v6170 = vpack.c.b16 %v5386, %v5386
      %v6171 = vpack.c.b16 %v5387, %v5387
      %v6172 = vpack.c.b16 %v5388, %v5388
      %v6173 = vpack.c.b16 %v5389, %v5389
      %v6174 = vpack.c.b16 %v5390, %v5390
      %v6175 = vpack.c.b16 %v5391, %v5391
      %v6176 = vpack.c.b16 %v5392, %v5392
      %v6177 = vpack.c.b16 %v5393, %v5393
      %v6178 = vpack.c.b16 %v5394, %v5394
      %v6179 = vpack.c.b16 %v5395, %v5395
      %v6180 = vpack.c.b16 %v5396, %v5396
      %v6181 = vpack.c.b16 %v5397, %v5397
      %v6182 = vpack.c.b16 %v5398, %v5398
      %v6183 = vpack.c.b16 %v5399, %v5399
      %v6184 = vpack.c.b16 %v5400, %v5400
      %v6185 = vpack.c.b16 %v5401, %v5401
      %v6186 = vpack.c.b16 %v5402, %v5402
      %v6187 = vpack.c.b16 %v5403, %v5403
      %v6188 = vpack.c.b16 %v5404, %v5404
      %v6189 = vpack.c.b16 %v5405, %v5405
      %v6190 = vpack.c.b16 %v5406, %v5406
      %v6191 = vpack.c.b16 %v5407, %v5407
      %v6192 = vpack.c.b16 %v5408, %v5408
      %v6193 = vpack.c.b16 %v5409, %v5409
      %v6194 = vpack.c.b16 %v5410, %v5410
      %v6195 = vpack.c.b16 %v5411, %v5411
      %v6196 = vpack.c.b16 %v5412, %v5412
      %v6197 = vpack.c.b16 %v5413, %v5413
      %v6198 = vpack.c.b16 %v5414, %v5414
      %v6199 = vpack.c.b16 %v5415, %v5415
      %v6200 = vpack.c.b16 %v5416, %v5416
      %v6201 = vpack.c.b16 %v5417, %v5417
      %v6202 = vpack.c.b16 %v5418, %v5418
      %v6203 = vpack.c.b16 %v5419, %v5419
      %v6204 = vpack.c.b16 %v5420, %v5420
      %v6205 = vpack.c.b16 %v5421, %v5421
      %v6206 = vpack.c.b16 %v5422, %v5422
      %v6207 = vpack.c.b16 %v5423, %v5423
      %v6208 = vpack.c.b16 %v5424, %v5424
      %v6209 = vpack.c.b16 %v5425, %v5425
      %v6210 = vpack.c.b16 %v5426, %v5426
      %v6211 = vpack.c.b16 %v5427, %v5427
      %v6212 = vpack.c.b16 %v5428, %v5428
      %v6213 = vpack.c.b16 %v5429, %v5429
      %v6214 = vpack.c.b16 %v5430, %v5430
      %v6215 = vpack.c.b16 %v5431, %v5431
      %v6216 = vpack.c.b16 %v5432, %v5432
      %v6217 = vpack.c.b16 %v5433, %v5433
      %v6218 = vpack.c.b16 %v5434, %v5434
      %v6219 = vpack.c.b16 %v5435, %v5435
      %v6220 = vpack.c.b16 %v5436, %v5436
      %v6221 = vpack.c.b16 %v5437, %v5437
      %v6222 = vpack.c.b16 %v5438, %v5438
      %v6223 = vpack.c.b16 %v5439, %v5439
      %v6224 = vpack.c.b16 %v5440, %v5440
      %v6225 = vpack.c.b16 %v5441, %v5441
      %v6226 = vpack.c.b16 %v5442, %v5442
      %v6227 = vpack.c.b16 %v5443, %v5443
      %v6228 = vpack.c.b16 %v5444, %v5444
      %v6229 = vpack.c.b16 %v5445, %v5445
      %v6230 = vpack.c.b16 %v5446, %v5446
      %v6231 = vpack.c.b16 %v5447, %v5447
      %v6232 = vpack.c.b16 %v5448, %v5448
      %v6233 = vpack.c.b16 %v5449, %v5449
      %v6234 = vpack.c.b16 %v5450, %v5450
      %v6235 = vpack.c.b16 %v5451, %v5451
      %v6236 = vpack.c.b16 %v5452, %v5452
      %v6237 = vpack.c.b16 %v5453, %v5453
      %v6238 = vpack.c.b16 %v5454, %v5454
      %v6239 = vpack.c.b16 %v5455, %v5455
      %v6240 = vpack.c.b16 %v5456, %v5456
      %v6241 = vpack.c.b16 %v5457, %v5457
      %v6242 = vpack.c.b16 %v5458, %v5458
      %v6243 = vpack.c.b16 %v5459, %v5459
      %v6244 = vpack.c.b16 %v5460, %v5460
      %v6245 = vpack.c.b16 %v5461, %v5461
      %v6246 = vpack.c.b16 %v5462, %v5462
      %v6247 = vpack.c.b16 %v5463, %v5463
      %v6248 = vpack.c.b16 %v5464, %v5464
      %v6249 = vpack.c.b16 %v5465, %v5465
      %v6250 = vpack.c.b16 %v5466, %v5466
      %v6251 = vpack.c.b16 %v5467, %v5467
      %v6252 = vpack.c.b16 %v5468, %v5468
      %v6253 = vpack.c.b16 %v5469, %v5469
      %v6254 = vpack.c.b16 %v5470, %v5470
      %v6255 = vpack.c.b16 %v5471, %v5471
      %v6256 = vpack.c.b16 %v5472, %v5472
      %v6257 = vpack.c.b16 %v5473, %v5473
      %v6258 = vpack.c.b16 %v5474, %v5474
      %v6259 = vpack.c.b16 %v5475, %v5475
      %v6260 = vpack.c.b16 %v5476, %v5476
      %v6261 = vpack.c.b16 %v5477, %v5477
      %v6262 = vpack.c.b16 %v5478, %v5478
      %v6263 = vpack.c.b16 %v5479, %v5479
      %v6264 = vpack.c.b16 %v5480, %v5480
      %v6265 = vpack.c.b16 %v5481, %v5481
      %v6266 = vpack.c.b16 %v5482, %v5482
      %v6267 = vpack.c.b16 %v5483, %v5483
      %v6268 = vpack.c.b16 %v5484, %v5484
      %v6269 = vpack.c.b16 %v5485, %v5485
      %v6270 = vpack.c.b16 %v5486, %v5486
      %v6271 = vpack.c.b16 %v5487, %v5487
      %v6272 = vpack.c.b16 %v5488, %v5488
      %v6273 = vpack.c.b16 %v5489, %v5489
      %v6274 = vpack.c.b16 %v5490, %v5490
      %v6275 = vpack.c.b16 %v5491, %v5491
      %v6276 = vpack.c.b16 %v5492, %v5492
      %v6277 = vpack.c.b16 %v5493, %v5493
      %v6278 = vpack.c.b16 %v5494, %v5494
      %v6279 = vpack.c.b16 %v5495, %v5495
      %v6280 = vpack.c.b16 %v5496, %v5496
      %v6281 = vpack.c.b16 %v5497, %v5497
      %v6282 = vpack.c.b16 %v5498, %v5498
      %v6283 = vpack.c.b16 %v5499, %v5499
      %v6284 = vpack.c.b16 %v5500, %v5500
      %v6285 = vpack.c.b16 %v5501, %v5501
      %v6286 = vpack.c.b16 %v5502, %v5502
      %v6287 = vpack.c.b16 %v5503, %v5503
      %v6288 = vpack.c.b16 %v5504, %v5504
      %v6289 = vpack.c.b16 %v5505, %v5505
      %v6290 = vpack.c.b16 %v5506, %v5506
      %v6291 = vpack.c.b16 %v5507, %v5507
      %v6292 = vpack.c.b16 %v5508, %v5508
      %v6293 = vpack.c.b16 %v5509, %v5509
      %v6294 = vpack.c.b16 %v5510, %v5510
      %v6295 = vpack.c.b16 %v5511, %v5511
      %v6296 = vpack.c.b16 %v5512, %v5512
      %v6297 = vpack.c.b16 %v5513, %v5513
      %v6298 = vpack.c.b16 %v5514, %v5514
      %v6299 = vpack.c.b16 %v5515, %v5515
      %v6300 = vpack.c.b16 %v5516, %v5516
      %v6301 = vpack.c.b16 %v5517, %v5517
      %v6302 = vpack.c.b16 %v5518, %v5518
      %v6303 = vpack.c.b16 %v5519, %v5519
      %v6304 = vpack.c.b16 %v5520, %v5520
      %v6305 = vpack.c.b16 %v5521, %v5521
      %v6306 = vpack.c.b16 %v5522, %v5522
      %v6307 = vpack.c.b16 %v5523, %v5523
      %v6308 = vpack.c.b16 %v5524, %v5524
      %v6309 = vpack.c.b16 %v5525, %v5525
      %v6310 = vpack.c.b16 %v5526, %v5526
      %v6311 = vpack.c.b16 %v5527, %v5527
      %v6312 = vpack.c.b16 %v5528, %v5528
      %v6313 = vpack.c.b16 %v5529, %v5529
      %v6314 = vpack.c.b16 %v5530, %v5530
      %v6315 = vpack.c.b16 %v5531, %v5531
      %v6316 = vpack.c.b16 %v5532, %v5532
      %v6317 = vpack.c.b16 %v5533, %v5533
      %v6318 = vpack.c.b16 %v5534, %v5534
      %v6319 = vpack.c.b16 %v5535, %v5535
      %v6320 = vpack.c.b16 %v5536, %v5536
      %v6321 = vpack.c.b16 %v5537, %v5537
      %v6322 = vpack.c.b16 %v5538, %v5538
      %v6323 = vpack.c.b16 %v5539, %v5539
      %v6324 = vpack.c.b16 %v5540, %v5540
      %v6325 = vpack.c.b16 %v5541, %v5541
      %v6326 = vpack.c.b16 %v5542, %v5542
      %v6327 = vpack.c.b16 %v5543, %v5543
      %v6328 = vpack.c.b16 %v5544, %v5544
      %v6329 = vpack.c.b16 %v5545, %v5545
      %v6330 = vpack.c.b16 %v5546, %v5546
      %v6331 = vpack.c.b16 %v5547, %v5547
      %v6332 = vpack.c.b16 %v5548, %v5548
      %v6333 = vpack.c.b16 %v5549, %v5549
      %v6334 = vpack.c.b16 %v5550, %v5550
      %v6335 = vpack.c.b16 %v5551, %v5551
      %v6336 = vpack.c.b16 %v5552, %v5552
      %v6337 = vpack.c.b16 %v5553, %v5553
      %v6338 = vpack.c.b16 %v5554, %v5554
      %v6339 = vpack.c.b16 %v5555, %v5555
      %v6340 = vpack.c.b16 %v5556, %v5556
      %v6341 = vpack.c.b16 %v5557, %v5557
      %v6342 = vpack.c.b16 %v5558, %v5558
      %v6343 = vpack.c.b16 %v5559, %v5559
      %v6344 = vpack.c.b16 %v5560, %v5560
      %v6345 = vpack.c.b16 %v5561, %v5561
      %v6346 = vpack.c.b16 %v5562, %v5562
      %v6347 = vpack.c.b16 %v5563, %v5563
      %v6348 = vpack.c.b16 %v5564, %v5564
      %v6349 = vpack.c.b16 %v5565, %v5565
      %v6350 = vpack.c.b16 %v5566, %v5566
      %v6351 = vpack.c.b16 %v5567, %v5567
      %v6352 = vpack.c.b16 %v5568, %v5568
      %v6353 = vpack.c.b16 %v5569, %v5569
      %v6354 = vpack.c.b16 %v5570, %v5570
      %v6355 = vpack.c.b16 %v5571, %v5571
      %v6356 = vpack.c.b16 %v5572, %v5572
      %v6357 = vpack.c.b16 %v5573, %v5573
      %v6358 = vpack.c.b16 %v5574, %v5574
      %v6359 = vpack.c.b16 %v5575, %v5575
      %v6360 = vpack.c.b16 %v5576, %v5576
      %v6361 = vpack.c.b16 %v5577, %v5577
      %v6362 = vpack.c.b16 %v5578, %v5578
      %v6363 = vpack.c.b16 %v5579, %v5579
      %v6364 = vpack.c.b16 %v5580, %v5580
      %v6365 = vpack.c.b16 %v5581, %v5581
      %v6366 = vpack.c.b16 %v5582, %v5582
      %v6367 = vpack.c.b16 %v5583, %v5583
      %v6368 = vpack.c.b16 %v5584, %v5584
      %v6369 = vpack.c.b16 %v5585, %v5585
      %v6370 = vpack.c.b16 %v5586, %v5586
      %v6371 = vpack.c.b16 %v5587, %v5587
      %v6372 = vpack.c.b16 %v5588, %v5588
      %v6373 = vpack.c.b16 %v5589, %v5589
      %v6374 = vpack.c.b16 %v5590, %v5590
      %v6375 = vpack.c.b16 %v5591, %v5591
      %v6376 = vpack.c.b16 %v5592, %v5592
      %v6377 = vpack.c.b16 %v5593, %v5593
      %v6378 = vpack.c.b16 %v5594, %v5594
      %v6379 = vpack.c.b16 %v5595, %v5595
      %v6380 = vpack.c.b16 %v5596, %v5596
      %v6381 = vpack.c.b16 %v5597, %v5597
      %v6382 = vpack.c.b16 %v5598, %v5598
      %v6383 = vpack.c.b16 %v5599, %v5599
      %v6384 = vpack.c.b16 %v5600, %v5600
      %v6385 = vpack.c.b16 %v5601, %v5601
      %v6386 = vpack.c.b16 %v5602, %v5602
      %v6387 = vpack.c.b16 %v5603, %v5603
      %v6388 = vpack.c.b16 %v5604, %v5604
      %v6389 = vpack.c.b16 %v5605, %v5605
      %v6390 = vpack.c.b16 %v5606, %v5606
      %v6391 = vpack.c.b16 %v5607, %v5607
      %v6392 = vpack.c.b16 %v5608, %v5608
      %v6393 = vpack.c.b16 %v5609, %v5609
      %v6394 = vpack.c.b16 %v5610, %v5610
      %v6395 = vpack.c.b16 %v5611, %v5611
      %v6396 = vpack.c.b16 %v5612, %v5612
      %v6397 = vpack.c.b16 %v5613, %v5613
      %v6398 = vpack.c.b16 %v5614, %v5614
      %v6399 = vpack.c.b16 %v5615, %v5615
      %v6400 = vpack.c.b16 %v5616, %v5616
      %v6401 = vpack.c.b16 %v5617, %v5617
      %v6402 = vpack.c.b16 %v5618, %v5618
      %v6403 = vpack.c.b16 %v5619, %v5619
      %v6404 = vpack.c.b16 %v5620, %v5620
      %v6405 = vpack.c.b16 %v5621, %v5621
      %v6406 = vpack.c.b16 %v5622, %v5622
      %v6407 = vpack.c.b16 %v5623, %v5623
      %v6408 = vpack.c.b16 %v5624, %v5624
      %v6409 = vpack.c.b16 %v5625, %v5625
      %v6410 = vpack.c.b16 %v5626, %v5626
      %v6411 = vpack.c.b16 %v5627, %v5627
      %v6412 = vpack.c.b16 %v5628, %v5628
      %v6413 = vpack.c.b16 %v5629, %v5629
      %v6414 = vpack.c.b16 %v5630, %v5630
      %v6415 = vpack.c.b16 %v5631, %v5631
      %v6416 = vpack.c.b16 %v5632, %v5632
      %v6417 = vpack.c.b16 %v5633, %v5633
      %v6418 = vpack.c.b16 %v5634, %v5634
      %v6419 = vpack.c.b16 %v5635, %v5635
      %v6420 = vpack.c.b16 %v5636, %v5636
      %v6421 = vpack.c.b16 %v5637, %v5637
      %v6422 = vpack.c.b16 %v5638, %v5638
      %v6423 = vpack.c.b16 %v5639, %v5639
      %v6424 = vpack.c.b16 %v5640, %v5640
      %v6425 = vpack.c.b16 %v5641, %v5641
      %v6426 = vpack.c.b16 %v5642, %v5642
      %v6427 = vpack.c.b16 %v5643, %v5643
      %v6428 = vpack.c.b16 %v5644, %v5644
      %v6429 = vpack.c.b16 %v5645, %v5645
      %v6430 = vpack.c.b16 %v5646, %v5646
      %v6431 = vpack.c.b16 %v5647, %v5647
      %v6432 = vpack.c.b16 %v5648, %v5648
      %v6433 = vpack.c.b16 %v5649, %v5649
      %v6434 = vpack.c.b16 %v5650, %v5650
      %v6435 = vpack.c.b16 %v5651, %v5651
      %v6436 = vpack.c.b16 %v5652, %v5652
      %v6437 = vpack.c.b16 %v5653, %v5653
      %v6438 = vpack.c.b16 %v5654, %v5654
      %v6439 = vpack.c.b16 %v5655, %v5655
      %v6440 = vpack.c.b16 %v5656, %v5656
      %v6441 = vpack.c.b16 %v5657, %v5657
      %v6442 = vpack.c.b16 %v5658, %v5658
      %v6443 = vpack.c.b16 %v5659, %v5659
      %v6444 = vpack.c.b16 %v5660, %v5660
      %v6445 = vpack.c.b16 %v5661, %v5661
      %v6446 = vpack.c.b16 %v5662, %v5662
      %v6447 = vpack.c.b16 %v5663, %v5663
      %v6448 = vpack.c.b16 %v5664, %v5664
      %v6449 = vpack.c.b16 %v5665, %v5665
      %v6450 = vpack.c.b16 %v5666, %v5666
      %v6451 = vpack.c.b16 %v5667, %v5667
      %v6452 = vpack.c.b16 %v5668, %v5668
      %v6453 = vpack.c.b16 %v5669, %v5669
      %v6454 = vpack.c.b16 %v5670, %v5670
      %v6455 = vpack.c.b16 %v5671, %v5671
      %v6456 = vpack.c.b16 %v5672, %v5672
      %v6457 = vpack.c.b16 %v5673, %v5673
      %v6458 = vpack.c.b16 %v5674, %v5674
      %v6459 = vpack.c.b16 %v5675, %v5675
      %7244 = vst [vmem:[%s172] sm:$0xf] %v5676
      %7245 = vst [vmem:[%s172 + $0x4] sm:$0xf] %v5677
      %7246 = vst [vmem:[%s172 + $0x8] sm:$0xf] %v5678
      %7247 = vst [vmem:[%s172 + $0xc] sm:$0xf] %v5679
      %7248 = vst [vmem:[%s172 + $0x10] sm:$0xf] %v5680
      %7249 = vst [vmem:[%s172 + $0x14] sm:$0xf] %v5681
      %7250 = vst [vmem:[%s172 + $0x18] sm:$0xf] %v5682
      %7251 = vst [vmem:[%s172 + $0x1c] sm:$0xf] %v5683
      %7252 = vst [vmem:[%s172 + $0x20] sm:$0xf] %v5684
      %7253 = vst [vmem:[%s172 + $0x24] sm:$0xf] %v5685
      %7254 = vst [vmem:[%s172 + $0x28] sm:$0xf] %v5686
      %7255 = vst [vmem:[%s172 + $0x2c] sm:$0xf] %v5687
      %7256 = vst [vmem:[%s172 + $0x30] sm:$0xf] %v5688
      %7257 = vst [vmem:[%s172 + $0x34] sm:$0xf] %v5689
      %7258 = vst [vmem:[%s172 + $0x38] sm:$0xf] %v5690
      %7259 = vst [vmem:[%s172 + $0x3c] sm:$0xf] %v5691
      %7260 = vst [vmem:[%s172 + $0x40] sm:$0xf] %v5692
      %7261 = vst [vmem:[%s172 + $0x44] sm:$0xf] %v5693
      %7262 = vst [vmem:[%s172 + $0x48] sm:$0xf] %v5694
      %7263 = vst [vmem:[%s172 + $0x4c] sm:$0xf] %v5695
      %7264 = vst [vmem:[%s172 + $0x50] sm:$0xf] %v5696
      %7265 = vst [vmem:[%s172 + $0x54] sm:$0xf] %v5697
      %7266 = vst [vmem:[%s172 + $0x58] sm:$0xf] %v5698
      %7267 = vst [vmem:[%s172 + $0x5c] sm:$0xf] %v5699
      %7268 = vst [vmem:[%s172 + $0x60] sm:$0xf] %v5700
      %7269 = vst [vmem:[%s172 + $0x64] sm:$0xf] %v5701
      %7270 = vst [vmem:[%s172 + $0x68] sm:$0xf] %v5702
      %7271 = vst [vmem:[%s172 + $0x6c] sm:$0xf] %v5703
      %7272 = vst [vmem:[%s172 + $0x70] sm:$0xf] %v5704
      %7273 = vst [vmem:[%s172 + $0x74] sm:$0xf] %v5705
      %7274 = vst [vmem:[%s172 + $0x78] sm:$0xf] %v5706
      %7275 = vst [vmem:[%s172 + $0x7c] sm:$0xf] %v5707
      %7276 = vst [vmem:[%s172 + $0x80] sm:$0xf] %v5708
      %7277 = vst [vmem:[%s172 + $0x84] sm:$0xf] %v5709
      %7278 = vst [vmem:[%s172 + $0x88] sm:$0xf] %v5710
      %7279 = vst [vmem:[%s172 + $0x8c] sm:$0xf] %v5711
      %7280 = vst [vmem:[%s172 + $0x90] sm:$0xf] %v5712
      %7281 = vst [vmem:[%s172 + $0x94] sm:$0xf] %v5713
      %7282 = vst [vmem:[%s172 + $0x98] sm:$0xf] %v5714
      %7283 = vst [vmem:[%s172 + $0x9c] sm:$0xf] %v5715
      %7284 = vst [vmem:[%s172 + $0xa0] sm:$0xf] %v5716
      %7285 = vst [vmem:[%s172 + $0xa4] sm:$0xf] %v5717
      %7286 = vst [vmem:[%s172 + $0xa8] sm:$0xf] %v5718
      %7287 = vst [vmem:[%s172 + $0xac] sm:$0xf] %v5719
      %7288 = vst [vmem:[%s172 + $0xb0] sm:$0xf] %v5720
      %7289 = vst [vmem:[%s172 + $0xb4] sm:$0xf] %v5721
      %7290 = vst [vmem:[%s172 + $0xb8] sm:$0xf] %v5722
      %7291 = vst [vmem:[%s172 + $0xbc] sm:$0xf] %v5723
      %7292 = vst [vmem:[%s172 + $0xc0] sm:$0xf] %v5724
      %7293 = vst [vmem:[%s172 + $0xc4] sm:$0xf] %v5725
      %7294 = vst [vmem:[%s172 + $0xc8] sm:$0xf] %v5726
      %7295 = vst [vmem:[%s172 + $0xcc] sm:$0xf] %v5727
      %7296 = vst [vmem:[%s172 + $0xd0] sm:$0xf] %v5728
      %7297 = vst [vmem:[%s172 + $0xd4] sm:$0xf] %v5729
      %7298 = vst [vmem:[%s172 + $0xd8] sm:$0xf] %v5730
      %7299 = vst [vmem:[%s172 + $0xdc] sm:$0xf] %v5731
      %7300 = vst [vmem:[%s172 + $0xe0] sm:$0xf] %v5732
      %7301 = vst [vmem:[%s172 + $0xe4] sm:$0xf] %v5733
      %7302 = vst [vmem:[%s172 + $0xe8] sm:$0xf] %v5734
      %7303 = vst [vmem:[%s172 + $0xec] sm:$0xf] %v5735
      %7304 = vst [vmem:[%s172 + $0xf0] sm:$0xf] %v5736
      %7305 = vst [vmem:[%s172 + $0xf4] sm:$0xf] %v5737
      %7306 = vst [vmem:[%s172 + $0xf8] sm:$0xf] %v5738
      %7307 = vst [vmem:[%s172 + $0xfc] sm:$0xf] %v5739
      %7308 = vst [vmem:[%s172 + $0x100] sm:$0xf] %v5740
      %7309 = vst [vmem:[%s172 + $0x104] sm:$0xf] %v5741
      %7310 = vst [vmem:[%s172 + $0x108] sm:$0xf] %v5742
      %7311 = vst [vmem:[%s172 + $0x10c] sm:$0xf] %v5743
      %7312 = vst [vmem:[%s172 + $0x110] sm:$0xf] %v5744
      %7313 = vst [vmem:[%s172 + $0x114] sm:$0xf] %v5745
      %7314 = vst [vmem:[%s172 + $0x118] sm:$0xf] %v5746
      %7315 = vst [vmem:[%s172 + $0x11c] sm:$0xf] %v5747
      %7316 = vst [vmem:[%s172 + $0x120] sm:$0xf] %v5748
      %7317 = vst [vmem:[%s172 + $0x124] sm:$0xf] %v5749
      %7318 = vst [vmem:[%s172 + $0x128] sm:$0xf] %v5750
      %7319 = vst [vmem:[%s172 + $0x12c] sm:$0xf] %v5751
      %7320 = vst [vmem:[%s172 + $0x130] sm:$0xf] %v5752
      %7321 = vst [vmem:[%s172 + $0x134] sm:$0xf] %v5753
      %7322 = vst [vmem:[%s172 + $0x138] sm:$0xf] %v5754
      %7323 = vst [vmem:[%s172 + $0x13c] sm:$0xf] %v5755
      %7324 = vst [vmem:[%s172 + $0x140] sm:$0xf] %v5756
      %7325 = vst [vmem:[%s172 + $0x144] sm:$0xf] %v5757
      %7326 = vst [vmem:[%s172 + $0x148] sm:$0xf] %v5758
      %7327 = vst [vmem:[%s172 + $0x14c] sm:$0xf] %v5759
      %7328 = vst [vmem:[%s172 + $0x150] sm:$0xf] %v5760
      %7329 = vst [vmem:[%s172 + $0x154] sm:$0xf] %v5761
      %7330 = vst [vmem:[%s172 + $0x158] sm:$0xf] %v5762
      %7331 = vst [vmem:[%s172 + $0x15c] sm:$0xf] %v5763
      %7332 = vst [vmem:[%s172 + $0x160] sm:$0xf] %v5764
      %7333 = vst [vmem:[%s172 + $0x164] sm:$0xf] %v5765
      %7334 = vst [vmem:[%s172 + $0x168] sm:$0xf] %v5766
      %7335 = vst [vmem:[%s172 + $0x16c] sm:$0xf] %v5767
      %7336 = vst [vmem:[%s172 + $0x170] sm:$0xf] %v5768
      %7337 = vst [vmem:[%s172 + $0x174] sm:$0xf] %v5769
      %7338 = vst [vmem:[%s172 + $0x178] sm:$0xf] %v5770
      %7339 = vst [vmem:[%s172 + $0x17c] sm:$0xf] %v5771
      %7340 = vst [vmem:[%s172 + $0x180] sm:$0xf] %v5772
      %7341 = vst [vmem:[%s172 + $0x184] sm:$0xf] %v5773
      %7342 = vst [vmem:[%s172 + $0x188] sm:$0xf] %v5774
      %7343 = vst [vmem:[%s172 + $0x18c] sm:$0xf] %v5775
      %7344 = vst [vmem:[%s172 + $0x190] sm:$0xf] %v5776
      %7345 = vst [vmem:[%s172 + $0x194] sm:$0xf] %v5777
      %7346 = vst [vmem:[%s172 + $0x198] sm:$0xf] %v5778
      %7347 = vst [vmem:[%s172 + $0x19c] sm:$0xf] %v5779
      %7348 = vst [vmem:[%s172 + $0x1a0] sm:$0xf] %v5780
      %7349 = vst [vmem:[%s172 + $0x1a4] sm:$0xf] %v5781
      %7350 = vst [vmem:[%s172 + $0x1a8] sm:$0xf] %v5782
      %7351 = vst [vmem:[%s172 + $0x1ac] sm:$0xf] %v5783
      %7352 = vst [vmem:[%s172 + $0x1b0] sm:$0xf] %v5784
      %7353 = vst [vmem:[%s172 + $0x1b4] sm:$0xf] %v5785
      %7354 = vst [vmem:[%s172 + $0x1b8] sm:$0xf] %v5786
      %7355 = vst [vmem:[%s172 + $0x1bc] sm:$0xf] %v5787
      %7356 = vst [vmem:[%s172 + $0x1c0] sm:$0xf] %v5788
      %7357 = vst [vmem:[%s172 + $0x1c4] sm:$0xf] %v5789
      %7358 = vst [vmem:[%s172 + $0x1c8] sm:$0xf] %v5790
      %7359 = vst [vmem:[%s172 + $0x1cc] sm:$0xf] %v5791
      %7360 = vst [vmem:[%s172 + $0x1d0] sm:$0xf] %v5792
      %7361 = vst [vmem:[%s172 + $0x1d4] sm:$0xf] %v5793
      %7362 = vst [vmem:[%s172 + $0x1d8] sm:$0xf] %v5794
      %7363 = vst [vmem:[%s172 + $0x1dc] sm:$0xf] %v5795
      %7364 = vst [vmem:[%s172 + $0x1e0] sm:$0xf] %v5796
      %7365 = vst [vmem:[%s172 + $0x1e4] sm:$0xf] %v5797
      %7366 = vst [vmem:[%s172 + $0x1e8] sm:$0xf] %v5798
      %7367 = vst [vmem:[%s172 + $0x1ec] sm:$0xf] %v5799
      %7368 = vst [vmem:[%s172 + $0x1f0] sm:$0xf] %v5800
      %7369 = vst [vmem:[%s172 + $0x1f4] sm:$0xf] %v5801
      %7370 = vst [vmem:[%s172 + $0x1f8] sm:$0xf] %v5802
      %7371 = vst [vmem:[%s172 + $0x1fc] sm:$0xf] %v5803
      %7372 = vst [vmem:[%s172 + $0x200] sm:$0xf] %v5804
      %7373 = vst [vmem:[%s172 + $0x204] sm:$0xf] %v5805
      %7374 = vst [vmem:[%s172 + $0x208] sm:$0xf] %v5806
      %7375 = vst [vmem:[%s172 + $0x20c] sm:$0xf] %v5807
      %7376 = vst [vmem:[%s172 + $0x210] sm:$0xf] %v5808
      %7377 = vst [vmem:[%s172 + $0x214] sm:$0xf] %v5809
      %7378 = vst [vmem:[%s172 + $0x218] sm:$0xf] %v5810
      %7379 = vst [vmem:[%s172 + $0x21c] sm:$0xf] %v5811
      %7380 = vst [vmem:[%s172 + $0x220] sm:$0xf] %v5812
      %7381 = vst [vmem:[%s172 + $0x224] sm:$0xf] %v5813
      %7382 = vst [vmem:[%s172 + $0x228] sm:$0xf] %v5814
      %7383 = vst [vmem:[%s172 + $0x22c] sm:$0xf] %v5815
      %7384 = vst [vmem:[%s172 + $0x230] sm:$0xf] %v5816
      %7385 = vst [vmem:[%s172 + $0x234] sm:$0xf] %v5817
      %7386 = vst [vmem:[%s172 + $0x238] sm:$0xf] %v5818
      %7387 = vst [vmem:[%s172 + $0x23c] sm:$0xf] %v5819
      %7388 = vst [vmem:[%s172 + $0x240] sm:$0xf] %v5820
      %7389 = vst [vmem:[%s172 + $0x244] sm:$0xf] %v5821
      %7390 = vst [vmem:[%s172 + $0x248] sm:$0xf] %v5822
      %7391 = vst [vmem:[%s172 + $0x24c] sm:$0xf] %v5823
      %7392 = vst [vmem:[%s172 + $0x250] sm:$0xf] %v5824
      %7393 = vst [vmem:[%s172 + $0x254] sm:$0xf] %v5825
      %7394 = vst [vmem:[%s172 + $0x258] sm:$0xf] %v5826
      %7395 = vst [vmem:[%s172 + $0x25c] sm:$0xf] %v5827
      %7396 = vst [vmem:[%s172 + $0x260] sm:$0xf] %v5828
      %7397 = vst [vmem:[%s172 + $0x264] sm:$0xf] %v5829
      %7398 = vst [vmem:[%s172 + $0x268] sm:$0xf] %v5830
      %7399 = vst [vmem:[%s172 + $0x26c] sm:$0xf] %v5831
      %7400 = vst [vmem:[%s172 + $0x270] sm:$0xf] %v5832
      %7401 = vst [vmem:[%s172 + $0x274] sm:$0xf] %v5833
      %7402 = vst [vmem:[%s172 + $0x278] sm:$0xf] %v5834
      %7403 = vst [vmem:[%s172 + $0x27c] sm:$0xf] %v5835
      %7404 = vst [vmem:[%s172 + $0x280] sm:$0xf] %v5836
      %7405 = vst [vmem:[%s172 + $0x284] sm:$0xf] %v5837
      %7406 = vst [vmem:[%s172 + $0x288] sm:$0xf] %v5838
      %7407 = vst [vmem:[%s172 + $0x28c] sm:$0xf] %v5839
      %7408 = vst [vmem:[%s172 + $0x290] sm:$0xf] %v5840
      %7409 = vst [vmem:[%s172 + $0x294] sm:$0xf] %v5841
      %7410 = vst [vmem:[%s172 + $0x298] sm:$0xf] %v5842
      %7411 = vst [vmem:[%s172 + $0x29c] sm:$0xf] %v5843
      %7412 = vst [vmem:[%s172 + $0x2a0] sm:$0xf] %v5844
      %7413 = vst [vmem:[%s172 + $0x2a4] sm:$0xf] %v5845
      %7414 = vst [vmem:[%s172 + $0x2a8] sm:$0xf] %v5846
      %7415 = vst [vmem:[%s172 + $0x2ac] sm:$0xf] %v5847
      %7416 = vst [vmem:[%s172 + $0x2b0] sm:$0xf] %v5848
      %7417 = vst [vmem:[%s172 + $0x2b4] sm:$0xf] %v5849
      %7418 = vst [vmem:[%s172 + $0x2b8] sm:$0xf] %v5850
      %7419 = vst [vmem:[%s172 + $0x2bc] sm:$0xf] %v5851
      %7420 = vst [vmem:[%s172 + $0x2c0] sm:$0xf] %v5852
      %7421 = vst [vmem:[%s172 + $0x2c4] sm:$0xf] %v5853
      %7422 = vst [vmem:[%s172 + $0x2c8] sm:$0xf] %v5854
      %7423 = vst [vmem:[%s172 + $0x2cc] sm:$0xf] %v5855
      %7424 = vst [vmem:[%s172 + $0x2d0] sm:$0xf] %v5856
      %7425 = vst [vmem:[%s172 + $0x2d4] sm:$0xf] %v5857
      %7426 = vst [vmem:[%s172 + $0x2d8] sm:$0xf] %v5858
      %7427 = vst [vmem:[%s172 + $0x2dc] sm:$0xf] %v5859
      %7428 = vst [vmem:[%s172 + $0x2e0] sm:$0xf] %v5860
      %7429 = vst [vmem:[%s172 + $0x2e4] sm:$0xf] %v5861
      %7430 = vst [vmem:[%s172 + $0x2e8] sm:$0xf] %v5862
      %7431 = vst [vmem:[%s172 + $0x2ec] sm:$0xf] %v5863
      %7432 = vst [vmem:[%s172 + $0x2f0] sm:$0xf] %v5864
      %7433 = vst [vmem:[%s172 + $0x2f4] sm:$0xf] %v5865
      %7434 = vst [vmem:[%s172 + $0x2f8] sm:$0xf] %v5866
      %7435 = vst [vmem:[%s172 + $0x2fc] sm:$0xf] %v5867
      %7436 = vst [vmem:[%s172 + $0x300] sm:$0xf] %v5868
      %7437 = vst [vmem:[%s172 + $0x304] sm:$0xf] %v5869
      %7438 = vst [vmem:[%s172 + $0x308] sm:$0xf] %v5870
      %7439 = vst [vmem:[%s172 + $0x30c] sm:$0xf] %v5871
      %7440 = vst [vmem:[%s172 + $0x310] sm:$0xf] %v5872
      %7441 = vst [vmem:[%s172 + $0x314] sm:$0xf] %v5873
      %7442 = vst [vmem:[%s172 + $0x318] sm:$0xf] %v5874
      %7443 = vst [vmem:[%s172 + $0x31c] sm:$0xf] %v5875
      %7444 = vst [vmem:[%s172 + $0x320] sm:$0xf] %v5876
      %7445 = vst [vmem:[%s172 + $0x324] sm:$0xf] %v5877
      %7446 = vst [vmem:[%s172 + $0x328] sm:$0xf] %v5878
      %7447 = vst [vmem:[%s172 + $0x32c] sm:$0xf] %v5879
      %7448 = vst [vmem:[%s172 + $0x330] sm:$0xf] %v5880
      %7449 = vst [vmem:[%s172 + $0x334] sm:$0xf] %v5881
      %7450 = vst [vmem:[%s172 + $0x338] sm:$0xf] %v5882
      %7451 = vst [vmem:[%s172 + $0x33c] sm:$0xf] %v5883
      %7452 = vst [vmem:[%s172 + $0x340] sm:$0xf] %v5884
      %7453 = vst [vmem:[%s172 + $0x344] sm:$0xf] %v5885
      %7454 = vst [vmem:[%s172 + $0x348] sm:$0xf] %v5886
      %7455 = vst [vmem:[%s172 + $0x34c] sm:$0xf] %v5887
      %7456 = vst [vmem:[%s172 + $0x350] sm:$0xf] %v5888
      %7457 = vst [vmem:[%s172 + $0x354] sm:$0xf] %v5889
      %7458 = vst [vmem:[%s172 + $0x358] sm:$0xf] %v5890
      %7459 = vst [vmem:[%s172 + $0x35c] sm:$0xf] %v5891
      %7460 = vst [vmem:[%s172 + $0x360] sm:$0xf] %v5892
      %7461 = vst [vmem:[%s172 + $0x364] sm:$0xf] %v5893
      %7462 = vst [vmem:[%s172 + $0x368] sm:$0xf] %v5894
      %7463 = vst [vmem:[%s172 + $0x36c] sm:$0xf] %v5895
      %7464 = vst [vmem:[%s172 + $0x370] sm:$0xf] %v5896
      %7465 = vst [vmem:[%s172 + $0x374] sm:$0xf] %v5897
      %7466 = vst [vmem:[%s172 + $0x378] sm:$0xf] %v5898
      %7467 = vst [vmem:[%s172 + $0x37c] sm:$0xf] %v5899
      %7468 = vst [vmem:[%s172 + $0x380] sm:$0xf] %v5900
      %7469 = vst [vmem:[%s172 + $0x384] sm:$0xf] %v5901
      %7470 = vst [vmem:[%s172 + $0x388] sm:$0xf] %v5902
      %7471 = vst [vmem:[%s172 + $0x38c] sm:$0xf] %v5903
      %7472 = vst [vmem:[%s172 + $0x390] sm:$0xf] %v5904
      %7473 = vst [vmem:[%s172 + $0x394] sm:$0xf] %v5905
      %7474 = vst [vmem:[%s172 + $0x398] sm:$0xf] %v5906
      %7475 = vst [vmem:[%s172 + $0x39c] sm:$0xf] %v5907
      %7476 = vst [vmem:[%s172 + $0x3a0] sm:$0xf] %v5908
      %7477 = vst [vmem:[%s172 + $0x3a4] sm:$0xf] %v5909
      %7478 = vst [vmem:[%s172 + $0x3a8] sm:$0xf] %v5910
      %7479 = vst [vmem:[%s172 + $0x3ac] sm:$0xf] %v5911
      %7480 = vst [vmem:[%s172 + $0x3b0] sm:$0xf] %v5912
      %7481 = vst [vmem:[%s172 + $0x3b4] sm:$0xf] %v5913
      %7482 = vst [vmem:[%s172 + $0x3b8] sm:$0xf] %v5914
      %7483 = vst [vmem:[%s172 + $0x3bc] sm:$0xf] %v5915
      %7484 = vst [vmem:[%s172 + $0x3c0] sm:$0xf] %v5916
      %7485 = vst [vmem:[%s172 + $0x3c4] sm:$0xf] %v5917
      %7486 = vst [vmem:[%s172 + $0x3c8] sm:$0xf] %v5918
      %7487 = vst [vmem:[%s172 + $0x3cc] sm:$0xf] %v5919
      %7488 = vst [vmem:[%s172 + $0x3d0] sm:$0xf] %v5920
      %7489 = vst [vmem:[%s172 + $0x3d4] sm:$0xf] %v5921
      %7490 = vst [vmem:[%s172 + $0x3d8] sm:$0xf] %v5922
      %7491 = vst [vmem:[%s172 + $0x3dc] sm:$0xf] %v5923
      %7492 = vst [vmem:[%s172 + $0x3e0] sm:$0xf] %v5924
      %7493 = vst [vmem:[%s172 + $0x3e4] sm:$0xf] %v5925
      %7494 = vst [vmem:[%s172 + $0x3e8] sm:$0xf] %v5926
      %7495 = vst [vmem:[%s172 + $0x3ec] sm:$0xf] %v5927
      %7496 = vst [vmem:[%s172 + $0x3f0] sm:$0xf] %v5928
      %7497 = vst [vmem:[%s172 + $0x3f4] sm:$0xf] %v5929
      %7498 = vst [vmem:[%s172 + $0x3f8] sm:$0xf] %v5930
      %7499 = vst [vmem:[%s172 + $0x3fc] sm:$0xf] %v5931
      %7500 = vst [vmem:[%s172 + $0x400] sm:$0xf] %v5932
      %7501 = vst [vmem:[%s172 + $0x404] sm:$0xf] %v5933
      %7502 = vst [vmem:[%s172 + $0x408] sm:$0xf] %v5934
      %7503 = vst [vmem:[%s172 + $0x40c] sm:$0xf] %v5935
      %7504 = vst [vmem:[%s172 + $0x410] sm:$0xf] %v5936
      %7505 = vst [vmem:[%s172 + $0x414] sm:$0xf] %v5937
      %7506 = vst [vmem:[%s172 + $0x418] sm:$0xf] %v5938
      %7507 = vst [vmem:[%s172 + $0x41c] sm:$0xf] %v5939
      %7508 = vst [vmem:[%s172 + $0x420] sm:$0xf] %v5940
      %7509 = vst [vmem:[%s172 + $0x424] sm:$0xf] %v5941
      %7510 = vst [vmem:[%s172 + $0x428] sm:$0xf] %v5942
      %7511 = vst [vmem:[%s172 + $0x42c] sm:$0xf] %v5943
      %7512 = vst [vmem:[%s172 + $0x430] sm:$0xf] %v5944
      %7513 = vst [vmem:[%s172 + $0x434] sm:$0xf] %v5945
      %7514 = vst [vmem:[%s172 + $0x438] sm:$0xf] %v5946
      %7515 = vst [vmem:[%s172 + $0x43c] sm:$0xf] %v5947
      %7516 = vst [vmem:[%s172 + $0x440] sm:$0xf] %v5948
      %7517 = vst [vmem:[%s172 + $0x444] sm:$0xf] %v5949
      %7518 = vst [vmem:[%s172 + $0x448] sm:$0xf] %v5950
      %7519 = vst [vmem:[%s172 + $0x44c] sm:$0xf] %v5951
      %7520 = vst [vmem:[%s172 + $0x450] sm:$0xf] %v5952
      %7521 = vst [vmem:[%s172 + $0x454] sm:$0xf] %v5953
      %7522 = vst [vmem:[%s172 + $0x458] sm:$0xf] %v5954
      %7523 = vst [vmem:[%s172 + $0x45c] sm:$0xf] %v5955
      %7524 = vst [vmem:[%s172 + $0x460] sm:$0xf] %v5956
      %7525 = vst [vmem:[%s172 + $0x464] sm:$0xf] %v5957
      %7526 = vst [vmem:[%s172 + $0x468] sm:$0xf] %v5958
      %7527 = vst [vmem:[%s172 + $0x46c] sm:$0xf] %v5959
      %7528 = vst [vmem:[%s172 + $0x470] sm:$0xf] %v5960
      %7529 = vst [vmem:[%s172 + $0x474] sm:$0xf] %v5961
      %7530 = vst [vmem:[%s172 + $0x478] sm:$0xf] %v5962
      %7531 = vst [vmem:[%s172 + $0x47c] sm:$0xf] %v5963
      %7532 = vst [vmem:[%s172 + $0x480] sm:$0xf] %v5964
      %7533 = vst [vmem:[%s172 + $0x484] sm:$0xf] %v5965
      %7534 = vst [vmem:[%s172 + $0x488] sm:$0xf] %v5966
      %7535 = vst [vmem:[%s172 + $0x48c] sm:$0xf] %v5967
      %7536 = vst [vmem:[%s172 + $0x490] sm:$0xf] %v5968
      %7537 = vst [vmem:[%s172 + $0x494] sm:$0xf] %v5969
      %7538 = vst [vmem:[%s172 + $0x498] sm:$0xf] %v5970
      %7539 = vst [vmem:[%s172 + $0x49c] sm:$0xf] %v5971
      %7540 = vst [vmem:[%s172 + $0x4a0] sm:$0xf] %v5972
      %7541 = vst [vmem:[%s172 + $0x4a4] sm:$0xf] %v5973
      %7542 = vst [vmem:[%s172 + $0x4a8] sm:$0xf] %v5974
      %7543 = vst [vmem:[%s172 + $0x4ac] sm:$0xf] %v5975
      %7544 = vst [vmem:[%s172 + $0x4b0] sm:$0xf] %v5976
      %7545 = vst [vmem:[%s172 + $0x4b4] sm:$0xf] %v5977
      %7546 = vst [vmem:[%s172 + $0x4b8] sm:$0xf] %v5978
      %7547 = vst [vmem:[%s172 + $0x4bc] sm:$0xf] %v5979
      %7548 = vst [vmem:[%s172 + $0x4c0] sm:$0xf] %v5980
      %7549 = vst [vmem:[%s172 + $0x4c4] sm:$0xf] %v5981
      %7550 = vst [vmem:[%s172 + $0x4c8] sm:$0xf] %v5982
      %7551 = vst [vmem:[%s172 + $0x4cc] sm:$0xf] %v5983
      %7552 = vst [vmem:[%s172 + $0x4d0] sm:$0xf] %v5984
      %7553 = vst [vmem:[%s172 + $0x4d4] sm:$0xf] %v5985
      %7554 = vst [vmem:[%s172 + $0x4d8] sm:$0xf] %v5986
      %7555 = vst [vmem:[%s172 + $0x4dc] sm:$0xf] %v5987
      %7556 = vst [vmem:[%s172 + $0x4e0] sm:$0xf] %v5988
      %7557 = vst [vmem:[%s172 + $0x4e4] sm:$0xf] %v5989
      %7558 = vst [vmem:[%s172 + $0x4e8] sm:$0xf] %v5990
      %7559 = vst [vmem:[%s172 + $0x4ec] sm:$0xf] %v5991
      %7560 = vst [vmem:[%s172 + $0x4f0] sm:$0xf] %v5992
      %7561 = vst [vmem:[%s172 + $0x4f4] sm:$0xf] %v5993
      %7562 = vst [vmem:[%s172 + $0x4f8] sm:$0xf] %v5994
      %7563 = vst [vmem:[%s172 + $0x4fc] sm:$0xf] %v5995
      %7564 = vst [vmem:[%s172 + $0x500] sm:$0xf] %v5996
      %7565 = vst [vmem:[%s172 + $0x504] sm:$0xf] %v5997
      %7566 = vst [vmem:[%s172 + $0x508] sm:$0xf] %v5998
      %7567 = vst [vmem:[%s172 + $0x50c] sm:$0xf] %v5999
      %7568 = vst [vmem:[%s172 + $0x510] sm:$0xf] %v6000
      %7569 = vst [vmem:[%s172 + $0x514] sm:$0xf] %v6001
      %7570 = vst [vmem:[%s172 + $0x518] sm:$0xf] %v6002
      %7571 = vst [vmem:[%s172 + $0x51c] sm:$0xf] %v6003
      %7572 = vst [vmem:[%s172 + $0x520] sm:$0xf] %v6004
      %7573 = vst [vmem:[%s172 + $0x524] sm:$0xf] %v6005
      %7574 = vst [vmem:[%s172 + $0x528] sm:$0xf] %v6006
      %7575 = vst [vmem:[%s172 + $0x52c] sm:$0xf] %v6007
      %7576 = vst [vmem:[%s172 + $0x530] sm:$0xf] %v6008
      %7577 = vst [vmem:[%s172 + $0x534] sm:$0xf] %v6009
      %7578 = vst [vmem:[%s172 + $0x538] sm:$0xf] %v6010
      %7579 = vst [vmem:[%s172 + $0x53c] sm:$0xf] %v6011
      %7580 = vst [vmem:[%s172 + $0x540] sm:$0xf] %v6012
      %7581 = vst [vmem:[%s172 + $0x544] sm:$0xf] %v6013
      %7582 = vst [vmem:[%s172 + $0x548] sm:$0xf] %v6014
      %7583 = vst [vmem:[%s172 + $0x54c] sm:$0xf] %v6015
      %7584 = vst [vmem:[%s172 + $0x550] sm:$0xf] %v6016
      %7585 = vst [vmem:[%s172 + $0x554] sm:$0xf] %v6017
      %7586 = vst [vmem:[%s172 + $0x558] sm:$0xf] %v6018
      %7587 = vst [vmem:[%s172 + $0x55c] sm:$0xf] %v6019
      %7588 = vst [vmem:[%s172 + $0x560] sm:$0xf] %v6020
      %7589 = vst [vmem:[%s172 + $0x564] sm:$0xf] %v6021
      %7590 = vst [vmem:[%s172 + $0x568] sm:$0xf] %v6022
      %7591 = vst [vmem:[%s172 + $0x56c] sm:$0xf] %v6023
      %7592 = vst [vmem:[%s172 + $0x570] sm:$0xf] %v6024
      %7593 = vst [vmem:[%s172 + $0x574] sm:$0xf] %v6025
      %7594 = vst [vmem:[%s172 + $0x578] sm:$0xf] %v6026
      %7595 = vst [vmem:[%s172 + $0x57c] sm:$0xf] %v6027
      %7596 = vst [vmem:[%s172 + $0x580] sm:$0xf] %v6028
      %7597 = vst [vmem:[%s172 + $0x584] sm:$0xf] %v6029
      %7598 = vst [vmem:[%s172 + $0x588] sm:$0xf] %v6030
      %7599 = vst [vmem:[%s172 + $0x58c] sm:$0xf] %v6031
      %7600 = vst [vmem:[%s172 + $0x590] sm:$0xf] %v6032
      %7601 = vst [vmem:[%s172 + $0x594] sm:$0xf] %v6033
      %7602 = vst [vmem:[%s172 + $0x598] sm:$0xf] %v6034
      %7603 = vst [vmem:[%s172 + $0x59c] sm:$0xf] %v6035
      %7604 = vst [vmem:[%s172 + $0x5a0] sm:$0xf] %v6036
      %7605 = vst [vmem:[%s172 + $0x5a4] sm:$0xf] %v6037
      %7606 = vst [vmem:[%s172 + $0x5a8] sm:$0xf] %v6038
      %7607 = vst [vmem:[%s172 + $0x5ac] sm:$0xf] %v6039
      %7608 = vst [vmem:[%s172 + $0x5b0] sm:$0xf] %v6040
      %7609 = vst [vmem:[%s172 + $0x5b4] sm:$0xf] %v6041
      %7610 = vst [vmem:[%s172 + $0x5b8] sm:$0xf] %v6042
      %7611 = vst [vmem:[%s172 + $0x5bc] sm:$0xf] %v6043
      %7612 = vst [vmem:[%s172 + $0x5c0] sm:$0xf] %v6044
      %7613 = vst [vmem:[%s172 + $0x5c4] sm:$0xf] %v6045
      %7614 = vst [vmem:[%s172 + $0x5c8] sm:$0xf] %v6046
      %7615 = vst [vmem:[%s172 + $0x5cc] sm:$0xf] %v6047
      %7616 = vst [vmem:[%s172 + $0x5d0] sm:$0xf] %v6048
      %7617 = vst [vmem:[%s172 + $0x5d4] sm:$0xf] %v6049
      %7618 = vst [vmem:[%s172 + $0x5d8] sm:$0xf] %v6050
      %7619 = vst [vmem:[%s172 + $0x5dc] sm:$0xf] %v6051
      %7620 = vst [vmem:[%s172 + $0x5e0] sm:$0xf] %v6052
      %7621 = vst [vmem:[%s172 + $0x5e4] sm:$0xf] %v6053
      %7622 = vst [vmem:[%s172 + $0x5e8] sm:$0xf] %v6054
      %7623 = vst [vmem:[%s172 + $0x5ec] sm:$0xf] %v6055
      %7624 = vst [vmem:[%s172 + $0x5f0] sm:$0xf] %v6056
      %7625 = vst [vmem:[%s172 + $0x5f4] sm:$0xf] %v6057
      %7626 = vst [vmem:[%s172 + $0x5f8] sm:$0xf] %v6058
      %7627 = vst [vmem:[%s172 + $0x5fc] sm:$0xf] %v6059
      %7628 = vst [vmem:[%s172 + $0x600] sm:$0xf] %v6060
      %7629 = vst [vmem:[%s172 + $0x604] sm:$0xf] %v6061
      %7630 = vst [vmem:[%s172 + $0x608] sm:$0xf] %v6062
      %7631 = vst [vmem:[%s172 + $0x60c] sm:$0xf] %v6063
      %7632 = vst [vmem:[%s172 + $0x610] sm:$0xf] %v6064
      %7633 = vst [vmem:[%s172 + $0x614] sm:$0xf] %v6065
      %7634 = vst [vmem:[%s172 + $0x618] sm:$0xf] %v6066
      %7635 = vst [vmem:[%s172 + $0x61c] sm:$0xf] %v6067
      %7636 = vst [vmem:[%s172 + $0x620] sm:$0xf] %v6068
      %7637 = vst [vmem:[%s172 + $0x624] sm:$0xf] %v6069
      %7638 = vst [vmem:[%s172 + $0x628] sm:$0xf] %v6070
      %7639 = vst [vmem:[%s172 + $0x62c] sm:$0xf] %v6071
      %7640 = vst [vmem:[%s172 + $0x630] sm:$0xf] %v6072
      %7641 = vst [vmem:[%s172 + $0x634] sm:$0xf] %v6073
      %7642 = vst [vmem:[%s172 + $0x638] sm:$0xf] %v6074
      %7643 = vst [vmem:[%s172 + $0x63c] sm:$0xf] %v6075
      %7644 = vst [vmem:[%s172 + $0x640] sm:$0xf] %v6076
      %7645 = vst [vmem:[%s172 + $0x644] sm:$0xf] %v6077
      %7646 = vst [vmem:[%s172 + $0x648] sm:$0xf] %v6078
      %7647 = vst [vmem:[%s172 + $0x64c] sm:$0xf] %v6079
      %7648 = vst [vmem:[%s172 + $0x650] sm:$0xf] %v6080
      %7649 = vst [vmem:[%s172 + $0x654] sm:$0xf] %v6081
      %7650 = vst [vmem:[%s172 + $0x658] sm:$0xf] %v6082
      %7651 = vst [vmem:[%s172 + $0x65c] sm:$0xf] %v6083
      %7652 = vst [vmem:[%s172 + $0x660] sm:$0xf] %v6084
      %7653 = vst [vmem:[%s172 + $0x664] sm:$0xf] %v6085
      %7654 = vst [vmem:[%s172 + $0x668] sm:$0xf] %v6086
      %7655 = vst [vmem:[%s172 + $0x66c] sm:$0xf] %v6087
      %7656 = vst [vmem:[%s172 + $0x670] sm:$0xf] %v6088
      %7657 = vst [vmem:[%s172 + $0x674] sm:$0xf] %v6089
      %7658 = vst [vmem:[%s172 + $0x678] sm:$0xf] %v6090
      %7659 = vst [vmem:[%s172 + $0x67c] sm:$0xf] %v6091
      %7660 = vst [vmem:[%s172 + $0x680] sm:$0xf] %v6092
      %7661 = vst [vmem:[%s172 + $0x684] sm:$0xf] %v6093
      %7662 = vst [vmem:[%s172 + $0x688] sm:$0xf] %v6094
      %7663 = vst [vmem:[%s172 + $0x68c] sm:$0xf] %v6095
      %7664 = vst [vmem:[%s172 + $0x690] sm:$0xf] %v6096
      %7665 = vst [vmem:[%s172 + $0x694] sm:$0xf] %v6097
      %7666 = vst [vmem:[%s172 + $0x698] sm:$0xf] %v6098
      %7667 = vst [vmem:[%s172 + $0x69c] sm:$0xf] %v6099
      %7668 = vst [vmem:[%s172 + $0x6a0] sm:$0xf] %v6100
      %7669 = vst [vmem:[%s172 + $0x6a4] sm:$0xf] %v6101
      %7670 = vst [vmem:[%s172 + $0x6a8] sm:$0xf] %v6102
      %7671 = vst [vmem:[%s172 + $0x6ac] sm:$0xf] %v6103
      %7672 = vst [vmem:[%s172 + $0x6b0] sm:$0xf] %v6104
      %7673 = vst [vmem:[%s172 + $0x6b4] sm:$0xf] %v6105
      %7674 = vst [vmem:[%s172 + $0x6b8] sm:$0xf] %v6106
      %7675 = vst [vmem:[%s172 + $0x6bc] sm:$0xf] %v6107
      %7676 = vst [vmem:[%s172 + $0x6c0] sm:$0xf] %v6108
      %7677 = vst [vmem:[%s172 + $0x6c4] sm:$0xf] %v6109
      %7678 = vst [vmem:[%s172 + $0x6c8] sm:$0xf] %v6110
      %7679 = vst [vmem:[%s172 + $0x6cc] sm:$0xf] %v6111
      %7680 = vst [vmem:[%s172 + $0x6d0] sm:$0xf] %v6112
      %7681 = vst [vmem:[%s172 + $0x6d4] sm:$0xf] %v6113
      %7682 = vst [vmem:[%s172 + $0x6d8] sm:$0xf] %v6114
      %7683 = vst [vmem:[%s172 + $0x6dc] sm:$0xf] %v6115
      %7684 = vst [vmem:[%s172 + $0x6e0] sm:$0xf] %v6116
      %7685 = vst [vmem:[%s172 + $0x6e4] sm:$0xf] %v6117
      %7686 = vst [vmem:[%s172 + $0x6e8] sm:$0xf] %v6118
      %7687 = vst [vmem:[%s172 + $0x6ec] sm:$0xf] %v6119
      %7688 = vst [vmem:[%s172 + $0x6f0] sm:$0xf] %v6120
      %7689 = vst [vmem:[%s172 + $0x6f4] sm:$0xf] %v6121
      %7690 = vst [vmem:[%s172 + $0x6f8] sm:$0xf] %v6122
      %7691 = vst [vmem:[%s172 + $0x6fc] sm:$0xf] %v6123
      %7692 = vst [vmem:[%s172 + $0x700] sm:$0xf] %v6124
      %7693 = vst [vmem:[%s172 + $0x704] sm:$0xf] %v6125
      %7694 = vst [vmem:[%s172 + $0x708] sm:$0xf] %v6126
      %7695 = vst [vmem:[%s172 + $0x70c] sm:$0xf] %v6127
      %7696 = vst [vmem:[%s172 + $0x710] sm:$0xf] %v6128
      %7697 = vst [vmem:[%s172 + $0x714] sm:$0xf] %v6129
      %7698 = vst [vmem:[%s172 + $0x718] sm:$0xf] %v6130
      %7699 = vst [vmem:[%s172 + $0x71c] sm:$0xf] %v6131
      %7700 = vst [vmem:[%s172 + $0x720] sm:$0xf] %v6132
      %7701 = vst [vmem:[%s172 + $0x724] sm:$0xf] %v6133
      %7702 = vst [vmem:[%s172 + $0x728] sm:$0xf] %v6134
      %7703 = vst [vmem:[%s172 + $0x72c] sm:$0xf] %v6135
      %7704 = vst [vmem:[%s172 + $0x730] sm:$0xf] %v6136
      %7705 = vst [vmem:[%s172 + $0x734] sm:$0xf] %v6137
      %7706 = vst [vmem:[%s172 + $0x738] sm:$0xf] %v6138
      %7707 = vst [vmem:[%s172 + $0x73c] sm:$0xf] %v6139
      %7708 = vst [vmem:[%s172 + $0x740] sm:$0xf] %v6140
      %7709 = vst [vmem:[%s172 + $0x744] sm:$0xf] %v6141
      %7710 = vst [vmem:[%s172 + $0x748] sm:$0xf] %v6142
      %7711 = vst [vmem:[%s172 + $0x74c] sm:$0xf] %v6143
      %7712 = vst [vmem:[%s172 + $0x750] sm:$0xf] %v6144
      %7713 = vst [vmem:[%s172 + $0x754] sm:$0xf] %v6145
      %7714 = vst [vmem:[%s172 + $0x758] sm:$0xf] %v6146
      %7715 = vst [vmem:[%s172 + $0x75c] sm:$0xf] %v6147
      %7716 = vst [vmem:[%s172 + $0x760] sm:$0xf] %v6148
      %7717 = vst [vmem:[%s172 + $0x764] sm:$0xf] %v6149
      %7718 = vst [vmem:[%s172 + $0x768] sm:$0xf] %v6150
      %7719 = vst [vmem:[%s172 + $0x76c] sm:$0xf] %v6151
      %7720 = vst [vmem:[%s172 + $0x770] sm:$0xf] %v6152
      %7721 = vst [vmem:[%s172 + $0x774] sm:$0xf] %v6153
      %7722 = vst [vmem:[%s172 + $0x778] sm:$0xf] %v6154
      %7723 = vst [vmem:[%s172 + $0x77c] sm:$0xf] %v6155
      %7724 = vst [vmem:[%s172 + $0x780] sm:$0xf] %v6156
      %7725 = vst [vmem:[%s172 + $0x784] sm:$0xf] %v6157
      %7726 = vst [vmem:[%s172 + $0x788] sm:$0xf] %v6158
      %7727 = vst [vmem:[%s172 + $0x78c] sm:$0xf] %v6159
      %7728 = vst [vmem:[%s172 + $0x790] sm:$0xf] %v6160
      %7729 = vst [vmem:[%s172 + $0x794] sm:$0xf] %v6161
      %7730 = vst [vmem:[%s172 + $0x798] sm:$0xf] %v6162
      %7731 = vst [vmem:[%s172 + $0x79c] sm:$0xf] %v6163
      %7732 = vst [vmem:[%s172 + $0x7a0] sm:$0xf] %v6164
      %7733 = vst [vmem:[%s172 + $0x7a4] sm:$0xf] %v6165
      %7734 = vst [vmem:[%s172 + $0x7a8] sm:$0xf] %v6166
      %7735 = vst [vmem:[%s172 + $0x7ac] sm:$0xf] %v6167
      %7736 = vst [vmem:[%s172 + $0x7b0] sm:$0xf] %v6168
      %7737 = vst [vmem:[%s172 + $0x7b4] sm:$0xf] %v6169
      %7738 = vst [vmem:[%s172 + $0x7b8] sm:$0xf] %v6170
      %7739 = vst [vmem:[%s172 + $0x7bc] sm:$0xf] %v6171
      %7740 = vst [vmem:[%s172 + $0x7c0] sm:$0xf] %v6172
      %7741 = vst [vmem:[%s172 + $0x7c4] sm:$0xf] %v6173
      %7742 = vst [vmem:[%s172 + $0x7c8] sm:$0xf] %v6174
      %7743 = vst [vmem:[%s172 + $0x7cc] sm:$0xf] %v6175
      %7744 = vst [vmem:[%s172 + $0x7d0] sm:$0xf] %v6176
      %7745 = vst [vmem:[%s172 + $0x7d4] sm:$0xf] %v6177
      %7746 = vst [vmem:[%s172 + $0x7d8] sm:$0xf] %v6178
      %7747 = vst [vmem:[%s172 + $0x7dc] sm:$0xf] %v6179
      %7748 = vst [vmem:[%s172 + $0x7e0] sm:$0xf] %v6180
      %7749 = vst [vmem:[%s172 + $0x7e4] sm:$0xf] %v6181
      %7750 = vst [vmem:[%s172 + $0x7e8] sm:$0xf] %v6182
      %7751 = vst [vmem:[%s172 + $0x7ec] sm:$0xf] %v6183
      %7752 = vst [vmem:[%s172 + $0x7f0] sm:$0xf] %v6184
      %7753 = vst [vmem:[%s172 + $0x7f4] sm:$0xf] %v6185
      %7754 = vst [vmem:[%s172 + $0x7f8] sm:$0xf] %v6186
      %7755 = vst [vmem:[%s172 + $0x7fc] sm:$0xf] %v6187
      %7756 = vst [vmem:[%s172 + $0x800] sm:$0xf] %v6188
      %7757 = vst [vmem:[%s172 + $0x804] sm:$0xf] %v6189
      %7758 = vst [vmem:[%s172 + $0x808] sm:$0xf] %v6190
      %7759 = vst [vmem:[%s172 + $0x80c] sm:$0xf] %v6191
      %7760 = vst [vmem:[%s172 + $0x810] sm:$0xf] %v6192
      %7761 = vst [vmem:[%s172 + $0x814] sm:$0xf] %v6193
      %7762 = vst [vmem:[%s172 + $0x818] sm:$0xf] %v6194
      %7763 = vst [vmem:[%s172 + $0x81c] sm:$0xf] %v6195
      %7764 = vst [vmem:[%s172 + $0x820] sm:$0xf] %v6196
      %7765 = vst [vmem:[%s172 + $0x824] sm:$0xf] %v6197
      %7766 = vst [vmem:[%s172 + $0x828] sm:$0xf] %v6198
      %7767 = vst [vmem:[%s172 + $0x82c] sm:$0xf] %v6199
      %7768 = vst [vmem:[%s172 + $0x830] sm:$0xf] %v6200
      %7769 = vst [vmem:[%s172 + $0x834] sm:$0xf] %v6201
      %7770 = vst [vmem:[%s172 + $0x838] sm:$0xf] %v6202
      %7771 = vst [vmem:[%s172 + $0x83c] sm:$0xf] %v6203
      %7772 = vst [vmem:[%s172 + $0x840] sm:$0xf] %v6204
      %7773 = vst [vmem:[%s172 + $0x844] sm:$0xf] %v6205
      %7774 = vst [vmem:[%s172 + $0x848] sm:$0xf] %v6206
      %7775 = vst [vmem:[%s172 + $0x84c] sm:$0xf] %v6207
      %7776 = vst [vmem:[%s172 + $0x850] sm:$0xf] %v6208
      %7777 = vst [vmem:[%s172 + $0x854] sm:$0xf] %v6209
      %7778 = vst [vmem:[%s172 + $0x858] sm:$0xf] %v6210
      %7779 = vst [vmem:[%s172 + $0x85c] sm:$0xf] %v6211
      %7780 = vst [vmem:[%s172 + $0x860] sm:$0xf] %v6212
      %7781 = vst [vmem:[%s172 + $0x864] sm:$0xf] %v6213
      %7782 = vst [vmem:[%s172 + $0x868] sm:$0xf] %v6214
      %7783 = vst [vmem:[%s172 + $0x86c] sm:$0xf] %v6215
      %7784 = vst [vmem:[%s172 + $0x870] sm:$0xf] %v6216
      %7785 = vst [vmem:[%s172 + $0x874] sm:$0xf] %v6217
      %7786 = vst [vmem:[%s172 + $0x878] sm:$0xf] %v6218
      %7787 = vst [vmem:[%s172 + $0x87c] sm:$0xf] %v6219
      %7788 = vst [vmem:[%s172 + $0x880] sm:$0xf] %v6220
      %7789 = vst [vmem:[%s172 + $0x884] sm:$0xf] %v6221
      %7790 = vst [vmem:[%s172 + $0x888] sm:$0xf] %v6222
      %7791 = vst [vmem:[%s172 + $0x88c] sm:$0xf] %v6223
      %7792 = vst [vmem:[%s172 + $0x890] sm:$0xf] %v6224
      %7793 = vst [vmem:[%s172 + $0x894] sm:$0xf] %v6225
      %7794 = vst [vmem:[%s172 + $0x898] sm:$0xf] %v6226
      %7795 = vst [vmem:[%s172 + $0x89c] sm:$0xf] %v6227
      %7796 = vst [vmem:[%s172 + $0x8a0] sm:$0xf] %v6228
      %7797 = vst [vmem:[%s172 + $0x8a4] sm:$0xf] %v6229
      %7798 = vst [vmem:[%s172 + $0x8a8] sm:$0xf] %v6230
      %7799 = vst [vmem:[%s172 + $0x8ac] sm:$0xf] %v6231
      %7800 = vst [vmem:[%s172 + $0x8b0] sm:$0xf] %v6232
      %7801 = vst [vmem:[%s172 + $0x8b4] sm:$0xf] %v6233
      %7802 = vst [vmem:[%s172 + $0x8b8] sm:$0xf] %v6234
      %7803 = vst [vmem:[%s172 + $0x8bc] sm:$0xf] %v6235
      %7804 = vst [vmem:[%s172 + $0x8c0] sm:$0xf] %v6236
      %7805 = vst [vmem:[%s172 + $0x8c4] sm:$0xf] %v6237
      %7806 = vst [vmem:[%s172 + $0x8c8] sm:$0xf] %v6238
      %7807 = vst [vmem:[%s172 + $0x8cc] sm:$0xf] %v6239
      %7808 = vst [vmem:[%s172 + $0x8d0] sm:$0xf] %v6240
      %7809 = vst [vmem:[%s172 + $0x8d4] sm:$0xf] %v6241
      %7810 = vst [vmem:[%s172 + $0x8d8] sm:$0xf] %v6242
      %7811 = vst [vmem:[%s172 + $0x8dc] sm:$0xf] %v6243
      %7812 = vst [vmem:[%s172 + $0x8e0] sm:$0xf] %v6244
      %7813 = vst [vmem:[%s172 + $0x8e4] sm:$0xf] %v6245
      %7814 = vst [vmem:[%s172 + $0x8e8] sm:$0xf] %v6246
      %7815 = vst [vmem:[%s172 + $0x8ec] sm:$0xf] %v6247
      %7816 = vst [vmem:[%s172 + $0x8f0] sm:$0xf] %v6248
      %7817 = vst [vmem:[%s172 + $0x8f4] sm:$0xf] %v6249
      %7818 = vst [vmem:[%s172 + $0x8f8] sm:$0xf] %v6250
      %7819 = vst [vmem:[%s172 + $0x8fc] sm:$0xf] %v6251
      %7820 = vst [vmem:[%s172 + $0x900] sm:$0xf] %v6252
      %7821 = vst [vmem:[%s172 + $0x904] sm:$0xf] %v6253
      %7822 = vst [vmem:[%s172 + $0x908] sm:$0xf] %v6254
      %7823 = vst [vmem:[%s172 + $0x90c] sm:$0xf] %v6255
      %7824 = vst [vmem:[%s172 + $0x910] sm:$0xf] %v6256
      %7825 = vst [vmem:[%s172 + $0x914] sm:$0xf] %v6257
      %7826 = vst [vmem:[%s172 + $0x918] sm:$0xf] %v6258
      %7827 = vst [vmem:[%s172 + $0x91c] sm:$0xf] %v6259
      %7828 = vst [vmem:[%s172 + $0x920] sm:$0xf] %v6260
      %7829 = vst [vmem:[%s172 + $0x924] sm:$0xf] %v6261
      %7830 = vst [vmem:[%s172 + $0x928] sm:$0xf] %v6262
      %7831 = vst [vmem:[%s172 + $0x92c] sm:$0xf] %v6263
      %7832 = vst [vmem:[%s172 + $0x930] sm:$0xf] %v6264
      %7833 = vst [vmem:[%s172 + $0x934] sm:$0xf] %v6265
      %7834 = vst [vmem:[%s172 + $0x938] sm:$0xf] %v6266
      %7835 = vst [vmem:[%s172 + $0x93c] sm:$0xf] %v6267
      %7836 = vst [vmem:[%s172 + $0x940] sm:$0xf] %v6268
      %7837 = vst [vmem:[%s172 + $0x944] sm:$0xf] %v6269
      %7838 = vst [vmem:[%s172 + $0x948] sm:$0xf] %v6270
      %7839 = vst [vmem:[%s172 + $0x94c] sm:$0xf] %v6271
      %7840 = vst [vmem:[%s172 + $0x950] sm:$0xf] %v6272
      %7841 = vst [vmem:[%s172 + $0x954] sm:$0xf] %v6273
      %7842 = vst [vmem:[%s172 + $0x958] sm:$0xf] %v6274
      %7843 = vst [vmem:[%s172 + $0x95c] sm:$0xf] %v6275
      %7844 = vst [vmem:[%s172 + $0x960] sm:$0xf] %v6276
      %7845 = vst [vmem:[%s172 + $0x964] sm:$0xf] %v6277
      %7846 = vst [vmem:[%s172 + $0x968] sm:$0xf] %v6278
      %7847 = vst [vmem:[%s172 + $0x96c] sm:$0xf] %v6279
      %7848 = vst [vmem:[%s172 + $0x970] sm:$0xf] %v6280
      %7849 = vst [vmem:[%s172 + $0x974] sm:$0xf] %v6281
      %7850 = vst [vmem:[%s172 + $0x978] sm:$0xf] %v6282
      %7851 = vst [vmem:[%s172 + $0x97c] sm:$0xf] %v6283
      %7852 = vst [vmem:[%s172 + $0x980] sm:$0xf] %v6284
      %7853 = vst [vmem:[%s172 + $0x984] sm:$0xf] %v6285
      %7854 = vst [vmem:[%s172 + $0x988] sm:$0xf] %v6286
      %7855 = vst [vmem:[%s172 + $0x98c] sm:$0xf] %v6287
      %7856 = vst [vmem:[%s172 + $0x990] sm:$0xf] %v6288
      %7857 = vst [vmem:[%s172 + $0x994] sm:$0xf] %v6289
      %7858 = vst [vmem:[%s172 + $0x998] sm:$0xf] %v6290
      %7859 = vst [vmem:[%s172 + $0x99c] sm:$0xf] %v6291
      %7860 = vst [vmem:[%s172 + $0x9a0] sm:$0xf] %v6292
      %7861 = vst [vmem:[%s172 + $0x9a4] sm:$0xf] %v6293
      %7862 = vst [vmem:[%s172 + $0x9a8] sm:$0xf] %v6294
      %7863 = vst [vmem:[%s172 + $0x9ac] sm:$0xf] %v6295
      %7864 = vst [vmem:[%s172 + $0x9b0] sm:$0xf] %v6296
      %7865 = vst [vmem:[%s172 + $0x9b4] sm:$0xf] %v6297
      %7866 = vst [vmem:[%s172 + $0x9b8] sm:$0xf] %v6298
      %7867 = vst [vmem:[%s172 + $0x9bc] sm:$0xf] %v6299
      %7868 = vst [vmem:[%s172 + $0x9c0] sm:$0xf] %v6300
      %7869 = vst [vmem:[%s172 + $0x9c4] sm:$0xf] %v6301
      %7870 = vst [vmem:[%s172 + $0x9c8] sm:$0xf] %v6302
      %7871 = vst [vmem:[%s172 + $0x9cc] sm:$0xf] %v6303
      %7872 = vst [vmem:[%s172 + $0x9d0] sm:$0xf] %v6304
      %7873 = vst [vmem:[%s172 + $0x9d4] sm:$0xf] %v6305
      %7874 = vst [vmem:[%s172 + $0x9d8] sm:$0xf] %v6306
      %7875 = vst [vmem:[%s172 + $0x9dc] sm:$0xf] %v6307
      %7876 = vst [vmem:[%s172 + $0x9e0] sm:$0xf] %v6308
      %7877 = vst [vmem:[%s172 + $0x9e4] sm:$0xf] %v6309
      %7878 = vst [vmem:[%s172 + $0x9e8] sm:$0xf] %v6310
      %7879 = vst [vmem:[%s172 + $0x9ec] sm:$0xf] %v6311
      %7880 = vst [vmem:[%s172 + $0x9f0] sm:$0xf] %v6312
      %7881 = vst [vmem:[%s172 + $0x9f4] sm:$0xf] %v6313
      %7882 = vst [vmem:[%s172 + $0x9f8] sm:$0xf] %v6314
      %7883 = vst [vmem:[%s172 + $0x9fc] sm:$0xf] %v6315
      %7884 = vst [vmem:[%s172 + $0xa00] sm:$0xf] %v6316
      %7885 = vst [vmem:[%s172 + $0xa04] sm:$0xf] %v6317
      %7886 = vst [vmem:[%s172 + $0xa08] sm:$0xf] %v6318
      %7887 = vst [vmem:[%s172 + $0xa0c] sm:$0xf] %v6319
      %7888 = vst [vmem:[%s172 + $0xa10] sm:$0xf] %v6320
      %7889 = vst [vmem:[%s172 + $0xa14] sm:$0xf] %v6321
      %7890 = vst [vmem:[%s172 + $0xa18] sm:$0xf] %v6322
      %7891 = vst [vmem:[%s172 + $0xa1c] sm:$0xf] %v6323
      %7892 = vst [vmem:[%s172 + $0xa20] sm:$0xf] %v6324
      %7893 = vst [vmem:[%s172 + $0xa24] sm:$0xf] %v6325
      %7894 = vst [vmem:[%s172 + $0xa28] sm:$0xf] %v6326
      %7895 = vst [vmem:[%s172 + $0xa2c] sm:$0xf] %v6327
      %7896 = vst [vmem:[%s172 + $0xa30] sm:$0xf] %v6328
      %7897 = vst [vmem:[%s172 + $0xa34] sm:$0xf] %v6329
      %7898 = vst [vmem:[%s172 + $0xa38] sm:$0xf] %v6330
      %7899 = vst [vmem:[%s172 + $0xa3c] sm:$0xf] %v6331
      %7900 = vst [vmem:[%s172 + $0xa40] sm:$0xf] %v6332
      %7901 = vst [vmem:[%s172 + $0xa44] sm:$0xf] %v6333
      %7902 = vst [vmem:[%s172 + $0xa48] sm:$0xf] %v6334
      %7903 = vst [vmem:[%s172 + $0xa4c] sm:$0xf] %v6335
      %7904 = vst [vmem:[%s172 + $0xa50] sm:$0xf] %v6336
      %7905 = vst [vmem:[%s172 + $0xa54] sm:$0xf] %v6337
      %7906 = vst [vmem:[%s172 + $0xa58] sm:$0xf] %v6338
      %7907 = vst [vmem:[%s172 + $0xa5c] sm:$0xf] %v6339
      %7908 = vst [vmem:[%s172 + $0xa60] sm:$0xf] %v6340
      %7909 = vst [vmem:[%s172 + $0xa64] sm:$0xf] %v6341
      %7910 = vst [vmem:[%s172 + $0xa68] sm:$0xf] %v6342
      %7911 = vst [vmem:[%s172 + $0xa6c] sm:$0xf] %v6343
      %7912 = vst [vmem:[%s172 + $0xa70] sm:$0xf] %v6344
      %7913 = vst [vmem:[%s172 + $0xa74] sm:$0xf] %v6345
      %7914 = vst [vmem:[%s172 + $0xa78] sm:$0xf] %v6346
      %7915 = vst [vmem:[%s172 + $0xa7c] sm:$0xf] %v6347
      %7916 = vst [vmem:[%s172 + $0xa80] sm:$0xf] %v6348
      %7917 = vst [vmem:[%s172 + $0xa84] sm:$0xf] %v6349
      %7918 = vst [vmem:[%s172 + $0xa88] sm:$0xf] %v6350
      %7919 = vst [vmem:[%s172 + $0xa8c] sm:$0xf] %v6351
      %7920 = vst [vmem:[%s172 + $0xa90] sm:$0xf] %v6352
      %7921 = vst [vmem:[%s172 + $0xa94] sm:$0xf] %v6353
      %7922 = vst [vmem:[%s172 + $0xa98] sm:$0xf] %v6354
      %7923 = vst [vmem:[%s172 + $0xa9c] sm:$0xf] %v6355
      %7924 = vst [vmem:[%s172 + $0xaa0] sm:$0xf] %v6356
      %7925 = vst [vmem:[%s172 + $0xaa4] sm:$0xf] %v6357
      %7926 = vst [vmem:[%s172 + $0xaa8] sm:$0xf] %v6358
      %7927 = vst [vmem:[%s172 + $0xaac] sm:$0xf] %v6359
      %7928 = vst [vmem:[%s172 + $0xab0] sm:$0xf] %v6360
      %7929 = vst [vmem:[%s172 + $0xab4] sm:$0xf] %v6361
      %7930 = vst [vmem:[%s172 + $0xab8] sm:$0xf] %v6362
      %7931 = vst [vmem:[%s172 + $0xabc] sm:$0xf] %v6363
      %7932 = vst [vmem:[%s172 + $0xac0] sm:$0xf] %v6364
      %7933 = vst [vmem:[%s172 + $0xac4] sm:$0xf] %v6365
      %7934 = vst [vmem:[%s172 + $0xac8] sm:$0xf] %v6366
      %7935 = vst [vmem:[%s172 + $0xacc] sm:$0xf] %v6367
      %7936 = vst [vmem:[%s172 + $0xad0] sm:$0xf] %v6368
      %7937 = vst [vmem:[%s172 + $0xad4] sm:$0xf] %v6369
      %7938 = vst [vmem:[%s172 + $0xad8] sm:$0xf] %v6370
      %7939 = vst [vmem:[%s172 + $0xadc] sm:$0xf] %v6371
      %7940 = vst [vmem:[%s172 + $0xae0] sm:$0xf] %v6372
      %7941 = vst [vmem:[%s172 + $0xae4] sm:$0xf] %v6373
      %7942 = vst [vmem:[%s172 + $0xae8] sm:$0xf] %v6374
      %7943 = vst [vmem:[%s172 + $0xaec] sm:$0xf] %v6375
      %7944 = vst [vmem:[%s172 + $0xaf0] sm:$0xf] %v6376
      %7945 = vst [vmem:[%s172 + $0xaf4] sm:$0xf] %v6377
      %7946 = vst [vmem:[%s172 + $0xaf8] sm:$0xf] %v6378
      %7947 = vst [vmem:[%s172 + $0xafc] sm:$0xf] %v6379
      %7948 = vst [vmem:[%s172 + $0xb00] sm:$0xf] %v6380
      %7949 = vst [vmem:[%s172 + $0xb04] sm:$0xf] %v6381
      %7950 = vst [vmem:[%s172 + $0xb08] sm:$0xf] %v6382
      %7951 = vst [vmem:[%s172 + $0xb0c] sm:$0xf] %v6383
      %7952 = vst [vmem:[%s172 + $0xb10] sm:$0xf] %v6384
      %7953 = vst [vmem:[%s172 + $0xb14] sm:$0xf] %v6385
      %7954 = vst [vmem:[%s172 + $0xb18] sm:$0xf] %v6386
      %7955 = vst [vmem:[%s172 + $0xb1c] sm:$0xf] %v6387
      %7956 = vst [vmem:[%s172 + $0xb20] sm:$0xf] %v6388
      %7957 = vst [vmem:[%s172 + $0xb24] sm:$0xf] %v6389
      %7958 = vst [vmem:[%s172 + $0xb28] sm:$0xf] %v6390
      %7959 = vst [vmem:[%s172 + $0xb2c] sm:$0xf] %v6391
      %7960 = vst [vmem:[%s172 + $0xb30] sm:$0xf] %v6392
      %7961 = vst [vmem:[%s172 + $0xb34] sm:$0xf] %v6393
      %7962 = vst [vmem:[%s172 + $0xb38] sm:$0xf] %v6394
      %7963 = vst [vmem:[%s172 + $0xb3c] sm:$0xf] %v6395
      %7964 = vst [vmem:[%s172 + $0xb40] sm:$0xf] %v6396
      %7965 = vst [vmem:[%s172 + $0xb44] sm:$0xf] %v6397
      %7966 = vst [vmem:[%s172 + $0xb48] sm:$0xf] %v6398
      %7967 = vst [vmem:[%s172 + $0xb4c] sm:$0xf] %v6399
      %7968 = vst [vmem:[%s172 + $0xb50] sm:$0xf] %v6400
      %7969 = vst [vmem:[%s172 + $0xb54] sm:$0xf] %v6401
      %7970 = vst [vmem:[%s172 + $0xb58] sm:$0xf] %v6402
      %7971 = vst [vmem:[%s172 + $0xb5c] sm:$0xf] %v6403
      %7972 = vst [vmem:[%s172 + $0xb60] sm:$0xf] %v6404
      %7973 = vst [vmem:[%s172 + $0xb64] sm:$0xf] %v6405
      %7974 = vst [vmem:[%s172 + $0xb68] sm:$0xf] %v6406
      %7975 = vst [vmem:[%s172 + $0xb6c] sm:$0xf] %v6407
      %7976 = vst [vmem:[%s172 + $0xb70] sm:$0xf] %v6408
      %7977 = vst [vmem:[%s172 + $0xb74] sm:$0xf] %v6409
      %7978 = vst [vmem:[%s172 + $0xb78] sm:$0xf] %v6410
      %7979 = vst [vmem:[%s172 + $0xb7c] sm:$0xf] %v6411
      %7980 = vst [vmem:[%s172 + $0xb80] sm:$0xf] %v6412
      %7981 = vst [vmem:[%s172 + $0xb84] sm:$0xf] %v6413
      %7982 = vst [vmem:[%s172 + $0xb88] sm:$0xf] %v6414
      %7983 = vst [vmem:[%s172 + $0xb8c] sm:$0xf] %v6415
      %7984 = vst [vmem:[%s172 + $0xb90] sm:$0xf] %v6416
      %7985 = vst [vmem:[%s172 + $0xb94] sm:$0xf] %v6417
      %7986 = vst [vmem:[%s172 + $0xb98] sm:$0xf] %v6418
      %7987 = vst [vmem:[%s172 + $0xb9c] sm:$0xf] %v6419
      %7988 = vst [vmem:[%s172 + $0xba0] sm:$0xf] %v6420
      %7989 = vst [vmem:[%s172 + $0xba4] sm:$0xf] %v6421
      %7990 = vst [vmem:[%s172 + $0xba8] sm:$0xf] %v6422
      %7991 = vst [vmem:[%s172 + $0xbac] sm:$0xf] %v6423
      %7992 = vst [vmem:[%s172 + $0xbb0] sm:$0xf] %v6424
      %7993 = vst [vmem:[%s172 + $0xbb4] sm:$0xf] %v6425
      %7994 = vst [vmem:[%s172 + $0xbb8] sm:$0xf] %v6426
      %7995 = vst [vmem:[%s172 + $0xbbc] sm:$0xf] %v6427
      %7996 = vst [vmem:[%s172 + $0xbc0] sm:$0xf] %v6428
      %7997 = vst [vmem:[%s172 + $0xbc4] sm:$0xf] %v6429
      %7998 = vst [vmem:[%s172 + $0xbc8] sm:$0xf] %v6430
      %7999 = vst [vmem:[%s172 + $0xbcc] sm:$0xf] %v6431
      %8000 = vst [vmem:[%s172 + $0xbd0] sm:$0xf] %v6432
      %8001 = vst [vmem:[%s172 + $0xbd4] sm:$0xf] %v6433
      %8002 = vst [vmem:[%s172 + $0xbd8] sm:$0xf] %v6434
      %8003 = vst [vmem:[%s172 + $0xbdc] sm:$0xf] %v6435
      %8004 = vst [vmem:[%s172 + $0xbe0] sm:$0xf] %v6436
      %8005 = vst [vmem:[%s172 + $0xbe4] sm:$0xf] %v6437
      %8006 = vst [vmem:[%s172 + $0xbe8] sm:$0xf] %v6438
      %8007 = vst [vmem:[%s172 + $0xbec] sm:$0xf] %v6439
      %8008 = vst [vmem:[%s172 + $0xbf0] sm:$0xf] %v6440
      %8009 = vst [vmem:[%s172 + $0xbf4] sm:$0xf] %v6441
      %8010 = vst [vmem:[%s172 + $0xbf8] sm:$0xf] %v6442
      %8011 = vst [vmem:[%s172 + $0xbfc] sm:$0xf] %v6443
      %8012 = vst [vmem:[%s172 + $0xc00] sm:$0xf] %v6444
      %8013 = vst [vmem:[%s172 + $0xc04] sm:$0xf] %v6445
      %8014 = vst [vmem:[%s172 + $0xc08] sm:$0xf] %v6446
      %8015 = vst [vmem:[%s172 + $0xc0c] sm:$0xf] %v6447
      %8016 = vst [vmem:[%s172 + $0xc10] sm:$0xf] %v6448
      %8017 = vst [vmem:[%s172 + $0xc14] sm:$0xf] %v6449
      %8018 = vst [vmem:[%s172 + $0xc18] sm:$0xf] %v6450
      %8019 = vst [vmem:[%s172 + $0xc1c] sm:$0xf] %v6451
      %8020 = vst [vmem:[%s172 + $0xc20] sm:$0xf] %v6452
      %8021 = vst [vmem:[%s172 + $0xc24] sm:$0xf] %v6453
      %8022 = vst [vmem:[%s172 + $0xc28] sm:$0xf] %v6454
      %8023 = vst [vmem:[%s172 + $0xc2c] sm:$0xf] %v6455
      %8024 = vst [vmem:[%s172 + $0xc30] sm:$0xf] %v6456
      %8025 = vst [vmem:[%s172 + $0xc34] sm:$0xf] %v6457
      %8026 = vst [vmem:[%s172 + $0xc38] sm:$0xf] %v6458
      %8027 = vst [vmem:[%s172 + $0xc3c] sm:$0xf] %v6459
      %s8028 = smul.u32 784, %s14
      %p8029 = scmp.lt.s32.totalorder %s8028, 1567
      %s8030 = scalar_select %p8029, %s8028, 1567
      %s8031 = smul.addr %s8030, 4
      %s8032 = scalar_lea.vmem %s3, %s8031
      // Predicated region
      $region33: #{_stem.1} parent=31 // pred_check
        %p8033 = pneg %p100
      $region34: #{_stem.1} parent=31 // pred_check_branch
        %8035 = sbr.rel (%p8033) target = $region36
      $region35: #{_stem.1} parent=31 // pred_region
        %s8036 = smul.u32 784, %s14
      $region36: #{_stem.1} parent=31 // pred_fallthru
        _
    $region32: #{_stem.1} parent=5 // pred_fallthru
      _
    %p8037 = scmp.le.s32.totalorder 2, %s9
    // Predicated region
    $region37: #{_stem.1} parent=5 // pred_check
      %p8038 = pneg %p8037
    $region38: #{_stem.1} parent=5 // pred_check_branch
      %8040 = sbr.rel (%p8038) target = $region40
    $region39: #{_stem.1} parent=5 // pred_region
      %s8041 = ssub.s32 %s9, 2
      // Predicated region
      $region41: #{_stem.1} parent=39 // pred_check
        %p8042 = pneg %p106
      $region42: #{_stem.1} parent=39 // pred_check_branch
        %8044 = sbr.rel (%p8042) target = $region44
      $region43: #{_stem.1} parent=39 // pred_region
        %s8045 = smul.u32 784, %s15
        %p8046 = scmp.lt.s32.totalorder %s8045, 1567
        %s8047 = scalar_select %p8046, %s8045, 1567
        %s8048 = smul.addr %s8047, 4
        %s8049 = scalar_lea.vmem %s3, %s8048
      $region44: #{_stem.1} parent=39 // pred_fallthru
        _
    $region40: #{_stem.1} parent=5 // pred_fallthru
      _
  $region6: #{_stem.1} parent=0 // loop_footer
    %s13 = sadd.s32 1, %s9
  $region7: #{_stem.1} parent=0 // loop_footer_branch
    %8 = sbr.rel target = $region3
  $region8: #{_stem.1} parent=0 // loop_exit
    _

</llo_original>
